<compile_context>
chip_gen: v7x
topology: tpu7x:2x2x1
jax: 0.10.0
libtpu: 0.0.40
codegen_flags: <defaults>
</compile_context>

<pallas_src>
import math
import numpy as np
import jax
import jax.numpy as jnp
from jax.experimental import pallas as pl
from jax.experimental.pallas import tpu as pltpu

# ----------------------------- configuration ---------------------------------
M_FOURIER = 1
L_PERIOD = 1.0
LAYERS = [2 + 2 * M_FOURIER, 32, 32, 32, 1]   # layers[0] must equal 2 + 2*M
BLOCK_N = 4096                                 # batch rows per grid step (on lanes)

D_IN = LAYERS[0]
H = LAYERS[1]


# ------------------------------- kernel ---------------------------------------
def modified_mlp_kernel(inp_ref,
                        wE_ref, bE_ref,        # stacked [U; V; Lin0]: (3H, D_IN-1), (3H, 1)
                        w1_ref, b1_ref,
                        w2_ref, b2_ref,
                        wout_ref, bout_ref,
                        out_ref):
    # ----- input encoding: features on sublanes, batch on lanes -----
    t = inp_ref[0:1, :]                        # (1, BN)
    x = inp_ref[1:2, :]                        # (1, BN)
    w = 2.0 * jnp.pi / L_PERIOD
    feats = [t]
    for k in range(1, M_FOURIER + 1):
        feats.append(jnp.cos(k * w * x))
    for k in range(1, M_FOURIER + 1):
        feats.append(jnp.sin(k * w * x))
    # The constant-1 encoder feature is folded into bE in the wrapper, so only
    # D_IN-1 broadcast FMAs remain.  No concat is ever materialized.

    # ----- single stacked pass: gating pre-acts (2H rows) + first Linear (H rows)
    wE = wE_ref[...]                           # (3H, D_IN-1)
    acc = bE_ref[...]                          # (3H, 1) -> broadcasts over lanes
    for j, f in enumerate(feats):
        acc = acc + wE[:, j:j + 1] * f         # (3H,1)*(1,BN) broadcast FMA (VPU)

    uv = jnp.tanh(acc[:2 * H, :])              # (2H, BN), native EUP tanh
    u = uv[:H, :]
    v = uv[H:, :]
    d = u - v                                  # mix(o) = v + o*(u - v)

    def mix(o):
        return v + o * d                       # single FMA per element

    # ----- first hidden Linear (already computed in the stacked pass) -----
    out = acc[2 * H:, :]                       # (H, BN)
    out = mix(out)                             # after the Linear module
    out = mix(jnp.tanh(out))                   # after the activation module

    # ----- remaining hidden Linears (K = H, MXU) -----
    for w_ref, b_ref in ((w1_ref, b1_ref), (w2_ref, b2_ref)):
        out = jnp.dot(w_ref[...], out, preferred_element_type=jnp.float32) + b_ref[...]
        out = mix(out)                         # after the Linear module
        out = mix(jnp.tanh(out))               # after the activation module

    # ----- final Linear (layer_list[-1]) — lane-dense (1, BN) store -----
    out_ref[...] = (jnp.dot(wout_ref[...], out, preferred_element_type=jnp.float32)
                    + bout_ref[...]).astype(out_ref.dtype)


# ------------------------------ wrappers ---------------------------------------
def _pack_params(params):
    """params: [(W,b)] with W:(in_f,out_f), b:(1,out_f) for [U, V, Lin0, Lin1, Lin2, Lin_out].
    Returns the transposed / stacked / constant-folded parameter list."""
    (wU, bU), (wV, bV), (w0, b0), (w1, b1), (w2, b2), (wo, bo) = params

    # Stack [U; V; Lin0] -> (3H, D_IN) in (out_f, in_f) layout.
    wE_full = jnp.concatenate([wU.T, wV.T, w0.T], axis=0)       # (3H, D_IN)
    bE = jnp.concatenate([bU, bV, b0], axis=1).T                # (3H, 1)
    # Fold the constant-1 encoder feature (column 1 of enc) into the bias,
    # then drop that column.  Exactly equivalent algebra.
    bE = bE + wE_full[:, 1:2]
    wE = jnp.concatenate([wE_full[:, 0:1], wE_full[:, 2:]], axis=1)  # (3H, D_IN-1)

    return [wE, bE,
            w1.T, b1.T,
            w2.T, b2.T,
            wo.T, bo.T]


def modified_mlp_forward_tn(inp_tn, params, block_n=BLOCK_N):
    """Primary (layout-friendly) entry point.
    inp_tn: (2, N) with row 0 = t, row 1 = x (batch on lanes).
    Returns (1, N).  No HBM transposes around the kernel."""
    N = inp_tn.shape[1]
    assert block_n % 128 == 0, "block_n must be a multiple of 128 (lane width)"
    assert N % block_n == 0, "pad batch to a multiple of block_n"
    grid = (N // block_n,)   # keep >= 2 steps when possible (v7x has 2 TCs)

    flat = _pack_params(params)

    in_specs = [pl.BlockSpec((2, block_n), lambda i: (0, i))]
    for a in flat:
        in_specs.append(pl.BlockSpec(a.shape, lambda i: (0, 0)))  # VMEM-resident, no re-DMA

    param_bytes = int(sum(a.size * a.dtype.itemsize for a in flat))
    cost = pl.CostEstimate(
        flops=5200 * N,                 # encoder FMAs + mix chain + 32x32 matmuls
        transcendentals=162 * N,        # 160 tanh rows + cos + sin per element
        bytes_accessed=12 * N + param_bytes,
    )

    out_tn = pl.pallas_call(
        modified_mlp_kernel,
        out_shape=jax.ShapeDtypeStruct((LAYERS[-1], N), jnp.float32),
        grid=grid,
        in_specs=in_specs,
        out_specs=pl.BlockSpec((LAYERS[-1], block_n), lambda i: (0, i)),
        compiler_params=pltpu.CompilerParams(
            dimension_semantics=("parallel",),
            vmem_limit_bytes=48 * 1024 * 1024,   # headroom for large blocks, fits v7x 64 MiB
        ),
        cost_estimate=cost,
    )(inp_tn, *flat)

    return out_tn                                      # (1, N)


def modified_mlp_forward(inp, params, block_n=BLOCK_N):
    """Compatibility wrapper matching the PyTorch module signature:
    inp: (N, 2) -> (N, 1).  Prefer modified_mlp_forward_tn to avoid the
    HBM transposes on either side of the kernel."""
    return modified_mlp_forward_tn(inp.T, params, block_n=block_n).T


# --------------------------- parameter setup ----------------------------------
def xavier_uniform(key, fan_in, fan_out):
    limit = math.sqrt(6.0 / (fan_in + fan_out))
    return jax.random.uniform(key, (fan_in, fan_out), jnp.float32, -limit, limit)


def init_params(key):
    keys = jax.random.split(key, 6)
    params = []
    # layer_U, layer_V
    params.append((xavier_uniform(keys[0], LAYERS[0], LAYERS[1]), jnp.zeros((1, LAYERS[1]), jnp.float32)))
    params.append((xavier_uniform(keys[1], LAYERS[0], LAYERS[1]), jnp.zeros((1, LAYERS[1]), jnp.float32)))
    # hidden Linears layer_list[0], [2], [4]
    params.append((xavier_uniform(keys[2], LAYERS[0], LAYERS[1]), jnp.zeros((1, LAYERS[1]), jnp.float32)))
    params.append((xavier_uniform(keys[3], LAYERS[1], LAYERS[2]), jnp.zeros((1, LAYERS[2]), jnp.float32)))
    params.append((xavier_uniform(keys[4], LAYERS[2], LAYERS[3]), jnp.zeros((1, LAYERS[3]), jnp.float32)))
    # final Linear layer_list[-1]
    params.append((xavier_uniform(keys[5], LAYERS[3], LAYERS[4]), jnp.zeros((1, LAYERS[4]), jnp.float32)))
    return params


# ------------------------- pure-JAX reference ---------------------------------
def reference_forward(inp, params):
    (wU, bU), (wV, bV), (w0, b0), (w1, b1), (w2, b2), (wo, bo) = params
    t, x = inp[:, 0:1], inp[:, 1:2]
    w = 2.0 * jnp.pi / L_PERIOD
    k = jnp.arange(1, M_FOURIER + 1, dtype=jnp.float32)
    enc = jnp.concatenate([t, jnp.ones_like(t), jnp.cos(k * w * x), jnp.sin(k * w * x)], -1)
    u = jnp.tanh(enc @ wU + bU)
    v = jnp.tanh(enc @ wV + bV)
    mix = lambda o: o * u + (1.0 - o) * v
    out = enc
    for W, b in ((w0, b0), (w1, b1), (w2, b2)):
        out = mix(out @ W + b)          # after the Linear module
        out = mix(jnp.tanh(out))        # after the activation module
    return out @ wo + bo


# --------------------------------- main ----------------------------------------
if __name__ == "__main__":
    key = jax.random.PRNGKey(0)
    k_inp, k_par = jax.random.split(key)

    N = 2 * BLOCK_N          # >= 2 grid steps so both v7x TensorCores get work
    # Lane-dense input layout: row 0 = t, row 1 = x (no HBM transpose needed).
    inp_tn = jax.random.normal(k_inp, (2, N), dtype=jnp.float32)
    params = init_params(k_par)

    out_tn = modified_mlp_forward_tn(inp_tn, params, block_n=BLOCK_N)   # (1, N)
    out_tn = jax.block_until_ready(out_tn)

    ref = reference_forward(inp_tn.T, params)                           # (N, 1)
    np.testing.assert_allclose(np.asarray(out_tn), np.asarray(ref.T), rtol=2e-5, atol=2e-5)

    print("KERNEL_OK")
</pallas_src>

<mosaic_0001>
module attributes {stable_mosaic.version = 11 : i64} {
  func.func @modified_mlp_kernel(%arg0: i32, %arg1: memref<2x4096xf32, #tpu.memory_space<vmem>>, %arg2: memref<96x3xf32, #tpu.memory_space<vmem>>, %arg3: memref<96x1xf32, #tpu.memory_space<vmem>>, %arg4: memref<32x32xf32, #tpu.memory_space<vmem>>, %arg5: memref<32x1xf32, #tpu.memory_space<vmem>>, %arg6: memref<32x32xf32, #tpu.memory_space<vmem>>, %arg7: memref<32x1xf32, #tpu.memory_space<vmem>>, %arg8: memref<1x32xf32, #tpu.memory_space<vmem>>, %arg9: memref<1x1xf32, #tpu.memory_space<vmem>>, %arg10: memref<1x4096xf32, #tpu.memory_space<vmem>>) attributes {dimension_semantics = [#tpu.dimension_semantics<parallel>], iteration_bounds = array<i64: 2>, scalar_prefetch = 0 : i64, scratch_operands = 0 : i64, tpu.core_type = #tpu.core_type<tc>, window_params = [{transform_indices = @transform_0, window_bounds = array<i64: 2, 4096>}, {pipeline_mode = #tpu.pipeline_mode<synchronous>, transform_indices = @transform_1, window_bounds = array<i64: 96, 3>}, {pipeline_mode = #tpu.pipeline_mode<synchronous>, transform_indices = @transform_2, window_bounds = array<i64: 96, 1>}, {pipeline_mode = #tpu.pipeline_mode<synchronous>, transform_indices = @transform_3, window_bounds = array<i64: 32, 32>}, {pipeline_mode = #tpu.pipeline_mode<synchronous>, transform_indices = @transform_4, window_bounds = array<i64: 32, 1>}, {pipeline_mode = #tpu.pipeline_mode<synchronous>, transform_indices = @transform_5, window_bounds = array<i64: 32, 32>}, {pipeline_mode = #tpu.pipeline_mode<synchronous>, transform_indices = @transform_6, window_bounds = array<i64: 32, 1>}, {pipeline_mode = #tpu.pipeline_mode<synchronous>, transform_indices = @transform_7, window_bounds = array<i64: 1, 32>}, {pipeline_mode = #tpu.pipeline_mode<synchronous>, transform_indices = @transform_8, window_bounds = array<i64: 1, 1>}, {transform_indices = @transform_9, window_bounds = array<i64: 1, 4096>}]} {
    %c0 = arith.constant 0 : index
    %c0_0 = arith.constant 0 : index
    %0 = vector.load %arg1[%c0, %c0_0] : memref<2x4096xf32, #tpu.memory_space<vmem>>, vector<1x4096xf32>
    %c1 = arith.constant 1 : index
    %c0_1 = arith.constant 0 : index
    %1 = vector.load %arg1[%c1, %c0_1] : memref<2x4096xf32, #tpu.memory_space<vmem>>, vector<1x4096xf32>
    %cst = arith.constant 6.28318548 : f32
    %2 = vector.broadcast %cst : f32 to vector<1x4096xf32>
    %3 = arith.mulf %2, %1 : vector<1x4096xf32>
    %4 = math.cos %3 : vector<1x4096xf32>
    %cst_2 = arith.constant 6.28318548 : f32
    %5 = vector.broadcast %cst_2 : f32 to vector<1x4096xf32>
    %6 = arith.mulf %5, %1 : vector<1x4096xf32>
    %7 = math.sin %6 : vector<1x4096xf32>
    %c0_3 = arith.constant 0 : index
    %c0_4 = arith.constant 0 : index
    %8 = vector.load %arg2[%c0_3, %c0_4] : memref<96x3xf32, #tpu.memory_space<vmem>>, vector<96x3xf32>
    %c0_5 = arith.constant 0 : index
    %c0_6 = arith.constant 0 : index
    %9 = vector.load %arg3[%c0_5, %c0_6] : memref<96x1xf32, #tpu.memory_space<vmem>>, vector<96x1xf32>
    %10 = vector.extract_strided_slice %8 {offsets = [0, 0], sizes = [96, 1], strides = [1, 1]} : vector<96x3xf32> to vector<96x1xf32>
    %11 = vector.broadcast %10 : vector<96x1xf32> to vector<96x4096xf32>
    %12 = vector.broadcast %0 : vector<1x4096xf32> to vector<96x4096xf32>
    %13 = arith.mulf %11, %12 : vector<96x4096xf32>
    %14 = vector.broadcast %9 : vector<96x1xf32> to vector<96x4096xf32>
    %15 = arith.addf %14, %13 : vector<96x4096xf32>
    %16 = vector.extract_strided_slice %8 {offsets = [0, 1], sizes = [96, 1], strides = [1, 1]} : vector<96x3xf32> to vector<96x1xf32>
    %17 = vector.broadcast %16 : vector<96x1xf32> to vector<96x4096xf32>
    %18 = vector.broadcast %4 : vector<1x4096xf32> to vector<96x4096xf32>
    %19 = arith.mulf %17, %18 : vector<96x4096xf32>
    %20 = arith.addf %15, %19 : vector<96x4096xf32>
    %21 = vector.extract_strided_slice %8 {offsets = [0, 2], sizes = [96, 1], strides = [1, 1]} : vector<96x3xf32> to vector<96x1xf32>
    %22 = vector.broadcast %21 : vector<96x1xf32> to vector<96x4096xf32>
    %23 = vector.broadcast %7 : vector<1x4096xf32> to vector<96x4096xf32>
    %24 = arith.mulf %22, %23 : vector<96x4096xf32>
    %25 = arith.addf %20, %24 : vector<96x4096xf32>
    %26 = vector.extract_strided_slice %25 {offsets = [0, 0], sizes = [64, 4096], strides = [1, 1]} : vector<96x4096xf32> to vector<64x4096xf32>
    %27 = math.tanh %26 : vector<64x4096xf32>
    %28 = vector.extract_strided_slice %27 {offsets = [0, 0], sizes = [32, 4096], strides = [1, 1]} : vector<64x4096xf32> to vector<32x4096xf32>
    %29 = vector.extract_strided_slice %27 {offsets = [32, 0], sizes = [32, 4096], strides = [1, 1]} : vector<64x4096xf32> to vector<32x4096xf32>
    %30 = arith.subf %28, %29 : vector<32x4096xf32>
    %31 = vector.extract_strided_slice %25 {offsets = [64, 0], sizes = [32, 4096], strides = [1, 1]} : vector<96x4096xf32> to vector<32x4096xf32>
    %32 = arith.mulf %31, %30 : vector<32x4096xf32>
    %33 = arith.addf %29, %32 : vector<32x4096xf32>
    %34 = math.tanh %33 : vector<32x4096xf32>
    %35 = arith.mulf %34, %30 : vector<32x4096xf32>
    %36 = arith.addf %29, %35 : vector<32x4096xf32>
    %c0_7 = arith.constant 0 : index
    %c0_8 = arith.constant 0 : index
    %37 = vector.load %arg4[%c0_7, %c0_8] : memref<32x32xf32, #tpu.memory_space<vmem>>, vector<32x32xf32>
    %cst_9 = arith.constant dense<0.000000e+00> : vector<32x4096xf32>
    %38 = tpu.matmul %37, %36, %cst_9 {dimension_numbers = #tpu.dot_dimension_numbers<[1], [0], [0], [1], [0, 0, 1, 1], [], []>} : vector<32x32xf32>, vector<32x4096xf32>, vector<32x4096xf32> -> vector<32x4096xf32>
    %c0_10 = arith.constant 0 : index
    %c0_11 = arith.constant 0 : index
    %39 = vector.load %arg5[%c0_10, %c0_11] : memref<32x1xf32, #tpu.memory_space<vmem>>, vector<32x1xf32>
    %40 = vector.broadcast %39 : vector<32x1xf32> to vector<32x4096xf32>
    %41 = arith.addf %38, %40 : vector<32x4096xf32>
    %42 = arith.mulf %41, %30 : vector<32x4096xf32>
    %43 = arith.addf %29, %42 : vector<32x4096xf32>
    %44 = math.tanh %43 : vector<32x4096xf32>
    %45 = arith.mulf %44, %30 : vector<32x4096xf32>
    %46 = arith.addf %29, %45 : vector<32x4096xf32>
    %c0_12 = arith.constant 0 : index
    %c0_13 = arith.constant 0 : index
    %47 = vector.load %arg6[%c0_12, %c0_13] : memref<32x32xf32, #tpu.memory_space<vmem>>, vector<32x32xf32>
    %cst_14 = arith.constant dense<0.000000e+00> : vector<32x4096xf32>
    %48 = tpu.matmul %47, %46, %cst_14 {dimension_numbers = #tpu.dot_dimension_numbers<[1], [0], [0], [1], [0, 0, 1, 1], [], []>} : vector<32x32xf32>, vector<32x4096xf32>, vector<32x4096xf32> -> vector<32x4096xf32>
    %c0_15 = arith.constant 0 : index
    %c0_16 = arith.constant 0 : index
    %49 = vector.load %arg7[%c0_15, %c0_16] : memref<32x1xf32, #tpu.memory_space<vmem>>, vector<32x1xf32>
    %50 = vector.broadcast %49 : vector<32x1xf32> to vector<32x4096xf32>
    %51 = arith.addf %48, %50 : vector<32x4096xf32>
    %52 = arith.mulf %51, %30 : vector<32x4096xf32>
    %53 = arith.addf %29, %52 : vector<32x4096xf32>
    %54 = math.tanh %53 : vector<32x4096xf32>
    %55 = arith.mulf %54, %30 : vector<32x4096xf32>
    %56 = arith.addf %29, %55 : vector<32x4096xf32>
    %c0_17 = arith.constant 0 : index
    %c0_18 = arith.constant 0 : index
    %57 = vector.load %arg8[%c0_17, %c0_18] : memref<1x32xf32, #tpu.memory_space<vmem>>, vector<1x32xf32>
    %cst_19 = arith.constant dense<0.000000e+00> : vector<1x4096xf32>
    %58 = tpu.matmul %57, %56, %cst_19 {dimension_numbers = #tpu.dot_dimension_numbers<[1], [0], [0], [1], [0, 0, 1, 1], [], []>} : vector<1x32xf32>, vector<32x4096xf32>, vector<1x4096xf32> -> vector<1x4096xf32>
    %c0_20 = arith.constant 0 : index
    %c0_21 = arith.constant 0 : index
    %59 = vector.load %arg9[%c0_20, %c0_21] : memref<1x1xf32, #tpu.memory_space<vmem>>, vector<1x1xf32>
    %60 = vector.broadcast %59 : vector<1x1xf32> to vector<1x4096xf32>
    %61 = arith.addf %58, %60 : vector<1x4096xf32>
    %c0_22 = arith.constant 0 : index
    %c0_23 = arith.constant 0 : index
    %62 = vector.load %arg10[%c0_22, %c0_23] : memref<1x4096xf32, #tpu.memory_space<vmem>>, vector<1x4096xf32>
    tpu.vector_store %arg10[%c0_22, %c0_23], %61 {strides = array<i32>} : memref<1x4096xf32, #tpu.memory_space<vmem>>, vector<1x4096xf32>,
    return
  }
  func.func @transform_0(%arg0: i32) -> (i32, i32) {
    %c0_i32 = arith.constant 0 : i32
    %c0_i32_0 = arith.constant 0 : i32
    return %c0_i32, %arg0 : i32, i32
  }
  func.func @transform_1(%arg0: i32) -> (i32, i32) {
    %c0_i32 = arith.constant 0 : i32
    %c0_i32_0 = arith.constant 0 : i32
    %c0_i32_1 = arith.constant 0 : i32
    return %c0_i32, %c0_i32_0 : i32, i32
  }
  func.func @transform_2(%arg0: i32) -> (i32, i32) {
    %c0_i32 = arith.constant 0 : i32
    %c0_i32_0 = arith.constant 0 : i32
    %c0_i32_1 = arith.constant 0 : i32
    return %c0_i32, %c0_i32_0 : i32, i32
  }
  func.func @transform_3(%arg0: i32) -> (i32, i32) {
    %c0_i32 = arith.constant 0 : i32
    %c0_i32_0 = arith.constant 0 : i32
    %c0_i32_1 = arith.constant 0 : i32
    return %c0_i32, %c0_i32_0 : i32, i32
  }
  func.func @transform_4(%arg0: i32) -> (i32, i32) {
    %c0_i32 = arith.constant 0 : i32
    %c0_i32_0 = arith.constant 0 : i32
    %c0_i32_1 = arith.constant 0 : i32
    return %c0_i32, %c0_i32_0 : i32, i32
  }
  func.func @transform_5(%arg0: i32) -> (i32, i32) {
    %c0_i32 = arith.constant 0 : i32
    %c0_i32_0 = arith.constant 0 : i32
    %c0_i32_1 = arith.constant 0 : i32
    return %c0_i32, %c0_i32_0 : i32, i32
  }
  func.func @transform_6(%arg0: i32) -> (i32, i32) {
    %c0_i32 = arith.constant 0 : i32
    %c0_i32_0 = arith.constant 0 : i32
    %c0_i32_1 = arith.constant 0 : i32
    return %c0_i32, %c0_i32_0 : i32, i32
  }
  func.func @transform_7(%arg0: i32) -> (i32, i32) {
    %c0_i32 = arith.constant 0 : i32
    %c0_i32_0 = arith.constant 0 : i32
    %c0_i32_1 = arith.constant 0 : i32
    return %c0_i32, %c0_i32_0 : i32, i32
  }
  func.func @transform_8(%arg0: i32) -> (i32, i32) {
    %c0_i32 = arith.constant 0 : i32
    %c0_i32_0 = arith.constant 0 : i32
    %c0_i32_1 = arith.constant 0 : i32
    return %c0_i32, %c0_i32_0 : i32, i32
  }
  func.func @transform_9(%arg0: i32) -> (i32, i32) {
    %c0_i32 = arith.constant 0 : i32
    %c0_i32_0 = arith.constant 0 : i32
    return %c0_i32, %arg0 : i32, i32
  }
}

</mosaic_0001>

<llo_original>
// kernel: tpu_custom_call.1
$region0: #{tpu_custom_call.1}
  #allocation0 [shape = 'u32[]', space=smem, size = 0x4, offset = 0x4, fixed_abs, tag = 'smem constant byte address 0x4 - core index']
  #allocation1 [shape = 'u32[144,128]{1,0:T(1,128)}', space=vmem, size = 0x12000, scoped, tag = 'internal scratch']
  #allocation2 [shape = 'f32[1,1]{1,0:T(1,128)S(1)}', space=vmem, size = 0x200, scoped, tag = 'scoped memory for tpu_custom_call.1']
  %s0 = inlined_call_operand.vmem [shape: f32[2,8192], index: 0, kind: input, shape index: {}]
  %s1 = inlined_call_operand.vmem [shape: f32[96,3], index: 1, kind: input, shape index: {}]
  %s2 = inlined_call_operand.vmem [shape: f32[96,1], index: 2, kind: input, shape index: {}]
  %s3 = inlined_call_operand.vmem [shape: f32[32,32], index: 3, kind: input, shape index: {}]
  %s4 = inlined_call_operand.vmem [shape: f32[32,1], index: 4, kind: input, shape index: {}]
  %s5 = inlined_call_operand.vmem [shape: f32[32,32], index: 5, kind: input, shape index: {}]
  %s6 = inlined_call_operand.vmem [shape: f32[32,1], index: 6, kind: input, shape index: {}]
  %s7 = inlined_call_operand.vmem [shape: f32[1,32], index: 7, kind: input, shape index: {}]
  %s8 = inlined_call_operand.<no memory space> [shape: f32[1,1], index: 8, kind: input, shape index: {}]
  %s9 = inlined_call_operand.hbm [shape: f32[1,8192], index: 9, kind: output, shape index: {}]
  %s10 = sld [smem:[#allocation0]]
  $region69: #{tpu_custom_call.1} parent=0
    _
  %s12 = ssub.s32 1, %s10
  %s13 = scalar_select 0, %s12, %s10
  %v14 = vstv %s8
  %15 = vst [vmem:[#allocation2] sm:$0x1] %v14
  $region1: #{tpu_custom_call.1} parent=0
    #allocation3 [shape = 'u8[32768]{0}', space=vmem, size = 0x8000, scoped, tag = 'output window, operand 0']
    #allocation4 [shape = 's32[2]{0}', space=sflag, size = 0x8, scoped, tag = 'scoped memory for tpu_custom_call.1']
    %16 = vsyncpa [#allocation4], 0
    %s17 = scalar_lea.sflag [#allocation4], 1
    %18 = vsyncpa %s17, 0
    loop: start=0, step=1, limit=4
    $region2: #{tpu_custom_call.1} parent=1 // loop_pre_header
      _
    $region3: #{tpu_custom_call.1} parent=1 // loop_header
      %s20 = sphi 0, %s24
      %p21 = scmp.ge.s32.totalorder %s20, 4
      %s30 = sphi 0, %s32
      %s33 = sphi 0, %s30
      %s34 = sphi 0, %s33
      %s50 = sphi 0, %s34
      %s54 = sphi 0, %s54
      %s56 = sphi 0, %s54
      %s57 = sphi 0, %s56
      %s71 = sphi 0, %s57
      %s75 = sphi 0, %s75
      %s77 = sphi 0, %s75
      %s78 = sphi 0, %s77
      %s92 = sphi 0, %s78
      %s96 = sphi 0, %s96
      %s98 = sphi 0, %s96
      %s99 = sphi 0, %s98
      %s113 = sphi 0, %s99
      %s117 = sphi 0, %s117
      %s119 = sphi 0, %s117
      %s120 = sphi 0, %s119
      %s134 = sphi 0, %s120
      %s138 = sphi 0, %s138
      %s140 = sphi 0, %s138
      %s141 = sphi 0, %s140
      %s155 = sphi 0, %s141
      %s159 = sphi 0, %s159
      %s161 = sphi 0, %s159
      %s162 = sphi 0, %s161
      %s176 = sphi 0, %s162
      %s180 = sphi 0, %s180
      %s182 = sphi 0, %s180
      %s183 = sphi 0, %s182
      %s197 = sphi 0, %s183
      %s201 = sphi 0, %s201
      %s203 = sphi 0, %s201
      %s204 = sphi 0, %s203
      %s218 = sphi 0, %s204
      %s224 = sphi 0, %s226
      %s227 = sphi 0, %s224
      %s228 = sphi 0, %s227
      %s244 = sphi 0, %s228
    $region4: #{tpu_custom_call.1} parent=1 // loop_header_branch
      %23 = sbr.rel (%p21) target = $region8
    $region5: #{tpu_custom_call.1} parent=1 // loop_body
      %s25 = ssub.s32 %s20, 1
      %s26 = ssub.s32 %s20, 2
      %s27 = sadd.s32 %s20, 1
      %s28 = ssub.s32 %s20, %s27
      %p29 = scmp.eq.s32.totalorder %s28, 0
      %s31 = sadd.s32 %s30, 1
      %s32 = scalar_select %p29, %s30, %s31
      %p35 = pneg %p29
      %p36 = scmp.eq.s32.totalorder %s20, 1
      %p37 = por %p35, %p36
      %p38 = scmp.ne.s32.totalorder %s30, %s33
      %p39 = scmp.eq.s32.totalorder %s20, 0
      %p40 = por %p38, %p39
      %p41 = scmp.ne.s32.totalorder %s30, %s33
      %p42 = scmp.eq.s32.totalorder %s25, 1
      %p43 = por %p41, %p42
      %p44 = scmp.ne.s32.totalorder %s33, %s34
      %p45 = scmp.eq.s32.totalorder %s25, 0
      %p46 = por %p44, %p45
      %p47 = scmp.ne.s32.totalorder %s33, %s34
      %p48 = scmp.eq.s32.totalorder %s26, 1
      %p49 = por %p47, %p48
      %p51 = scmp.ne.s32.totalorder %s34, %s50
      %p52 = scmp.eq.s32.totalorder %s26, 0
      %p53 = por %p51, %p52
      %s55 = sadd.s32 %s54, 1
      %p58 = scmp.eq.s32.totalorder %s20, 1
      %p59 = scmp.ne.s32.totalorder %s54, %s56
      %p60 = scmp.eq.s32.totalorder %s20, 0
      %p61 = por %p59, %p60
      %p62 = scmp.ne.s32.totalorder %s54, %s56
      %p63 = scmp.eq.s32.totalorder %s25, 1
      %p64 = por %p62, %p63
      %p65 = scmp.ne.s32.totalorder %s56, %s57
      %p66 = scmp.eq.s32.totalorder %s25, 0
      %p67 = por %p65, %p66
      %p68 = scmp.ne.s32.totalorder %s56, %s57
      %p69 = scmp.eq.s32.totalorder %s26, 1
      %p70 = por %p68, %p69
      %p72 = scmp.ne.s32.totalorder %s57, %s71
      %p73 = scmp.eq.s32.totalorder %s26, 0
      %p74 = por %p72, %p73
      %s76 = sadd.s32 %s75, 1
      %p79 = scmp.eq.s32.totalorder %s20, 1
      %p80 = scmp.ne.s32.totalorder %s75, %s77
      %p81 = scmp.eq.s32.totalorder %s20, 0
      %p82 = por %p80, %p81
      %p83 = scmp.ne.s32.totalorder %s75, %s77
      %p84 = scmp.eq.s32.totalorder %s25, 1
      %p85 = por %p83, %p84
      %p86 = scmp.ne.s32.totalorder %s77, %s78
      %p87 = scmp.eq.s32.totalorder %s25, 0
      %p88 = por %p86, %p87
      %p89 = scmp.ne.s32.totalorder %s77, %s78
      %p90 = scmp.eq.s32.totalorder %s26, 1
      %p91 = por %p89, %p90
      %p93 = scmp.ne.s32.totalorder %s78, %s92
      %p94 = scmp.eq.s32.totalorder %s26, 0
      %p95 = por %p93, %p94
      %s97 = sadd.s32 %s96, 1
      %p100 = scmp.eq.s32.totalorder %s20, 1
      %p101 = scmp.ne.s32.totalorder %s96, %s98
      %p102 = scmp.eq.s32.totalorder %s20, 0
      %p103 = por %p101, %p102
      %p104 = scmp.ne.s32.totalorder %s96, %s98
      %p105 = scmp.eq.s32.totalorder %s25, 1
      %p106 = por %p104, %p105
      %p107 = scmp.ne.s32.totalorder %s98, %s99
      %p108 = scmp.eq.s32.totalorder %s25, 0
      %p109 = por %p107, %p108
      %p110 = scmp.ne.s32.totalorder %s98, %s99
      %p111 = scmp.eq.s32.totalorder %s26, 1
      %p112 = por %p110, %p111
      %p114 = scmp.ne.s32.totalorder %s99, %s113
      %p115 = scmp.eq.s32.totalorder %s26, 0
      %p116 = por %p114, %p115
      %s118 = sadd.s32 %s117, 1
      %p121 = scmp.eq.s32.totalorder %s20, 1
      %p122 = scmp.ne.s32.totalorder %s117, %s119
      %p123 = scmp.eq.s32.totalorder %s20, 0
      %p124 = por %p122, %p123
      %p125 = scmp.ne.s32.totalorder %s117, %s119
      %p126 = scmp.eq.s32.totalorder %s25, 1
      %p127 = por %p125, %p126
      %p128 = scmp.ne.s32.totalorder %s119, %s120
      %p129 = scmp.eq.s32.totalorder %s25, 0
      %p130 = por %p128, %p129
      %p131 = scmp.ne.s32.totalorder %s119, %s120
      %p132 = scmp.eq.s32.totalorder %s26, 1
      %p133 = por %p131, %p132
      %p135 = scmp.ne.s32.totalorder %s120, %s134
      %p136 = scmp.eq.s32.totalorder %s26, 0
      %p137 = por %p135, %p136
      %s139 = sadd.s32 %s138, 1
      %p142 = scmp.eq.s32.totalorder %s20, 1
      %p143 = scmp.ne.s32.totalorder %s138, %s140
      %p144 = scmp.eq.s32.totalorder %s20, 0
      %p145 = por %p143, %p144
      %p146 = scmp.ne.s32.totalorder %s138, %s140
      %p147 = scmp.eq.s32.totalorder %s25, 1
      %p148 = por %p146, %p147
      %p149 = scmp.ne.s32.totalorder %s140, %s141
      %p150 = scmp.eq.s32.totalorder %s25, 0
      %p151 = por %p149, %p150
      %p152 = scmp.ne.s32.totalorder %s140, %s141
      %p153 = scmp.eq.s32.totalorder %s26, 1
      %p154 = por %p152, %p153
      %p156 = scmp.ne.s32.totalorder %s141, %s155
      %p157 = scmp.eq.s32.totalorder %s26, 0
      %p158 = por %p156, %p157
      %s160 = sadd.s32 %s159, 1
      %p163 = scmp.eq.s32.totalorder %s20, 1
      %p164 = scmp.ne.s32.totalorder %s159, %s161
      %p165 = scmp.eq.s32.totalorder %s20, 0
      %p166 = por %p164, %p165
      %p167 = scmp.ne.s32.totalorder %s159, %s161
      %p168 = scmp.eq.s32.totalorder %s25, 1
      %p169 = por %p167, %p168
      %p170 = scmp.ne.s32.totalorder %s161, %s162
      %p171 = scmp.eq.s32.totalorder %s25, 0
      %p172 = por %p170, %p171
      %p173 = scmp.ne.s32.totalorder %s161, %s162
      %p174 = scmp.eq.s32.totalorder %s26, 1
      %p175 = por %p173, %p174
      %p177 = scmp.ne.s32.totalorder %s162, %s176
      %p178 = scmp.eq.s32.totalorder %s26, 0
      %p179 = por %p177, %p178
      %s181 = sadd.s32 %s180, 1
      %p184 = scmp.eq.s32.totalorder %s20, 1
      %p185 = scmp.ne.s32.totalorder %s180, %s182
      %p186 = scmp.eq.s32.totalorder %s20, 0
      %p187 = por %p185, %p186
      %p188 = scmp.ne.s32.totalorder %s180, %s182
      %p189 = scmp.eq.s32.totalorder %s25, 1
      %p190 = por %p188, %p189
      %p191 = scmp.ne.s32.totalorder %s182, %s183
      %p192 = scmp.eq.s32.totalorder %s25, 0
      %p193 = por %p191, %p192
      %p194 = scmp.ne.s32.totalorder %s182, %s183
      %p195 = scmp.eq.s32.totalorder %s26, 1
      %p196 = por %p194, %p195
      %p198 = scmp.ne.s32.totalorder %s183, %s197
      %p199 = scmp.eq.s32.totalorder %s26, 0
      %p200 = por %p198, %p199
      %s202 = sadd.s32 %s201, 1
      %p205 = scmp.eq.s32.totalorder %s20, 1
      %p206 = scmp.ne.s32.totalorder %s201, %s203
      %p207 = scmp.eq.s32.totalorder %s20, 0
      %p208 = por %p206, %p207
      %p209 = scmp.ne.s32.totalorder %s201, %s203
      %p210 = scmp.eq.s32.totalorder %s25, 1
      %p211 = por %p209, %p210
      %p212 = scmp.ne.s32.totalorder %s203, %s204
      %p213 = scmp.eq.s32.totalorder %s25, 0
      %p214 = por %p212, %p213
      %p215 = scmp.ne.s32.totalorder %s203, %s204
      %p216 = scmp.eq.s32.totalorder %s26, 1
      %p217 = por %p215, %p216
      %p219 = scmp.ne.s32.totalorder %s204, %s218
      %p220 = scmp.eq.s32.totalorder %s26, 0
      %p221 = por %p219, %p220
      %s222 = ssub.s32 %s20, %s27
      %p223 = scmp.eq.s32.totalorder %s222, 0
      %s225 = sadd.s32 %s224, 1
      %s226 = scalar_select %p223, %s224, %s225
      %p229 = pneg %p223
      %p230 = scmp.eq.s32.totalorder %s20, 1
      %p231 = por %p229, %p230
      %p232 = scmp.ne.s32.totalorder %s224, %s227
      %p233 = scmp.eq.s32.totalorder %s20, 0
      %p234 = por %p232, %p233
      %p235 = scmp.ne.s32.totalorder %s224, %s227
      %p236 = scmp.eq.s32.totalorder %s25, 1
      %p237 = por %p235, %p236
      %p238 = scmp.ne.s32.totalorder %s227, %s228
      %p239 = scmp.eq.s32.totalorder %s25, 0
      %p240 = por %p238, %p239
      %p241 = scmp.ne.s32.totalorder %s227, %s228
      %p242 = scmp.eq.s32.totalorder %s26, 1
      %p243 = por %p241, %p242
      %p245 = scmp.ne.s32.totalorder %s228, %s244
      %p246 = scmp.eq.s32.totalorder %s26, 0
      %p247 = por %p245, %p246
      %p248 = scmp.le.s32.totalorder 1, %s20
      %p249 = scmp.lt.s32.totalorder %s20, 3
      %p250 = pnand %p248, %p249
      %p251 = pneg %p250
      // Predicated region
      $region9: #{tpu_custom_call.1} parent=5 // pred_check
        _
      $region10: #{tpu_custom_call.1} parent=5 // pred_check_branch
        %253 = sbr.rel (%p250) target = $region12
      $region11: #{tpu_custom_call.1} parent=5 // pred_region
        %s254 = ssub.s32 %s20, 1
        // Predicated region
        $region13: #{tpu_custom_call.1} parent=11 // pred_check
          %p255 = pneg %p67
        $region14: #{tpu_custom_call.1} parent=11 // pred_check_branch
          %257 = sbr.rel (%p255) target = $region16
        $region15: #{tpu_custom_call.1} parent=11 // pred_region
          _
        $region16: #{tpu_custom_call.1} parent=11 // pred_fallthru
          _
        // Predicated region
        $region17: #{tpu_custom_call.1} parent=11 // pred_check
          %p258 = pneg %p88
        $region18: #{tpu_custom_call.1} parent=11 // pred_check_branch
          %260 = sbr.rel (%p258) target = $region20
        $region19: #{tpu_custom_call.1} parent=11 // pred_region
          _
        $region20: #{tpu_custom_call.1} parent=11 // pred_fallthru
          _
        // Predicated region
        $region21: #{tpu_custom_call.1} parent=11 // pred_check
          %p261 = pneg %p109
        $region22: #{tpu_custom_call.1} parent=11 // pred_check_branch
          %263 = sbr.rel (%p261) target = $region24
        $region23: #{tpu_custom_call.1} parent=11 // pred_region
          _
        $region24: #{tpu_custom_call.1} parent=11 // pred_fallthru
          _
        // Predicated region
        $region25: #{tpu_custom_call.1} parent=11 // pred_check
          %p264 = pneg %p130
        $region26: #{tpu_custom_call.1} parent=11 // pred_check_branch
          %266 = sbr.rel (%p264) target = $region28
        $region27: #{tpu_custom_call.1} parent=11 // pred_region
          _
        $region28: #{tpu_custom_call.1} parent=11 // pred_fallthru
          _
        // Predicated region
        $region29: #{tpu_custom_call.1} parent=11 // pred_check
          %p267 = pneg %p151
        $region30: #{tpu_custom_call.1} parent=11 // pred_check_branch
          %269 = sbr.rel (%p267) target = $region32
        $region31: #{tpu_custom_call.1} parent=11 // pred_region
          _
        $region32: #{tpu_custom_call.1} parent=11 // pred_fallthru
          _
        // Predicated region
        $region33: #{tpu_custom_call.1} parent=11 // pred_check
          %p270 = pneg %p172
        $region34: #{tpu_custom_call.1} parent=11 // pred_check_branch
          %272 = sbr.rel (%p270) target = $region36
        $region35: #{tpu_custom_call.1} parent=11 // pred_region
          _
        $region36: #{tpu_custom_call.1} parent=11 // pred_fallthru
          _
        // Predicated region
        $region37: #{tpu_custom_call.1} parent=11 // pred_check
          %p273 = pneg %p193
        $region38: #{tpu_custom_call.1} parent=11 // pred_check_branch
          %275 = sbr.rel (%p273) target = $region40
        $region39: #{tpu_custom_call.1} parent=11 // pred_region
          _
        $region40: #{tpu_custom_call.1} parent=11 // pred_fallthru
          _
        // Predicated region
        $region41: #{tpu_custom_call.1} parent=11 // pred_check
          %p276 = pneg %p214
        $region42: #{tpu_custom_call.1} parent=11 // pred_check_branch
          %278 = sbr.rel (%p276) target = $region44
        $region43: #{tpu_custom_call.1} parent=11 // pred_region
          _
        $region44: #{tpu_custom_call.1} parent=11 // pred_fallthru
          _
      $region12: #{tpu_custom_call.1} parent=5 // pred_fallthru
        _
      %p279 = scmp.lt.s32.totalorder %s20, 2
      // Predicated region
      $region45: #{tpu_custom_call.1} parent=5 // pred_check
        %p280 = pneg %p279
      $region46: #{tpu_custom_call.1} parent=5 // pred_check_branch
        %282 = sbr.rel (%p280) target = $region48
      $region47: #{tpu_custom_call.1} parent=5 // pred_region
        // Predicated region
        $region49: #{tpu_custom_call.1} parent=47 // pred_check
          %p283 = pneg %p40
        $region50: #{tpu_custom_call.1} parent=47 // pred_check_branch
          %285 = sbr.rel (%p283) target = $region52
        $region51: #{tpu_custom_call.1} parent=47 // pred_region
          %s286 = smul.u32 32, %s20
          %p287 = scmp.lt.s32.totalorder %s286, 63
          %s288 = scalar_select %p287, %s286, 63
          %s289 = smul.addr %s288, 2
          %s290 = scalar_lea.vmem %s0, %s289
          %s291 = smul.u32 32, %s20
        $region52: #{tpu_custom_call.1} parent=47 // pred_fallthru
          _
      $region48: #{tpu_custom_call.1} parent=5 // pred_fallthru
        _
      %p292 = scmp.le.s32.totalorder 1, %s20
      %p293 = scmp.lt.s32.totalorder %s20, 3
      %p294 = pnand %p292, %p293
      %p295 = pneg %p294
      // Predicated region
      $region53: #{tpu_custom_call.1} parent=5 // pred_check
        _
      $region54: #{tpu_custom_call.1} parent=5 // pred_check_branch
        %297 = sbr.rel (%p294) target = $region56
      $region55: #{tpu_custom_call.1} parent=5 // pred_region
        %s298 = ssub.s32 %s20, 1
        %s299 = smul.u32 32, %s25
        %p300 = scmp.lt.s32.totalorder %s299, 63
        %s301 = scalar_select %p300, %s299, 63
        %s302 = smul.addr %s301, 2
        %s303 = scalar_lea.vmem %s0, %s302
        %p304 = pneg %p46
        %p305 = pneg %p43
        %p306 = pneg %p67
        %p307 = pneg %p64
        %p308 = pneg %p88
        %p309 = pneg %p85
        %p310 = pneg %p109
        %p311 = pneg %p106
        %p312 = pneg %p130
        %p313 = pneg %p127
        %p314 = pneg %p151
        %p315 = pneg %p148
        %p316 = pneg %p172
        %p317 = pneg %p169
        %p318 = pneg %p193
        %p319 = pneg %p190
        %p320 = pneg %p214
        %p321 = pneg %p211
        %p322 = pneg %p240
        %p323 = pneg %p237
        %s324 = sand.u32 %s227, 1
        %s325 = scalar_lea.sflag [#allocation4], %s324
        %s326 = sand.u32 %s227, 1
        %s327 = smul.addr %s326, 32
        %s328 = scalar_lea.vmem [#allocation3], %s327
        %s329 = smul.u32 32, %s25
        %p330 = scmp.lt.s32.totalorder %s329, 63
        %s331 = scalar_select %p330, %s329, 63
        %s332 = smul.addr %s331, 2
        %s333 = scalar_lea.vmem %s0, %s332
        %s334 = smul.u32 32, %s25
        %s335 = smul.u32 32, %s25
        %v336 = vld [vmem:[%s333] ss:$2 sm:$0xff]
        %s337 = scalar_lea.vmem %s333, 16
        %v338 = vld [vmem:[%s337] ss:$2 sm:$0xff]
        %s339 = scalar_lea.vmem %s333, 32
        %v340 = vld [vmem:[%s339] ss:$2 sm:$0xff]
        %s341 = scalar_lea.vmem %s333, 48
        %v342 = vld [vmem:[%s341] ss:$2 sm:$0xff]
        %s343 = scalar_lea.vmem %s333, 1
        %v344 = vld [vmem:[%s343] ss:$2 sm:$0xff]
        %s345 = scalar_lea.vmem %s333, 17
        %v346 = vld [vmem:[%s345] ss:$2 sm:$0xff]
        %s347 = scalar_lea.vmem %s333, 33
        %v348 = vld [vmem:[%s347] ss:$2 sm:$0xff]
        %s349 = scalar_lea.vmem %s333, 49
        %v350 = vld [vmem:[%s349] ss:$2 sm:$0xff]
        %v351 = vmul.f32 %v344, 6.2831855
        %v352 = vmul.f32 %v346, 6.2831855
        %v353 = vmul.f32 %v348, 6.2831855
        %v354 = vmul.f32 %v350, 6.2831855
        %v355 = vand.u32 2147483647, %v351
        %vm356 = vcmp.le.f32.partialorder %v355, 0.7853982
        %vm357 = vcmp.lt.s32.totalorder %v351, 0
        %v358 = vand.u32 %v351, 2139095040
        %v359 = vshrl.u32 %v358, 23
        %v360 = vsub.s32 %v359, 127
        %v361 = vand.u32 2147483647, %v351
        %v362 = vand.u32 %v361, 8388607
        %v363 = vor.u32 %v362, 8388608
        %v364 = vsub.s32 0, %v363
        %v365 = vadd.s32 %v360, 1
        %vm366 = vcmp.gt.s32.totalorder %v365, 0
        %v367 = vsel %vm366, %v365, 0
        %v368 = vshrl.u32 %v367, 5
        %v369 = vand.u32 %v367, 31
        %v370 = vsub.s32 32, %v369
        %v371 = vshrl.u32 683565275, %v370
        %v372 = vshll.u32 683565275, %v369
        %v373 = vshrl.u32 2475754826, %v370
        %v374 = vor.u32 %v372, %v373
        %v375 = vshll.u32 2475754826, %v369
        %v376 = vshrl.u32 2131351028, %v370
        %v377 = vor.u32 %v375, %v376
        %v378 = vshll.u32 2131351028, %v369
        %v379 = vshrl.u32 2102212464, %v370
        %v380 = vor.u32 %v378, %v379
        %v381 = vshll.u32 2102212464, %v369
        %v382 = vshrl.u32 920167782, %v370
        %v383 = vor.u32 %v381, %v382
        %v384 = vshll.u32 920167782, %v369
        %v385 = vshrl.u32 1326507024, %v370
        %v386 = vor.u32 %v384, %v385
        %vm387 = vcmp.lt.s32.totalorder %v368, 1
        %vm388 = vcmp.lt.s32.totalorder %v368, 2
        %vm389 = vcmp.lt.s32.totalorder %v368, 3
        %vm390 = vcmp.lt.s32.totalorder %v368, 4
        %v391 = vsel %vm387, %v371, %v374
        %v392 = vsel %vm390, %v380, 2102212464
        %v393 = vsel %vm389, %v377, %v392
        %v394 = vsel %vm388, %v391, %v393
        %v395 = vsel %vm387, %v374, %v377
        %v396 = vsel %vm390, %v383, 920167782
        %v397 = vsel %vm389, %v380, %v396
        %v398 = vsel %vm388, %v395, %v397
        %v399 = vsel %vm387, %v377, %v380
        %v400 = vsel %vm390, %v386, 1326507024
        %v401 = vsel %vm389, %v383, %v400
        %v402 = vsel %vm388, %v399, %v401
        %v403 = vshll.u32 %v363, 8
        %v404 = vmul.u32.u64.compose %v403, %v402
        %v405 = vextract.low.u32 %v404
        %v406 = vextract.high.u32 %v404
        %v407 = vmul.u32.u64.compose %v403, %v398
        %v408 = vextract.low.u32 %v407
        %v409 = vextract.high.u32 %v407
        %v410 = vmul.u32 %v403, %v394
        %v411 = vadd.s32 %v406, %v408
        %vm412 = vc.u32 %v406, %v408
        %v413 = vadd.s32 %v409, 1
        %v414 = vsel %vm412, %v413, %v409
        %v415 = vadd.s32 %v410, %v414
        %v416 = vadd.s32 %v415, 536870912
        %v417 = vshrl.u32 %v416, 30
        %v418 = vshll.u32 %v417, 30
        %v419 = vsub.s32 %v415, %v418
        %vm420 = vcmp.lt.s32.totalorder %v419, 0
        %v421 = vsub.s32 0, %v419
        %v422 = vsel %vm420, %v421, %v419
        %v423 = vclz %v422
        %v424 = vsub.s32 %v423, 2
        %vm425 = vcmp.gt.s32.totalorder 0, %v424
        %v426 = vsel %vm425, 0, %v424
        %v427 = vsub.s32 32, %v426
        %v428 = vshll.u32 %v419, %v426
        %v429 = vshrl.u32 %v411, %v427
        %v430 = vor.u32 %v428, %v429
        %v431 = vsub.s32 4294967266, %v426
        %v432 = vadd.s32 %v431, 127
        %v433 = vshll.u32 %v432, 23
        %v434 = vor.u32 4788187, %v433
        %v435 = vand.u32 2147483647, %v434
        %v437 = vcvt.s32.f32 %v430
        %v438 = vmul.f32 %v437, %v435
        %v439 = vxor.u32 %v438, 2147483648
        %v440 = vsel %vm357, %v439, %v438
        %v441 = vsub.s32 4, %v417
        %v442 = vsel %vm357, %v441, %v417
        %v443 = vsel %vm356, %v351, %v440
        %v444 = vsel %vm356, 0, %v442
        %v445 = vcosq.f32.pop %v443
        %v446 = vsinq.f32.pop %v443
        %vm447 = vweird.f32 %v351
        %v448 = vand.u32 %v444, 3
        %vm449 = vcmp.lt.s32.totalorder %v448, 2
        %vm450 = vcmp.eq.s32.totalorder %v448, 0
        %v451 = vxor.u32 %v446, 2147483648
        %v452 = vsel %vm450, %v445, %v451
        %vm453 = vcmp.eq.s32.totalorder %v448, 2
        %v454 = vxor.u32 %v445, 2147483648
        %v455 = vsel %vm453, %v454, %v446
        %v456 = vsel %vm449, %v452, %v455
        %v457 = vsel %vm447, nan, %v456
        %v458 = vand.u32 2147483647, %v352
        %vm459 = vcmp.le.f32.partialorder %v458, 0.7853982
        %vm460 = vcmp.lt.s32.totalorder %v352, 0
        %v461 = vand.u32 %v352, 2139095040
        %v462 = vshrl.u32 %v461, 23
        %v463 = vsub.s32 %v462, 127
        %v464 = vand.u32 2147483647, %v352
        %v465 = vand.u32 %v464, 8388607
        %v466 = vor.u32 %v465, 8388608
        %v467 = vsub.s32 0, %v466
        %v468 = vadd.s32 %v463, 1
        %vm469 = vcmp.gt.s32.totalorder %v468, 0
        %v470 = vsel %vm469, %v468, 0
        %v471 = vshrl.u32 %v470, 5
        %v472 = vand.u32 %v470, 31
        %v473 = vsub.s32 32, %v472
        %v474 = vshrl.u32 683565275, %v473
        %v475 = vshll.u32 683565275, %v472
        %v476 = vshrl.u32 2475754826, %v473
        %v477 = vor.u32 %v475, %v476
        %v478 = vshll.u32 2475754826, %v472
        %v479 = vshrl.u32 2131351028, %v473
        %v480 = vor.u32 %v478, %v479
        %v481 = vshll.u32 2131351028, %v472
        %v482 = vshrl.u32 2102212464, %v473
        %v483 = vor.u32 %v481, %v482
        %v484 = vshll.u32 2102212464, %v472
        %v485 = vshrl.u32 920167782, %v473
        %v486 = vor.u32 %v484, %v485
        %v487 = vshll.u32 920167782, %v472
        %v488 = vshrl.u32 1326507024, %v473
        %v489 = vor.u32 %v487, %v488
        %vm490 = vcmp.lt.s32.totalorder %v471, 1
        %vm491 = vcmp.lt.s32.totalorder %v471, 2
        %vm492 = vcmp.lt.s32.totalorder %v471, 3
        %vm493 = vcmp.lt.s32.totalorder %v471, 4
        %v494 = vsel %vm490, %v474, %v477
        %v495 = vsel %vm493, %v483, 2102212464
        %v496 = vsel %vm492, %v480, %v495
        %v497 = vsel %vm491, %v494, %v496
        %v498 = vsel %vm490, %v477, %v480
        %v499 = vsel %vm493, %v486, 920167782
        %v500 = vsel %vm492, %v483, %v499
        %v501 = vsel %vm491, %v498, %v500
        %v502 = vsel %vm490, %v480, %v483
        %v503 = vsel %vm493, %v489, 1326507024
        %v504 = vsel %vm492, %v486, %v503
        %v505 = vsel %vm491, %v502, %v504
        %v506 = vshll.u32 %v466, 8
        %v507 = vmul.u32.u64.compose %v506, %v505
        %v508 = vextract.low.u32 %v507
        %v509 = vextract.high.u32 %v507
        %v510 = vmul.u32.u64.compose %v506, %v501
        %v511 = vextract.low.u32 %v510
        %v512 = vextract.high.u32 %v510
        %v513 = vmul.u32 %v506, %v497
        %v514 = vadd.s32 %v509, %v511
        %vm515 = vc.u32 %v509, %v511
        %v516 = vadd.s32 %v512, 1
        %v517 = vsel %vm515, %v516, %v512
        %v518 = vadd.s32 %v513, %v517
        %v519 = vadd.s32 %v518, 536870912
        %v520 = vshrl.u32 %v519, 30
        %v521 = vshll.u32 %v520, 30
        %v522 = vsub.s32 %v518, %v521
        %vm523 = vcmp.lt.s32.totalorder %v522, 0
        %v524 = vsub.s32 0, %v522
        %v525 = vsel %vm523, %v524, %v522
        %v526 = vclz %v525
        %v527 = vsub.s32 %v526, 2
        %vm528 = vcmp.gt.s32.totalorder 0, %v527
        %v529 = vsel %vm528, 0, %v527
        %v530 = vsub.s32 32, %v529
        %v531 = vshll.u32 %v522, %v529
        %v532 = vshrl.u32 %v514, %v530
        %v533 = vor.u32 %v531, %v532
        %v534 = vsub.s32 4294967266, %v529
        %v535 = vadd.s32 %v534, 127
        %v536 = vshll.u32 %v535, 23
        %v537 = vor.u32 4788187, %v536
        %v538 = vand.u32 2147483647, %v537
        %v540 = vcvt.s32.f32 %v533
        %v541 = vmul.f32 %v540, %v538
        %v542 = vxor.u32 %v541, 2147483648
        %v543 = vsel %vm460, %v542, %v541
        %v544 = vsub.s32 4, %v520
        %v545 = vsel %vm460, %v544, %v520
        %v546 = vsel %vm459, %v352, %v543
        %v547 = vsel %vm459, 0, %v545
        %v548 = vcosq.f32.pop %v546
        %v549 = vsinq.f32.pop %v546
        %vm550 = vweird.f32 %v352
        %v551 = vand.u32 %v547, 3
        %vm552 = vcmp.lt.s32.totalorder %v551, 2
        %vm553 = vcmp.eq.s32.totalorder %v551, 0
        %v554 = vxor.u32 %v549, 2147483648
        %v555 = vsel %vm553, %v548, %v554
        %vm556 = vcmp.eq.s32.totalorder %v551, 2
        %v557 = vxor.u32 %v548, 2147483648
        %v558 = vsel %vm556, %v557, %v549
        %v559 = vsel %vm552, %v555, %v558
        %v560 = vsel %vm550, nan, %v559
        %v561 = vand.u32 2147483647, %v353
        %vm562 = vcmp.le.f32.partialorder %v561, 0.7853982
        %vm563 = vcmp.lt.s32.totalorder %v353, 0
        %v564 = vand.u32 %v353, 2139095040
        %v565 = vshrl.u32 %v564, 23
        %v566 = vsub.s32 %v565, 127
        %v567 = vand.u32 2147483647, %v353
        %v568 = vand.u32 %v567, 8388607
        %v569 = vor.u32 %v568, 8388608
        %v570 = vsub.s32 0, %v569
        %v571 = vadd.s32 %v566, 1
        %vm572 = vcmp.gt.s32.totalorder %v571, 0
        %v573 = vsel %vm572, %v571, 0
        %v574 = vshrl.u32 %v573, 5
        %v575 = vand.u32 %v573, 31
        %v576 = vsub.s32 32, %v575
        %v577 = vshrl.u32 683565275, %v576
        %v578 = vshll.u32 683565275, %v575
        %v579 = vshrl.u32 2475754826, %v576
        %v580 = vor.u32 %v578, %v579
        %v581 = vshll.u32 2475754826, %v575
        %v582 = vshrl.u32 2131351028, %v576
        %v583 = vor.u32 %v581, %v582
        %v584 = vshll.u32 2131351028, %v575
        %v585 = vshrl.u32 2102212464, %v576
        %v586 = vor.u32 %v584, %v585
        %v587 = vshll.u32 2102212464, %v575
        %v588 = vshrl.u32 920167782, %v576
        %v589 = vor.u32 %v587, %v588
        %v590 = vshll.u32 920167782, %v575
        %v591 = vshrl.u32 1326507024, %v576
        %v592 = vor.u32 %v590, %v591
        %vm593 = vcmp.lt.s32.totalorder %v574, 1
        %vm594 = vcmp.lt.s32.totalorder %v574, 2
        %vm595 = vcmp.lt.s32.totalorder %v574, 3
        %vm596 = vcmp.lt.s32.totalorder %v574, 4
        %v597 = vsel %vm593, %v577, %v580
        %v598 = vsel %vm596, %v586, 2102212464
        %v599 = vsel %vm595, %v583, %v598
        %v600 = vsel %vm594, %v597, %v599
        %v601 = vsel %vm593, %v580, %v583
        %v602 = vsel %vm596, %v589, 920167782
        %v603 = vsel %vm595, %v586, %v602
        %v604 = vsel %vm594, %v601, %v603
        %v605 = vsel %vm593, %v583, %v586
        %v606 = vsel %vm596, %v592, 1326507024
        %v607 = vsel %vm595, %v589, %v606
        %v608 = vsel %vm594, %v605, %v607
        %v609 = vshll.u32 %v569, 8
        %v610 = vmul.u32.u64.compose %v609, %v608
        %v611 = vextract.low.u32 %v610
        %v612 = vextract.high.u32 %v610
        %v613 = vmul.u32.u64.compose %v609, %v604
        %v614 = vextract.low.u32 %v613
        %v615 = vextract.high.u32 %v613
        %v616 = vmul.u32 %v609, %v600
        %v617 = vadd.s32 %v612, %v614
        %vm618 = vc.u32 %v612, %v614
        %v619 = vadd.s32 %v615, 1
        %v620 = vsel %vm618, %v619, %v615
        %v621 = vadd.s32 %v616, %v620
        %v622 = vadd.s32 %v621, 536870912
        %v623 = vshrl.u32 %v622, 30
        %v624 = vshll.u32 %v623, 30
        %v625 = vsub.s32 %v621, %v624
        %vm626 = vcmp.lt.s32.totalorder %v625, 0
        %v627 = vsub.s32 0, %v625
        %v628 = vsel %vm626, %v627, %v625
        %v629 = vclz %v628
        %v630 = vsub.s32 %v629, 2
        %vm631 = vcmp.gt.s32.totalorder 0, %v630
        %v632 = vsel %vm631, 0, %v630
        %v633 = vsub.s32 32, %v632
        %v634 = vshll.u32 %v625, %v632
        %v635 = vshrl.u32 %v617, %v633
        %v636 = vor.u32 %v634, %v635
        %v637 = vsub.s32 4294967266, %v632
        %v638 = vadd.s32 %v637, 127
        %v639 = vshll.u32 %v638, 23
        %v640 = vor.u32 4788187, %v639
        %v641 = vand.u32 2147483647, %v640
        %v643 = vcvt.s32.f32 %v636
        %v644 = vmul.f32 %v643, %v641
        %v645 = vxor.u32 %v644, 2147483648
        %v646 = vsel %vm563, %v645, %v644
        %v647 = vsub.s32 4, %v623
        %v648 = vsel %vm563, %v647, %v623
        %v649 = vsel %vm562, %v353, %v646
        %v650 = vsel %vm562, 0, %v648
        %v651 = vcosq.f32.pop %v649
        %v652 = vsinq.f32.pop %v649
        %vm653 = vweird.f32 %v353
        %v654 = vand.u32 %v650, 3
        %vm655 = vcmp.lt.s32.totalorder %v654, 2
        %vm656 = vcmp.eq.s32.totalorder %v654, 0
        %v657 = vxor.u32 %v652, 2147483648
        %v658 = vsel %vm656, %v651, %v657
        %vm659 = vcmp.eq.s32.totalorder %v654, 2
        %v660 = vxor.u32 %v651, 2147483648
        %v661 = vsel %vm659, %v660, %v652
        %v662 = vsel %vm655, %v658, %v661
        %v663 = vsel %vm653, nan, %v662
        %v664 = vand.u32 2147483647, %v354
        %vm665 = vcmp.le.f32.partialorder %v664, 0.7853982
        %vm666 = vcmp.lt.s32.totalorder %v354, 0
        %v667 = vand.u32 %v354, 2139095040
        %v668 = vshrl.u32 %v667, 23
        %v669 = vsub.s32 %v668, 127
        %v670 = vand.u32 2147483647, %v354
        %v671 = vand.u32 %v670, 8388607
        %v672 = vor.u32 %v671, 8388608
        %v673 = vsub.s32 0, %v672
        %v674 = vadd.s32 %v669, 1
        %vm675 = vcmp.gt.s32.totalorder %v674, 0
        %v676 = vsel %vm675, %v674, 0
        %v677 = vshrl.u32 %v676, 5
        %v678 = vand.u32 %v676, 31
        %v679 = vsub.s32 32, %v678
        %v680 = vshrl.u32 683565275, %v679
        %v681 = vshll.u32 683565275, %v678
        %v682 = vshrl.u32 2475754826, %v679
        %v683 = vor.u32 %v681, %v682
        %v684 = vshll.u32 2475754826, %v678
        %v685 = vshrl.u32 2131351028, %v679
        %v686 = vor.u32 %v684, %v685
        %v687 = vshll.u32 2131351028, %v678
        %v688 = vshrl.u32 2102212464, %v679
        %v689 = vor.u32 %v687, %v688
        %v690 = vshll.u32 2102212464, %v678
        %v691 = vshrl.u32 920167782, %v679
        %v692 = vor.u32 %v690, %v691
        %v693 = vshll.u32 920167782, %v678
        %v694 = vshrl.u32 1326507024, %v679
        %v695 = vor.u32 %v693, %v694
        %vm696 = vcmp.lt.s32.totalorder %v677, 1
        %vm697 = vcmp.lt.s32.totalorder %v677, 2
        %vm698 = vcmp.lt.s32.totalorder %v677, 3
        %vm699 = vcmp.lt.s32.totalorder %v677, 4
        %v700 = vsel %vm696, %v680, %v683
        %v701 = vsel %vm699, %v689, 2102212464
        %v702 = vsel %vm698, %v686, %v701
        %v703 = vsel %vm697, %v700, %v702
        %v704 = vsel %vm696, %v683, %v686
        %v705 = vsel %vm699, %v692, 920167782
        %v706 = vsel %vm698, %v689, %v705
        %v707 = vsel %vm697, %v704, %v706
        %v708 = vsel %vm696, %v686, %v689
        %v709 = vsel %vm699, %v695, 1326507024
        %v710 = vsel %vm698, %v692, %v709
        %v711 = vsel %vm697, %v708, %v710
        %v712 = vshll.u32 %v672, 8
        %v713 = vmul.u32.u64.compose %v712, %v711
        %v714 = vextract.low.u32 %v713
        %v715 = vextract.high.u32 %v713
        %v716 = vmul.u32.u64.compose %v712, %v707
        %v717 = vextract.low.u32 %v716
        %v718 = vextract.high.u32 %v716
        %v719 = vmul.u32 %v712, %v703
        %v720 = vadd.s32 %v715, %v717
        %vm721 = vc.u32 %v715, %v717
        %v722 = vadd.s32 %v718, 1
        %v723 = vsel %vm721, %v722, %v718
        %v724 = vadd.s32 %v719, %v723
        %v725 = vadd.s32 %v724, 536870912
        %v726 = vshrl.u32 %v725, 30
        %v727 = vshll.u32 %v726, 30
        %v728 = vsub.s32 %v724, %v727
        %vm729 = vcmp.lt.s32.totalorder %v728, 0
        %v730 = vsub.s32 0, %v728
        %v731 = vsel %vm729, %v730, %v728
        %v732 = vclz %v731
        %v733 = vsub.s32 %v732, 2
        %vm734 = vcmp.gt.s32.totalorder 0, %v733
        %v735 = vsel %vm734, 0, %v733
        %v736 = vsub.s32 32, %v735
        %v737 = vshll.u32 %v728, %v735
        %v738 = vshrl.u32 %v720, %v736
        %v739 = vor.u32 %v737, %v738
        %v740 = vsub.s32 4294967266, %v735
        %v741 = vadd.s32 %v740, 127
        %v742 = vshll.u32 %v741, 23
        %v743 = vor.u32 4788187, %v742
        %v744 = vand.u32 2147483647, %v743
        %v746 = vcvt.s32.f32 %v739
        %v747 = vmul.f32 %v746, %v744
        %v748 = vxor.u32 %v747, 2147483648
        %v749 = vsel %vm666, %v748, %v747
        %v750 = vsub.s32 4, %v726
        %v751 = vsel %vm666, %v750, %v726
        %v752 = vsel %vm665, %v354, %v749
        %v753 = vsel %vm665, 0, %v751
        %v754 = vcosq.f32.pop %v752
        %v755 = vsinq.f32.pop %v752
        %vm756 = vweird.f32 %v354
        %v757 = vand.u32 %v753, 3
        %vm758 = vcmp.lt.s32.totalorder %v757, 2
        %vm759 = vcmp.eq.s32.totalorder %v757, 0
        %v760 = vxor.u32 %v755, 2147483648
        %v761 = vsel %vm759, %v754, %v760
        %vm762 = vcmp.eq.s32.totalorder %v757, 2
        %v763 = vxor.u32 %v754, 2147483648
        %v764 = vsel %vm762, %v763, %v755
        %v765 = vsel %vm758, %v761, %v764
        %v766 = vsel %vm756, nan, %v765
        %v767 = vand.u32 2147483647, %v351
        %vm768 = vcmp.le.f32.partialorder %v767, 0.7853982
        %vm769 = vcmp.lt.s32.totalorder %v351, 0
        %v770 = vand.u32 %v351, 2139095040
        %v771 = vshrl.u32 %v770, 23
        %v772 = vsub.s32 %v771, 127
        %v773 = vand.u32 2147483647, %v351
        %v774 = vand.u32 %v773, 8388607
        %v775 = vor.u32 %v774, 8388608
        %v776 = vsub.s32 0, %v775
        %v777 = vadd.s32 %v772, 1
        %vm778 = vcmp.gt.s32.totalorder %v777, 0
        %v779 = vsel %vm778, %v777, 0
        %v780 = vshrl.u32 %v779, 5
        %v781 = vand.u32 %v779, 31
        %v782 = vsub.s32 32, %v781
        %v783 = vshrl.u32 683565275, %v782
        %v784 = vshll.u32 683565275, %v781
        %v785 = vshrl.u32 2475754826, %v782
        %v786 = vor.u32 %v784, %v785
        %v787 = vshll.u32 2475754826, %v781
        %v788 = vshrl.u32 2131351028, %v782
        %v789 = vor.u32 %v787, %v788
        %v790 = vshll.u32 2131351028, %v781
        %v791 = vshrl.u32 2102212464, %v782
        %v792 = vor.u32 %v790, %v791
        %v793 = vshll.u32 2102212464, %v781
        %v794 = vshrl.u32 920167782, %v782
        %v795 = vor.u32 %v793, %v794
        %v796 = vshll.u32 920167782, %v781
        %v797 = vshrl.u32 1326507024, %v782
        %v798 = vor.u32 %v796, %v797
        %vm799 = vcmp.lt.s32.totalorder %v780, 1
        %vm800 = vcmp.lt.s32.totalorder %v780, 2
        %vm801 = vcmp.lt.s32.totalorder %v780, 3
        %vm802 = vcmp.lt.s32.totalorder %v780, 4
        %v803 = vsel %vm799, %v783, %v786
        %v804 = vsel %vm802, %v792, 2102212464
        %v805 = vsel %vm801, %v789, %v804
        %v806 = vsel %vm800, %v803, %v805
        %v807 = vsel %vm799, %v786, %v789
        %v808 = vsel %vm802, %v795, 920167782
        %v809 = vsel %vm801, %v792, %v808
        %v810 = vsel %vm800, %v807, %v809
        %v811 = vsel %vm799, %v789, %v792
        %v812 = vsel %vm802, %v798, 1326507024
        %v813 = vsel %vm801, %v795, %v812
        %v814 = vsel %vm800, %v811, %v813
        %v815 = vshll.u32 %v775, 8
        %v816 = vmul.u32.u64.compose %v815, %v814
        %v817 = vextract.low.u32 %v816
        %v818 = vextract.high.u32 %v816
        %v819 = vmul.u32.u64.compose %v815, %v810
        %v820 = vextract.low.u32 %v819
        %v821 = vextract.high.u32 %v819
        %v822 = vmul.u32 %v815, %v806
        %v823 = vadd.s32 %v818, %v820
        %vm824 = vc.u32 %v818, %v820
        %v825 = vadd.s32 %v821, 1
        %v826 = vsel %vm824, %v825, %v821
        %v827 = vadd.s32 %v822, %v826
        %v828 = vadd.s32 %v827, 536870912
        %v829 = vshrl.u32 %v828, 30
        %v830 = vshll.u32 %v829, 30
        %v831 = vsub.s32 %v827, %v830
        %vm832 = vcmp.lt.s32.totalorder %v831, 0
        %v833 = vsub.s32 0, %v831
        %v834 = vsel %vm832, %v833, %v831
        %v835 = vclz %v834
        %v836 = vsub.s32 %v835, 2
        %vm837 = vcmp.gt.s32.totalorder 0, %v836
        %v838 = vsel %vm837, 0, %v836
        %v839 = vsub.s32 32, %v838
        %v840 = vshll.u32 %v831, %v838
        %v841 = vshrl.u32 %v823, %v839
        %v842 = vor.u32 %v840, %v841
        %v843 = vsub.s32 4294967266, %v838
        %v844 = vadd.s32 %v843, 127
        %v845 = vshll.u32 %v844, 23
        %v846 = vor.u32 4788187, %v845
        %v847 = vand.u32 2147483647, %v846
        %v849 = vcvt.s32.f32 %v842
        %v850 = vmul.f32 %v849, %v847
        %v851 = vxor.u32 %v850, 2147483648
        %v852 = vsel %vm769, %v851, %v850
        %v853 = vsub.s32 4, %v829
        %v854 = vsel %vm769, %v853, %v829
        %v855 = vsel %vm768, %v351, %v852
        %v856 = vsel %vm768, 0, %v854
        %v857 = vcosq.f32.pop %v855
        %v858 = vsinq.f32.pop %v855
        %vm859 = vweird.f32 %v351
        %v860 = vadd.s32 %v856, 3
        %v861 = vand.u32 %v860, 3
        %vm862 = vcmp.lt.s32.totalorder %v861, 2
        %vm863 = vcmp.eq.s32.totalorder %v861, 0
        %v864 = vxor.u32 %v858, 2147483648
        %v865 = vsel %vm863, %v857, %v864
        %vm866 = vcmp.eq.s32.totalorder %v861, 2
        %v867 = vxor.u32 %v857, 2147483648
        %v868 = vsel %vm866, %v867, %v858
        %v869 = vsel %vm862, %v865, %v868
        %v870 = vsel %vm859, nan, %v869
        %v871 = vand.u32 2147483647, %v352
        %vm872 = vcmp.le.f32.partialorder %v871, 0.7853982
        %vm873 = vcmp.lt.s32.totalorder %v352, 0
        %v874 = vand.u32 %v352, 2139095040
        %v875 = vshrl.u32 %v874, 23
        %v876 = vsub.s32 %v875, 127
        %v877 = vand.u32 2147483647, %v352
        %v878 = vand.u32 %v877, 8388607
        %v879 = vor.u32 %v878, 8388608
        %v880 = vsub.s32 0, %v879
        %v881 = vadd.s32 %v876, 1
        %vm882 = vcmp.gt.s32.totalorder %v881, 0
        %v883 = vsel %vm882, %v881, 0
        %v884 = vshrl.u32 %v883, 5
        %v885 = vand.u32 %v883, 31
        %v886 = vsub.s32 32, %v885
        %v887 = vshrl.u32 683565275, %v886
        %v888 = vshll.u32 683565275, %v885
        %v889 = vshrl.u32 2475754826, %v886
        %v890 = vor.u32 %v888, %v889
        %v891 = vshll.u32 2475754826, %v885
        %v892 = vshrl.u32 2131351028, %v886
        %v893 = vor.u32 %v891, %v892
        %v894 = vshll.u32 2131351028, %v885
        %v895 = vshrl.u32 2102212464, %v886
        %v896 = vor.u32 %v894, %v895
        %v897 = vshll.u32 2102212464, %v885
        %v898 = vshrl.u32 920167782, %v886
        %v899 = vor.u32 %v897, %v898
        %v900 = vshll.u32 920167782, %v885
        %v901 = vshrl.u32 1326507024, %v886
        %v902 = vor.u32 %v900, %v901
        %vm903 = vcmp.lt.s32.totalorder %v884, 1
        %vm904 = vcmp.lt.s32.totalorder %v884, 2
        %vm905 = vcmp.lt.s32.totalorder %v884, 3
        %vm906 = vcmp.lt.s32.totalorder %v884, 4
        %v907 = vsel %vm903, %v887, %v890
        %v908 = vsel %vm906, %v896, 2102212464
        %v909 = vsel %vm905, %v893, %v908
        %v910 = vsel %vm904, %v907, %v909
        %v911 = vsel %vm903, %v890, %v893
        %v912 = vsel %vm906, %v899, 920167782
        %v913 = vsel %vm905, %v896, %v912
        %v914 = vsel %vm904, %v911, %v913
        %v915 = vsel %vm903, %v893, %v896
        %v916 = vsel %vm906, %v902, 1326507024
        %v917 = vsel %vm905, %v899, %v916
        %v918 = vsel %vm904, %v915, %v917
        %v919 = vshll.u32 %v879, 8
        %v920 = vmul.u32.u64.compose %v919, %v918
        %v921 = vextract.low.u32 %v920
        %v922 = vextract.high.u32 %v920
        %v923 = vmul.u32.u64.compose %v919, %v914
        %v924 = vextract.low.u32 %v923
        %v925 = vextract.high.u32 %v923
        %v926 = vmul.u32 %v919, %v910
        %v927 = vadd.s32 %v922, %v924
        %vm928 = vc.u32 %v922, %v924
        %v929 = vadd.s32 %v925, 1
        %v930 = vsel %vm928, %v929, %v925
        %v931 = vadd.s32 %v926, %v930
        %v932 = vadd.s32 %v931, 536870912
        %v933 = vshrl.u32 %v932, 30
        %v934 = vshll.u32 %v933, 30
        %v935 = vsub.s32 %v931, %v934
        %vm936 = vcmp.lt.s32.totalorder %v935, 0
        %v937 = vsub.s32 0, %v935
        %v938 = vsel %vm936, %v937, %v935
        %v939 = vclz %v938
        %v940 = vsub.s32 %v939, 2
        %vm941 = vcmp.gt.s32.totalorder 0, %v940
        %v942 = vsel %vm941, 0, %v940
        %v943 = vsub.s32 32, %v942
        %v944 = vshll.u32 %v935, %v942
        %v945 = vshrl.u32 %v927, %v943
        %v946 = vor.u32 %v944, %v945
        %v947 = vsub.s32 4294967266, %v942
        %v948 = vadd.s32 %v947, 127
        %v949 = vshll.u32 %v948, 23
        %v950 = vor.u32 4788187, %v949
        %v951 = vand.u32 2147483647, %v950
        %v953 = vcvt.s32.f32 %v946
        %v954 = vmul.f32 %v953, %v951
        %v955 = vxor.u32 %v954, 2147483648
        %v956 = vsel %vm873, %v955, %v954
        %v957 = vsub.s32 4, %v933
        %v958 = vsel %vm873, %v957, %v933
        %v959 = vsel %vm872, %v352, %v956
        %v960 = vsel %vm872, 0, %v958
        %v961 = vcosq.f32.pop %v959
        %v962 = vsinq.f32.pop %v959
        %vm963 = vweird.f32 %v352
        %v964 = vadd.s32 %v960, 3
        %v965 = vand.u32 %v964, 3
        %vm966 = vcmp.lt.s32.totalorder %v965, 2
        %vm967 = vcmp.eq.s32.totalorder %v965, 0
        %v968 = vxor.u32 %v962, 2147483648
        %v969 = vsel %vm967, %v961, %v968
        %vm970 = vcmp.eq.s32.totalorder %v965, 2
        %v971 = vxor.u32 %v961, 2147483648
        %v972 = vsel %vm970, %v971, %v962
        %v973 = vsel %vm966, %v969, %v972
        %v974 = vsel %vm963, nan, %v973
        %v975 = vand.u32 2147483647, %v353
        %vm976 = vcmp.le.f32.partialorder %v975, 0.7853982
        %vm977 = vcmp.lt.s32.totalorder %v353, 0
        %v978 = vand.u32 %v353, 2139095040
        %v979 = vshrl.u32 %v978, 23
        %v980 = vsub.s32 %v979, 127
        %v981 = vand.u32 2147483647, %v353
        %v982 = vand.u32 %v981, 8388607
        %v983 = vor.u32 %v982, 8388608
        %v984 = vsub.s32 0, %v983
        %v985 = vadd.s32 %v980, 1
        %vm986 = vcmp.gt.s32.totalorder %v985, 0
        %v987 = vsel %vm986, %v985, 0
        %v988 = vshrl.u32 %v987, 5
        %v989 = vand.u32 %v987, 31
        %v990 = vsub.s32 32, %v989
        %v991 = vshrl.u32 683565275, %v990
        %v992 = vshll.u32 683565275, %v989
        %v993 = vshrl.u32 2475754826, %v990
        %v994 = vor.u32 %v992, %v993
        %v995 = vshll.u32 2475754826, %v989
        %v996 = vshrl.u32 2131351028, %v990
        %v997 = vor.u32 %v995, %v996
        %v998 = vshll.u32 2131351028, %v989
        %v999 = vshrl.u32 2102212464, %v990
        %v1000 = vor.u32 %v998, %v999
        %v1001 = vshll.u32 2102212464, %v989
        %v1002 = vshrl.u32 920167782, %v990
        %v1003 = vor.u32 %v1001, %v1002
        %v1004 = vshll.u32 920167782, %v989
        %v1005 = vshrl.u32 1326507024, %v990
        %v1006 = vor.u32 %v1004, %v1005
        %vm1007 = vcmp.lt.s32.totalorder %v988, 1
        %vm1008 = vcmp.lt.s32.totalorder %v988, 2
        %vm1009 = vcmp.lt.s32.totalorder %v988, 3
        %vm1010 = vcmp.lt.s32.totalorder %v988, 4
        %v1011 = vsel %vm1007, %v991, %v994
        %v1012 = vsel %vm1010, %v1000, 2102212464
        %v1013 = vsel %vm1009, %v997, %v1012
        %v1014 = vsel %vm1008, %v1011, %v1013
        %v1015 = vsel %vm1007, %v994, %v997
        %v1016 = vsel %vm1010, %v1003, 920167782
        %v1017 = vsel %vm1009, %v1000, %v1016
        %v1018 = vsel %vm1008, %v1015, %v1017
        %v1019 = vsel %vm1007, %v997, %v1000
        %v1020 = vsel %vm1010, %v1006, 1326507024
        %v1021 = vsel %vm1009, %v1003, %v1020
        %v1022 = vsel %vm1008, %v1019, %v1021
        %v1023 = vshll.u32 %v983, 8
        %v1024 = vmul.u32.u64.compose %v1023, %v1022
        %v1025 = vextract.low.u32 %v1024
        %v1026 = vextract.high.u32 %v1024
        %v1027 = vmul.u32.u64.compose %v1023, %v1018
        %v1028 = vextract.low.u32 %v1027
        %v1029 = vextract.high.u32 %v1027
        %v1030 = vmul.u32 %v1023, %v1014
        %v1031 = vadd.s32 %v1026, %v1028
        %vm1032 = vc.u32 %v1026, %v1028
        %v1033 = vadd.s32 %v1029, 1
        %v1034 = vsel %vm1032, %v1033, %v1029
        %v1035 = vadd.s32 %v1030, %v1034
        %v1036 = vadd.s32 %v1035, 536870912
        %v1037 = vshrl.u32 %v1036, 30
        %v1038 = vshll.u32 %v1037, 30
        %v1039 = vsub.s32 %v1035, %v1038
        %vm1040 = vcmp.lt.s32.totalorder %v1039, 0
        %v1041 = vsub.s32 0, %v1039
        %v1042 = vsel %vm1040, %v1041, %v1039
        %v1043 = vclz %v1042
        %v1044 = vsub.s32 %v1043, 2
        %vm1045 = vcmp.gt.s32.totalorder 0, %v1044
        %v1046 = vsel %vm1045, 0, %v1044
        %v1047 = vsub.s32 32, %v1046
        %v1048 = vshll.u32 %v1039, %v1046
        %v1049 = vshrl.u32 %v1031, %v1047
        %v1050 = vor.u32 %v1048, %v1049
        %v1051 = vsub.s32 4294967266, %v1046
        %v1052 = vadd.s32 %v1051, 127
        %v1053 = vshll.u32 %v1052, 23
        %v1054 = vor.u32 4788187, %v1053
        %v1055 = vand.u32 2147483647, %v1054
        %v1057 = vcvt.s32.f32 %v1050
        %v1058 = vmul.f32 %v1057, %v1055
        %v1059 = vxor.u32 %v1058, 2147483648
        %v1060 = vsel %vm977, %v1059, %v1058
        %v1061 = vsub.s32 4, %v1037
        %v1062 = vsel %vm977, %v1061, %v1037
        %v1063 = vsel %vm976, %v353, %v1060
        %v1064 = vsel %vm976, 0, %v1062
        %v1065 = vcosq.f32.pop %v1063
        %v1066 = vsinq.f32.pop %v1063
        %vm1067 = vweird.f32 %v353
        %v1068 = vadd.s32 %v1064, 3
        %v1069 = vand.u32 %v1068, 3
        %vm1070 = vcmp.lt.s32.totalorder %v1069, 2
        %vm1071 = vcmp.eq.s32.totalorder %v1069, 0
        %v1072 = vxor.u32 %v1066, 2147483648
        %v1073 = vsel %vm1071, %v1065, %v1072
        %vm1074 = vcmp.eq.s32.totalorder %v1069, 2
        %v1075 = vxor.u32 %v1065, 2147483648
        %v1076 = vsel %vm1074, %v1075, %v1066
        %v1077 = vsel %vm1070, %v1073, %v1076
        %v1078 = vsel %vm1067, nan, %v1077
        %v1079 = vand.u32 2147483647, %v354
        %vm1080 = vcmp.le.f32.partialorder %v1079, 0.7853982
        %vm1081 = vcmp.lt.s32.totalorder %v354, 0
        %v1082 = vand.u32 %v354, 2139095040
        %v1083 = vshrl.u32 %v1082, 23
        %v1084 = vsub.s32 %v1083, 127
        %v1085 = vand.u32 2147483647, %v354
        %v1086 = vand.u32 %v1085, 8388607
        %v1087 = vor.u32 %v1086, 8388608
        %v1088 = vsub.s32 0, %v1087
        %v1089 = vadd.s32 %v1084, 1
        %vm1090 = vcmp.gt.s32.totalorder %v1089, 0
        %v1091 = vsel %vm1090, %v1089, 0
        %v1092 = vshrl.u32 %v1091, 5
        %v1093 = vand.u32 %v1091, 31
        %v1094 = vsub.s32 32, %v1093
        %v1095 = vshrl.u32 683565275, %v1094
        %v1096 = vshll.u32 683565275, %v1093
        %v1097 = vshrl.u32 2475754826, %v1094
        %v1098 = vor.u32 %v1096, %v1097
        %v1099 = vshll.u32 2475754826, %v1093
        %v1100 = vshrl.u32 2131351028, %v1094
        %v1101 = vor.u32 %v1099, %v1100
        %v1102 = vshll.u32 2131351028, %v1093
        %v1103 = vshrl.u32 2102212464, %v1094
        %v1104 = vor.u32 %v1102, %v1103
        %v1105 = vshll.u32 2102212464, %v1093
        %v1106 = vshrl.u32 920167782, %v1094
        %v1107 = vor.u32 %v1105, %v1106
        %v1108 = vshll.u32 920167782, %v1093
        %v1109 = vshrl.u32 1326507024, %v1094
        %v1110 = vor.u32 %v1108, %v1109
        %vm1111 = vcmp.lt.s32.totalorder %v1092, 1
        %vm1112 = vcmp.lt.s32.totalorder %v1092, 2
        %vm1113 = vcmp.lt.s32.totalorder %v1092, 3
        %vm1114 = vcmp.lt.s32.totalorder %v1092, 4
        %v1115 = vsel %vm1111, %v1095, %v1098
        %v1116 = vsel %vm1114, %v1104, 2102212464
        %v1117 = vsel %vm1113, %v1101, %v1116
        %v1118 = vsel %vm1112, %v1115, %v1117
        %v1119 = vsel %vm1111, %v1098, %v1101
        %v1120 = vsel %vm1114, %v1107, 920167782
        %v1121 = vsel %vm1113, %v1104, %v1120
        %v1122 = vsel %vm1112, %v1119, %v1121
        %v1123 = vsel %vm1111, %v1101, %v1104
        %v1124 = vsel %vm1114, %v1110, 1326507024
        %v1125 = vsel %vm1113, %v1107, %v1124
        %v1126 = vsel %vm1112, %v1123, %v1125
        %v1127 = vshll.u32 %v1087, 8
        %v1128 = vmul.u32.u64.compose %v1127, %v1126
        %v1129 = vextract.low.u32 %v1128
        %v1130 = vextract.high.u32 %v1128
        %v1131 = vmul.u32.u64.compose %v1127, %v1122
        %v1132 = vextract.low.u32 %v1131
        %v1133 = vextract.high.u32 %v1131
        %v1134 = vmul.u32 %v1127, %v1118
        %v1135 = vadd.s32 %v1130, %v1132
        %vm1136 = vc.u32 %v1130, %v1132
        %v1137 = vadd.s32 %v1133, 1
        %v1138 = vsel %vm1136, %v1137, %v1133
        %v1139 = vadd.s32 %v1134, %v1138
        %v1140 = vadd.s32 %v1139, 536870912
        %v1141 = vshrl.u32 %v1140, 30
        %v1142 = vshll.u32 %v1141, 30
        %v1143 = vsub.s32 %v1139, %v1142
        %vm1144 = vcmp.lt.s32.totalorder %v1143, 0
        %v1145 = vsub.s32 0, %v1143
        %v1146 = vsel %vm1144, %v1145, %v1143
        %v1147 = vclz %v1146
        %v1148 = vsub.s32 %v1147, 2
        %vm1149 = vcmp.gt.s32.totalorder 0, %v1148
        %v1150 = vsel %vm1149, 0, %v1148
        %v1151 = vsub.s32 32, %v1150
        %v1152 = vshll.u32 %v1143, %v1150
        %v1153 = vshrl.u32 %v1135, %v1151
        %v1154 = vor.u32 %v1152, %v1153
        %v1155 = vsub.s32 4294967266, %v1150
        %v1156 = vadd.s32 %v1155, 127
        %v1157 = vshll.u32 %v1156, 23
        %v1158 = vor.u32 4788187, %v1157
        %v1159 = vand.u32 2147483647, %v1158
        %v1161 = vcvt.s32.f32 %v1154
        %v1162 = vmul.f32 %v1161, %v1159
        %v1163 = vxor.u32 %v1162, 2147483648
        %v1164 = vsel %vm1081, %v1163, %v1162
        %v1165 = vsub.s32 4, %v1141
        %v1166 = vsel %vm1081, %v1165, %v1141
        %v1167 = vsel %vm1080, %v354, %v1164
        %v1168 = vsel %vm1080, 0, %v1166
        %v1169 = vcosq.f32.pop %v1167
        %v1170 = vsinq.f32.pop %v1167
        %vm1171 = vweird.f32 %v354
        %v1172 = vadd.s32 %v1168, 3
        %v1173 = vand.u32 %v1172, 3
        %vm1174 = vcmp.lt.s32.totalorder %v1173, 2
        %vm1175 = vcmp.eq.s32.totalorder %v1173, 0
        %v1176 = vxor.u32 %v1170, 2147483648
        %v1177 = vsel %vm1175, %v1169, %v1176
        %vm1178 = vcmp.eq.s32.totalorder %v1173, 2
        %v1179 = vxor.u32 %v1169, 2147483648
        %v1180 = vsel %vm1178, %v1179, %v1170
        %v1181 = vsel %vm1174, %v1177, %v1180
        %v1182 = vsel %vm1171, nan, %v1181
        %v1183 = vld [vmem:[%s1] sm:$0xff]
        %v1184 = vld [vmem:[%s1 + $0x8] sm:$0xff]
        %v1185 = vld [vmem:[%s1 + $0x10] sm:$0xff]
        %v1186 = vld [vmem:[%s1 + $0x18] sm:$0xff]
        %v1187 = vld [vmem:[%s1 + $0x20] sm:$0xff]
        %v1188 = vld [vmem:[%s1 + $0x28] sm:$0xff]
        %v1189 = vld [vmem:[%s1 + $0x30] sm:$0xff]
        %v1190 = vld [vmem:[%s1 + $0x38] sm:$0xff]
        %v1191 = vld [vmem:[%s1 + $0x40] sm:$0xff]
        %v1192 = vld [vmem:[%s1 + $0x48] sm:$0xff]
        %v1193 = vld [vmem:[%s1 + $0x50] sm:$0xff]
        %v1194 = vld [vmem:[%s1 + $0x58] sm:$0xff]
        %v1195 = vld [vmem:[%s2] sm:$0xff]
        %v1196 = vld [vmem:[%s2 + $0x8] sm:$0xff]
        %v1197 = vld [vmem:[%s2 + $0x10] sm:$0xff]
        %v1198 = vld [vmem:[%s2 + $0x18] sm:$0xff]
        %v1199 = vld [vmem:[%s2 + $0x20] sm:$0xff]
        %v1200 = vld [vmem:[%s2 + $0x28] sm:$0xff]
        %v1201 = vld [vmem:[%s2 + $0x30] sm:$0xff]
        %v1202 = vld [vmem:[%s2 + $0x38] sm:$0xff]
        %v1203 = vld [vmem:[%s2 + $0x40] sm:$0xff]
        %v1204 = vld [vmem:[%s2 + $0x48] sm:$0xff]
        %v1205 = vld [vmem:[%s2 + $0x50] sm:$0xff]
        %v1206 = vld [vmem:[%s2 + $0x58] sm:$0xff]
        %1208 = vset.pattern.permute.xlu0 0
        %1209 = vperm.xlu0 %1208, %v1183
        %v1210 = vpop.permute.xlu0 %1209
        %1213 = vset.pattern.permute.xlu0 0
        %1214 = vperm.xlu0 %1213, %v1184
        %v1215 = vpop.permute.xlu0 %1214
        %1218 = vset.pattern.permute.xlu0 0
        %1219 = vperm.xlu0 %1218, %v1185
        %v1220 = vpop.permute.xlu0 %1219
        %1223 = vset.pattern.permute.xlu0 0
        %1224 = vperm.xlu0 %1223, %v1186
        %v1225 = vpop.permute.xlu0 %1224
        %1228 = vset.pattern.permute.xlu0 0
        %1229 = vperm.xlu0 %1228, %v1187
        %v1230 = vpop.permute.xlu0 %1229
        %1233 = vset.pattern.permute.xlu0 0
        %1234 = vperm.xlu0 %1233, %v1188
        %v1235 = vpop.permute.xlu0 %1234
        %1238 = vset.pattern.permute.xlu0 0
        %1239 = vperm.xlu0 %1238, %v1189
        %v1240 = vpop.permute.xlu0 %1239
        %1243 = vset.pattern.permute.xlu0 0
        %1244 = vperm.xlu0 %1243, %v1190
        %v1245 = vpop.permute.xlu0 %1244
        %1248 = vset.pattern.permute.xlu0 0
        %1249 = vperm.xlu0 %1248, %v1191
        %v1250 = vpop.permute.xlu0 %1249
        %1253 = vset.pattern.permute.xlu0 0
        %1254 = vperm.xlu0 %1253, %v1192
        %v1255 = vpop.permute.xlu0 %1254
        %1258 = vset.pattern.permute.xlu0 0
        %1259 = vperm.xlu0 %1258, %v1193
        %v1260 = vpop.permute.xlu0 %1259
        %1263 = vset.pattern.permute.xlu0 0
        %1264 = vperm.xlu0 %1263, %v1194
        %v1265 = vpop.permute.xlu0 %1264
        %v1271 = vlaneseq
        %v1272 = vshrl.u32 %v1271, 7
        %v1273 = vsub.s32 0, %v1272
        %v1274 = vrot.slane %v336, %v1273
        %v1275 = vlaneseq
        %v1276 = vshrl.u32 %v1275, 7
        %v1277 = vsub.s32 1, %v1276
        %v1278 = vrot.slane %v336, %v1277
        %v1279 = vlaneseq
        %v1280 = vshrl.u32 %v1279, 7
        %v1281 = vsub.s32 2, %v1280
        %v1282 = vrot.slane %v336, %v1281
        %v1283 = vlaneseq
        %v1284 = vshrl.u32 %v1283, 7
        %v1285 = vsub.s32 3, %v1284
        %v1286 = vrot.slane %v336, %v1285
        %v1287 = vlaneseq
        %v1288 = vshrl.u32 %v1287, 7
        %v1289 = vsub.s32 4, %v1288
        %v1290 = vrot.slane %v336, %v1289
        %v1291 = vlaneseq
        %v1292 = vshrl.u32 %v1291, 7
        %v1293 = vsub.s32 5, %v1292
        %v1294 = vrot.slane %v336, %v1293
        %v1295 = vlaneseq
        %v1296 = vshrl.u32 %v1295, 7
        %v1297 = vsub.s32 6, %v1296
        %v1298 = vrot.slane %v336, %v1297
        %v1299 = vlaneseq
        %v1300 = vshrl.u32 %v1299, 7
        %v1301 = vsub.s32 7, %v1300
        %v1302 = vrot.slane %v336, %v1301
        %v1303 = vlaneseq
        %v1304 = vshrl.u32 %v1303, 7
        %v1305 = vsub.s32 0, %v1304
        %v1306 = vrot.slane %v338, %v1305
        %v1307 = vlaneseq
        %v1308 = vshrl.u32 %v1307, 7
        %v1309 = vsub.s32 1, %v1308
        %v1310 = vrot.slane %v338, %v1309
        %v1311 = vlaneseq
        %v1312 = vshrl.u32 %v1311, 7
        %v1313 = vsub.s32 2, %v1312
        %v1314 = vrot.slane %v338, %v1313
        %v1315 = vlaneseq
        %v1316 = vshrl.u32 %v1315, 7
        %v1317 = vsub.s32 3, %v1316
        %v1318 = vrot.slane %v338, %v1317
        %v1319 = vlaneseq
        %v1320 = vshrl.u32 %v1319, 7
        %v1321 = vsub.s32 4, %v1320
        %v1322 = vrot.slane %v338, %v1321
        %v1323 = vlaneseq
        %v1324 = vshrl.u32 %v1323, 7
        %v1325 = vsub.s32 5, %v1324
        %v1326 = vrot.slane %v338, %v1325
        %v1327 = vlaneseq
        %v1328 = vshrl.u32 %v1327, 7
        %v1329 = vsub.s32 6, %v1328
        %v1330 = vrot.slane %v338, %v1329
        %v1331 = vlaneseq
        %v1332 = vshrl.u32 %v1331, 7
        %v1333 = vsub.s32 7, %v1332
        %v1334 = vrot.slane %v338, %v1333
        %v1335 = vlaneseq
        %v1336 = vshrl.u32 %v1335, 7
        %v1337 = vsub.s32 0, %v1336
        %v1338 = vrot.slane %v340, %v1337
        %v1339 = vlaneseq
        %v1340 = vshrl.u32 %v1339, 7
        %v1341 = vsub.s32 1, %v1340
        %v1342 = vrot.slane %v340, %v1341
        %v1343 = vlaneseq
        %v1344 = vshrl.u32 %v1343, 7
        %v1345 = vsub.s32 2, %v1344
        %v1346 = vrot.slane %v340, %v1345
        %v1347 = vlaneseq
        %v1348 = vshrl.u32 %v1347, 7
        %v1349 = vsub.s32 3, %v1348
        %v1350 = vrot.slane %v340, %v1349
        %v1351 = vlaneseq
        %v1352 = vshrl.u32 %v1351, 7
        %v1353 = vsub.s32 4, %v1352
        %v1354 = vrot.slane %v340, %v1353
        %v1355 = vlaneseq
        %v1356 = vshrl.u32 %v1355, 7
        %v1357 = vsub.s32 5, %v1356
        %v1358 = vrot.slane %v340, %v1357
        %v1359 = vlaneseq
        %v1360 = vshrl.u32 %v1359, 7
        %v1361 = vsub.s32 6, %v1360
        %v1362 = vrot.slane %v340, %v1361
        %v1363 = vlaneseq
        %v1364 = vshrl.u32 %v1363, 7
        %v1365 = vsub.s32 7, %v1364
        %v1366 = vrot.slane %v340, %v1365
        %v1367 = vlaneseq
        %v1368 = vshrl.u32 %v1367, 7
        %v1369 = vsub.s32 0, %v1368
        %v1370 = vrot.slane %v342, %v1369
        %v1371 = vlaneseq
        %v1372 = vshrl.u32 %v1371, 7
        %v1373 = vsub.s32 1, %v1372
        %v1374 = vrot.slane %v342, %v1373
        %v1375 = vlaneseq
        %v1376 = vshrl.u32 %v1375, 7
        %v1377 = vsub.s32 2, %v1376
        %v1378 = vrot.slane %v342, %v1377
        %v1379 = vlaneseq
        %v1380 = vshrl.u32 %v1379, 7
        %v1381 = vsub.s32 3, %v1380
        %v1382 = vrot.slane %v342, %v1381
        %v1383 = vlaneseq
        %v1384 = vshrl.u32 %v1383, 7
        %v1385 = vsub.s32 4, %v1384
        %v1386 = vrot.slane %v342, %v1385
        %v1387 = vlaneseq
        %v1388 = vshrl.u32 %v1387, 7
        %v1389 = vsub.s32 5, %v1388
        %v1390 = vrot.slane %v342, %v1389
        %v1391 = vlaneseq
        %v1392 = vshrl.u32 %v1391, 7
        %v1393 = vsub.s32 6, %v1392
        %v1394 = vrot.slane %v342, %v1393
        %v1395 = vlaneseq
        %v1396 = vshrl.u32 %v1395, 7
        %v1397 = vsub.s32 7, %v1396
        %v1398 = vrot.slane %v342, %v1397
        %v1431 = vmul.f32 %v1210, %v1274
        %v1432 = vmul.f32 %v1210, %v1278
        %v1433 = vmul.f32 %v1210, %v1282
        %v1434 = vmul.f32 %v1210, %v1286
        %v1435 = vmul.f32 %v1210, %v1290
        %v1436 = vmul.f32 %v1210, %v1294
        %v1437 = vmul.f32 %v1210, %v1298
        %v1438 = vmul.f32 %v1210, %v1302
        %v1439 = vmul.f32 %v1210, %v1306
        %v1440 = vmul.f32 %v1210, %v1310
        %v1441 = vmul.f32 %v1210, %v1314
        %v1442 = vmul.f32 %v1210, %v1318
        %v1443 = vmul.f32 %v1210, %v1322
        %v1444 = vmul.f32 %v1210, %v1326
        %v1445 = vmul.f32 %v1210, %v1330
        %v1446 = vmul.f32 %v1210, %v1334
        %v1447 = vmul.f32 %v1210, %v1338
        %v1448 = vmul.f32 %v1210, %v1342
        %v1449 = vmul.f32 %v1210, %v1346
        %v1450 = vmul.f32 %v1210, %v1350
        %v1451 = vmul.f32 %v1210, %v1354
        %v1452 = vmul.f32 %v1210, %v1358
        %v1453 = vmul.f32 %v1210, %v1362
        %v1454 = vmul.f32 %v1210, %v1366
        %v1455 = vmul.f32 %v1210, %v1370
        %v1456 = vmul.f32 %v1210, %v1374
        %v1457 = vmul.f32 %v1210, %v1378
        %v1458 = vmul.f32 %v1210, %v1382
        %v1459 = vmul.f32 %v1210, %v1386
        %v1460 = vmul.f32 %v1210, %v1390
        %v1461 = vmul.f32 %v1210, %v1394
        %v1462 = vmul.f32 %v1210, %v1398
        %v1463 = vmul.f32 %v1215, %v1274
        %v1464 = vmul.f32 %v1215, %v1278
        %v1465 = vmul.f32 %v1215, %v1282
        %v1466 = vmul.f32 %v1215, %v1286
        %v1467 = vmul.f32 %v1215, %v1290
        %v1468 = vmul.f32 %v1215, %v1294
        %v1469 = vmul.f32 %v1215, %v1298
        %v1470 = vmul.f32 %v1215, %v1302
        %v1471 = vmul.f32 %v1215, %v1306
        %v1472 = vmul.f32 %v1215, %v1310
        %v1473 = vmul.f32 %v1215, %v1314
        %v1474 = vmul.f32 %v1215, %v1318
        %v1475 = vmul.f32 %v1215, %v1322
        %v1476 = vmul.f32 %v1215, %v1326
        %v1477 = vmul.f32 %v1215, %v1330
        %v1478 = vmul.f32 %v1215, %v1334
        %v1479 = vmul.f32 %v1215, %v1338
        %v1480 = vmul.f32 %v1215, %v1342
        %v1481 = vmul.f32 %v1215, %v1346
        %v1482 = vmul.f32 %v1215, %v1350
        %v1483 = vmul.f32 %v1215, %v1354
        %v1484 = vmul.f32 %v1215, %v1358
        %v1485 = vmul.f32 %v1215, %v1362
        %v1486 = vmul.f32 %v1215, %v1366
        %v1487 = vmul.f32 %v1215, %v1370
        %v1488 = vmul.f32 %v1215, %v1374
        %v1489 = vmul.f32 %v1215, %v1378
        %v1490 = vmul.f32 %v1215, %v1382
        %v1491 = vmul.f32 %v1215, %v1386
        %v1492 = vmul.f32 %v1215, %v1390
        %v1493 = vmul.f32 %v1215, %v1394
        %v1494 = vmul.f32 %v1215, %v1398
        %v1495 = vmul.f32 %v1220, %v1274
        %v1496 = vmul.f32 %v1220, %v1278
        %v1497 = vmul.f32 %v1220, %v1282
        %v1498 = vmul.f32 %v1220, %v1286
        %v1499 = vmul.f32 %v1220, %v1290
        %v1500 = vmul.f32 %v1220, %v1294
        %v1501 = vmul.f32 %v1220, %v1298
        %v1502 = vmul.f32 %v1220, %v1302
        %v1503 = vmul.f32 %v1220, %v1306
        %v1504 = vmul.f32 %v1220, %v1310
        %v1505 = vmul.f32 %v1220, %v1314
        %v1506 = vmul.f32 %v1220, %v1318
        %v1507 = vmul.f32 %v1220, %v1322
        %v1508 = vmul.f32 %v1220, %v1326
        %v1509 = vmul.f32 %v1220, %v1330
        %v1510 = vmul.f32 %v1220, %v1334
        %v1511 = vmul.f32 %v1220, %v1338
        %v1512 = vmul.f32 %v1220, %v1342
        %v1513 = vmul.f32 %v1220, %v1346
        %v1514 = vmul.f32 %v1220, %v1350
        %v1515 = vmul.f32 %v1220, %v1354
        %v1516 = vmul.f32 %v1220, %v1358
        %v1517 = vmul.f32 %v1220, %v1362
        %v1518 = vmul.f32 %v1220, %v1366
        %v1519 = vmul.f32 %v1220, %v1370
        %v1520 = vmul.f32 %v1220, %v1374
        %v1521 = vmul.f32 %v1220, %v1378
        %v1522 = vmul.f32 %v1220, %v1382
        %v1523 = vmul.f32 %v1220, %v1386
        %v1524 = vmul.f32 %v1220, %v1390
        %v1525 = vmul.f32 %v1220, %v1394
        %v1526 = vmul.f32 %v1220, %v1398
        %v1527 = vmul.f32 %v1225, %v1274
        %v1528 = vmul.f32 %v1225, %v1278
        %v1529 = vmul.f32 %v1225, %v1282
        %v1530 = vmul.f32 %v1225, %v1286
        %v1531 = vmul.f32 %v1225, %v1290
        %v1532 = vmul.f32 %v1225, %v1294
        %v1533 = vmul.f32 %v1225, %v1298
        %v1534 = vmul.f32 %v1225, %v1302
        %v1535 = vmul.f32 %v1225, %v1306
        %v1536 = vmul.f32 %v1225, %v1310
        %v1537 = vmul.f32 %v1225, %v1314
        %v1538 = vmul.f32 %v1225, %v1318
        %v1539 = vmul.f32 %v1225, %v1322
        %v1540 = vmul.f32 %v1225, %v1326
        %v1541 = vmul.f32 %v1225, %v1330
        %v1542 = vmul.f32 %v1225, %v1334
        %v1543 = vmul.f32 %v1225, %v1338
        %v1544 = vmul.f32 %v1225, %v1342
        %v1545 = vmul.f32 %v1225, %v1346
        %v1546 = vmul.f32 %v1225, %v1350
        %v1547 = vmul.f32 %v1225, %v1354
        %v1548 = vmul.f32 %v1225, %v1358
        %v1549 = vmul.f32 %v1225, %v1362
        %v1550 = vmul.f32 %v1225, %v1366
        %v1551 = vmul.f32 %v1225, %v1370
        %v1552 = vmul.f32 %v1225, %v1374
        %v1553 = vmul.f32 %v1225, %v1378
        %v1554 = vmul.f32 %v1225, %v1382
        %v1555 = vmul.f32 %v1225, %v1386
        %v1556 = vmul.f32 %v1225, %v1390
        %v1557 = vmul.f32 %v1225, %v1394
        %v1558 = vmul.f32 %v1225, %v1398
        %v1559 = vmul.f32 %v1230, %v1274
        %v1560 = vmul.f32 %v1230, %v1278
        %v1561 = vmul.f32 %v1230, %v1282
        %v1562 = vmul.f32 %v1230, %v1286
        %v1563 = vmul.f32 %v1230, %v1290
        %v1564 = vmul.f32 %v1230, %v1294
        %v1565 = vmul.f32 %v1230, %v1298
        %v1566 = vmul.f32 %v1230, %v1302
        %v1567 = vmul.f32 %v1230, %v1306
        %v1568 = vmul.f32 %v1230, %v1310
        %v1569 = vmul.f32 %v1230, %v1314
        %v1570 = vmul.f32 %v1230, %v1318
        %v1571 = vmul.f32 %v1230, %v1322
        %v1572 = vmul.f32 %v1230, %v1326
        %v1573 = vmul.f32 %v1230, %v1330
        %v1574 = vmul.f32 %v1230, %v1334
        %v1575 = vmul.f32 %v1230, %v1338
        %v1576 = vmul.f32 %v1230, %v1342
        %v1577 = vmul.f32 %v1230, %v1346
        %v1578 = vmul.f32 %v1230, %v1350
        %v1579 = vmul.f32 %v1230, %v1354
        %v1580 = vmul.f32 %v1230, %v1358
        %v1581 = vmul.f32 %v1230, %v1362
        %v1582 = vmul.f32 %v1230, %v1366
        %v1583 = vmul.f32 %v1230, %v1370
        %v1584 = vmul.f32 %v1230, %v1374
        %v1585 = vmul.f32 %v1230, %v1378
        %v1586 = vmul.f32 %v1230, %v1382
        %v1587 = vmul.f32 %v1230, %v1386
        %v1588 = vmul.f32 %v1230, %v1390
        %v1589 = vmul.f32 %v1230, %v1394
        %v1590 = vmul.f32 %v1230, %v1398
        %v1591 = vmul.f32 %v1235, %v1274
        %v1592 = vmul.f32 %v1235, %v1278
        %v1593 = vmul.f32 %v1235, %v1282
        %v1594 = vmul.f32 %v1235, %v1286
        %v1595 = vmul.f32 %v1235, %v1290
        %v1596 = vmul.f32 %v1235, %v1294
        %v1597 = vmul.f32 %v1235, %v1298
        %v1598 = vmul.f32 %v1235, %v1302
        %v1599 = vmul.f32 %v1235, %v1306
        %v1600 = vmul.f32 %v1235, %v1310
        %v1601 = vmul.f32 %v1235, %v1314
        %v1602 = vmul.f32 %v1235, %v1318
        %v1603 = vmul.f32 %v1235, %v1322
        %v1604 = vmul.f32 %v1235, %v1326
        %v1605 = vmul.f32 %v1235, %v1330
        %v1606 = vmul.f32 %v1235, %v1334
        %v1607 = vmul.f32 %v1235, %v1338
        %v1608 = vmul.f32 %v1235, %v1342
        %v1609 = vmul.f32 %v1235, %v1346
        %v1610 = vmul.f32 %v1235, %v1350
        %v1611 = vmul.f32 %v1235, %v1354
        %v1612 = vmul.f32 %v1235, %v1358
        %v1613 = vmul.f32 %v1235, %v1362
        %v1614 = vmul.f32 %v1235, %v1366
        %v1615 = vmul.f32 %v1235, %v1370
        %v1616 = vmul.f32 %v1235, %v1374
        %v1617 = vmul.f32 %v1235, %v1378
        %v1618 = vmul.f32 %v1235, %v1382
        %v1619 = vmul.f32 %v1235, %v1386
        %v1620 = vmul.f32 %v1235, %v1390
        %v1621 = vmul.f32 %v1235, %v1394
        %v1622 = vmul.f32 %v1235, %v1398
        %v1623 = vmul.f32 %v1240, %v1274
        %v1624 = vmul.f32 %v1240, %v1278
        %v1625 = vmul.f32 %v1240, %v1282
        %v1626 = vmul.f32 %v1240, %v1286
        %v1627 = vmul.f32 %v1240, %v1290
        %v1628 = vmul.f32 %v1240, %v1294
        %v1629 = vmul.f32 %v1240, %v1298
        %v1630 = vmul.f32 %v1240, %v1302
        %v1631 = vmul.f32 %v1240, %v1306
        %v1632 = vmul.f32 %v1240, %v1310
        %v1633 = vmul.f32 %v1240, %v1314
        %v1634 = vmul.f32 %v1240, %v1318
        %v1635 = vmul.f32 %v1240, %v1322
        %v1636 = vmul.f32 %v1240, %v1326
        %v1637 = vmul.f32 %v1240, %v1330
        %v1638 = vmul.f32 %v1240, %v1334
        %v1639 = vmul.f32 %v1240, %v1338
        %v1640 = vmul.f32 %v1240, %v1342
        %v1641 = vmul.f32 %v1240, %v1346
        %v1642 = vmul.f32 %v1240, %v1350
        %v1643 = vmul.f32 %v1240, %v1354
        %v1644 = vmul.f32 %v1240, %v1358
        %v1645 = vmul.f32 %v1240, %v1362
        %v1646 = vmul.f32 %v1240, %v1366
        %v1647 = vmul.f32 %v1240, %v1370
        %v1648 = vmul.f32 %v1240, %v1374
        %v1649 = vmul.f32 %v1240, %v1378
        %v1650 = vmul.f32 %v1240, %v1382
        %v1651 = vmul.f32 %v1240, %v1386
        %v1652 = vmul.f32 %v1240, %v1390
        %v1653 = vmul.f32 %v1240, %v1394
        %v1654 = vmul.f32 %v1240, %v1398
        %v1655 = vmul.f32 %v1245, %v1274
        %v1656 = vmul.f32 %v1245, %v1278
        %v1657 = vmul.f32 %v1245, %v1282
        %v1658 = vmul.f32 %v1245, %v1286
        %v1659 = vmul.f32 %v1245, %v1290
        %v1660 = vmul.f32 %v1245, %v1294
        %v1661 = vmul.f32 %v1245, %v1298
        %v1662 = vmul.f32 %v1245, %v1302
        %v1663 = vmul.f32 %v1245, %v1306
        %v1664 = vmul.f32 %v1245, %v1310
        %v1665 = vmul.f32 %v1245, %v1314
        %v1666 = vmul.f32 %v1245, %v1318
        %v1667 = vmul.f32 %v1245, %v1322
        %v1668 = vmul.f32 %v1245, %v1326
        %v1669 = vmul.f32 %v1245, %v1330
        %v1670 = vmul.f32 %v1245, %v1334
        %v1671 = vmul.f32 %v1245, %v1338
        %v1672 = vmul.f32 %v1245, %v1342
        %v1673 = vmul.f32 %v1245, %v1346
        %v1674 = vmul.f32 %v1245, %v1350
        %v1675 = vmul.f32 %v1245, %v1354
        %v1676 = vmul.f32 %v1245, %v1358
        %v1677 = vmul.f32 %v1245, %v1362
        %v1678 = vmul.f32 %v1245, %v1366
        %v1679 = vmul.f32 %v1245, %v1370
        %v1680 = vmul.f32 %v1245, %v1374
        %v1681 = vmul.f32 %v1245, %v1378
        %v1682 = vmul.f32 %v1245, %v1382
        %v1683 = vmul.f32 %v1245, %v1386
        %v1684 = vmul.f32 %v1245, %v1390
        %v1685 = vmul.f32 %v1245, %v1394
        %v1686 = vmul.f32 %v1245, %v1398
        %v1687 = vmul.f32 %v1250, %v1274
        %v1688 = vmul.f32 %v1250, %v1278
        %v1689 = vmul.f32 %v1250, %v1282
        %v1690 = vmul.f32 %v1250, %v1286
        %v1691 = vmul.f32 %v1250, %v1290
        %v1692 = vmul.f32 %v1250, %v1294
        %v1693 = vmul.f32 %v1250, %v1298
        %v1694 = vmul.f32 %v1250, %v1302
        %v1695 = vmul.f32 %v1250, %v1306
        %v1696 = vmul.f32 %v1250, %v1310
        %v1697 = vmul.f32 %v1250, %v1314
        %v1698 = vmul.f32 %v1250, %v1318
        %v1699 = vmul.f32 %v1250, %v1322
        %v1700 = vmul.f32 %v1250, %v1326
        %v1701 = vmul.f32 %v1250, %v1330
        %v1702 = vmul.f32 %v1250, %v1334
        %v1703 = vmul.f32 %v1250, %v1338
        %v1704 = vmul.f32 %v1250, %v1342
        %v1705 = vmul.f32 %v1250, %v1346
        %v1706 = vmul.f32 %v1250, %v1350
        %v1707 = vmul.f32 %v1250, %v1354
        %v1708 = vmul.f32 %v1250, %v1358
        %v1709 = vmul.f32 %v1250, %v1362
        %v1710 = vmul.f32 %v1250, %v1366
        %v1711 = vmul.f32 %v1250, %v1370
        %v1712 = vmul.f32 %v1250, %v1374
        %v1713 = vmul.f32 %v1250, %v1378
        %v1714 = vmul.f32 %v1250, %v1382
        %v1715 = vmul.f32 %v1250, %v1386
        %v1716 = vmul.f32 %v1250, %v1390
        %v1717 = vmul.f32 %v1250, %v1394
        %v1718 = vmul.f32 %v1250, %v1398
        %v1719 = vmul.f32 %v1255, %v1274
        %v1720 = vmul.f32 %v1255, %v1278
        %v1721 = vmul.f32 %v1255, %v1282
        %v1722 = vmul.f32 %v1255, %v1286
        %v1723 = vmul.f32 %v1255, %v1290
        %v1724 = vmul.f32 %v1255, %v1294
        %v1725 = vmul.f32 %v1255, %v1298
        %v1726 = vmul.f32 %v1255, %v1302
        %v1727 = vmul.f32 %v1255, %v1306
        %v1728 = vmul.f32 %v1255, %v1310
        %v1729 = vmul.f32 %v1255, %v1314
        %v1730 = vmul.f32 %v1255, %v1318
        %v1731 = vmul.f32 %v1255, %v1322
        %v1732 = vmul.f32 %v1255, %v1326
        %v1733 = vmul.f32 %v1255, %v1330
        %v1734 = vmul.f32 %v1255, %v1334
        %v1735 = vmul.f32 %v1255, %v1338
        %v1736 = vmul.f32 %v1255, %v1342
        %v1737 = vmul.f32 %v1255, %v1346
        %v1738 = vmul.f32 %v1255, %v1350
        %v1739 = vmul.f32 %v1255, %v1354
        %v1740 = vmul.f32 %v1255, %v1358
        %v1741 = vmul.f32 %v1255, %v1362
        %v1742 = vmul.f32 %v1255, %v1366
        %v1743 = vmul.f32 %v1255, %v1370
        %v1744 = vmul.f32 %v1255, %v1374
        %v1745 = vmul.f32 %v1255, %v1378
        %v1746 = vmul.f32 %v1255, %v1382
        %v1747 = vmul.f32 %v1255, %v1386
        %v1748 = vmul.f32 %v1255, %v1390
        %v1749 = vmul.f32 %v1255, %v1394
        %v1750 = vmul.f32 %v1255, %v1398
        %v1751 = vmul.f32 %v1260, %v1274
        %v1752 = vmul.f32 %v1260, %v1278
        %v1753 = vmul.f32 %v1260, %v1282
        %v1754 = vmul.f32 %v1260, %v1286
        %v1755 = vmul.f32 %v1260, %v1290
        %v1756 = vmul.f32 %v1260, %v1294
        %v1757 = vmul.f32 %v1260, %v1298
        %v1758 = vmul.f32 %v1260, %v1302
        %v1759 = vmul.f32 %v1260, %v1306
        %v1760 = vmul.f32 %v1260, %v1310
        %v1761 = vmul.f32 %v1260, %v1314
        %v1762 = vmul.f32 %v1260, %v1318
        %v1763 = vmul.f32 %v1260, %v1322
        %v1764 = vmul.f32 %v1260, %v1326
        %v1765 = vmul.f32 %v1260, %v1330
        %v1766 = vmul.f32 %v1260, %v1334
        %v1767 = vmul.f32 %v1260, %v1338
        %v1768 = vmul.f32 %v1260, %v1342
        %v1769 = vmul.f32 %v1260, %v1346
        %v1770 = vmul.f32 %v1260, %v1350
        %v1771 = vmul.f32 %v1260, %v1354
        %v1772 = vmul.f32 %v1260, %v1358
        %v1773 = vmul.f32 %v1260, %v1362
        %v1774 = vmul.f32 %v1260, %v1366
        %v1775 = vmul.f32 %v1260, %v1370
        %v1776 = vmul.f32 %v1260, %v1374
        %v1777 = vmul.f32 %v1260, %v1378
        %v1778 = vmul.f32 %v1260, %v1382
        %v1779 = vmul.f32 %v1260, %v1386
        %v1780 = vmul.f32 %v1260, %v1390
        %v1781 = vmul.f32 %v1260, %v1394
        %v1782 = vmul.f32 %v1260, %v1398
        %v1783 = vmul.f32 %v1265, %v1274
        %v1784 = vmul.f32 %v1265, %v1278
        %v1785 = vmul.f32 %v1265, %v1282
        %v1786 = vmul.f32 %v1265, %v1286
        %v1787 = vmul.f32 %v1265, %v1290
        %v1788 = vmul.f32 %v1265, %v1294
        %v1789 = vmul.f32 %v1265, %v1298
        %v1790 = vmul.f32 %v1265, %v1302
        %v1791 = vmul.f32 %v1265, %v1306
        %v1792 = vmul.f32 %v1265, %v1310
        %v1793 = vmul.f32 %v1265, %v1314
        %v1794 = vmul.f32 %v1265, %v1318
        %v1795 = vmul.f32 %v1265, %v1322
        %v1796 = vmul.f32 %v1265, %v1326
        %v1797 = vmul.f32 %v1265, %v1330
        %v1798 = vmul.f32 %v1265, %v1334
        %v1799 = vmul.f32 %v1265, %v1338
        %v1800 = vmul.f32 %v1265, %v1342
        %v1801 = vmul.f32 %v1265, %v1346
        %v1802 = vmul.f32 %v1265, %v1350
        %v1803 = vmul.f32 %v1265, %v1354
        %v1804 = vmul.f32 %v1265, %v1358
        %v1805 = vmul.f32 %v1265, %v1362
        %v1806 = vmul.f32 %v1265, %v1366
        %v1807 = vmul.f32 %v1265, %v1370
        %v1808 = vmul.f32 %v1265, %v1374
        %v1809 = vmul.f32 %v1265, %v1378
        %v1810 = vmul.f32 %v1265, %v1382
        %v1811 = vmul.f32 %v1265, %v1386
        %v1812 = vmul.f32 %v1265, %v1390
        %v1813 = vmul.f32 %v1265, %v1394
        %v1814 = vmul.f32 %v1265, %v1398
        %1816 = vset.pattern.permute.xlu0 0
        %1817 = vperm.xlu0 %1816, %v1195
        %v1818 = vpop.permute.xlu0 %1817
        %1821 = vset.pattern.permute.xlu0 0
        %1822 = vperm.xlu0 %1821, %v1196
        %v1823 = vpop.permute.xlu0 %1822
        %1826 = vset.pattern.permute.xlu0 0
        %1827 = vperm.xlu0 %1826, %v1197
        %v1828 = vpop.permute.xlu0 %1827
        %1831 = vset.pattern.permute.xlu0 0
        %1832 = vperm.xlu0 %1831, %v1198
        %v1833 = vpop.permute.xlu0 %1832
        %1836 = vset.pattern.permute.xlu0 0
        %1837 = vperm.xlu0 %1836, %v1199
        %v1838 = vpop.permute.xlu0 %1837
        %1841 = vset.pattern.permute.xlu0 0
        %1842 = vperm.xlu0 %1841, %v1200
        %v1843 = vpop.permute.xlu0 %1842
        %1846 = vset.pattern.permute.xlu0 0
        %1847 = vperm.xlu0 %1846, %v1201
        %v1848 = vpop.permute.xlu0 %1847
        %1851 = vset.pattern.permute.xlu0 0
        %1852 = vperm.xlu0 %1851, %v1202
        %v1853 = vpop.permute.xlu0 %1852
        %1856 = vset.pattern.permute.xlu0 0
        %1857 = vperm.xlu0 %1856, %v1203
        %v1858 = vpop.permute.xlu0 %1857
        %1861 = vset.pattern.permute.xlu0 0
        %1862 = vperm.xlu0 %1861, %v1204
        %v1863 = vpop.permute.xlu0 %1862
        %1866 = vset.pattern.permute.xlu0 0
        %1867 = vperm.xlu0 %1866, %v1205
        %v1868 = vpop.permute.xlu0 %1867
        %1871 = vset.pattern.permute.xlu0 0
        %1872 = vperm.xlu0 %1871, %v1206
        %v1873 = vpop.permute.xlu0 %1872
        %v1875 = vadd.f32 %v1818, %v1431
        %v1876 = vadd.f32 %v1818, %v1432
        %v1877 = vadd.f32 %v1818, %v1433
        %v1878 = vadd.f32 %v1818, %v1434
        %v1879 = vadd.f32 %v1818, %v1435
        %v1880 = vadd.f32 %v1818, %v1436
        %v1881 = vadd.f32 %v1818, %v1437
        %v1882 = vadd.f32 %v1818, %v1438
        %v1883 = vadd.f32 %v1818, %v1439
        %v1884 = vadd.f32 %v1818, %v1440
        %v1885 = vadd.f32 %v1818, %v1441
        %v1886 = vadd.f32 %v1818, %v1442
        %v1887 = vadd.f32 %v1818, %v1443
        %v1888 = vadd.f32 %v1818, %v1444
        %v1889 = vadd.f32 %v1818, %v1445
        %v1890 = vadd.f32 %v1818, %v1446
        %v1891 = vadd.f32 %v1818, %v1447
        %v1892 = vadd.f32 %v1818, %v1448
        %v1893 = vadd.f32 %v1818, %v1449
        %v1894 = vadd.f32 %v1818, %v1450
        %v1895 = vadd.f32 %v1818, %v1451
        %v1896 = vadd.f32 %v1818, %v1452
        %v1897 = vadd.f32 %v1818, %v1453
        %v1898 = vadd.f32 %v1818, %v1454
        %v1899 = vadd.f32 %v1818, %v1455
        %v1900 = vadd.f32 %v1818, %v1456
        %v1901 = vadd.f32 %v1818, %v1457
        %v1902 = vadd.f32 %v1818, %v1458
        %v1903 = vadd.f32 %v1818, %v1459
        %v1904 = vadd.f32 %v1818, %v1460
        %v1905 = vadd.f32 %v1818, %v1461
        %v1906 = vadd.f32 %v1818, %v1462
        %v1907 = vadd.f32 %v1823, %v1463
        %v1908 = vadd.f32 %v1823, %v1464
        %v1909 = vadd.f32 %v1823, %v1465
        %v1910 = vadd.f32 %v1823, %v1466
        %v1911 = vadd.f32 %v1823, %v1467
        %v1912 = vadd.f32 %v1823, %v1468
        %v1913 = vadd.f32 %v1823, %v1469
        %v1914 = vadd.f32 %v1823, %v1470
        %v1915 = vadd.f32 %v1823, %v1471
        %v1916 = vadd.f32 %v1823, %v1472
        %v1917 = vadd.f32 %v1823, %v1473
        %v1918 = vadd.f32 %v1823, %v1474
        %v1919 = vadd.f32 %v1823, %v1475
        %v1920 = vadd.f32 %v1823, %v1476
        %v1921 = vadd.f32 %v1823, %v1477
        %v1922 = vadd.f32 %v1823, %v1478
        %v1923 = vadd.f32 %v1823, %v1479
        %v1924 = vadd.f32 %v1823, %v1480
        %v1925 = vadd.f32 %v1823, %v1481
        %v1926 = vadd.f32 %v1823, %v1482
        %v1927 = vadd.f32 %v1823, %v1483
        %v1928 = vadd.f32 %v1823, %v1484
        %v1929 = vadd.f32 %v1823, %v1485
        %v1930 = vadd.f32 %v1823, %v1486
        %v1931 = vadd.f32 %v1823, %v1487
        %v1932 = vadd.f32 %v1823, %v1488
        %v1933 = vadd.f32 %v1823, %v1489
        %v1934 = vadd.f32 %v1823, %v1490
        %v1935 = vadd.f32 %v1823, %v1491
        %v1936 = vadd.f32 %v1823, %v1492
        %v1937 = vadd.f32 %v1823, %v1493
        %v1938 = vadd.f32 %v1823, %v1494
        %v1939 = vadd.f32 %v1828, %v1495
        %v1940 = vadd.f32 %v1828, %v1496
        %v1941 = vadd.f32 %v1828, %v1497
        %v1942 = vadd.f32 %v1828, %v1498
        %v1943 = vadd.f32 %v1828, %v1499
        %v1944 = vadd.f32 %v1828, %v1500
        %v1945 = vadd.f32 %v1828, %v1501
        %v1946 = vadd.f32 %v1828, %v1502
        %v1947 = vadd.f32 %v1828, %v1503
        %v1948 = vadd.f32 %v1828, %v1504
        %v1949 = vadd.f32 %v1828, %v1505
        %v1950 = vadd.f32 %v1828, %v1506
        %v1951 = vadd.f32 %v1828, %v1507
        %v1952 = vadd.f32 %v1828, %v1508
        %v1953 = vadd.f32 %v1828, %v1509
        %v1954 = vadd.f32 %v1828, %v1510
        %v1955 = vadd.f32 %v1828, %v1511
        %v1956 = vadd.f32 %v1828, %v1512
        %v1957 = vadd.f32 %v1828, %v1513
        %v1958 = vadd.f32 %v1828, %v1514
        %v1959 = vadd.f32 %v1828, %v1515
        %v1960 = vadd.f32 %v1828, %v1516
        %v1961 = vadd.f32 %v1828, %v1517
        %v1962 = vadd.f32 %v1828, %v1518
        %v1963 = vadd.f32 %v1828, %v1519
        %v1964 = vadd.f32 %v1828, %v1520
        %v1965 = vadd.f32 %v1828, %v1521
        %v1966 = vadd.f32 %v1828, %v1522
        %v1967 = vadd.f32 %v1828, %v1523
        %v1968 = vadd.f32 %v1828, %v1524
        %v1969 = vadd.f32 %v1828, %v1525
        %v1970 = vadd.f32 %v1828, %v1526
        %v1971 = vadd.f32 %v1833, %v1527
        %v1972 = vadd.f32 %v1833, %v1528
        %v1973 = vadd.f32 %v1833, %v1529
        %v1974 = vadd.f32 %v1833, %v1530
        %v1975 = vadd.f32 %v1833, %v1531
        %v1976 = vadd.f32 %v1833, %v1532
        %v1977 = vadd.f32 %v1833, %v1533
        %v1978 = vadd.f32 %v1833, %v1534
        %v1979 = vadd.f32 %v1833, %v1535
        %v1980 = vadd.f32 %v1833, %v1536
        %v1981 = vadd.f32 %v1833, %v1537
        %v1982 = vadd.f32 %v1833, %v1538
        %v1983 = vadd.f32 %v1833, %v1539
        %v1984 = vadd.f32 %v1833, %v1540
        %v1985 = vadd.f32 %v1833, %v1541
        %v1986 = vadd.f32 %v1833, %v1542
        %v1987 = vadd.f32 %v1833, %v1543
        %v1988 = vadd.f32 %v1833, %v1544
        %v1989 = vadd.f32 %v1833, %v1545
        %v1990 = vadd.f32 %v1833, %v1546
        %v1991 = vadd.f32 %v1833, %v1547
        %v1992 = vadd.f32 %v1833, %v1548
        %v1993 = vadd.f32 %v1833, %v1549
        %v1994 = vadd.f32 %v1833, %v1550
        %v1995 = vadd.f32 %v1833, %v1551
        %v1996 = vadd.f32 %v1833, %v1552
        %v1997 = vadd.f32 %v1833, %v1553
        %v1998 = vadd.f32 %v1833, %v1554
        %v1999 = vadd.f32 %v1833, %v1555
        %v2000 = vadd.f32 %v1833, %v1556
        %v2001 = vadd.f32 %v1833, %v1557
        %v2002 = vadd.f32 %v1833, %v1558
        %v2003 = vadd.f32 %v1838, %v1559
        %v2004 = vadd.f32 %v1838, %v1560
        %v2005 = vadd.f32 %v1838, %v1561
        %v2006 = vadd.f32 %v1838, %v1562
        %v2007 = vadd.f32 %v1838, %v1563
        %v2008 = vadd.f32 %v1838, %v1564
        %v2009 = vadd.f32 %v1838, %v1565
        %v2010 = vadd.f32 %v1838, %v1566
        %v2011 = vadd.f32 %v1838, %v1567
        %v2012 = vadd.f32 %v1838, %v1568
        %v2013 = vadd.f32 %v1838, %v1569
        %v2014 = vadd.f32 %v1838, %v1570
        %v2015 = vadd.f32 %v1838, %v1571
        %v2016 = vadd.f32 %v1838, %v1572
        %v2017 = vadd.f32 %v1838, %v1573
        %v2018 = vadd.f32 %v1838, %v1574
        %v2019 = vadd.f32 %v1838, %v1575
        %v2020 = vadd.f32 %v1838, %v1576
        %v2021 = vadd.f32 %v1838, %v1577
        %v2022 = vadd.f32 %v1838, %v1578
        %v2023 = vadd.f32 %v1838, %v1579
        %v2024 = vadd.f32 %v1838, %v1580
        %v2025 = vadd.f32 %v1838, %v1581
        %v2026 = vadd.f32 %v1838, %v1582
        %v2027 = vadd.f32 %v1838, %v1583
        %v2028 = vadd.f32 %v1838, %v1584
        %v2029 = vadd.f32 %v1838, %v1585
        %v2030 = vadd.f32 %v1838, %v1586
        %v2031 = vadd.f32 %v1838, %v1587
        %v2032 = vadd.f32 %v1838, %v1588
        %v2033 = vadd.f32 %v1838, %v1589
        %v2034 = vadd.f32 %v1838, %v1590
        %v2035 = vadd.f32 %v1843, %v1591
        %v2036 = vadd.f32 %v1843, %v1592
        %v2037 = vadd.f32 %v1843, %v1593
        %v2038 = vadd.f32 %v1843, %v1594
        %v2039 = vadd.f32 %v1843, %v1595
        %v2040 = vadd.f32 %v1843, %v1596
        %v2041 = vadd.f32 %v1843, %v1597
        %v2042 = vadd.f32 %v1843, %v1598
        %v2043 = vadd.f32 %v1843, %v1599
        %v2044 = vadd.f32 %v1843, %v1600
        %v2045 = vadd.f32 %v1843, %v1601
        %v2046 = vadd.f32 %v1843, %v1602
        %v2047 = vadd.f32 %v1843, %v1603
        %v2048 = vadd.f32 %v1843, %v1604
        %v2049 = vadd.f32 %v1843, %v1605
        %v2050 = vadd.f32 %v1843, %v1606
        %v2051 = vadd.f32 %v1843, %v1607
        %v2052 = vadd.f32 %v1843, %v1608
        %v2053 = vadd.f32 %v1843, %v1609
        %v2054 = vadd.f32 %v1843, %v1610
        %v2055 = vadd.f32 %v1843, %v1611
        %v2056 = vadd.f32 %v1843, %v1612
        %v2057 = vadd.f32 %v1843, %v1613
        %v2058 = vadd.f32 %v1843, %v1614
        %v2059 = vadd.f32 %v1843, %v1615
        %v2060 = vadd.f32 %v1843, %v1616
        %v2061 = vadd.f32 %v1843, %v1617
        %v2062 = vadd.f32 %v1843, %v1618
        %v2063 = vadd.f32 %v1843, %v1619
        %v2064 = vadd.f32 %v1843, %v1620
        %v2065 = vadd.f32 %v1843, %v1621
        %v2066 = vadd.f32 %v1843, %v1622
        %v2067 = vadd.f32 %v1848, %v1623
        %v2068 = vadd.f32 %v1848, %v1624
        %v2069 = vadd.f32 %v1848, %v1625
        %v2070 = vadd.f32 %v1848, %v1626
        %v2071 = vadd.f32 %v1848, %v1627
        %v2072 = vadd.f32 %v1848, %v1628
        %v2073 = vadd.f32 %v1848, %v1629
        %v2074 = vadd.f32 %v1848, %v1630
        %v2075 = vadd.f32 %v1848, %v1631
        %v2076 = vadd.f32 %v1848, %v1632
        %v2077 = vadd.f32 %v1848, %v1633
        %v2078 = vadd.f32 %v1848, %v1634
        %v2079 = vadd.f32 %v1848, %v1635
        %v2080 = vadd.f32 %v1848, %v1636
        %v2081 = vadd.f32 %v1848, %v1637
        %v2082 = vadd.f32 %v1848, %v1638
        %v2083 = vadd.f32 %v1848, %v1639
        %v2084 = vadd.f32 %v1848, %v1640
        %v2085 = vadd.f32 %v1848, %v1641
        %v2086 = vadd.f32 %v1848, %v1642
        %v2087 = vadd.f32 %v1848, %v1643
        %v2088 = vadd.f32 %v1848, %v1644
        %v2089 = vadd.f32 %v1848, %v1645
        %v2090 = vadd.f32 %v1848, %v1646
        %v2091 = vadd.f32 %v1848, %v1647
        %v2092 = vadd.f32 %v1848, %v1648
        %v2093 = vadd.f32 %v1848, %v1649
        %v2094 = vadd.f32 %v1848, %v1650
        %v2095 = vadd.f32 %v1848, %v1651
        %v2096 = vadd.f32 %v1848, %v1652
        %v2097 = vadd.f32 %v1848, %v1653
        %v2098 = vadd.f32 %v1848, %v1654
        %v2099 = vadd.f32 %v1853, %v1655
        %v2100 = vadd.f32 %v1853, %v1656
        %v2101 = vadd.f32 %v1853, %v1657
        %v2102 = vadd.f32 %v1853, %v1658
        %v2103 = vadd.f32 %v1853, %v1659
        %v2104 = vadd.f32 %v1853, %v1660
        %v2105 = vadd.f32 %v1853, %v1661
        %v2106 = vadd.f32 %v1853, %v1662
        %v2107 = vadd.f32 %v1853, %v1663
        %v2108 = vadd.f32 %v1853, %v1664
        %v2109 = vadd.f32 %v1853, %v1665
        %v2110 = vadd.f32 %v1853, %v1666
        %v2111 = vadd.f32 %v1853, %v1667
        %v2112 = vadd.f32 %v1853, %v1668
        %v2113 = vadd.f32 %v1853, %v1669
        %v2114 = vadd.f32 %v1853, %v1670
        %v2115 = vadd.f32 %v1853, %v1671
        %v2116 = vadd.f32 %v1853, %v1672
        %v2117 = vadd.f32 %v1853, %v1673
        %v2118 = vadd.f32 %v1853, %v1674
        %v2119 = vadd.f32 %v1853, %v1675
        %v2120 = vadd.f32 %v1853, %v1676
        %v2121 = vadd.f32 %v1853, %v1677
        %v2122 = vadd.f32 %v1853, %v1678
        %v2123 = vadd.f32 %v1853, %v1679
        %v2124 = vadd.f32 %v1853, %v1680
        %v2125 = vadd.f32 %v1853, %v1681
        %v2126 = vadd.f32 %v1853, %v1682
        %v2127 = vadd.f32 %v1853, %v1683
        %v2128 = vadd.f32 %v1853, %v1684
        %v2129 = vadd.f32 %v1853, %v1685
        %v2130 = vadd.f32 %v1853, %v1686
        %v2131 = vadd.f32 %v1858, %v1687
        %v2132 = vadd.f32 %v1858, %v1688
        %v2133 = vadd.f32 %v1858, %v1689
        %v2134 = vadd.f32 %v1858, %v1690
        %v2135 = vadd.f32 %v1858, %v1691
        %v2136 = vadd.f32 %v1858, %v1692
        %v2137 = vadd.f32 %v1858, %v1693
        %v2138 = vadd.f32 %v1858, %v1694
        %v2139 = vadd.f32 %v1858, %v1695
        %v2140 = vadd.f32 %v1858, %v1696
        %v2141 = vadd.f32 %v1858, %v1697
        %v2142 = vadd.f32 %v1858, %v1698
        %v2143 = vadd.f32 %v1858, %v1699
        %v2144 = vadd.f32 %v1858, %v1700
        %v2145 = vadd.f32 %v1858, %v1701
        %v2146 = vadd.f32 %v1858, %v1702
        %v2147 = vadd.f32 %v1858, %v1703
        %v2148 = vadd.f32 %v1858, %v1704
        %v2149 = vadd.f32 %v1858, %v1705
        %v2150 = vadd.f32 %v1858, %v1706
        %v2151 = vadd.f32 %v1858, %v1707
        %v2152 = vadd.f32 %v1858, %v1708
        %v2153 = vadd.f32 %v1858, %v1709
        %v2154 = vadd.f32 %v1858, %v1710
        %v2155 = vadd.f32 %v1858, %v1711
        %v2156 = vadd.f32 %v1858, %v1712
        %v2157 = vadd.f32 %v1858, %v1713
        %v2158 = vadd.f32 %v1858, %v1714
        %v2159 = vadd.f32 %v1858, %v1715
        %v2160 = vadd.f32 %v1858, %v1716
        %v2161 = vadd.f32 %v1858, %v1717
        %v2162 = vadd.f32 %v1858, %v1718
        %v2163 = vadd.f32 %v1863, %v1719
        %v2164 = vadd.f32 %v1863, %v1720
        %v2165 = vadd.f32 %v1863, %v1721
        %v2166 = vadd.f32 %v1863, %v1722
        %v2167 = vadd.f32 %v1863, %v1723
        %v2168 = vadd.f32 %v1863, %v1724
        %v2169 = vadd.f32 %v1863, %v1725
        %v2170 = vadd.f32 %v1863, %v1726
        %v2171 = vadd.f32 %v1863, %v1727
        %v2172 = vadd.f32 %v1863, %v1728
        %v2173 = vadd.f32 %v1863, %v1729
        %v2174 = vadd.f32 %v1863, %v1730
        %v2175 = vadd.f32 %v1863, %v1731
        %v2176 = vadd.f32 %v1863, %v1732
        %v2177 = vadd.f32 %v1863, %v1733
        %v2178 = vadd.f32 %v1863, %v1734
        %v2179 = vadd.f32 %v1863, %v1735
        %v2180 = vadd.f32 %v1863, %v1736
        %v2181 = vadd.f32 %v1863, %v1737
        %v2182 = vadd.f32 %v1863, %v1738
        %v2183 = vadd.f32 %v1863, %v1739
        %v2184 = vadd.f32 %v1863, %v1740
        %v2185 = vadd.f32 %v1863, %v1741
        %v2186 = vadd.f32 %v1863, %v1742
        %v2187 = vadd.f32 %v1863, %v1743
        %v2188 = vadd.f32 %v1863, %v1744
        %v2189 = vadd.f32 %v1863, %v1745
        %v2190 = vadd.f32 %v1863, %v1746
        %v2191 = vadd.f32 %v1863, %v1747
        %v2192 = vadd.f32 %v1863, %v1748
        %v2193 = vadd.f32 %v1863, %v1749
        %v2194 = vadd.f32 %v1863, %v1750
        %v2195 = vadd.f32 %v1868, %v1751
        %v2196 = vadd.f32 %v1868, %v1752
        %v2197 = vadd.f32 %v1868, %v1753
        %v2198 = vadd.f32 %v1868, %v1754
        %v2199 = vadd.f32 %v1868, %v1755
        %v2200 = vadd.f32 %v1868, %v1756
        %v2201 = vadd.f32 %v1868, %v1757
        %v2202 = vadd.f32 %v1868, %v1758
        %v2203 = vadd.f32 %v1868, %v1759
        %v2204 = vadd.f32 %v1868, %v1760
        %v2205 = vadd.f32 %v1868, %v1761
        %v2206 = vadd.f32 %v1868, %v1762
        %v2207 = vadd.f32 %v1868, %v1763
        %v2208 = vadd.f32 %v1868, %v1764
        %v2209 = vadd.f32 %v1868, %v1765
        %v2210 = vadd.f32 %v1868, %v1766
        %v2211 = vadd.f32 %v1868, %v1767
        %v2212 = vadd.f32 %v1868, %v1768
        %v2213 = vadd.f32 %v1868, %v1769
        %v2214 = vadd.f32 %v1868, %v1770
        %v2215 = vadd.f32 %v1868, %v1771
        %v2216 = vadd.f32 %v1868, %v1772
        %v2217 = vadd.f32 %v1868, %v1773
        %v2218 = vadd.f32 %v1868, %v1774
        %v2219 = vadd.f32 %v1868, %v1775
        %v2220 = vadd.f32 %v1868, %v1776
        %v2221 = vadd.f32 %v1868, %v1777
        %v2222 = vadd.f32 %v1868, %v1778
        %v2223 = vadd.f32 %v1868, %v1779
        %v2224 = vadd.f32 %v1868, %v1780
        %v2225 = vadd.f32 %v1868, %v1781
        %v2226 = vadd.f32 %v1868, %v1782
        %v2227 = vadd.f32 %v1873, %v1783
        %v2228 = vadd.f32 %v1873, %v1784
        %v2229 = vadd.f32 %v1873, %v1785
        %v2230 = vadd.f32 %v1873, %v1786
        %v2231 = vadd.f32 %v1873, %v1787
        %v2232 = vadd.f32 %v1873, %v1788
        %v2233 = vadd.f32 %v1873, %v1789
        %v2234 = vadd.f32 %v1873, %v1790
        %v2235 = vadd.f32 %v1873, %v1791
        %v2236 = vadd.f32 %v1873, %v1792
        %v2237 = vadd.f32 %v1873, %v1793
        %v2238 = vadd.f32 %v1873, %v1794
        %v2239 = vadd.f32 %v1873, %v1795
        %v2240 = vadd.f32 %v1873, %v1796
        %v2241 = vadd.f32 %v1873, %v1797
        %v2242 = vadd.f32 %v1873, %v1798
        %v2243 = vadd.f32 %v1873, %v1799
        %v2244 = vadd.f32 %v1873, %v1800
        %v2245 = vadd.f32 %v1873, %v1801
        %v2246 = vadd.f32 %v1873, %v1802
        %v2247 = vadd.f32 %v1873, %v1803
        %v2248 = vadd.f32 %v1873, %v1804
        %v2249 = vadd.f32 %v1873, %v1805
        %v2250 = vadd.f32 %v1873, %v1806
        %v2251 = vadd.f32 %v1873, %v1807
        %v2252 = vadd.f32 %v1873, %v1808
        %v2253 = vadd.f32 %v1873, %v1809
        %v2254 = vadd.f32 %v1873, %v1810
        %v2255 = vadd.f32 %v1873, %v1811
        %v2256 = vadd.f32 %v1873, %v1812
        %v2257 = vadd.f32 %v1873, %v1813
        %v2258 = vadd.f32 %v1873, %v1814
        %2259 = vset.pattern.permute.xlu0 1
        %2260 = vperm.xlu0 %2259, %v1183
        %v2261 = vpop.permute.xlu0 %2260
        %2263 = vset.pattern.permute.xlu0 1
        %2264 = vperm.xlu0 %2263, %v1184
        %v2265 = vpop.permute.xlu0 %2264
        %2267 = vset.pattern.permute.xlu0 1
        %2268 = vperm.xlu0 %2267, %v1185
        %v2269 = vpop.permute.xlu0 %2268
        %2271 = vset.pattern.permute.xlu0 1
        %2272 = vperm.xlu0 %2271, %v1186
        %v2273 = vpop.permute.xlu0 %2272
        %2275 = vset.pattern.permute.xlu0 1
        %2276 = vperm.xlu0 %2275, %v1187
        %v2277 = vpop.permute.xlu0 %2276
        %2279 = vset.pattern.permute.xlu0 1
        %2280 = vperm.xlu0 %2279, %v1188
        %v2281 = vpop.permute.xlu0 %2280
        %2283 = vset.pattern.permute.xlu0 1
        %2284 = vperm.xlu0 %2283, %v1189
        %v2285 = vpop.permute.xlu0 %2284
        %2287 = vset.pattern.permute.xlu0 1
        %2288 = vperm.xlu0 %2287, %v1190
        %v2289 = vpop.permute.xlu0 %2288
        %2291 = vset.pattern.permute.xlu0 1
        %2292 = vperm.xlu0 %2291, %v1191
        %v2293 = vpop.permute.xlu0 %2292
        %2295 = vset.pattern.permute.xlu0 1
        %2296 = vperm.xlu0 %2295, %v1192
        %v2297 = vpop.permute.xlu0 %2296
        %2299 = vset.pattern.permute.xlu0 1
        %2300 = vperm.xlu0 %2299, %v1193
        %v2301 = vpop.permute.xlu0 %2300
        %2303 = vset.pattern.permute.xlu0 1
        %2304 = vperm.xlu0 %2303, %v1194
        %v2305 = vpop.permute.xlu0 %2304
        %v2311 = vlaneseq
        %v2312 = vshrl.u32 %v2311, 7
        %v2313 = vsub.s32 0, %v2312
        %v2314 = vrot.slane %v457, %v2313
        %v2315 = vlaneseq
        %v2316 = vshrl.u32 %v2315, 7
        %v2317 = vsub.s32 1, %v2316
        %v2318 = vrot.slane %v457, %v2317
        %v2319 = vlaneseq
        %v2320 = vshrl.u32 %v2319, 7
        %v2321 = vsub.s32 2, %v2320
        %v2322 = vrot.slane %v457, %v2321
        %v2323 = vlaneseq
        %v2324 = vshrl.u32 %v2323, 7
        %v2325 = vsub.s32 3, %v2324
        %v2326 = vrot.slane %v457, %v2325
        %v2327 = vlaneseq
        %v2328 = vshrl.u32 %v2327, 7
        %v2329 = vsub.s32 4, %v2328
        %v2330 = vrot.slane %v457, %v2329
        %v2331 = vlaneseq
        %v2332 = vshrl.u32 %v2331, 7
        %v2333 = vsub.s32 5, %v2332
        %v2334 = vrot.slane %v457, %v2333
        %v2335 = vlaneseq
        %v2336 = vshrl.u32 %v2335, 7
        %v2337 = vsub.s32 6, %v2336
        %v2338 = vrot.slane %v457, %v2337
        %v2339 = vlaneseq
        %v2340 = vshrl.u32 %v2339, 7
        %v2341 = vsub.s32 7, %v2340
        %v2342 = vrot.slane %v457, %v2341
        %v2343 = vlaneseq
        %v2344 = vshrl.u32 %v2343, 7
        %v2345 = vsub.s32 0, %v2344
        %v2346 = vrot.slane %v560, %v2345
        %v2347 = vlaneseq
        %v2348 = vshrl.u32 %v2347, 7
        %v2349 = vsub.s32 1, %v2348
        %v2350 = vrot.slane %v560, %v2349
        %v2351 = vlaneseq
        %v2352 = vshrl.u32 %v2351, 7
        %v2353 = vsub.s32 2, %v2352
        %v2354 = vrot.slane %v560, %v2353
        %v2355 = vlaneseq
        %v2356 = vshrl.u32 %v2355, 7
        %v2357 = vsub.s32 3, %v2356
        %v2358 = vrot.slane %v560, %v2357
        %v2359 = vlaneseq
        %v2360 = vshrl.u32 %v2359, 7
        %v2361 = vsub.s32 4, %v2360
        %v2362 = vrot.slane %v560, %v2361
        %v2363 = vlaneseq
        %v2364 = vshrl.u32 %v2363, 7
        %v2365 = vsub.s32 5, %v2364
        %v2366 = vrot.slane %v560, %v2365
        %v2367 = vlaneseq
        %v2368 = vshrl.u32 %v2367, 7
        %v2369 = vsub.s32 6, %v2368
        %v2370 = vrot.slane %v560, %v2369
        %v2371 = vlaneseq
        %v2372 = vshrl.u32 %v2371, 7
        %v2373 = vsub.s32 7, %v2372
        %v2374 = vrot.slane %v560, %v2373
        %v2375 = vlaneseq
        %v2376 = vshrl.u32 %v2375, 7
        %v2377 = vsub.s32 0, %v2376
        %v2378 = vrot.slane %v663, %v2377
        %v2379 = vlaneseq
        %v2380 = vshrl.u32 %v2379, 7
        %v2381 = vsub.s32 1, %v2380
        %v2382 = vrot.slane %v663, %v2381
        %v2383 = vlaneseq
        %v2384 = vshrl.u32 %v2383, 7
        %v2385 = vsub.s32 2, %v2384
        %v2386 = vrot.slane %v663, %v2385
        %v2387 = vlaneseq
        %v2388 = vshrl.u32 %v2387, 7
        %v2389 = vsub.s32 3, %v2388
        %v2390 = vrot.slane %v663, %v2389
        %v2391 = vlaneseq
        %v2392 = vshrl.u32 %v2391, 7
        %v2393 = vsub.s32 4, %v2392
        %v2394 = vrot.slane %v663, %v2393
        %v2395 = vlaneseq
        %v2396 = vshrl.u32 %v2395, 7
        %v2397 = vsub.s32 5, %v2396
        %v2398 = vrot.slane %v663, %v2397
        %v2399 = vlaneseq
        %v2400 = vshrl.u32 %v2399, 7
        %v2401 = vsub.s32 6, %v2400
        %v2402 = vrot.slane %v663, %v2401
        %v2403 = vlaneseq
        %v2404 = vshrl.u32 %v2403, 7
        %v2405 = vsub.s32 7, %v2404
        %v2406 = vrot.slane %v663, %v2405
        %v2407 = vlaneseq
        %v2408 = vshrl.u32 %v2407, 7
        %v2409 = vsub.s32 0, %v2408
        %v2410 = vrot.slane %v766, %v2409
        %v2411 = vlaneseq
        %v2412 = vshrl.u32 %v2411, 7
        %v2413 = vsub.s32 1, %v2412
        %v2414 = vrot.slane %v766, %v2413
        %v2415 = vlaneseq
        %v2416 = vshrl.u32 %v2415, 7
        %v2417 = vsub.s32 2, %v2416
        %v2418 = vrot.slane %v766, %v2417
        %v2419 = vlaneseq
        %v2420 = vshrl.u32 %v2419, 7
        %v2421 = vsub.s32 3, %v2420
        %v2422 = vrot.slane %v766, %v2421
        %v2423 = vlaneseq
        %v2424 = vshrl.u32 %v2423, 7
        %v2425 = vsub.s32 4, %v2424
        %v2426 = vrot.slane %v766, %v2425
        %v2427 = vlaneseq
        %v2428 = vshrl.u32 %v2427, 7
        %v2429 = vsub.s32 5, %v2428
        %v2430 = vrot.slane %v766, %v2429
        %v2431 = vlaneseq
        %v2432 = vshrl.u32 %v2431, 7
        %v2433 = vsub.s32 6, %v2432
        %v2434 = vrot.slane %v766, %v2433
        %v2435 = vlaneseq
        %v2436 = vshrl.u32 %v2435, 7
        %v2437 = vsub.s32 7, %v2436
        %v2438 = vrot.slane %v766, %v2437
        %v2471 = vmul.f32 %v2261, %v2314
        %v2472 = vmul.f32 %v2261, %v2318
        %v2473 = vmul.f32 %v2261, %v2322
        %v2474 = vmul.f32 %v2261, %v2326
        %v2475 = vmul.f32 %v2261, %v2330
        %v2476 = vmul.f32 %v2261, %v2334
        %v2477 = vmul.f32 %v2261, %v2338
        %v2478 = vmul.f32 %v2261, %v2342
        %v2479 = vmul.f32 %v2261, %v2346
        %v2480 = vmul.f32 %v2261, %v2350
        %v2481 = vmul.f32 %v2261, %v2354
        %v2482 = vmul.f32 %v2261, %v2358
        %v2483 = vmul.f32 %v2261, %v2362
        %v2484 = vmul.f32 %v2261, %v2366
        %v2485 = vmul.f32 %v2261, %v2370
        %v2486 = vmul.f32 %v2261, %v2374
        %v2487 = vmul.f32 %v2261, %v2378
        %v2488 = vmul.f32 %v2261, %v2382
        %v2489 = vmul.f32 %v2261, %v2386
        %v2490 = vmul.f32 %v2261, %v2390
        %v2491 = vmul.f32 %v2261, %v2394
        %v2492 = vmul.f32 %v2261, %v2398
        %v2493 = vmul.f32 %v2261, %v2402
        %v2494 = vmul.f32 %v2261, %v2406
        %v2495 = vmul.f32 %v2261, %v2410
        %v2496 = vmul.f32 %v2261, %v2414
        %v2497 = vmul.f32 %v2261, %v2418
        %v2498 = vmul.f32 %v2261, %v2422
        %v2499 = vmul.f32 %v2261, %v2426
        %v2500 = vmul.f32 %v2261, %v2430
        %v2501 = vmul.f32 %v2261, %v2434
        %v2502 = vmul.f32 %v2261, %v2438
        %v2503 = vmul.f32 %v2265, %v2314
        %v2504 = vmul.f32 %v2265, %v2318
        %v2505 = vmul.f32 %v2265, %v2322
        %v2506 = vmul.f32 %v2265, %v2326
        %v2507 = vmul.f32 %v2265, %v2330
        %v2508 = vmul.f32 %v2265, %v2334
        %v2509 = vmul.f32 %v2265, %v2338
        %v2510 = vmul.f32 %v2265, %v2342
        %v2511 = vmul.f32 %v2265, %v2346
        %v2512 = vmul.f32 %v2265, %v2350
        %v2513 = vmul.f32 %v2265, %v2354
        %v2514 = vmul.f32 %v2265, %v2358
        %v2515 = vmul.f32 %v2265, %v2362
        %v2516 = vmul.f32 %v2265, %v2366
        %v2517 = vmul.f32 %v2265, %v2370
        %v2518 = vmul.f32 %v2265, %v2374
        %v2519 = vmul.f32 %v2265, %v2378
        %v2520 = vmul.f32 %v2265, %v2382
        %v2521 = vmul.f32 %v2265, %v2386
        %v2522 = vmul.f32 %v2265, %v2390
        %v2523 = vmul.f32 %v2265, %v2394
        %v2524 = vmul.f32 %v2265, %v2398
        %v2525 = vmul.f32 %v2265, %v2402
        %v2526 = vmul.f32 %v2265, %v2406
        %v2527 = vmul.f32 %v2265, %v2410
        %v2528 = vmul.f32 %v2265, %v2414
        %v2529 = vmul.f32 %v2265, %v2418
        %v2530 = vmul.f32 %v2265, %v2422
        %v2531 = vmul.f32 %v2265, %v2426
        %v2532 = vmul.f32 %v2265, %v2430
        %v2533 = vmul.f32 %v2265, %v2434
        %v2534 = vmul.f32 %v2265, %v2438
        %v2535 = vmul.f32 %v2269, %v2314
        %v2536 = vmul.f32 %v2269, %v2318
        %v2537 = vmul.f32 %v2269, %v2322
        %v2538 = vmul.f32 %v2269, %v2326
        %v2539 = vmul.f32 %v2269, %v2330
        %v2540 = vmul.f32 %v2269, %v2334
        %v2541 = vmul.f32 %v2269, %v2338
        %v2542 = vmul.f32 %v2269, %v2342
        %v2543 = vmul.f32 %v2269, %v2346
        %v2544 = vmul.f32 %v2269, %v2350
        %v2545 = vmul.f32 %v2269, %v2354
        %v2546 = vmul.f32 %v2269, %v2358
        %v2547 = vmul.f32 %v2269, %v2362
        %v2548 = vmul.f32 %v2269, %v2366
        %v2549 = vmul.f32 %v2269, %v2370
        %v2550 = vmul.f32 %v2269, %v2374
        %v2551 = vmul.f32 %v2269, %v2378
        %v2552 = vmul.f32 %v2269, %v2382
        %v2553 = vmul.f32 %v2269, %v2386
        %v2554 = vmul.f32 %v2269, %v2390
        %v2555 = vmul.f32 %v2269, %v2394
        %v2556 = vmul.f32 %v2269, %v2398
        %v2557 = vmul.f32 %v2269, %v2402
        %v2558 = vmul.f32 %v2269, %v2406
        %v2559 = vmul.f32 %v2269, %v2410
        %v2560 = vmul.f32 %v2269, %v2414
        %v2561 = vmul.f32 %v2269, %v2418
        %v2562 = vmul.f32 %v2269, %v2422
        %v2563 = vmul.f32 %v2269, %v2426
        %v2564 = vmul.f32 %v2269, %v2430
        %v2565 = vmul.f32 %v2269, %v2434
        %v2566 = vmul.f32 %v2269, %v2438
        %v2567 = vmul.f32 %v2273, %v2314
        %v2568 = vmul.f32 %v2273, %v2318
        %v2569 = vmul.f32 %v2273, %v2322
        %v2570 = vmul.f32 %v2273, %v2326
        %v2571 = vmul.f32 %v2273, %v2330
        %v2572 = vmul.f32 %v2273, %v2334
        %v2573 = vmul.f32 %v2273, %v2338
        %v2574 = vmul.f32 %v2273, %v2342
        %v2575 = vmul.f32 %v2273, %v2346
        %v2576 = vmul.f32 %v2273, %v2350
        %v2577 = vmul.f32 %v2273, %v2354
        %v2578 = vmul.f32 %v2273, %v2358
        %v2579 = vmul.f32 %v2273, %v2362
        %v2580 = vmul.f32 %v2273, %v2366
        %v2581 = vmul.f32 %v2273, %v2370
        %v2582 = vmul.f32 %v2273, %v2374
        %v2583 = vmul.f32 %v2273, %v2378
        %v2584 = vmul.f32 %v2273, %v2382
        %v2585 = vmul.f32 %v2273, %v2386
        %v2586 = vmul.f32 %v2273, %v2390
        %v2587 = vmul.f32 %v2273, %v2394
        %v2588 = vmul.f32 %v2273, %v2398
        %v2589 = vmul.f32 %v2273, %v2402
        %v2590 = vmul.f32 %v2273, %v2406
        %v2591 = vmul.f32 %v2273, %v2410
        %v2592 = vmul.f32 %v2273, %v2414
        %v2593 = vmul.f32 %v2273, %v2418
        %v2594 = vmul.f32 %v2273, %v2422
        %v2595 = vmul.f32 %v2273, %v2426
        %v2596 = vmul.f32 %v2273, %v2430
        %v2597 = vmul.f32 %v2273, %v2434
        %v2598 = vmul.f32 %v2273, %v2438
        %v2599 = vmul.f32 %v2277, %v2314
        %v2600 = vmul.f32 %v2277, %v2318
        %v2601 = vmul.f32 %v2277, %v2322
        %v2602 = vmul.f32 %v2277, %v2326
        %v2603 = vmul.f32 %v2277, %v2330
        %v2604 = vmul.f32 %v2277, %v2334
        %v2605 = vmul.f32 %v2277, %v2338
        %v2606 = vmul.f32 %v2277, %v2342
        %v2607 = vmul.f32 %v2277, %v2346
        %v2608 = vmul.f32 %v2277, %v2350
        %v2609 = vmul.f32 %v2277, %v2354
        %v2610 = vmul.f32 %v2277, %v2358
        %v2611 = vmul.f32 %v2277, %v2362
        %v2612 = vmul.f32 %v2277, %v2366
        %v2613 = vmul.f32 %v2277, %v2370
        %v2614 = vmul.f32 %v2277, %v2374
        %v2615 = vmul.f32 %v2277, %v2378
        %v2616 = vmul.f32 %v2277, %v2382
        %v2617 = vmul.f32 %v2277, %v2386
        %v2618 = vmul.f32 %v2277, %v2390
        %v2619 = vmul.f32 %v2277, %v2394
        %v2620 = vmul.f32 %v2277, %v2398
        %v2621 = vmul.f32 %v2277, %v2402
        %v2622 = vmul.f32 %v2277, %v2406
        %v2623 = vmul.f32 %v2277, %v2410
        %v2624 = vmul.f32 %v2277, %v2414
        %v2625 = vmul.f32 %v2277, %v2418
        %v2626 = vmul.f32 %v2277, %v2422
        %v2627 = vmul.f32 %v2277, %v2426
        %v2628 = vmul.f32 %v2277, %v2430
        %v2629 = vmul.f32 %v2277, %v2434
        %v2630 = vmul.f32 %v2277, %v2438
        %v2631 = vmul.f32 %v2281, %v2314
        %v2632 = vmul.f32 %v2281, %v2318
        %v2633 = vmul.f32 %v2281, %v2322
        %v2634 = vmul.f32 %v2281, %v2326
        %v2635 = vmul.f32 %v2281, %v2330
        %v2636 = vmul.f32 %v2281, %v2334
        %v2637 = vmul.f32 %v2281, %v2338
        %v2638 = vmul.f32 %v2281, %v2342
        %v2639 = vmul.f32 %v2281, %v2346
        %v2640 = vmul.f32 %v2281, %v2350
        %v2641 = vmul.f32 %v2281, %v2354
        %v2642 = vmul.f32 %v2281, %v2358
        %v2643 = vmul.f32 %v2281, %v2362
        %v2644 = vmul.f32 %v2281, %v2366
        %v2645 = vmul.f32 %v2281, %v2370
        %v2646 = vmul.f32 %v2281, %v2374
        %v2647 = vmul.f32 %v2281, %v2378
        %v2648 = vmul.f32 %v2281, %v2382
        %v2649 = vmul.f32 %v2281, %v2386
        %v2650 = vmul.f32 %v2281, %v2390
        %v2651 = vmul.f32 %v2281, %v2394
        %v2652 = vmul.f32 %v2281, %v2398
        %v2653 = vmul.f32 %v2281, %v2402
        %v2654 = vmul.f32 %v2281, %v2406
        %v2655 = vmul.f32 %v2281, %v2410
        %v2656 = vmul.f32 %v2281, %v2414
        %v2657 = vmul.f32 %v2281, %v2418
        %v2658 = vmul.f32 %v2281, %v2422
        %v2659 = vmul.f32 %v2281, %v2426
        %v2660 = vmul.f32 %v2281, %v2430
        %v2661 = vmul.f32 %v2281, %v2434
        %v2662 = vmul.f32 %v2281, %v2438
        %v2663 = vmul.f32 %v2285, %v2314
        %v2664 = vmul.f32 %v2285, %v2318
        %v2665 = vmul.f32 %v2285, %v2322
        %v2666 = vmul.f32 %v2285, %v2326
        %v2667 = vmul.f32 %v2285, %v2330
        %v2668 = vmul.f32 %v2285, %v2334
        %v2669 = vmul.f32 %v2285, %v2338
        %v2670 = vmul.f32 %v2285, %v2342
        %v2671 = vmul.f32 %v2285, %v2346
        %v2672 = vmul.f32 %v2285, %v2350
        %v2673 = vmul.f32 %v2285, %v2354
        %v2674 = vmul.f32 %v2285, %v2358
        %v2675 = vmul.f32 %v2285, %v2362
        %v2676 = vmul.f32 %v2285, %v2366
        %v2677 = vmul.f32 %v2285, %v2370
        %v2678 = vmul.f32 %v2285, %v2374
        %v2679 = vmul.f32 %v2285, %v2378
        %v2680 = vmul.f32 %v2285, %v2382
        %v2681 = vmul.f32 %v2285, %v2386
        %v2682 = vmul.f32 %v2285, %v2390
        %v2683 = vmul.f32 %v2285, %v2394
        %v2684 = vmul.f32 %v2285, %v2398
        %v2685 = vmul.f32 %v2285, %v2402
        %v2686 = vmul.f32 %v2285, %v2406
        %v2687 = vmul.f32 %v2285, %v2410
        %v2688 = vmul.f32 %v2285, %v2414
        %v2689 = vmul.f32 %v2285, %v2418
        %v2690 = vmul.f32 %v2285, %v2422
        %v2691 = vmul.f32 %v2285, %v2426
        %v2692 = vmul.f32 %v2285, %v2430
        %v2693 = vmul.f32 %v2285, %v2434
        %v2694 = vmul.f32 %v2285, %v2438
        %v2695 = vmul.f32 %v2289, %v2314
        %v2696 = vmul.f32 %v2289, %v2318
        %v2697 = vmul.f32 %v2289, %v2322
        %v2698 = vmul.f32 %v2289, %v2326
        %v2699 = vmul.f32 %v2289, %v2330
        %v2700 = vmul.f32 %v2289, %v2334
        %v2701 = vmul.f32 %v2289, %v2338
        %v2702 = vmul.f32 %v2289, %v2342
        %v2703 = vmul.f32 %v2289, %v2346
        %v2704 = vmul.f32 %v2289, %v2350
        %v2705 = vmul.f32 %v2289, %v2354
        %v2706 = vmul.f32 %v2289, %v2358
        %v2707 = vmul.f32 %v2289, %v2362
        %v2708 = vmul.f32 %v2289, %v2366
        %v2709 = vmul.f32 %v2289, %v2370
        %v2710 = vmul.f32 %v2289, %v2374
        %v2711 = vmul.f32 %v2289, %v2378
        %v2712 = vmul.f32 %v2289, %v2382
        %v2713 = vmul.f32 %v2289, %v2386
        %v2714 = vmul.f32 %v2289, %v2390
        %v2715 = vmul.f32 %v2289, %v2394
        %v2716 = vmul.f32 %v2289, %v2398
        %v2717 = vmul.f32 %v2289, %v2402
        %v2718 = vmul.f32 %v2289, %v2406
        %v2719 = vmul.f32 %v2289, %v2410
        %v2720 = vmul.f32 %v2289, %v2414
        %v2721 = vmul.f32 %v2289, %v2418
        %v2722 = vmul.f32 %v2289, %v2422
        %v2723 = vmul.f32 %v2289, %v2426
        %v2724 = vmul.f32 %v2289, %v2430
        %v2725 = vmul.f32 %v2289, %v2434
        %v2726 = vmul.f32 %v2289, %v2438
        %v2727 = vmul.f32 %v2293, %v2314
        %v2728 = vmul.f32 %v2293, %v2318
        %v2729 = vmul.f32 %v2293, %v2322
        %v2730 = vmul.f32 %v2293, %v2326
        %v2731 = vmul.f32 %v2293, %v2330
        %v2732 = vmul.f32 %v2293, %v2334
        %v2733 = vmul.f32 %v2293, %v2338
        %v2734 = vmul.f32 %v2293, %v2342
        %v2735 = vmul.f32 %v2293, %v2346
        %v2736 = vmul.f32 %v2293, %v2350
        %v2737 = vmul.f32 %v2293, %v2354
        %v2738 = vmul.f32 %v2293, %v2358
        %v2739 = vmul.f32 %v2293, %v2362
        %v2740 = vmul.f32 %v2293, %v2366
        %v2741 = vmul.f32 %v2293, %v2370
        %v2742 = vmul.f32 %v2293, %v2374
        %v2743 = vmul.f32 %v2293, %v2378
        %v2744 = vmul.f32 %v2293, %v2382
        %v2745 = vmul.f32 %v2293, %v2386
        %v2746 = vmul.f32 %v2293, %v2390
        %v2747 = vmul.f32 %v2293, %v2394
        %v2748 = vmul.f32 %v2293, %v2398
        %v2749 = vmul.f32 %v2293, %v2402
        %v2750 = vmul.f32 %v2293, %v2406
        %v2751 = vmul.f32 %v2293, %v2410
        %v2752 = vmul.f32 %v2293, %v2414
        %v2753 = vmul.f32 %v2293, %v2418
        %v2754 = vmul.f32 %v2293, %v2422
        %v2755 = vmul.f32 %v2293, %v2426
        %v2756 = vmul.f32 %v2293, %v2430
        %v2757 = vmul.f32 %v2293, %v2434
        %v2758 = vmul.f32 %v2293, %v2438
        %v2759 = vmul.f32 %v2297, %v2314
        %v2760 = vmul.f32 %v2297, %v2318
        %v2761 = vmul.f32 %v2297, %v2322
        %v2762 = vmul.f32 %v2297, %v2326
        %v2763 = vmul.f32 %v2297, %v2330
        %v2764 = vmul.f32 %v2297, %v2334
        %v2765 = vmul.f32 %v2297, %v2338
        %v2766 = vmul.f32 %v2297, %v2342
        %v2767 = vmul.f32 %v2297, %v2346
        %v2768 = vmul.f32 %v2297, %v2350
        %v2769 = vmul.f32 %v2297, %v2354
        %v2770 = vmul.f32 %v2297, %v2358
        %v2771 = vmul.f32 %v2297, %v2362
        %v2772 = vmul.f32 %v2297, %v2366
        %v2773 = vmul.f32 %v2297, %v2370
        %v2774 = vmul.f32 %v2297, %v2374
        %v2775 = vmul.f32 %v2297, %v2378
        %v2776 = vmul.f32 %v2297, %v2382
        %v2777 = vmul.f32 %v2297, %v2386
        %v2778 = vmul.f32 %v2297, %v2390
        %v2779 = vmul.f32 %v2297, %v2394
        %v2780 = vmul.f32 %v2297, %v2398
        %v2781 = vmul.f32 %v2297, %v2402
        %v2782 = vmul.f32 %v2297, %v2406
        %v2783 = vmul.f32 %v2297, %v2410
        %v2784 = vmul.f32 %v2297, %v2414
        %v2785 = vmul.f32 %v2297, %v2418
        %v2786 = vmul.f32 %v2297, %v2422
        %v2787 = vmul.f32 %v2297, %v2426
        %v2788 = vmul.f32 %v2297, %v2430
        %v2789 = vmul.f32 %v2297, %v2434
        %v2790 = vmul.f32 %v2297, %v2438
        %v2791 = vmul.f32 %v2301, %v2314
        %v2792 = vmul.f32 %v2301, %v2318
        %v2793 = vmul.f32 %v2301, %v2322
        %v2794 = vmul.f32 %v2301, %v2326
        %v2795 = vmul.f32 %v2301, %v2330
        %v2796 = vmul.f32 %v2301, %v2334
        %v2797 = vmul.f32 %v2301, %v2338
        %v2798 = vmul.f32 %v2301, %v2342
        %v2799 = vmul.f32 %v2301, %v2346
        %v2800 = vmul.f32 %v2301, %v2350
        %v2801 = vmul.f32 %v2301, %v2354
        %v2802 = vmul.f32 %v2301, %v2358
        %v2803 = vmul.f32 %v2301, %v2362
        %v2804 = vmul.f32 %v2301, %v2366
        %v2805 = vmul.f32 %v2301, %v2370
        %v2806 = vmul.f32 %v2301, %v2374
        %v2807 = vmul.f32 %v2301, %v2378
        %v2808 = vmul.f32 %v2301, %v2382
        %v2809 = vmul.f32 %v2301, %v2386
        %v2810 = vmul.f32 %v2301, %v2390
        %v2811 = vmul.f32 %v2301, %v2394
        %v2812 = vmul.f32 %v2301, %v2398
        %v2813 = vmul.f32 %v2301, %v2402
        %v2814 = vmul.f32 %v2301, %v2406
        %v2815 = vmul.f32 %v2301, %v2410
        %v2816 = vmul.f32 %v2301, %v2414
        %v2817 = vmul.f32 %v2301, %v2418
        %v2818 = vmul.f32 %v2301, %v2422
        %v2819 = vmul.f32 %v2301, %v2426
        %v2820 = vmul.f32 %v2301, %v2430
        %v2821 = vmul.f32 %v2301, %v2434
        %v2822 = vmul.f32 %v2301, %v2438
        %v2823 = vmul.f32 %v2305, %v2314
        %v2824 = vmul.f32 %v2305, %v2318
        %v2825 = vmul.f32 %v2305, %v2322
        %v2826 = vmul.f32 %v2305, %v2326
        %v2827 = vmul.f32 %v2305, %v2330
        %v2828 = vmul.f32 %v2305, %v2334
        %v2829 = vmul.f32 %v2305, %v2338
        %v2830 = vmul.f32 %v2305, %v2342
        %v2831 = vmul.f32 %v2305, %v2346
        %v2832 = vmul.f32 %v2305, %v2350
        %v2833 = vmul.f32 %v2305, %v2354
        %v2834 = vmul.f32 %v2305, %v2358
        %v2835 = vmul.f32 %v2305, %v2362
        %v2836 = vmul.f32 %v2305, %v2366
        %v2837 = vmul.f32 %v2305, %v2370
        %v2838 = vmul.f32 %v2305, %v2374
        %v2839 = vmul.f32 %v2305, %v2378
        %v2840 = vmul.f32 %v2305, %v2382
        %v2841 = vmul.f32 %v2305, %v2386
        %v2842 = vmul.f32 %v2305, %v2390
        %v2843 = vmul.f32 %v2305, %v2394
        %v2844 = vmul.f32 %v2305, %v2398
        %v2845 = vmul.f32 %v2305, %v2402
        %v2846 = vmul.f32 %v2305, %v2406
        %v2847 = vmul.f32 %v2305, %v2410
        %v2848 = vmul.f32 %v2305, %v2414
        %v2849 = vmul.f32 %v2305, %v2418
        %v2850 = vmul.f32 %v2305, %v2422
        %v2851 = vmul.f32 %v2305, %v2426
        %v2852 = vmul.f32 %v2305, %v2430
        %v2853 = vmul.f32 %v2305, %v2434
        %v2854 = vmul.f32 %v2305, %v2438
        %v2855 = vadd.f32 %v1875, %v2471
        %v2856 = vadd.f32 %v1876, %v2472
        %v2857 = vadd.f32 %v1877, %v2473
        %v2858 = vadd.f32 %v1878, %v2474
        %v2859 = vadd.f32 %v1879, %v2475
        %v2860 = vadd.f32 %v1880, %v2476
        %v2861 = vadd.f32 %v1881, %v2477
        %v2862 = vadd.f32 %v1882, %v2478
        %v2863 = vadd.f32 %v1883, %v2479
        %v2864 = vadd.f32 %v1884, %v2480
        %v2865 = vadd.f32 %v1885, %v2481
        %v2866 = vadd.f32 %v1886, %v2482
        %v2867 = vadd.f32 %v1887, %v2483
        %v2868 = vadd.f32 %v1888, %v2484
        %v2869 = vadd.f32 %v1889, %v2485
        %v2870 = vadd.f32 %v1890, %v2486
        %v2871 = vadd.f32 %v1891, %v2487
        %v2872 = vadd.f32 %v1892, %v2488
        %v2873 = vadd.f32 %v1893, %v2489
        %v2874 = vadd.f32 %v1894, %v2490
        %v2875 = vadd.f32 %v1895, %v2491
        %v2876 = vadd.f32 %v1896, %v2492
        %v2877 = vadd.f32 %v1897, %v2493
        %v2878 = vadd.f32 %v1898, %v2494
        %v2879 = vadd.f32 %v1899, %v2495
        %v2880 = vadd.f32 %v1900, %v2496
        %v2881 = vadd.f32 %v1901, %v2497
        %v2882 = vadd.f32 %v1902, %v2498
        %v2883 = vadd.f32 %v1903, %v2499
        %v2884 = vadd.f32 %v1904, %v2500
        %v2885 = vadd.f32 %v1905, %v2501
        %v2886 = vadd.f32 %v1906, %v2502
        %v2887 = vadd.f32 %v1907, %v2503
        %v2888 = vadd.f32 %v1908, %v2504
        %v2889 = vadd.f32 %v1909, %v2505
        %v2890 = vadd.f32 %v1910, %v2506
        %v2891 = vadd.f32 %v1911, %v2507
        %v2892 = vadd.f32 %v1912, %v2508
        %v2893 = vadd.f32 %v1913, %v2509
        %v2894 = vadd.f32 %v1914, %v2510
        %v2895 = vadd.f32 %v1915, %v2511
        %v2896 = vadd.f32 %v1916, %v2512
        %v2897 = vadd.f32 %v1917, %v2513
        %v2898 = vadd.f32 %v1918, %v2514
        %v2899 = vadd.f32 %v1919, %v2515
        %v2900 = vadd.f32 %v1920, %v2516
        %v2901 = vadd.f32 %v1921, %v2517
        %v2902 = vadd.f32 %v1922, %v2518
        %v2903 = vadd.f32 %v1923, %v2519
        %v2904 = vadd.f32 %v1924, %v2520
        %v2905 = vadd.f32 %v1925, %v2521
        %v2906 = vadd.f32 %v1926, %v2522
        %v2907 = vadd.f32 %v1927, %v2523
        %v2908 = vadd.f32 %v1928, %v2524
        %v2909 = vadd.f32 %v1929, %v2525
        %v2910 = vadd.f32 %v1930, %v2526
        %v2911 = vadd.f32 %v1931, %v2527
        %v2912 = vadd.f32 %v1932, %v2528
        %v2913 = vadd.f32 %v1933, %v2529
        %v2914 = vadd.f32 %v1934, %v2530
        %v2915 = vadd.f32 %v1935, %v2531
        %v2916 = vadd.f32 %v1936, %v2532
        %v2917 = vadd.f32 %v1937, %v2533
        %v2918 = vadd.f32 %v1938, %v2534
        %v2919 = vadd.f32 %v1939, %v2535
        %v2920 = vadd.f32 %v1940, %v2536
        %v2921 = vadd.f32 %v1941, %v2537
        %v2922 = vadd.f32 %v1942, %v2538
        %v2923 = vadd.f32 %v1943, %v2539
        %v2924 = vadd.f32 %v1944, %v2540
        %v2925 = vadd.f32 %v1945, %v2541
        %v2926 = vadd.f32 %v1946, %v2542
        %v2927 = vadd.f32 %v1947, %v2543
        %v2928 = vadd.f32 %v1948, %v2544
        %v2929 = vadd.f32 %v1949, %v2545
        %v2930 = vadd.f32 %v1950, %v2546
        %v2931 = vadd.f32 %v1951, %v2547
        %v2932 = vadd.f32 %v1952, %v2548
        %v2933 = vadd.f32 %v1953, %v2549
        %v2934 = vadd.f32 %v1954, %v2550
        %v2935 = vadd.f32 %v1955, %v2551
        %v2936 = vadd.f32 %v1956, %v2552
        %v2937 = vadd.f32 %v1957, %v2553
        %v2938 = vadd.f32 %v1958, %v2554
        %v2939 = vadd.f32 %v1959, %v2555
        %v2940 = vadd.f32 %v1960, %v2556
        %v2941 = vadd.f32 %v1961, %v2557
        %v2942 = vadd.f32 %v1962, %v2558
        %v2943 = vadd.f32 %v1963, %v2559
        %v2944 = vadd.f32 %v1964, %v2560
        %v2945 = vadd.f32 %v1965, %v2561
        %v2946 = vadd.f32 %v1966, %v2562
        %v2947 = vadd.f32 %v1967, %v2563
        %v2948 = vadd.f32 %v1968, %v2564
        %v2949 = vadd.f32 %v1969, %v2565
        %v2950 = vadd.f32 %v1970, %v2566
        %v2951 = vadd.f32 %v1971, %v2567
        %v2952 = vadd.f32 %v1972, %v2568
        %v2953 = vadd.f32 %v1973, %v2569
        %v2954 = vadd.f32 %v1974, %v2570
        %v2955 = vadd.f32 %v1975, %v2571
        %v2956 = vadd.f32 %v1976, %v2572
        %v2957 = vadd.f32 %v1977, %v2573
        %v2958 = vadd.f32 %v1978, %v2574
        %v2959 = vadd.f32 %v1979, %v2575
        %v2960 = vadd.f32 %v1980, %v2576
        %v2961 = vadd.f32 %v1981, %v2577
        %v2962 = vadd.f32 %v1982, %v2578
        %v2963 = vadd.f32 %v1983, %v2579
        %v2964 = vadd.f32 %v1984, %v2580
        %v2965 = vadd.f32 %v1985, %v2581
        %v2966 = vadd.f32 %v1986, %v2582
        %v2967 = vadd.f32 %v1987, %v2583
        %v2968 = vadd.f32 %v1988, %v2584
        %v2969 = vadd.f32 %v1989, %v2585
        %v2970 = vadd.f32 %v1990, %v2586
        %v2971 = vadd.f32 %v1991, %v2587
        %v2972 = vadd.f32 %v1992, %v2588
        %v2973 = vadd.f32 %v1993, %v2589
        %v2974 = vadd.f32 %v1994, %v2590
        %v2975 = vadd.f32 %v1995, %v2591
        %v2976 = vadd.f32 %v1996, %v2592
        %v2977 = vadd.f32 %v1997, %v2593
        %v2978 = vadd.f32 %v1998, %v2594
        %v2979 = vadd.f32 %v1999, %v2595
        %v2980 = vadd.f32 %v2000, %v2596
        %v2981 = vadd.f32 %v2001, %v2597
        %v2982 = vadd.f32 %v2002, %v2598
        %v2983 = vadd.f32 %v2003, %v2599
        %v2984 = vadd.f32 %v2004, %v2600
        %v2985 = vadd.f32 %v2005, %v2601
        %v2986 = vadd.f32 %v2006, %v2602
        %v2987 = vadd.f32 %v2007, %v2603
        %v2988 = vadd.f32 %v2008, %v2604
        %v2989 = vadd.f32 %v2009, %v2605
        %v2990 = vadd.f32 %v2010, %v2606
        %v2991 = vadd.f32 %v2011, %v2607
        %v2992 = vadd.f32 %v2012, %v2608
        %v2993 = vadd.f32 %v2013, %v2609
        %v2994 = vadd.f32 %v2014, %v2610
        %v2995 = vadd.f32 %v2015, %v2611
        %v2996 = vadd.f32 %v2016, %v2612
        %v2997 = vadd.f32 %v2017, %v2613
        %v2998 = vadd.f32 %v2018, %v2614
        %v2999 = vadd.f32 %v2019, %v2615
        %v3000 = vadd.f32 %v2020, %v2616
        %v3001 = vadd.f32 %v2021, %v2617
        %v3002 = vadd.f32 %v2022, %v2618
        %v3003 = vadd.f32 %v2023, %v2619
        %v3004 = vadd.f32 %v2024, %v2620
        %v3005 = vadd.f32 %v2025, %v2621
        %v3006 = vadd.f32 %v2026, %v2622
        %v3007 = vadd.f32 %v2027, %v2623
        %v3008 = vadd.f32 %v2028, %v2624
        %v3009 = vadd.f32 %v2029, %v2625
        %v3010 = vadd.f32 %v2030, %v2626
        %v3011 = vadd.f32 %v2031, %v2627
        %v3012 = vadd.f32 %v2032, %v2628
        %v3013 = vadd.f32 %v2033, %v2629
        %v3014 = vadd.f32 %v2034, %v2630
        %v3015 = vadd.f32 %v2035, %v2631
        %v3016 = vadd.f32 %v2036, %v2632
        %v3017 = vadd.f32 %v2037, %v2633
        %v3018 = vadd.f32 %v2038, %v2634
        %v3019 = vadd.f32 %v2039, %v2635
        %v3020 = vadd.f32 %v2040, %v2636
        %v3021 = vadd.f32 %v2041, %v2637
        %v3022 = vadd.f32 %v2042, %v2638
        %v3023 = vadd.f32 %v2043, %v2639
        %v3024 = vadd.f32 %v2044, %v2640
        %v3025 = vadd.f32 %v2045, %v2641
        %v3026 = vadd.f32 %v2046, %v2642
        %v3027 = vadd.f32 %v2047, %v2643
        %v3028 = vadd.f32 %v2048, %v2644
        %v3029 = vadd.f32 %v2049, %v2645
        %v3030 = vadd.f32 %v2050, %v2646
        %v3031 = vadd.f32 %v2051, %v2647
        %v3032 = vadd.f32 %v2052, %v2648
        %v3033 = vadd.f32 %v2053, %v2649
        %v3034 = vadd.f32 %v2054, %v2650
        %v3035 = vadd.f32 %v2055, %v2651
        %v3036 = vadd.f32 %v2056, %v2652
        %v3037 = vadd.f32 %v2057, %v2653
        %v3038 = vadd.f32 %v2058, %v2654
        %v3039 = vadd.f32 %v2059, %v2655
        %v3040 = vadd.f32 %v2060, %v2656
        %v3041 = vadd.f32 %v2061, %v2657
        %v3042 = vadd.f32 %v2062, %v2658
        %v3043 = vadd.f32 %v2063, %v2659
        %v3044 = vadd.f32 %v2064, %v2660
        %v3045 = vadd.f32 %v2065, %v2661
        %v3046 = vadd.f32 %v2066, %v2662
        %v3047 = vadd.f32 %v2067, %v2663
        %v3048 = vadd.f32 %v2068, %v2664
        %v3049 = vadd.f32 %v2069, %v2665
        %v3050 = vadd.f32 %v2070, %v2666
        %v3051 = vadd.f32 %v2071, %v2667
        %v3052 = vadd.f32 %v2072, %v2668
        %v3053 = vadd.f32 %v2073, %v2669
        %v3054 = vadd.f32 %v2074, %v2670
        %v3055 = vadd.f32 %v2075, %v2671
        %v3056 = vadd.f32 %v2076, %v2672
        %v3057 = vadd.f32 %v2077, %v2673
        %v3058 = vadd.f32 %v2078, %v2674
        %v3059 = vadd.f32 %v2079, %v2675
        %v3060 = vadd.f32 %v2080, %v2676
        %v3061 = vadd.f32 %v2081, %v2677
        %v3062 = vadd.f32 %v2082, %v2678
        %v3063 = vadd.f32 %v2083, %v2679
        %v3064 = vadd.f32 %v2084, %v2680
        %v3065 = vadd.f32 %v2085, %v2681
        %v3066 = vadd.f32 %v2086, %v2682
        %v3067 = vadd.f32 %v2087, %v2683
        %v3068 = vadd.f32 %v2088, %v2684
        %v3069 = vadd.f32 %v2089, %v2685
        %v3070 = vadd.f32 %v2090, %v2686
        %v3071 = vadd.f32 %v2091, %v2687
        %v3072 = vadd.f32 %v2092, %v2688
        %v3073 = vadd.f32 %v2093, %v2689
        %v3074 = vadd.f32 %v2094, %v2690
        %v3075 = vadd.f32 %v2095, %v2691
        %v3076 = vadd.f32 %v2096, %v2692
        %v3077 = vadd.f32 %v2097, %v2693
        %v3078 = vadd.f32 %v2098, %v2694
        %v3079 = vadd.f32 %v2099, %v2695
        %v3080 = vadd.f32 %v2100, %v2696
        %v3081 = vadd.f32 %v2101, %v2697
        %v3082 = vadd.f32 %v2102, %v2698
        %v3083 = vadd.f32 %v2103, %v2699
        %v3084 = vadd.f32 %v2104, %v2700
        %v3085 = vadd.f32 %v2105, %v2701
        %v3086 = vadd.f32 %v2106, %v2702
        %v3087 = vadd.f32 %v2107, %v2703
        %v3088 = vadd.f32 %v2108, %v2704
        %v3089 = vadd.f32 %v2109, %v2705
        %v3090 = vadd.f32 %v2110, %v2706
        %v3091 = vadd.f32 %v2111, %v2707
        %v3092 = vadd.f32 %v2112, %v2708
        %v3093 = vadd.f32 %v2113, %v2709
        %v3094 = vadd.f32 %v2114, %v2710
        %v3095 = vadd.f32 %v2115, %v2711
        %v3096 = vadd.f32 %v2116, %v2712
        %v3097 = vadd.f32 %v2117, %v2713
        %v3098 = vadd.f32 %v2118, %v2714
        %v3099 = vadd.f32 %v2119, %v2715
        %v3100 = vadd.f32 %v2120, %v2716
        %v3101 = vadd.f32 %v2121, %v2717
        %v3102 = vadd.f32 %v2122, %v2718
        %v3103 = vadd.f32 %v2123, %v2719
        %v3104 = vadd.f32 %v2124, %v2720
        %v3105 = vadd.f32 %v2125, %v2721
        %v3106 = vadd.f32 %v2126, %v2722
        %v3107 = vadd.f32 %v2127, %v2723
        %v3108 = vadd.f32 %v2128, %v2724
        %v3109 = vadd.f32 %v2129, %v2725
        %v3110 = vadd.f32 %v2130, %v2726
        %v3111 = vadd.f32 %v2131, %v2727
        %v3112 = vadd.f32 %v2132, %v2728
        %v3113 = vadd.f32 %v2133, %v2729
        %v3114 = vadd.f32 %v2134, %v2730
        %v3115 = vadd.f32 %v2135, %v2731
        %v3116 = vadd.f32 %v2136, %v2732
        %v3117 = vadd.f32 %v2137, %v2733
        %v3118 = vadd.f32 %v2138, %v2734
        %v3119 = vadd.f32 %v2139, %v2735
        %v3120 = vadd.f32 %v2140, %v2736
        %v3121 = vadd.f32 %v2141, %v2737
        %v3122 = vadd.f32 %v2142, %v2738
        %v3123 = vadd.f32 %v2143, %v2739
        %v3124 = vadd.f32 %v2144, %v2740
        %v3125 = vadd.f32 %v2145, %v2741
        %v3126 = vadd.f32 %v2146, %v2742
        %v3127 = vadd.f32 %v2147, %v2743
        %v3128 = vadd.f32 %v2148, %v2744
        %v3129 = vadd.f32 %v2149, %v2745
        %v3130 = vadd.f32 %v2150, %v2746
        %v3131 = vadd.f32 %v2151, %v2747
        %v3132 = vadd.f32 %v2152, %v2748
        %v3133 = vadd.f32 %v2153, %v2749
        %v3134 = vadd.f32 %v2154, %v2750
        %v3135 = vadd.f32 %v2155, %v2751
        %v3136 = vadd.f32 %v2156, %v2752
        %v3137 = vadd.f32 %v2157, %v2753
        %v3138 = vadd.f32 %v2158, %v2754
        %v3139 = vadd.f32 %v2159, %v2755
        %v3140 = vadd.f32 %v2160, %v2756
        %v3141 = vadd.f32 %v2161, %v2757
        %v3142 = vadd.f32 %v2162, %v2758
        %v3143 = vadd.f32 %v2163, %v2759
        %v3144 = vadd.f32 %v2164, %v2760
        %v3145 = vadd.f32 %v2165, %v2761
        %v3146 = vadd.f32 %v2166, %v2762
        %v3147 = vadd.f32 %v2167, %v2763
        %v3148 = vadd.f32 %v2168, %v2764
        %v3149 = vadd.f32 %v2169, %v2765
        %v3150 = vadd.f32 %v2170, %v2766
        %v3151 = vadd.f32 %v2171, %v2767
        %v3152 = vadd.f32 %v2172, %v2768
        %v3153 = vadd.f32 %v2173, %v2769
        %v3154 = vadd.f32 %v2174, %v2770
        %v3155 = vadd.f32 %v2175, %v2771
        %v3156 = vadd.f32 %v2176, %v2772
        %v3157 = vadd.f32 %v2177, %v2773
        %v3158 = vadd.f32 %v2178, %v2774
        %v3159 = vadd.f32 %v2179, %v2775
        %v3160 = vadd.f32 %v2180, %v2776
        %v3161 = vadd.f32 %v2181, %v2777
        %v3162 = vadd.f32 %v2182, %v2778
        %v3163 = vadd.f32 %v2183, %v2779
        %v3164 = vadd.f32 %v2184, %v2780
        %v3165 = vadd.f32 %v2185, %v2781
        %v3166 = vadd.f32 %v2186, %v2782
        %v3167 = vadd.f32 %v2187, %v2783
        %v3168 = vadd.f32 %v2188, %v2784
        %v3169 = vadd.f32 %v2189, %v2785
        %v3170 = vadd.f32 %v2190, %v2786
        %v3171 = vadd.f32 %v2191, %v2787
        %v3172 = vadd.f32 %v2192, %v2788
        %v3173 = vadd.f32 %v2193, %v2789
        %v3174 = vadd.f32 %v2194, %v2790
        %v3175 = vadd.f32 %v2195, %v2791
        %v3176 = vadd.f32 %v2196, %v2792
        %v3177 = vadd.f32 %v2197, %v2793
        %v3178 = vadd.f32 %v2198, %v2794
        %v3179 = vadd.f32 %v2199, %v2795
        %v3180 = vadd.f32 %v2200, %v2796
        %v3181 = vadd.f32 %v2201, %v2797
        %v3182 = vadd.f32 %v2202, %v2798
        %v3183 = vadd.f32 %v2203, %v2799
        %v3184 = vadd.f32 %v2204, %v2800
        %v3185 = vadd.f32 %v2205, %v2801
        %v3186 = vadd.f32 %v2206, %v2802
        %v3187 = vadd.f32 %v2207, %v2803
        %v3188 = vadd.f32 %v2208, %v2804
        %v3189 = vadd.f32 %v2209, %v2805
        %v3190 = vadd.f32 %v2210, %v2806
        %v3191 = vadd.f32 %v2211, %v2807
        %v3192 = vadd.f32 %v2212, %v2808
        %v3193 = vadd.f32 %v2213, %v2809
        %v3194 = vadd.f32 %v2214, %v2810
        %v3195 = vadd.f32 %v2215, %v2811
        %v3196 = vadd.f32 %v2216, %v2812
        %v3197 = vadd.f32 %v2217, %v2813
        %v3198 = vadd.f32 %v2218, %v2814
        %v3199 = vadd.f32 %v2219, %v2815
        %v3200 = vadd.f32 %v2220, %v2816
        %v3201 = vadd.f32 %v2221, %v2817
        %v3202 = vadd.f32 %v2222, %v2818
        %v3203 = vadd.f32 %v2223, %v2819
        %v3204 = vadd.f32 %v2224, %v2820
        %v3205 = vadd.f32 %v2225, %v2821
        %v3206 = vadd.f32 %v2226, %v2822
        %v3207 = vadd.f32 %v2227, %v2823
        %v3208 = vadd.f32 %v2228, %v2824
        %v3209 = vadd.f32 %v2229, %v2825
        %v3210 = vadd.f32 %v2230, %v2826
        %v3211 = vadd.f32 %v2231, %v2827
        %v3212 = vadd.f32 %v2232, %v2828
        %v3213 = vadd.f32 %v2233, %v2829
        %v3214 = vadd.f32 %v2234, %v2830
        %v3215 = vadd.f32 %v2235, %v2831
        %v3216 = vadd.f32 %v2236, %v2832
        %v3217 = vadd.f32 %v2237, %v2833
        %v3218 = vadd.f32 %v2238, %v2834
        %v3219 = vadd.f32 %v2239, %v2835
        %v3220 = vadd.f32 %v2240, %v2836
        %v3221 = vadd.f32 %v2241, %v2837
        %v3222 = vadd.f32 %v2242, %v2838
        %v3223 = vadd.f32 %v2243, %v2839
        %v3224 = vadd.f32 %v2244, %v2840
        %v3225 = vadd.f32 %v2245, %v2841
        %v3226 = vadd.f32 %v2246, %v2842
        %v3227 = vadd.f32 %v2247, %v2843
        %v3228 = vadd.f32 %v2248, %v2844
        %v3229 = vadd.f32 %v2249, %v2845
        %v3230 = vadd.f32 %v2250, %v2846
        %v3231 = vadd.f32 %v2251, %v2847
        %v3232 = vadd.f32 %v2252, %v2848
        %v3233 = vadd.f32 %v2253, %v2849
        %v3234 = vadd.f32 %v2254, %v2850
        %v3235 = vadd.f32 %v2255, %v2851
        %v3236 = vadd.f32 %v2256, %v2852
        %v3237 = vadd.f32 %v2257, %v2853
        %v3238 = vadd.f32 %v2258, %v2854
        %3239 = vset.pattern.permute.xlu0 2
        %3240 = vperm.xlu0 %3239, %v1183
        %v3241 = vpop.permute.xlu0 %3240
        %3243 = vset.pattern.permute.xlu0 2
        %3244 = vperm.xlu0 %3243, %v1184
        %v3245 = vpop.permute.xlu0 %3244
        %3247 = vset.pattern.permute.xlu0 2
        %3248 = vperm.xlu0 %3247, %v1185
        %v3249 = vpop.permute.xlu0 %3248
        %3251 = vset.pattern.permute.xlu0 2
        %3252 = vperm.xlu0 %3251, %v1186
        %v3253 = vpop.permute.xlu0 %3252
        %3255 = vset.pattern.permute.xlu0 2
        %3256 = vperm.xlu0 %3255, %v1187
        %v3257 = vpop.permute.xlu0 %3256
        %3259 = vset.pattern.permute.xlu0 2
        %3260 = vperm.xlu0 %3259, %v1188
        %v3261 = vpop.permute.xlu0 %3260
        %3263 = vset.pattern.permute.xlu0 2
        %3264 = vperm.xlu0 %3263, %v1189
        %v3265 = vpop.permute.xlu0 %3264
        %3267 = vset.pattern.permute.xlu0 2
        %3268 = vperm.xlu0 %3267, %v1190
        %v3269 = vpop.permute.xlu0 %3268
        %3271 = vset.pattern.permute.xlu0 2
        %3272 = vperm.xlu0 %3271, %v1191
        %v3273 = vpop.permute.xlu0 %3272
        %3275 = vset.pattern.permute.xlu0 2
        %3276 = vperm.xlu0 %3275, %v1192
        %v3277 = vpop.permute.xlu0 %3276
        %3279 = vset.pattern.permute.xlu0 2
        %3280 = vperm.xlu0 %3279, %v1193
        %v3281 = vpop.permute.xlu0 %3280
        %3283 = vset.pattern.permute.xlu0 2
        %3284 = vperm.xlu0 %3283, %v1194
        %v3285 = vpop.permute.xlu0 %3284
        %v3291 = vlaneseq
        %v3292 = vshrl.u32 %v3291, 7
        %v3293 = vsub.s32 0, %v3292
        %v3294 = vrot.slane %v870, %v3293
        %v3295 = vlaneseq
        %v3296 = vshrl.u32 %v3295, 7
        %v3297 = vsub.s32 1, %v3296
        %v3298 = vrot.slane %v870, %v3297
        %v3299 = vlaneseq
        %v3300 = vshrl.u32 %v3299, 7
        %v3301 = vsub.s32 2, %v3300
        %v3302 = vrot.slane %v870, %v3301
        %v3303 = vlaneseq
        %v3304 = vshrl.u32 %v3303, 7
        %v3305 = vsub.s32 3, %v3304
        %v3306 = vrot.slane %v870, %v3305
        %v3307 = vlaneseq
        %v3308 = vshrl.u32 %v3307, 7
        %v3309 = vsub.s32 4, %v3308
        %v3310 = vrot.slane %v870, %v3309
        %v3311 = vlaneseq
        %v3312 = vshrl.u32 %v3311, 7
        %v3313 = vsub.s32 5, %v3312
        %v3314 = vrot.slane %v870, %v3313
        %v3315 = vlaneseq
        %v3316 = vshrl.u32 %v3315, 7
        %v3317 = vsub.s32 6, %v3316
        %v3318 = vrot.slane %v870, %v3317
        %v3319 = vlaneseq
        %v3320 = vshrl.u32 %v3319, 7
        %v3321 = vsub.s32 7, %v3320
        %v3322 = vrot.slane %v870, %v3321
        %v3323 = vlaneseq
        %v3324 = vshrl.u32 %v3323, 7
        %v3325 = vsub.s32 0, %v3324
        %v3326 = vrot.slane %v974, %v3325
        %v3327 = vlaneseq
        %v3328 = vshrl.u32 %v3327, 7
        %v3329 = vsub.s32 1, %v3328
        %v3330 = vrot.slane %v974, %v3329
        %v3331 = vlaneseq
        %v3332 = vshrl.u32 %v3331, 7
        %v3333 = vsub.s32 2, %v3332
        %v3334 = vrot.slane %v974, %v3333
        %v3335 = vlaneseq
        %v3336 = vshrl.u32 %v3335, 7
        %v3337 = vsub.s32 3, %v3336
        %v3338 = vrot.slane %v974, %v3337
        %v3339 = vlaneseq
        %v3340 = vshrl.u32 %v3339, 7
        %v3341 = vsub.s32 4, %v3340
        %v3342 = vrot.slane %v974, %v3341
        %v3343 = vlaneseq
        %v3344 = vshrl.u32 %v3343, 7
        %v3345 = vsub.s32 5, %v3344
        %v3346 = vrot.slane %v974, %v3345
        %v3347 = vlaneseq
        %v3348 = vshrl.u32 %v3347, 7
        %v3349 = vsub.s32 6, %v3348
        %v3350 = vrot.slane %v974, %v3349
        %v3351 = vlaneseq
        %v3352 = vshrl.u32 %v3351, 7
        %v3353 = vsub.s32 7, %v3352
        %v3354 = vrot.slane %v974, %v3353
        %v3355 = vlaneseq
        %v3356 = vshrl.u32 %v3355, 7
        %v3357 = vsub.s32 0, %v3356
        %v3358 = vrot.slane %v1078, %v3357
        %v3359 = vlaneseq
        %v3360 = vshrl.u32 %v3359, 7
        %v3361 = vsub.s32 1, %v3360
        %v3362 = vrot.slane %v1078, %v3361
        %v3363 = vlaneseq
        %v3364 = vshrl.u32 %v3363, 7
        %v3365 = vsub.s32 2, %v3364
        %v3366 = vrot.slane %v1078, %v3365
        %v3367 = vlaneseq
        %v3368 = vshrl.u32 %v3367, 7
        %v3369 = vsub.s32 3, %v3368
        %v3370 = vrot.slane %v1078, %v3369
        %v3371 = vlaneseq
        %v3372 = vshrl.u32 %v3371, 7
        %v3373 = vsub.s32 4, %v3372
        %v3374 = vrot.slane %v1078, %v3373
        %v3375 = vlaneseq
        %v3376 = vshrl.u32 %v3375, 7
        %v3377 = vsub.s32 5, %v3376
        %v3378 = vrot.slane %v1078, %v3377
        %v3379 = vlaneseq
        %v3380 = vshrl.u32 %v3379, 7
        %v3381 = vsub.s32 6, %v3380
        %v3382 = vrot.slane %v1078, %v3381
        %v3383 = vlaneseq
        %v3384 = vshrl.u32 %v3383, 7
        %v3385 = vsub.s32 7, %v3384
        %v3386 = vrot.slane %v1078, %v3385
        %v3387 = vlaneseq
        %v3388 = vshrl.u32 %v3387, 7
        %v3389 = vsub.s32 0, %v3388
        %v3390 = vrot.slane %v1182, %v3389
        %v3391 = vlaneseq
        %v3392 = vshrl.u32 %v3391, 7
        %v3393 = vsub.s32 1, %v3392
        %v3394 = vrot.slane %v1182, %v3393
        %v3395 = vlaneseq
        %v3396 = vshrl.u32 %v3395, 7
        %v3397 = vsub.s32 2, %v3396
        %v3398 = vrot.slane %v1182, %v3397
        %v3399 = vlaneseq
        %v3400 = vshrl.u32 %v3399, 7
        %v3401 = vsub.s32 3, %v3400
        %v3402 = vrot.slane %v1182, %v3401
        %v3403 = vlaneseq
        %v3404 = vshrl.u32 %v3403, 7
        %v3405 = vsub.s32 4, %v3404
        %v3406 = vrot.slane %v1182, %v3405
        %v3407 = vlaneseq
        %v3408 = vshrl.u32 %v3407, 7
        %v3409 = vsub.s32 5, %v3408
        %v3410 = vrot.slane %v1182, %v3409
        %v3411 = vlaneseq
        %v3412 = vshrl.u32 %v3411, 7
        %v3413 = vsub.s32 6, %v3412
        %v3414 = vrot.slane %v1182, %v3413
        %v3415 = vlaneseq
        %v3416 = vshrl.u32 %v3415, 7
        %v3417 = vsub.s32 7, %v3416
        %v3418 = vrot.slane %v1182, %v3417
        %v3451 = vmul.f32 %v3241, %v3294
        %v3452 = vmul.f32 %v3241, %v3298
        %v3453 = vmul.f32 %v3241, %v3302
        %v3454 = vmul.f32 %v3241, %v3306
        %v3455 = vmul.f32 %v3241, %v3310
        %v3456 = vmul.f32 %v3241, %v3314
        %v3457 = vmul.f32 %v3241, %v3318
        %v3458 = vmul.f32 %v3241, %v3322
        %v3459 = vmul.f32 %v3241, %v3326
        %v3460 = vmul.f32 %v3241, %v3330
        %v3461 = vmul.f32 %v3241, %v3334
        %v3462 = vmul.f32 %v3241, %v3338
        %v3463 = vmul.f32 %v3241, %v3342
        %v3464 = vmul.f32 %v3241, %v3346
        %v3465 = vmul.f32 %v3241, %v3350
        %v3466 = vmul.f32 %v3241, %v3354
        %v3467 = vmul.f32 %v3241, %v3358
        %v3468 = vmul.f32 %v3241, %v3362
        %v3469 = vmul.f32 %v3241, %v3366
        %v3470 = vmul.f32 %v3241, %v3370
        %v3471 = vmul.f32 %v3241, %v3374
        %v3472 = vmul.f32 %v3241, %v3378
        %v3473 = vmul.f32 %v3241, %v3382
        %v3474 = vmul.f32 %v3241, %v3386
        %v3475 = vmul.f32 %v3241, %v3390
        %v3476 = vmul.f32 %v3241, %v3394
        %v3477 = vmul.f32 %v3241, %v3398
        %v3478 = vmul.f32 %v3241, %v3402
        %v3479 = vmul.f32 %v3241, %v3406
        %v3480 = vmul.f32 %v3241, %v3410
        %v3481 = vmul.f32 %v3241, %v3414
        %v3482 = vmul.f32 %v3241, %v3418
        %v3483 = vmul.f32 %v3245, %v3294
        %v3484 = vmul.f32 %v3245, %v3298
        %v3485 = vmul.f32 %v3245, %v3302
        %v3486 = vmul.f32 %v3245, %v3306
        %v3487 = vmul.f32 %v3245, %v3310
        %v3488 = vmul.f32 %v3245, %v3314
        %v3489 = vmul.f32 %v3245, %v3318
        %v3490 = vmul.f32 %v3245, %v3322
        %v3491 = vmul.f32 %v3245, %v3326
        %v3492 = vmul.f32 %v3245, %v3330
        %v3493 = vmul.f32 %v3245, %v3334
        %v3494 = vmul.f32 %v3245, %v3338
        %v3495 = vmul.f32 %v3245, %v3342
        %v3496 = vmul.f32 %v3245, %v3346
        %v3497 = vmul.f32 %v3245, %v3350
        %v3498 = vmul.f32 %v3245, %v3354
        %v3499 = vmul.f32 %v3245, %v3358
        %v3500 = vmul.f32 %v3245, %v3362
        %v3501 = vmul.f32 %v3245, %v3366
        %v3502 = vmul.f32 %v3245, %v3370
        %v3503 = vmul.f32 %v3245, %v3374
        %v3504 = vmul.f32 %v3245, %v3378
        %v3505 = vmul.f32 %v3245, %v3382
        %v3506 = vmul.f32 %v3245, %v3386
        %v3507 = vmul.f32 %v3245, %v3390
        %v3508 = vmul.f32 %v3245, %v3394
        %v3509 = vmul.f32 %v3245, %v3398
        %v3510 = vmul.f32 %v3245, %v3402
        %v3511 = vmul.f32 %v3245, %v3406
        %v3512 = vmul.f32 %v3245, %v3410
        %v3513 = vmul.f32 %v3245, %v3414
        %v3514 = vmul.f32 %v3245, %v3418
        %v3515 = vmul.f32 %v3249, %v3294
        %v3516 = vmul.f32 %v3249, %v3298
        %v3517 = vmul.f32 %v3249, %v3302
        %v3518 = vmul.f32 %v3249, %v3306
        %v3519 = vmul.f32 %v3249, %v3310
        %v3520 = vmul.f32 %v3249, %v3314
        %v3521 = vmul.f32 %v3249, %v3318
        %v3522 = vmul.f32 %v3249, %v3322
        %v3523 = vmul.f32 %v3249, %v3326
        %v3524 = vmul.f32 %v3249, %v3330
        %v3525 = vmul.f32 %v3249, %v3334
        %v3526 = vmul.f32 %v3249, %v3338
        %v3527 = vmul.f32 %v3249, %v3342
        %v3528 = vmul.f32 %v3249, %v3346
        %v3529 = vmul.f32 %v3249, %v3350
        %v3530 = vmul.f32 %v3249, %v3354
        %v3531 = vmul.f32 %v3249, %v3358
        %v3532 = vmul.f32 %v3249, %v3362
        %v3533 = vmul.f32 %v3249, %v3366
        %v3534 = vmul.f32 %v3249, %v3370
        %v3535 = vmul.f32 %v3249, %v3374
        %v3536 = vmul.f32 %v3249, %v3378
        %v3537 = vmul.f32 %v3249, %v3382
        %v3538 = vmul.f32 %v3249, %v3386
        %v3539 = vmul.f32 %v3249, %v3390
        %v3540 = vmul.f32 %v3249, %v3394
        %v3541 = vmul.f32 %v3249, %v3398
        %v3542 = vmul.f32 %v3249, %v3402
        %v3543 = vmul.f32 %v3249, %v3406
        %v3544 = vmul.f32 %v3249, %v3410
        %v3545 = vmul.f32 %v3249, %v3414
        %v3546 = vmul.f32 %v3249, %v3418
        %v3547 = vmul.f32 %v3253, %v3294
        %v3548 = vmul.f32 %v3253, %v3298
        %v3549 = vmul.f32 %v3253, %v3302
        %v3550 = vmul.f32 %v3253, %v3306
        %v3551 = vmul.f32 %v3253, %v3310
        %v3552 = vmul.f32 %v3253, %v3314
        %v3553 = vmul.f32 %v3253, %v3318
        %v3554 = vmul.f32 %v3253, %v3322
        %v3555 = vmul.f32 %v3253, %v3326
        %v3556 = vmul.f32 %v3253, %v3330
        %v3557 = vmul.f32 %v3253, %v3334
        %v3558 = vmul.f32 %v3253, %v3338
        %v3559 = vmul.f32 %v3253, %v3342
        %v3560 = vmul.f32 %v3253, %v3346
        %v3561 = vmul.f32 %v3253, %v3350
        %v3562 = vmul.f32 %v3253, %v3354
        %v3563 = vmul.f32 %v3253, %v3358
        %v3564 = vmul.f32 %v3253, %v3362
        %v3565 = vmul.f32 %v3253, %v3366
        %v3566 = vmul.f32 %v3253, %v3370
        %v3567 = vmul.f32 %v3253, %v3374
        %v3568 = vmul.f32 %v3253, %v3378
        %v3569 = vmul.f32 %v3253, %v3382
        %v3570 = vmul.f32 %v3253, %v3386
        %v3571 = vmul.f32 %v3253, %v3390
        %v3572 = vmul.f32 %v3253, %v3394
        %v3573 = vmul.f32 %v3253, %v3398
        %v3574 = vmul.f32 %v3253, %v3402
        %v3575 = vmul.f32 %v3253, %v3406
        %v3576 = vmul.f32 %v3253, %v3410
        %v3577 = vmul.f32 %v3253, %v3414
        %v3578 = vmul.f32 %v3253, %v3418
        %v3579 = vmul.f32 %v3257, %v3294
        %v3580 = vmul.f32 %v3257, %v3298
        %v3581 = vmul.f32 %v3257, %v3302
        %v3582 = vmul.f32 %v3257, %v3306
        %v3583 = vmul.f32 %v3257, %v3310
        %v3584 = vmul.f32 %v3257, %v3314
        %v3585 = vmul.f32 %v3257, %v3318
        %v3586 = vmul.f32 %v3257, %v3322
        %v3587 = vmul.f32 %v3257, %v3326
        %v3588 = vmul.f32 %v3257, %v3330
        %v3589 = vmul.f32 %v3257, %v3334
        %v3590 = vmul.f32 %v3257, %v3338
        %v3591 = vmul.f32 %v3257, %v3342
        %v3592 = vmul.f32 %v3257, %v3346
        %v3593 = vmul.f32 %v3257, %v3350
        %v3594 = vmul.f32 %v3257, %v3354
        %v3595 = vmul.f32 %v3257, %v3358
        %v3596 = vmul.f32 %v3257, %v3362
        %v3597 = vmul.f32 %v3257, %v3366
        %v3598 = vmul.f32 %v3257, %v3370
        %v3599 = vmul.f32 %v3257, %v3374
        %v3600 = vmul.f32 %v3257, %v3378
        %v3601 = vmul.f32 %v3257, %v3382
        %v3602 = vmul.f32 %v3257, %v3386
        %v3603 = vmul.f32 %v3257, %v3390
        %v3604 = vmul.f32 %v3257, %v3394
        %v3605 = vmul.f32 %v3257, %v3398
        %v3606 = vmul.f32 %v3257, %v3402
        %v3607 = vmul.f32 %v3257, %v3406
        %v3608 = vmul.f32 %v3257, %v3410
        %v3609 = vmul.f32 %v3257, %v3414
        %v3610 = vmul.f32 %v3257, %v3418
        %v3611 = vmul.f32 %v3261, %v3294
        %v3612 = vmul.f32 %v3261, %v3298
        %v3613 = vmul.f32 %v3261, %v3302
        %v3614 = vmul.f32 %v3261, %v3306
        %v3615 = vmul.f32 %v3261, %v3310
        %v3616 = vmul.f32 %v3261, %v3314
        %v3617 = vmul.f32 %v3261, %v3318
        %v3618 = vmul.f32 %v3261, %v3322
        %v3619 = vmul.f32 %v3261, %v3326
        %v3620 = vmul.f32 %v3261, %v3330
        %v3621 = vmul.f32 %v3261, %v3334
        %v3622 = vmul.f32 %v3261, %v3338
        %v3623 = vmul.f32 %v3261, %v3342
        %v3624 = vmul.f32 %v3261, %v3346
        %v3625 = vmul.f32 %v3261, %v3350
        %v3626 = vmul.f32 %v3261, %v3354
        %v3627 = vmul.f32 %v3261, %v3358
        %v3628 = vmul.f32 %v3261, %v3362
        %v3629 = vmul.f32 %v3261, %v3366
        %v3630 = vmul.f32 %v3261, %v3370
        %v3631 = vmul.f32 %v3261, %v3374
        %v3632 = vmul.f32 %v3261, %v3378
        %v3633 = vmul.f32 %v3261, %v3382
        %v3634 = vmul.f32 %v3261, %v3386
        %v3635 = vmul.f32 %v3261, %v3390
        %v3636 = vmul.f32 %v3261, %v3394
        %v3637 = vmul.f32 %v3261, %v3398
        %v3638 = vmul.f32 %v3261, %v3402
        %v3639 = vmul.f32 %v3261, %v3406
        %v3640 = vmul.f32 %v3261, %v3410
        %v3641 = vmul.f32 %v3261, %v3414
        %v3642 = vmul.f32 %v3261, %v3418
        %v3643 = vmul.f32 %v3265, %v3294
        %v3644 = vmul.f32 %v3265, %v3298
        %v3645 = vmul.f32 %v3265, %v3302
        %v3646 = vmul.f32 %v3265, %v3306
        %v3647 = vmul.f32 %v3265, %v3310
        %v3648 = vmul.f32 %v3265, %v3314
        %v3649 = vmul.f32 %v3265, %v3318
        %v3650 = vmul.f32 %v3265, %v3322
        %v3651 = vmul.f32 %v3265, %v3326
        %v3652 = vmul.f32 %v3265, %v3330
        %v3653 = vmul.f32 %v3265, %v3334
        %v3654 = vmul.f32 %v3265, %v3338
        %v3655 = vmul.f32 %v3265, %v3342
        %v3656 = vmul.f32 %v3265, %v3346
        %v3657 = vmul.f32 %v3265, %v3350
        %v3658 = vmul.f32 %v3265, %v3354
        %v3659 = vmul.f32 %v3265, %v3358
        %v3660 = vmul.f32 %v3265, %v3362
        %v3661 = vmul.f32 %v3265, %v3366
        %v3662 = vmul.f32 %v3265, %v3370
        %v3663 = vmul.f32 %v3265, %v3374
        %v3664 = vmul.f32 %v3265, %v3378
        %v3665 = vmul.f32 %v3265, %v3382
        %v3666 = vmul.f32 %v3265, %v3386
        %v3667 = vmul.f32 %v3265, %v3390
        %v3668 = vmul.f32 %v3265, %v3394
        %v3669 = vmul.f32 %v3265, %v3398
        %v3670 = vmul.f32 %v3265, %v3402
        %v3671 = vmul.f32 %v3265, %v3406
        %v3672 = vmul.f32 %v3265, %v3410
        %v3673 = vmul.f32 %v3265, %v3414
        %v3674 = vmul.f32 %v3265, %v3418
        %v3675 = vmul.f32 %v3269, %v3294
        %v3676 = vmul.f32 %v3269, %v3298
        %v3677 = vmul.f32 %v3269, %v3302
        %v3678 = vmul.f32 %v3269, %v3306
        %v3679 = vmul.f32 %v3269, %v3310
        %v3680 = vmul.f32 %v3269, %v3314
        %v3681 = vmul.f32 %v3269, %v3318
        %v3682 = vmul.f32 %v3269, %v3322
        %v3683 = vmul.f32 %v3269, %v3326
        %v3684 = vmul.f32 %v3269, %v3330
        %v3685 = vmul.f32 %v3269, %v3334
        %v3686 = vmul.f32 %v3269, %v3338
        %v3687 = vmul.f32 %v3269, %v3342
        %v3688 = vmul.f32 %v3269, %v3346
        %v3689 = vmul.f32 %v3269, %v3350
        %v3690 = vmul.f32 %v3269, %v3354
        %v3691 = vmul.f32 %v3269, %v3358
        %v3692 = vmul.f32 %v3269, %v3362
        %v3693 = vmul.f32 %v3269, %v3366
        %v3694 = vmul.f32 %v3269, %v3370
        %v3695 = vmul.f32 %v3269, %v3374
        %v3696 = vmul.f32 %v3269, %v3378
        %v3697 = vmul.f32 %v3269, %v3382
        %v3698 = vmul.f32 %v3269, %v3386
        %v3699 = vmul.f32 %v3269, %v3390
        %v3700 = vmul.f32 %v3269, %v3394
        %v3701 = vmul.f32 %v3269, %v3398
        %v3702 = vmul.f32 %v3269, %v3402
        %v3703 = vmul.f32 %v3269, %v3406
        %v3704 = vmul.f32 %v3269, %v3410
        %v3705 = vmul.f32 %v3269, %v3414
        %v3706 = vmul.f32 %v3269, %v3418
        %v3707 = vmul.f32 %v3273, %v3294
        %v3708 = vmul.f32 %v3273, %v3298
        %v3709 = vmul.f32 %v3273, %v3302
        %v3710 = vmul.f32 %v3273, %v3306
        %v3711 = vmul.f32 %v3273, %v3310
        %v3712 = vmul.f32 %v3273, %v3314
        %v3713 = vmul.f32 %v3273, %v3318
        %v3714 = vmul.f32 %v3273, %v3322
        %v3715 = vmul.f32 %v3273, %v3326
        %v3716 = vmul.f32 %v3273, %v3330
        %v3717 = vmul.f32 %v3273, %v3334
        %v3718 = vmul.f32 %v3273, %v3338
        %v3719 = vmul.f32 %v3273, %v3342
        %v3720 = vmul.f32 %v3273, %v3346
        %v3721 = vmul.f32 %v3273, %v3350
        %v3722 = vmul.f32 %v3273, %v3354
        %v3723 = vmul.f32 %v3273, %v3358
        %v3724 = vmul.f32 %v3273, %v3362
        %v3725 = vmul.f32 %v3273, %v3366
        %v3726 = vmul.f32 %v3273, %v3370
        %v3727 = vmul.f32 %v3273, %v3374
        %v3728 = vmul.f32 %v3273, %v3378
        %v3729 = vmul.f32 %v3273, %v3382
        %v3730 = vmul.f32 %v3273, %v3386
        %v3731 = vmul.f32 %v3273, %v3390
        %v3732 = vmul.f32 %v3273, %v3394
        %v3733 = vmul.f32 %v3273, %v3398
        %v3734 = vmul.f32 %v3273, %v3402
        %v3735 = vmul.f32 %v3273, %v3406
        %v3736 = vmul.f32 %v3273, %v3410
        %v3737 = vmul.f32 %v3273, %v3414
        %v3738 = vmul.f32 %v3273, %v3418
        %v3739 = vmul.f32 %v3277, %v3294
        %v3740 = vmul.f32 %v3277, %v3298
        %v3741 = vmul.f32 %v3277, %v3302
        %v3742 = vmul.f32 %v3277, %v3306
        %v3743 = vmul.f32 %v3277, %v3310
        %v3744 = vmul.f32 %v3277, %v3314
        %v3745 = vmul.f32 %v3277, %v3318
        %v3746 = vmul.f32 %v3277, %v3322
        %v3747 = vmul.f32 %v3277, %v3326
        %v3748 = vmul.f32 %v3277, %v3330
        %v3749 = vmul.f32 %v3277, %v3334
        %v3750 = vmul.f32 %v3277, %v3338
        %v3751 = vmul.f32 %v3277, %v3342
        %v3752 = vmul.f32 %v3277, %v3346
        %v3753 = vmul.f32 %v3277, %v3350
        %v3754 = vmul.f32 %v3277, %v3354
        %v3755 = vmul.f32 %v3277, %v3358
        %v3756 = vmul.f32 %v3277, %v3362
        %v3757 = vmul.f32 %v3277, %v3366
        %v3758 = vmul.f32 %v3277, %v3370
        %v3759 = vmul.f32 %v3277, %v3374
        %v3760 = vmul.f32 %v3277, %v3378
        %v3761 = vmul.f32 %v3277, %v3382
        %v3762 = vmul.f32 %v3277, %v3386
        %v3763 = vmul.f32 %v3277, %v3390
        %v3764 = vmul.f32 %v3277, %v3394
        %v3765 = vmul.f32 %v3277, %v3398
        %v3766 = vmul.f32 %v3277, %v3402
        %v3767 = vmul.f32 %v3277, %v3406
        %v3768 = vmul.f32 %v3277, %v3410
        %v3769 = vmul.f32 %v3277, %v3414
        %v3770 = vmul.f32 %v3277, %v3418
        %v3771 = vmul.f32 %v3281, %v3294
        %v3772 = vmul.f32 %v3281, %v3298
        %v3773 = vmul.f32 %v3281, %v3302
        %v3774 = vmul.f32 %v3281, %v3306
        %v3775 = vmul.f32 %v3281, %v3310
        %v3776 = vmul.f32 %v3281, %v3314
        %v3777 = vmul.f32 %v3281, %v3318
        %v3778 = vmul.f32 %v3281, %v3322
        %v3779 = vmul.f32 %v3281, %v3326
        %v3780 = vmul.f32 %v3281, %v3330
        %v3781 = vmul.f32 %v3281, %v3334
        %v3782 = vmul.f32 %v3281, %v3338
        %v3783 = vmul.f32 %v3281, %v3342
        %v3784 = vmul.f32 %v3281, %v3346
        %v3785 = vmul.f32 %v3281, %v3350
        %v3786 = vmul.f32 %v3281, %v3354
        %v3787 = vmul.f32 %v3281, %v3358
        %v3788 = vmul.f32 %v3281, %v3362
        %v3789 = vmul.f32 %v3281, %v3366
        %v3790 = vmul.f32 %v3281, %v3370
        %v3791 = vmul.f32 %v3281, %v3374
        %v3792 = vmul.f32 %v3281, %v3378
        %v3793 = vmul.f32 %v3281, %v3382
        %v3794 = vmul.f32 %v3281, %v3386
        %v3795 = vmul.f32 %v3281, %v3390
        %v3796 = vmul.f32 %v3281, %v3394
        %v3797 = vmul.f32 %v3281, %v3398
        %v3798 = vmul.f32 %v3281, %v3402
        %v3799 = vmul.f32 %v3281, %v3406
        %v3800 = vmul.f32 %v3281, %v3410
        %v3801 = vmul.f32 %v3281, %v3414
        %v3802 = vmul.f32 %v3281, %v3418
        %v3803 = vmul.f32 %v3285, %v3294
        %v3804 = vmul.f32 %v3285, %v3298
        %v3805 = vmul.f32 %v3285, %v3302
        %v3806 = vmul.f32 %v3285, %v3306
        %v3807 = vmul.f32 %v3285, %v3310
        %v3808 = vmul.f32 %v3285, %v3314
        %v3809 = vmul.f32 %v3285, %v3318
        %v3810 = vmul.f32 %v3285, %v3322
        %v3811 = vmul.f32 %v3285, %v3326
        %v3812 = vmul.f32 %v3285, %v3330
        %v3813 = vmul.f32 %v3285, %v3334
        %v3814 = vmul.f32 %v3285, %v3338
        %v3815 = vmul.f32 %v3285, %v3342
        %v3816 = vmul.f32 %v3285, %v3346
        %v3817 = vmul.f32 %v3285, %v3350
        %v3818 = vmul.f32 %v3285, %v3354
        %v3819 = vmul.f32 %v3285, %v3358
        %v3820 = vmul.f32 %v3285, %v3362
        %v3821 = vmul.f32 %v3285, %v3366
        %v3822 = vmul.f32 %v3285, %v3370
        %v3823 = vmul.f32 %v3285, %v3374
        %v3824 = vmul.f32 %v3285, %v3378
        %v3825 = vmul.f32 %v3285, %v3382
        %v3826 = vmul.f32 %v3285, %v3386
        %v3827 = vmul.f32 %v3285, %v3390
        %v3828 = vmul.f32 %v3285, %v3394
        %v3829 = vmul.f32 %v3285, %v3398
        %v3830 = vmul.f32 %v3285, %v3402
        %v3831 = vmul.f32 %v3285, %v3406
        %v3832 = vmul.f32 %v3285, %v3410
        %v3833 = vmul.f32 %v3285, %v3414
        %v3834 = vmul.f32 %v3285, %v3418
        %v3835 = vadd.f32 %v2855, %v3451
        %v3836 = vadd.f32 %v2856, %v3452
        %v3837 = vadd.f32 %v2857, %v3453
        %v3838 = vadd.f32 %v2858, %v3454
        %v3839 = vadd.f32 %v2859, %v3455
        %v3840 = vadd.f32 %v2860, %v3456
        %v3841 = vadd.f32 %v2861, %v3457
        %v3842 = vadd.f32 %v2862, %v3458
        %v3843 = vadd.f32 %v2863, %v3459
        %v3844 = vadd.f32 %v2864, %v3460
        %v3845 = vadd.f32 %v2865, %v3461
        %v3846 = vadd.f32 %v2866, %v3462
        %v3847 = vadd.f32 %v2867, %v3463
        %v3848 = vadd.f32 %v2868, %v3464
        %v3849 = vadd.f32 %v2869, %v3465
        %v3850 = vadd.f32 %v2870, %v3466
        %v3851 = vadd.f32 %v2871, %v3467
        %v3852 = vadd.f32 %v2872, %v3468
        %v3853 = vadd.f32 %v2873, %v3469
        %v3854 = vadd.f32 %v2874, %v3470
        %v3855 = vadd.f32 %v2875, %v3471
        %v3856 = vadd.f32 %v2876, %v3472
        %v3857 = vadd.f32 %v2877, %v3473
        %v3858 = vadd.f32 %v2878, %v3474
        %v3859 = vadd.f32 %v2879, %v3475
        %v3860 = vadd.f32 %v2880, %v3476
        %v3861 = vadd.f32 %v2881, %v3477
        %v3862 = vadd.f32 %v2882, %v3478
        %v3863 = vadd.f32 %v2883, %v3479
        %v3864 = vadd.f32 %v2884, %v3480
        %v3865 = vadd.f32 %v2885, %v3481
        %v3866 = vadd.f32 %v2886, %v3482
        %v3867 = vadd.f32 %v2887, %v3483
        %v3868 = vadd.f32 %v2888, %v3484
        %v3869 = vadd.f32 %v2889, %v3485
        %v3870 = vadd.f32 %v2890, %v3486
        %v3871 = vadd.f32 %v2891, %v3487
        %v3872 = vadd.f32 %v2892, %v3488
        %v3873 = vadd.f32 %v2893, %v3489
        %v3874 = vadd.f32 %v2894, %v3490
        %v3875 = vadd.f32 %v2895, %v3491
        %v3876 = vadd.f32 %v2896, %v3492
        %v3877 = vadd.f32 %v2897, %v3493
        %v3878 = vadd.f32 %v2898, %v3494
        %v3879 = vadd.f32 %v2899, %v3495
        %v3880 = vadd.f32 %v2900, %v3496
        %v3881 = vadd.f32 %v2901, %v3497
        %v3882 = vadd.f32 %v2902, %v3498
        %v3883 = vadd.f32 %v2903, %v3499
        %v3884 = vadd.f32 %v2904, %v3500
        %v3885 = vadd.f32 %v2905, %v3501
        %v3886 = vadd.f32 %v2906, %v3502
        %v3887 = vadd.f32 %v2907, %v3503
        %v3888 = vadd.f32 %v2908, %v3504
        %v3889 = vadd.f32 %v2909, %v3505
        %v3890 = vadd.f32 %v2910, %v3506
        %v3891 = vadd.f32 %v2911, %v3507
        %v3892 = vadd.f32 %v2912, %v3508
        %v3893 = vadd.f32 %v2913, %v3509
        %v3894 = vadd.f32 %v2914, %v3510
        %v3895 = vadd.f32 %v2915, %v3511
        %v3896 = vadd.f32 %v2916, %v3512
        %v3897 = vadd.f32 %v2917, %v3513
        %v3898 = vadd.f32 %v2918, %v3514
        %v3899 = vadd.f32 %v2919, %v3515
        %v3900 = vadd.f32 %v2920, %v3516
        %v3901 = vadd.f32 %v2921, %v3517
        %v3902 = vadd.f32 %v2922, %v3518
        %v3903 = vadd.f32 %v2923, %v3519
        %v3904 = vadd.f32 %v2924, %v3520
        %v3905 = vadd.f32 %v2925, %v3521
        %v3906 = vadd.f32 %v2926, %v3522
        %v3907 = vadd.f32 %v2927, %v3523
        %v3908 = vadd.f32 %v2928, %v3524
        %v3909 = vadd.f32 %v2929, %v3525
        %v3910 = vadd.f32 %v2930, %v3526
        %v3911 = vadd.f32 %v2931, %v3527
        %v3912 = vadd.f32 %v2932, %v3528
        %v3913 = vadd.f32 %v2933, %v3529
        %v3914 = vadd.f32 %v2934, %v3530
        %v3915 = vadd.f32 %v2935, %v3531
        %v3916 = vadd.f32 %v2936, %v3532
        %v3917 = vadd.f32 %v2937, %v3533
        %v3918 = vadd.f32 %v2938, %v3534
        %v3919 = vadd.f32 %v2939, %v3535
        %v3920 = vadd.f32 %v2940, %v3536
        %v3921 = vadd.f32 %v2941, %v3537
        %v3922 = vadd.f32 %v2942, %v3538
        %v3923 = vadd.f32 %v2943, %v3539
        %v3924 = vadd.f32 %v2944, %v3540
        %v3925 = vadd.f32 %v2945, %v3541
        %v3926 = vadd.f32 %v2946, %v3542
        %v3927 = vadd.f32 %v2947, %v3543
        %v3928 = vadd.f32 %v2948, %v3544
        %v3929 = vadd.f32 %v2949, %v3545
        %v3930 = vadd.f32 %v2950, %v3546
        %v3931 = vadd.f32 %v2951, %v3547
        %v3932 = vadd.f32 %v2952, %v3548
        %v3933 = vadd.f32 %v2953, %v3549
        %v3934 = vadd.f32 %v2954, %v3550
        %v3935 = vadd.f32 %v2955, %v3551
        %v3936 = vadd.f32 %v2956, %v3552
        %v3937 = vadd.f32 %v2957, %v3553
        %v3938 = vadd.f32 %v2958, %v3554
        %v3939 = vadd.f32 %v2959, %v3555
        %v3940 = vadd.f32 %v2960, %v3556
        %v3941 = vadd.f32 %v2961, %v3557
        %v3942 = vadd.f32 %v2962, %v3558
        %v3943 = vadd.f32 %v2963, %v3559
        %v3944 = vadd.f32 %v2964, %v3560
        %v3945 = vadd.f32 %v2965, %v3561
        %v3946 = vadd.f32 %v2966, %v3562
        %v3947 = vadd.f32 %v2967, %v3563
        %v3948 = vadd.f32 %v2968, %v3564
        %v3949 = vadd.f32 %v2969, %v3565
        %v3950 = vadd.f32 %v2970, %v3566
        %v3951 = vadd.f32 %v2971, %v3567
        %v3952 = vadd.f32 %v2972, %v3568
        %v3953 = vadd.f32 %v2973, %v3569
        %v3954 = vadd.f32 %v2974, %v3570
        %v3955 = vadd.f32 %v2975, %v3571
        %v3956 = vadd.f32 %v2976, %v3572
        %v3957 = vadd.f32 %v2977, %v3573
        %v3958 = vadd.f32 %v2978, %v3574
        %v3959 = vadd.f32 %v2979, %v3575
        %v3960 = vadd.f32 %v2980, %v3576
        %v3961 = vadd.f32 %v2981, %v3577
        %v3962 = vadd.f32 %v2982, %v3578
        %v3963 = vadd.f32 %v2983, %v3579
        %v3964 = vadd.f32 %v2984, %v3580
        %v3965 = vadd.f32 %v2985, %v3581
        %v3966 = vadd.f32 %v2986, %v3582
        %v3967 = vadd.f32 %v2987, %v3583
        %v3968 = vadd.f32 %v2988, %v3584
        %v3969 = vadd.f32 %v2989, %v3585
        %v3970 = vadd.f32 %v2990, %v3586
        %v3971 = vadd.f32 %v2991, %v3587
        %v3972 = vadd.f32 %v2992, %v3588
        %v3973 = vadd.f32 %v2993, %v3589
        %v3974 = vadd.f32 %v2994, %v3590
        %v3975 = vadd.f32 %v2995, %v3591
        %v3976 = vadd.f32 %v2996, %v3592
        %v3977 = vadd.f32 %v2997, %v3593
        %v3978 = vadd.f32 %v2998, %v3594
        %v3979 = vadd.f32 %v2999, %v3595
        %v3980 = vadd.f32 %v3000, %v3596
        %v3981 = vadd.f32 %v3001, %v3597
        %v3982 = vadd.f32 %v3002, %v3598
        %v3983 = vadd.f32 %v3003, %v3599
        %v3984 = vadd.f32 %v3004, %v3600
        %v3985 = vadd.f32 %v3005, %v3601
        %v3986 = vadd.f32 %v3006, %v3602
        %v3987 = vadd.f32 %v3007, %v3603
        %v3988 = vadd.f32 %v3008, %v3604
        %v3989 = vadd.f32 %v3009, %v3605
        %v3990 = vadd.f32 %v3010, %v3606
        %v3991 = vadd.f32 %v3011, %v3607
        %v3992 = vadd.f32 %v3012, %v3608
        %v3993 = vadd.f32 %v3013, %v3609
        %v3994 = vadd.f32 %v3014, %v3610
        %v3995 = vadd.f32 %v3015, %v3611
        %v3996 = vadd.f32 %v3016, %v3612
        %v3997 = vadd.f32 %v3017, %v3613
        %v3998 = vadd.f32 %v3018, %v3614
        %v3999 = vadd.f32 %v3019, %v3615
        %v4000 = vadd.f32 %v3020, %v3616
        %v4001 = vadd.f32 %v3021, %v3617
        %v4002 = vadd.f32 %v3022, %v3618
        %v4003 = vadd.f32 %v3023, %v3619
        %v4004 = vadd.f32 %v3024, %v3620
        %v4005 = vadd.f32 %v3025, %v3621
        %v4006 = vadd.f32 %v3026, %v3622
        %v4007 = vadd.f32 %v3027, %v3623
        %v4008 = vadd.f32 %v3028, %v3624
        %v4009 = vadd.f32 %v3029, %v3625
        %v4010 = vadd.f32 %v3030, %v3626
        %v4011 = vadd.f32 %v3031, %v3627
        %v4012 = vadd.f32 %v3032, %v3628
        %v4013 = vadd.f32 %v3033, %v3629
        %v4014 = vadd.f32 %v3034, %v3630
        %v4015 = vadd.f32 %v3035, %v3631
        %v4016 = vadd.f32 %v3036, %v3632
        %v4017 = vadd.f32 %v3037, %v3633
        %v4018 = vadd.f32 %v3038, %v3634
        %v4019 = vadd.f32 %v3039, %v3635
        %v4020 = vadd.f32 %v3040, %v3636
        %v4021 = vadd.f32 %v3041, %v3637
        %v4022 = vadd.f32 %v3042, %v3638
        %v4023 = vadd.f32 %v3043, %v3639
        %v4024 = vadd.f32 %v3044, %v3640
        %v4025 = vadd.f32 %v3045, %v3641
        %v4026 = vadd.f32 %v3046, %v3642
        %v4027 = vadd.f32 %v3047, %v3643
        %v4028 = vadd.f32 %v3048, %v3644
        %v4029 = vadd.f32 %v3049, %v3645
        %v4030 = vadd.f32 %v3050, %v3646
        %v4031 = vadd.f32 %v3051, %v3647
        %v4032 = vadd.f32 %v3052, %v3648
        %v4033 = vadd.f32 %v3053, %v3649
        %v4034 = vadd.f32 %v3054, %v3650
        %v4035 = vadd.f32 %v3055, %v3651
        %v4036 = vadd.f32 %v3056, %v3652
        %v4037 = vadd.f32 %v3057, %v3653
        %v4038 = vadd.f32 %v3058, %v3654
        %v4039 = vadd.f32 %v3059, %v3655
        %v4040 = vadd.f32 %v3060, %v3656
        %v4041 = vadd.f32 %v3061, %v3657
        %v4042 = vadd.f32 %v3062, %v3658
        %v4043 = vadd.f32 %v3063, %v3659
        %v4044 = vadd.f32 %v3064, %v3660
        %v4045 = vadd.f32 %v3065, %v3661
        %v4046 = vadd.f32 %v3066, %v3662
        %v4047 = vadd.f32 %v3067, %v3663
        %v4048 = vadd.f32 %v3068, %v3664
        %v4049 = vadd.f32 %v3069, %v3665
        %v4050 = vadd.f32 %v3070, %v3666
        %v4051 = vadd.f32 %v3071, %v3667
        %v4052 = vadd.f32 %v3072, %v3668
        %v4053 = vadd.f32 %v3073, %v3669
        %v4054 = vadd.f32 %v3074, %v3670
        %v4055 = vadd.f32 %v3075, %v3671
        %v4056 = vadd.f32 %v3076, %v3672
        %v4057 = vadd.f32 %v3077, %v3673
        %v4058 = vadd.f32 %v3078, %v3674
        %v4059 = vadd.f32 %v3079, %v3675
        %v4060 = vadd.f32 %v3080, %v3676
        %v4061 = vadd.f32 %v3081, %v3677
        %v4062 = vadd.f32 %v3082, %v3678
        %v4063 = vadd.f32 %v3083, %v3679
        %v4064 = vadd.f32 %v3084, %v3680
        %v4065 = vadd.f32 %v3085, %v3681
        %v4066 = vadd.f32 %v3086, %v3682
        %v4067 = vadd.f32 %v3087, %v3683
        %v4068 = vadd.f32 %v3088, %v3684
        %v4069 = vadd.f32 %v3089, %v3685
        %v4070 = vadd.f32 %v3090, %v3686
        %v4071 = vadd.f32 %v3091, %v3687
        %v4072 = vadd.f32 %v3092, %v3688
        %v4073 = vadd.f32 %v3093, %v3689
        %v4074 = vadd.f32 %v3094, %v3690
        %v4075 = vadd.f32 %v3095, %v3691
        %v4076 = vadd.f32 %v3096, %v3692
        %v4077 = vadd.f32 %v3097, %v3693
        %v4078 = vadd.f32 %v3098, %v3694
        %v4079 = vadd.f32 %v3099, %v3695
        %v4080 = vadd.f32 %v3100, %v3696
        %v4081 = vadd.f32 %v3101, %v3697
        %v4082 = vadd.f32 %v3102, %v3698
        %v4083 = vadd.f32 %v3103, %v3699
        %v4084 = vadd.f32 %v3104, %v3700
        %v4085 = vadd.f32 %v3105, %v3701
        %v4086 = vadd.f32 %v3106, %v3702
        %v4087 = vadd.f32 %v3107, %v3703
        %v4088 = vadd.f32 %v3108, %v3704
        %v4089 = vadd.f32 %v3109, %v3705
        %v4090 = vadd.f32 %v3110, %v3706
        %v4091 = vadd.f32 %v3111, %v3707
        %v4092 = vadd.f32 %v3112, %v3708
        %v4093 = vadd.f32 %v3113, %v3709
        %v4094 = vadd.f32 %v3114, %v3710
        %v4095 = vadd.f32 %v3115, %v3711
        %v4096 = vadd.f32 %v3116, %v3712
        %v4097 = vadd.f32 %v3117, %v3713
        %v4098 = vadd.f32 %v3118, %v3714
        %v4099 = vadd.f32 %v3119, %v3715
        %v4100 = vadd.f32 %v3120, %v3716
        %v4101 = vadd.f32 %v3121, %v3717
        %v4102 = vadd.f32 %v3122, %v3718
        %v4103 = vadd.f32 %v3123, %v3719
        %v4104 = vadd.f32 %v3124, %v3720
        %v4105 = vadd.f32 %v3125, %v3721
        %v4106 = vadd.f32 %v3126, %v3722
        %v4107 = vadd.f32 %v3127, %v3723
        %v4108 = vadd.f32 %v3128, %v3724
        %v4109 = vadd.f32 %v3129, %v3725
        %v4110 = vadd.f32 %v3130, %v3726
        %v4111 = vadd.f32 %v3131, %v3727
        %v4112 = vadd.f32 %v3132, %v3728
        %v4113 = vadd.f32 %v3133, %v3729
        %v4114 = vadd.f32 %v3134, %v3730
        %v4115 = vadd.f32 %v3135, %v3731
        %v4116 = vadd.f32 %v3136, %v3732
        %v4117 = vadd.f32 %v3137, %v3733
        %v4118 = vadd.f32 %v3138, %v3734
        %v4119 = vadd.f32 %v3139, %v3735
        %v4120 = vadd.f32 %v3140, %v3736
        %v4121 = vadd.f32 %v3141, %v3737
        %v4122 = vadd.f32 %v3142, %v3738
        %v4123 = vadd.f32 %v3143, %v3739
        %v4124 = vadd.f32 %v3144, %v3740
        %v4125 = vadd.f32 %v3145, %v3741
        %v4126 = vadd.f32 %v3146, %v3742
        %v4127 = vadd.f32 %v3147, %v3743
        %v4128 = vadd.f32 %v3148, %v3744
        %v4129 = vadd.f32 %v3149, %v3745
        %v4130 = vadd.f32 %v3150, %v3746
        %v4131 = vadd.f32 %v3151, %v3747
        %v4132 = vadd.f32 %v3152, %v3748
        %v4133 = vadd.f32 %v3153, %v3749
        %v4134 = vadd.f32 %v3154, %v3750
        %v4135 = vadd.f32 %v3155, %v3751
        %v4136 = vadd.f32 %v3156, %v3752
        %v4137 = vadd.f32 %v3157, %v3753
        %v4138 = vadd.f32 %v3158, %v3754
        %v4139 = vadd.f32 %v3159, %v3755
        %v4140 = vadd.f32 %v3160, %v3756
        %v4141 = vadd.f32 %v3161, %v3757
        %v4142 = vadd.f32 %v3162, %v3758
        %v4143 = vadd.f32 %v3163, %v3759
        %v4144 = vadd.f32 %v3164, %v3760
        %v4145 = vadd.f32 %v3165, %v3761
        %v4146 = vadd.f32 %v3166, %v3762
        %v4147 = vadd.f32 %v3167, %v3763
        %v4148 = vadd.f32 %v3168, %v3764
        %v4149 = vadd.f32 %v3169, %v3765
        %v4150 = vadd.f32 %v3170, %v3766
        %v4151 = vadd.f32 %v3171, %v3767
        %v4152 = vadd.f32 %v3172, %v3768
        %v4153 = vadd.f32 %v3173, %v3769
        %v4154 = vadd.f32 %v3174, %v3770
        %v4155 = vadd.f32 %v3175, %v3771
        %v4156 = vadd.f32 %v3176, %v3772
        %v4157 = vadd.f32 %v3177, %v3773
        %v4158 = vadd.f32 %v3178, %v3774
        %v4159 = vadd.f32 %v3179, %v3775
        %v4160 = vadd.f32 %v3180, %v3776
        %v4161 = vadd.f32 %v3181, %v3777
        %v4162 = vadd.f32 %v3182, %v3778
        %v4163 = vadd.f32 %v3183, %v3779
        %v4164 = vadd.f32 %v3184, %v3780
        %v4165 = vadd.f32 %v3185, %v3781
        %v4166 = vadd.f32 %v3186, %v3782
        %v4167 = vadd.f32 %v3187, %v3783
        %v4168 = vadd.f32 %v3188, %v3784
        %v4169 = vadd.f32 %v3189, %v3785
        %v4170 = vadd.f32 %v3190, %v3786
        %v4171 = vadd.f32 %v3191, %v3787
        %v4172 = vadd.f32 %v3192, %v3788
        %v4173 = vadd.f32 %v3193, %v3789
        %v4174 = vadd.f32 %v3194, %v3790
        %v4175 = vadd.f32 %v3195, %v3791
        %v4176 = vadd.f32 %v3196, %v3792
        %v4177 = vadd.f32 %v3197, %v3793
        %v4178 = vadd.f32 %v3198, %v3794
        %v4179 = vadd.f32 %v3199, %v3795
        %v4180 = vadd.f32 %v3200, %v3796
        %v4181 = vadd.f32 %v3201, %v3797
        %v4182 = vadd.f32 %v3202, %v3798
        %v4183 = vadd.f32 %v3203, %v3799
        %v4184 = vadd.f32 %v3204, %v3800
        %v4185 = vadd.f32 %v3205, %v3801
        %v4186 = vadd.f32 %v3206, %v3802
        %v4187 = vadd.f32 %v3207, %v3803
        %v4188 = vadd.f32 %v3208, %v3804
        %v4189 = vadd.f32 %v3209, %v3805
        %v4190 = vadd.f32 %v3210, %v3806
        %v4191 = vadd.f32 %v3211, %v3807
        %v4192 = vadd.f32 %v3212, %v3808
        %v4193 = vadd.f32 %v3213, %v3809
        %v4194 = vadd.f32 %v3214, %v3810
        %v4195 = vadd.f32 %v3215, %v3811
        %v4196 = vadd.f32 %v3216, %v3812
        %v4197 = vadd.f32 %v3217, %v3813
        %v4198 = vadd.f32 %v3218, %v3814
        %v4199 = vadd.f32 %v3219, %v3815
        %v4200 = vadd.f32 %v3220, %v3816
        %v4201 = vadd.f32 %v3221, %v3817
        %v4202 = vadd.f32 %v3222, %v3818
        %v4203 = vadd.f32 %v3223, %v3819
        %v4204 = vadd.f32 %v3224, %v3820
        %v4205 = vadd.f32 %v3225, %v3821
        %v4206 = vadd.f32 %v3226, %v3822
        %v4207 = vadd.f32 %v3227, %v3823
        %v4208 = vadd.f32 %v3228, %v3824
        %v4209 = vadd.f32 %v3229, %v3825
        %v4210 = vadd.f32 %v3230, %v3826
        %v4211 = vadd.f32 %v3231, %v3827
        %v4212 = vadd.f32 %v3232, %v3828
        %v4213 = vadd.f32 %v3233, %v3829
        %v4214 = vadd.f32 %v3234, %v3830
        %v4215 = vadd.f32 %v3235, %v3831
        %v4216 = vadd.f32 %v3236, %v3832
        %v4217 = vadd.f32 %v3237, %v3833
        %v4218 = vadd.f32 %v3238, %v3834
        %v4219 = vtanh.pop %v3835
        %v4220 = vtanh.pop %v3836
        %v4221 = vtanh.pop %v3837
        %v4222 = vtanh.pop %v3838
        %v4223 = vtanh.pop %v3839
        %v4224 = vtanh.pop %v3840
        %v4225 = vtanh.pop %v3841
        %v4226 = vtanh.pop %v3842
        %v4227 = vtanh.pop %v3843
        %v4228 = vtanh.pop %v3844
        %v4229 = vtanh.pop %v3845
        %v4230 = vtanh.pop %v3846
        %v4231 = vtanh.pop %v3847
        %v4232 = vtanh.pop %v3848
        %v4233 = vtanh.pop %v3849
        %v4234 = vtanh.pop %v3850
        %v4235 = vtanh.pop %v3851
        %v4236 = vtanh.pop %v3852
        %v4237 = vtanh.pop %v3853
        %v4238 = vtanh.pop %v3854
        %v4239 = vtanh.pop %v3855
        %v4240 = vtanh.pop %v3856
        %v4241 = vtanh.pop %v3857
        %v4242 = vtanh.pop %v3858
        %v4243 = vtanh.pop %v3859
        %v4244 = vtanh.pop %v3860
        %v4245 = vtanh.pop %v3861
        %v4246 = vtanh.pop %v3862
        %v4247 = vtanh.pop %v3863
        %v4248 = vtanh.pop %v3864
        %v4249 = vtanh.pop %v3865
        %v4250 = vtanh.pop %v3866
        %v4251 = vtanh.pop %v3867
        %v4252 = vtanh.pop %v3868
        %v4253 = vtanh.pop %v3869
        %v4254 = vtanh.pop %v3870
        %v4255 = vtanh.pop %v3871
        %v4256 = vtanh.pop %v3872
        %v4257 = vtanh.pop %v3873
        %v4258 = vtanh.pop %v3874
        %v4259 = vtanh.pop %v3875
        %v4260 = vtanh.pop %v3876
        %v4261 = vtanh.pop %v3877
        %v4262 = vtanh.pop %v3878
        %v4263 = vtanh.pop %v3879
        %v4264 = vtanh.pop %v3880
        %v4265 = vtanh.pop %v3881
        %v4266 = vtanh.pop %v3882
        %v4267 = vtanh.pop %v3883
        %v4268 = vtanh.pop %v3884
        %v4269 = vtanh.pop %v3885
        %v4270 = vtanh.pop %v3886
        %v4271 = vtanh.pop %v3887
        %v4272 = vtanh.pop %v3888
        %v4273 = vtanh.pop %v3889
        %v4274 = vtanh.pop %v3890
        %v4275 = vtanh.pop %v3891
        %v4276 = vtanh.pop %v3892
        %v4277 = vtanh.pop %v3893
        %v4278 = vtanh.pop %v3894
        %v4279 = vtanh.pop %v3895
        %v4280 = vtanh.pop %v3896
        %v4281 = vtanh.pop %v3897
        %v4282 = vtanh.pop %v3898
        %v4283 = vtanh.pop %v3899
        %v4284 = vtanh.pop %v3900
        %v4285 = vtanh.pop %v3901
        %v4286 = vtanh.pop %v3902
        %v4287 = vtanh.pop %v3903
        %v4288 = vtanh.pop %v3904
        %v4289 = vtanh.pop %v3905
        %v4290 = vtanh.pop %v3906
        %v4291 = vtanh.pop %v3907
        %v4292 = vtanh.pop %v3908
        %v4293 = vtanh.pop %v3909
        %v4294 = vtanh.pop %v3910
        %v4295 = vtanh.pop %v3911
        %v4296 = vtanh.pop %v3912
        %v4297 = vtanh.pop %v3913
        %v4298 = vtanh.pop %v3914
        %v4299 = vtanh.pop %v3915
        %v4300 = vtanh.pop %v3916
        %v4301 = vtanh.pop %v3917
        %v4302 = vtanh.pop %v3918
        %v4303 = vtanh.pop %v3919
        %v4304 = vtanh.pop %v3920
        %v4305 = vtanh.pop %v3921
        %v4306 = vtanh.pop %v3922
        %v4307 = vtanh.pop %v3923
        %v4308 = vtanh.pop %v3924
        %v4309 = vtanh.pop %v3925
        %v4310 = vtanh.pop %v3926
        %v4311 = vtanh.pop %v3927
        %v4312 = vtanh.pop %v3928
        %v4313 = vtanh.pop %v3929
        %v4314 = vtanh.pop %v3930
        %v4315 = vtanh.pop %v3931
        %v4316 = vtanh.pop %v3932
        %v4317 = vtanh.pop %v3933
        %v4318 = vtanh.pop %v3934
        %v4319 = vtanh.pop %v3935
        %v4320 = vtanh.pop %v3936
        %v4321 = vtanh.pop %v3937
        %v4322 = vtanh.pop %v3938
        %v4323 = vtanh.pop %v3939
        %v4324 = vtanh.pop %v3940
        %v4325 = vtanh.pop %v3941
        %v4326 = vtanh.pop %v3942
        %v4327 = vtanh.pop %v3943
        %v4328 = vtanh.pop %v3944
        %v4329 = vtanh.pop %v3945
        %v4330 = vtanh.pop %v3946
        %v4331 = vtanh.pop %v3947
        %v4332 = vtanh.pop %v3948
        %v4333 = vtanh.pop %v3949
        %v4334 = vtanh.pop %v3950
        %v4335 = vtanh.pop %v3951
        %v4336 = vtanh.pop %v3952
        %v4337 = vtanh.pop %v3953
        %v4338 = vtanh.pop %v3954
        %v4339 = vtanh.pop %v3955
        %v4340 = vtanh.pop %v3956
        %v4341 = vtanh.pop %v3957
        %v4342 = vtanh.pop %v3958
        %v4343 = vtanh.pop %v3959
        %v4344 = vtanh.pop %v3960
        %v4345 = vtanh.pop %v3961
        %v4346 = vtanh.pop %v3962
        %v4347 = vtanh.pop %v3963
        %v4348 = vtanh.pop %v3964
        %v4349 = vtanh.pop %v3965
        %v4350 = vtanh.pop %v3966
        %v4351 = vtanh.pop %v3967
        %v4352 = vtanh.pop %v3968
        %v4353 = vtanh.pop %v3969
        %v4354 = vtanh.pop %v3970
        %v4355 = vtanh.pop %v3971
        %v4356 = vtanh.pop %v3972
        %v4357 = vtanh.pop %v3973
        %v4358 = vtanh.pop %v3974
        %v4359 = vtanh.pop %v3975
        %v4360 = vtanh.pop %v3976
        %v4361 = vtanh.pop %v3977
        %v4362 = vtanh.pop %v3978
        %v4363 = vtanh.pop %v3979
        %v4364 = vtanh.pop %v3980
        %v4365 = vtanh.pop %v3981
        %v4366 = vtanh.pop %v3982
        %v4367 = vtanh.pop %v3983
        %v4368 = vtanh.pop %v3984
        %v4369 = vtanh.pop %v3985
        %v4370 = vtanh.pop %v3986
        %v4371 = vtanh.pop %v3987
        %v4372 = vtanh.pop %v3988
        %v4373 = vtanh.pop %v3989
        %v4374 = vtanh.pop %v3990
        %v4375 = vtanh.pop %v3991
        %v4376 = vtanh.pop %v3992
        %v4377 = vtanh.pop %v3993
        %v4378 = vtanh.pop %v3994
        %v4379 = vtanh.pop %v3995
        %v4380 = vtanh.pop %v3996
        %v4381 = vtanh.pop %v3997
        %v4382 = vtanh.pop %v3998
        %v4383 = vtanh.pop %v3999
        %v4384 = vtanh.pop %v4000
        %v4385 = vtanh.pop %v4001
        %v4386 = vtanh.pop %v4002
        %v4387 = vtanh.pop %v4003
        %v4388 = vtanh.pop %v4004
        %v4389 = vtanh.pop %v4005
        %v4390 = vtanh.pop %v4006
        %v4391 = vtanh.pop %v4007
        %v4392 = vtanh.pop %v4008
        %v4393 = vtanh.pop %v4009
        %v4394 = vtanh.pop %v4010
        %v4395 = vtanh.pop %v4011
        %v4396 = vtanh.pop %v4012
        %v4397 = vtanh.pop %v4013
        %v4398 = vtanh.pop %v4014
        %v4399 = vtanh.pop %v4015
        %v4400 = vtanh.pop %v4016
        %v4401 = vtanh.pop %v4017
        %v4402 = vtanh.pop %v4018
        %v4403 = vtanh.pop %v4019
        %v4404 = vtanh.pop %v4020
        %v4405 = vtanh.pop %v4021
        %v4406 = vtanh.pop %v4022
        %v4407 = vtanh.pop %v4023
        %v4408 = vtanh.pop %v4024
        %v4409 = vtanh.pop %v4025
        %v4410 = vtanh.pop %v4026
        %v4411 = vtanh.pop %v4027
        %v4412 = vtanh.pop %v4028
        %v4413 = vtanh.pop %v4029
        %v4414 = vtanh.pop %v4030
        %v4415 = vtanh.pop %v4031
        %v4416 = vtanh.pop %v4032
        %v4417 = vtanh.pop %v4033
        %v4418 = vtanh.pop %v4034
        %v4419 = vtanh.pop %v4035
        %v4420 = vtanh.pop %v4036
        %v4421 = vtanh.pop %v4037
        %v4422 = vtanh.pop %v4038
        %v4423 = vtanh.pop %v4039
        %v4424 = vtanh.pop %v4040
        %v4425 = vtanh.pop %v4041
        %v4426 = vtanh.pop %v4042
        %v4427 = vtanh.pop %v4043
        %v4428 = vtanh.pop %v4044
        %v4429 = vtanh.pop %v4045
        %v4430 = vtanh.pop %v4046
        %v4431 = vtanh.pop %v4047
        %v4432 = vtanh.pop %v4048
        %v4433 = vtanh.pop %v4049
        %v4434 = vtanh.pop %v4050
        %v4435 = vtanh.pop %v4051
        %v4436 = vtanh.pop %v4052
        %v4437 = vtanh.pop %v4053
        %v4438 = vtanh.pop %v4054
        %v4439 = vtanh.pop %v4055
        %v4440 = vtanh.pop %v4056
        %v4441 = vtanh.pop %v4057
        %v4442 = vtanh.pop %v4058
        %v4443 = vtanh.pop %v4059
        %v4444 = vtanh.pop %v4060
        %v4445 = vtanh.pop %v4061
        %v4446 = vtanh.pop %v4062
        %v4447 = vtanh.pop %v4063
        %v4448 = vtanh.pop %v4064
        %v4449 = vtanh.pop %v4065
        %v4450 = vtanh.pop %v4066
        %v4451 = vtanh.pop %v4067
        %v4452 = vtanh.pop %v4068
        %v4453 = vtanh.pop %v4069
        %v4454 = vtanh.pop %v4070
        %v4455 = vtanh.pop %v4071
        %v4456 = vtanh.pop %v4072
        %v4457 = vtanh.pop %v4073
        %v4458 = vtanh.pop %v4074
        %v4459 = vtanh.pop %v4075
        %v4460 = vtanh.pop %v4076
        %v4461 = vtanh.pop %v4077
        %v4462 = vtanh.pop %v4078
        %v4463 = vtanh.pop %v4079
        %v4464 = vtanh.pop %v4080
        %v4465 = vtanh.pop %v4081
        %v4466 = vtanh.pop %v4082
        %v4467 = vtanh.pop %v4083
        %v4468 = vtanh.pop %v4084
        %v4469 = vtanh.pop %v4085
        %v4470 = vtanh.pop %v4086
        %v4471 = vtanh.pop %v4087
        %v4472 = vtanh.pop %v4088
        %v4473 = vtanh.pop %v4089
        %v4474 = vtanh.pop %v4090
        %v4475 = vsub.f32 %v4219, %v4347
        %v4476 = vsub.f32 %v4220, %v4348
        %v4477 = vsub.f32 %v4221, %v4349
        %v4478 = vsub.f32 %v4222, %v4350
        %v4479 = vsub.f32 %v4223, %v4351
        %v4480 = vsub.f32 %v4224, %v4352
        %v4481 = vsub.f32 %v4225, %v4353
        %v4482 = vsub.f32 %v4226, %v4354
        %v4483 = vsub.f32 %v4227, %v4355
        %v4484 = vsub.f32 %v4228, %v4356
        %v4485 = vsub.f32 %v4229, %v4357
        %v4486 = vsub.f32 %v4230, %v4358
        %v4487 = vsub.f32 %v4231, %v4359
        %v4488 = vsub.f32 %v4232, %v4360
        %v4489 = vsub.f32 %v4233, %v4361
        %v4490 = vsub.f32 %v4234, %v4362
        %v4491 = vsub.f32 %v4235, %v4363
        %v4492 = vsub.f32 %v4236, %v4364
        %v4493 = vsub.f32 %v4237, %v4365
        %v4494 = vsub.f32 %v4238, %v4366
        %v4495 = vsub.f32 %v4239, %v4367
        %v4496 = vsub.f32 %v4240, %v4368
        %v4497 = vsub.f32 %v4241, %v4369
        %v4498 = vsub.f32 %v4242, %v4370
        %v4499 = vsub.f32 %v4243, %v4371
        %v4500 = vsub.f32 %v4244, %v4372
        %v4501 = vsub.f32 %v4245, %v4373
        %v4502 = vsub.f32 %v4246, %v4374
        %v4503 = vsub.f32 %v4247, %v4375
        %v4504 = vsub.f32 %v4248, %v4376
        %v4505 = vsub.f32 %v4249, %v4377
        %v4506 = vsub.f32 %v4250, %v4378
        %v4507 = vsub.f32 %v4251, %v4379
        %v4508 = vsub.f32 %v4252, %v4380
        %v4509 = vsub.f32 %v4253, %v4381
        %v4510 = vsub.f32 %v4254, %v4382
        %v4511 = vsub.f32 %v4255, %v4383
        %v4512 = vsub.f32 %v4256, %v4384
        %v4513 = vsub.f32 %v4257, %v4385
        %v4514 = vsub.f32 %v4258, %v4386
        %v4515 = vsub.f32 %v4259, %v4387
        %v4516 = vsub.f32 %v4260, %v4388
        %v4517 = vsub.f32 %v4261, %v4389
        %v4518 = vsub.f32 %v4262, %v4390
        %v4519 = vsub.f32 %v4263, %v4391
        %v4520 = vsub.f32 %v4264, %v4392
        %v4521 = vsub.f32 %v4265, %v4393
        %v4522 = vsub.f32 %v4266, %v4394
        %v4523 = vsub.f32 %v4267, %v4395
        %v4524 = vsub.f32 %v4268, %v4396
        %v4525 = vsub.f32 %v4269, %v4397
        %v4526 = vsub.f32 %v4270, %v4398
        %v4527 = vsub.f32 %v4271, %v4399
        %v4528 = vsub.f32 %v4272, %v4400
        %v4529 = vsub.f32 %v4273, %v4401
        %v4530 = vsub.f32 %v4274, %v4402
        %v4531 = vsub.f32 %v4275, %v4403
        %v4532 = vsub.f32 %v4276, %v4404
        %v4533 = vsub.f32 %v4277, %v4405
        %v4534 = vsub.f32 %v4278, %v4406
        %v4535 = vsub.f32 %v4279, %v4407
        %v4536 = vsub.f32 %v4280, %v4408
        %v4537 = vsub.f32 %v4281, %v4409
        %v4538 = vsub.f32 %v4282, %v4410
        %v4539 = vsub.f32 %v4283, %v4411
        %v4540 = vsub.f32 %v4284, %v4412
        %v4541 = vsub.f32 %v4285, %v4413
        %v4542 = vsub.f32 %v4286, %v4414
        %v4543 = vsub.f32 %v4287, %v4415
        %v4544 = vsub.f32 %v4288, %v4416
        %v4545 = vsub.f32 %v4289, %v4417
        %v4546 = vsub.f32 %v4290, %v4418
        %v4547 = vsub.f32 %v4291, %v4419
        %v4548 = vsub.f32 %v4292, %v4420
        %v4549 = vsub.f32 %v4293, %v4421
        %v4550 = vsub.f32 %v4294, %v4422
        %v4551 = vsub.f32 %v4295, %v4423
        %v4552 = vsub.f32 %v4296, %v4424
        %v4553 = vsub.f32 %v4297, %v4425
        %v4554 = vsub.f32 %v4298, %v4426
        %v4555 = vsub.f32 %v4299, %v4427
        %v4556 = vsub.f32 %v4300, %v4428
        %v4557 = vsub.f32 %v4301, %v4429
        %v4558 = vsub.f32 %v4302, %v4430
        %v4559 = vsub.f32 %v4303, %v4431
        %v4560 = vsub.f32 %v4304, %v4432
        %v4561 = vsub.f32 %v4305, %v4433
        %v4562 = vsub.f32 %v4306, %v4434
        %v4563 = vsub.f32 %v4307, %v4435
        %v4564 = vsub.f32 %v4308, %v4436
        %v4565 = vsub.f32 %v4309, %v4437
        %v4566 = vsub.f32 %v4310, %v4438
        %v4567 = vsub.f32 %v4311, %v4439
        %v4568 = vsub.f32 %v4312, %v4440
        %v4569 = vsub.f32 %v4313, %v4441
        %v4570 = vsub.f32 %v4314, %v4442
        %v4571 = vsub.f32 %v4315, %v4443
        %v4572 = vsub.f32 %v4316, %v4444
        %v4573 = vsub.f32 %v4317, %v4445
        %v4574 = vsub.f32 %v4318, %v4446
        %v4575 = vsub.f32 %v4319, %v4447
        %v4576 = vsub.f32 %v4320, %v4448
        %v4577 = vsub.f32 %v4321, %v4449
        %v4578 = vsub.f32 %v4322, %v4450
        %v4579 = vsub.f32 %v4323, %v4451
        %v4580 = vsub.f32 %v4324, %v4452
        %v4581 = vsub.f32 %v4325, %v4453
        %v4582 = vsub.f32 %v4326, %v4454
        %v4583 = vsub.f32 %v4327, %v4455
        %v4584 = vsub.f32 %v4328, %v4456
        %v4585 = vsub.f32 %v4329, %v4457
        %v4586 = vsub.f32 %v4330, %v4458
        %v4587 = vsub.f32 %v4331, %v4459
        %v4588 = vsub.f32 %v4332, %v4460
        %v4589 = vsub.f32 %v4333, %v4461
        %v4590 = vsub.f32 %v4334, %v4462
        %v4591 = vsub.f32 %v4335, %v4463
        %v4592 = vsub.f32 %v4336, %v4464
        %v4593 = vsub.f32 %v4337, %v4465
        %v4594 = vsub.f32 %v4338, %v4466
        %v4595 = vsub.f32 %v4339, %v4467
        %v4596 = vsub.f32 %v4340, %v4468
        %v4597 = vsub.f32 %v4341, %v4469
        %v4598 = vsub.f32 %v4342, %v4470
        %v4599 = vsub.f32 %v4343, %v4471
        %v4600 = vsub.f32 %v4344, %v4472
        %v4601 = vsub.f32 %v4345, %v4473
        %v4602 = vsub.f32 %v4346, %v4474
        %v4603 = vmul.f32 %v4091, %v4475
        %v4604 = vmul.f32 %v4092, %v4476
        %v4605 = vmul.f32 %v4093, %v4477
        %v4606 = vmul.f32 %v4094, %v4478
        %v4607 = vmul.f32 %v4095, %v4479
        %v4608 = vmul.f32 %v4096, %v4480
        %v4609 = vmul.f32 %v4097, %v4481
        %v4610 = vmul.f32 %v4098, %v4482
        %v4611 = vmul.f32 %v4099, %v4483
        %v4612 = vmul.f32 %v4100, %v4484
        %v4613 = vmul.f32 %v4101, %v4485
        %v4614 = vmul.f32 %v4102, %v4486
        %v4615 = vmul.f32 %v4103, %v4487
        %v4616 = vmul.f32 %v4104, %v4488
        %v4617 = vmul.f32 %v4105, %v4489
        %v4618 = vmul.f32 %v4106, %v4490
        %v4619 = vmul.f32 %v4107, %v4491
        %v4620 = vmul.f32 %v4108, %v4492
        %v4621 = vmul.f32 %v4109, %v4493
        %v4622 = vmul.f32 %v4110, %v4494
        %v4623 = vmul.f32 %v4111, %v4495
        %v4624 = vmul.f32 %v4112, %v4496
        %v4625 = vmul.f32 %v4113, %v4497
        %v4626 = vmul.f32 %v4114, %v4498
        %v4627 = vmul.f32 %v4115, %v4499
        %v4628 = vmul.f32 %v4116, %v4500
        %v4629 = vmul.f32 %v4117, %v4501
        %v4630 = vmul.f32 %v4118, %v4502
        %v4631 = vmul.f32 %v4119, %v4503
        %v4632 = vmul.f32 %v4120, %v4504
        %v4633 = vmul.f32 %v4121, %v4505
        %v4634 = vmul.f32 %v4122, %v4506
        %v4635 = vmul.f32 %v4123, %v4507
        %v4636 = vmul.f32 %v4124, %v4508
        %v4637 = vmul.f32 %v4125, %v4509
        %v4638 = vmul.f32 %v4126, %v4510
        %v4639 = vmul.f32 %v4127, %v4511
        %v4640 = vmul.f32 %v4128, %v4512
        %v4641 = vmul.f32 %v4129, %v4513
        %v4642 = vmul.f32 %v4130, %v4514
        %v4643 = vmul.f32 %v4131, %v4515
        %v4644 = vmul.f32 %v4132, %v4516
        %v4645 = vmul.f32 %v4133, %v4517
        %v4646 = vmul.f32 %v4134, %v4518
        %v4647 = vmul.f32 %v4135, %v4519
        %v4648 = vmul.f32 %v4136, %v4520
        %v4649 = vmul.f32 %v4137, %v4521
        %v4650 = vmul.f32 %v4138, %v4522
        %v4651 = vmul.f32 %v4139, %v4523
        %v4652 = vmul.f32 %v4140, %v4524
        %v4653 = vmul.f32 %v4141, %v4525
        %v4654 = vmul.f32 %v4142, %v4526
        %v4655 = vmul.f32 %v4143, %v4527
        %v4656 = vmul.f32 %v4144, %v4528
        %v4657 = vmul.f32 %v4145, %v4529
        %v4658 = vmul.f32 %v4146, %v4530
        %v4659 = vmul.f32 %v4147, %v4531
        %v4660 = vmul.f32 %v4148, %v4532
        %v4661 = vmul.f32 %v4149, %v4533
        %v4662 = vmul.f32 %v4150, %v4534
        %v4663 = vmul.f32 %v4151, %v4535
        %v4664 = vmul.f32 %v4152, %v4536
        %v4665 = vmul.f32 %v4153, %v4537
        %v4666 = vmul.f32 %v4154, %v4538
        %v4667 = vmul.f32 %v4155, %v4539
        %v4668 = vmul.f32 %v4156, %v4540
        %v4669 = vmul.f32 %v4157, %v4541
        %v4670 = vmul.f32 %v4158, %v4542
        %v4671 = vmul.f32 %v4159, %v4543
        %v4672 = vmul.f32 %v4160, %v4544
        %v4673 = vmul.f32 %v4161, %v4545
        %v4674 = vmul.f32 %v4162, %v4546
        %v4675 = vmul.f32 %v4163, %v4547
        %v4676 = vmul.f32 %v4164, %v4548
        %v4677 = vmul.f32 %v4165, %v4549
        %v4678 = vmul.f32 %v4166, %v4550
        %v4679 = vmul.f32 %v4167, %v4551
        %v4680 = vmul.f32 %v4168, %v4552
        %v4681 = vmul.f32 %v4169, %v4553
        %v4682 = vmul.f32 %v4170, %v4554
        %v4683 = vmul.f32 %v4171, %v4555
        %v4684 = vmul.f32 %v4172, %v4556
        %v4685 = vmul.f32 %v4173, %v4557
        %v4686 = vmul.f32 %v4174, %v4558
        %v4687 = vmul.f32 %v4175, %v4559
        %v4688 = vmul.f32 %v4176, %v4560
        %v4689 = vmul.f32 %v4177, %v4561
        %v4690 = vmul.f32 %v4178, %v4562
        %v4691 = vmul.f32 %v4179, %v4563
        %v4692 = vmul.f32 %v4180, %v4564
        %v4693 = vmul.f32 %v4181, %v4565
        %v4694 = vmul.f32 %v4182, %v4566
        %v4695 = vmul.f32 %v4183, %v4567
        %v4696 = vmul.f32 %v4184, %v4568
        %v4697 = vmul.f32 %v4185, %v4569
        %v4698 = vmul.f32 %v4186, %v4570
        %v4699 = vmul.f32 %v4187, %v4571
        %v4700 = vmul.f32 %v4188, %v4572
        %v4701 = vmul.f32 %v4189, %v4573
        %v4702 = vmul.f32 %v4190, %v4574
        %v4703 = vmul.f32 %v4191, %v4575
        %v4704 = vmul.f32 %v4192, %v4576
        %v4705 = vmul.f32 %v4193, %v4577
        %v4706 = vmul.f32 %v4194, %v4578
        %v4707 = vmul.f32 %v4195, %v4579
        %v4708 = vmul.f32 %v4196, %v4580
        %v4709 = vmul.f32 %v4197, %v4581
        %v4710 = vmul.f32 %v4198, %v4582
        %v4711 = vmul.f32 %v4199, %v4583
        %v4712 = vmul.f32 %v4200, %v4584
        %v4713 = vmul.f32 %v4201, %v4585
        %v4714 = vmul.f32 %v4202, %v4586
        %v4715 = vmul.f32 %v4203, %v4587
        %v4716 = vmul.f32 %v4204, %v4588
        %v4717 = vmul.f32 %v4205, %v4589
        %v4718 = vmul.f32 %v4206, %v4590
        %v4719 = vmul.f32 %v4207, %v4591
        %v4720 = vmul.f32 %v4208, %v4592
        %v4721 = vmul.f32 %v4209, %v4593
        %v4722 = vmul.f32 %v4210, %v4594
        %v4723 = vmul.f32 %v4211, %v4595
        %v4724 = vmul.f32 %v4212, %v4596
        %v4725 = vmul.f32 %v4213, %v4597
        %v4726 = vmul.f32 %v4214, %v4598
        %v4727 = vmul.f32 %v4215, %v4599
        %v4728 = vmul.f32 %v4216, %v4600
        %v4729 = vmul.f32 %v4217, %v4601
        %v4730 = vmul.f32 %v4218, %v4602
        %v4731 = vadd.f32 %v4347, %v4603
        %v4732 = vadd.f32 %v4348, %v4604
        %v4733 = vadd.f32 %v4349, %v4605
        %v4734 = vadd.f32 %v4350, %v4606
        %v4735 = vadd.f32 %v4351, %v4607
        %v4736 = vadd.f32 %v4352, %v4608
        %v4737 = vadd.f32 %v4353, %v4609
        %v4738 = vadd.f32 %v4354, %v4610
        %v4739 = vadd.f32 %v4355, %v4611
        %v4740 = vadd.f32 %v4356, %v4612
        %v4741 = vadd.f32 %v4357, %v4613
        %v4742 = vadd.f32 %v4358, %v4614
        %v4743 = vadd.f32 %v4359, %v4615
        %v4744 = vadd.f32 %v4360, %v4616
        %v4745 = vadd.f32 %v4361, %v4617
        %v4746 = vadd.f32 %v4362, %v4618
        %v4747 = vadd.f32 %v4363, %v4619
        %v4748 = vadd.f32 %v4364, %v4620
        %v4749 = vadd.f32 %v4365, %v4621
        %v4750 = vadd.f32 %v4366, %v4622
        %v4751 = vadd.f32 %v4367, %v4623
        %v4752 = vadd.f32 %v4368, %v4624
        %v4753 = vadd.f32 %v4369, %v4625
        %v4754 = vadd.f32 %v4370, %v4626
        %v4755 = vadd.f32 %v4371, %v4627
        %v4756 = vadd.f32 %v4372, %v4628
        %v4757 = vadd.f32 %v4373, %v4629
        %v4758 = vadd.f32 %v4374, %v4630
        %v4759 = vadd.f32 %v4375, %v4631
        %v4760 = vadd.f32 %v4376, %v4632
        %v4761 = vadd.f32 %v4377, %v4633
        %v4762 = vadd.f32 %v4378, %v4634
        %v4763 = vadd.f32 %v4379, %v4635
        %v4764 = vadd.f32 %v4380, %v4636
        %v4765 = vadd.f32 %v4381, %v4637
        %v4766 = vadd.f32 %v4382, %v4638
        %v4767 = vadd.f32 %v4383, %v4639
        %v4768 = vadd.f32 %v4384, %v4640
        %v4769 = vadd.f32 %v4385, %v4641
        %v4770 = vadd.f32 %v4386, %v4642
        %v4771 = vadd.f32 %v4387, %v4643
        %v4772 = vadd.f32 %v4388, %v4644
        %v4773 = vadd.f32 %v4389, %v4645
        %v4774 = vadd.f32 %v4390, %v4646
        %v4775 = vadd.f32 %v4391, %v4647
        %v4776 = vadd.f32 %v4392, %v4648
        %v4777 = vadd.f32 %v4393, %v4649
        %v4778 = vadd.f32 %v4394, %v4650
        %v4779 = vadd.f32 %v4395, %v4651
        %v4780 = vadd.f32 %v4396, %v4652
        %v4781 = vadd.f32 %v4397, %v4653
        %v4782 = vadd.f32 %v4398, %v4654
        %v4783 = vadd.f32 %v4399, %v4655
        %v4784 = vadd.f32 %v4400, %v4656
        %v4785 = vadd.f32 %v4401, %v4657
        %v4786 = vadd.f32 %v4402, %v4658
        %v4787 = vadd.f32 %v4403, %v4659
        %v4788 = vadd.f32 %v4404, %v4660
        %v4789 = vadd.f32 %v4405, %v4661
        %v4790 = vadd.f32 %v4406, %v4662
        %v4791 = vadd.f32 %v4407, %v4663
        %v4792 = vadd.f32 %v4408, %v4664
        %v4793 = vadd.f32 %v4409, %v4665
        %v4794 = vadd.f32 %v4410, %v4666
        %v4795 = vadd.f32 %v4411, %v4667
        %v4796 = vadd.f32 %v4412, %v4668
        %v4797 = vadd.f32 %v4413, %v4669
        %v4798 = vadd.f32 %v4414, %v4670
        %v4799 = vadd.f32 %v4415, %v4671
        %v4800 = vadd.f32 %v4416, %v4672
        %v4801 = vadd.f32 %v4417, %v4673
        %v4802 = vadd.f32 %v4418, %v4674
        %v4803 = vadd.f32 %v4419, %v4675
        %v4804 = vadd.f32 %v4420, %v4676
        %v4805 = vadd.f32 %v4421, %v4677
        %v4806 = vadd.f32 %v4422, %v4678
        %v4807 = vadd.f32 %v4423, %v4679
        %v4808 = vadd.f32 %v4424, %v4680
        %v4809 = vadd.f32 %v4425, %v4681
        %v4810 = vadd.f32 %v4426, %v4682
        %v4811 = vadd.f32 %v4427, %v4683
        %v4812 = vadd.f32 %v4428, %v4684
        %v4813 = vadd.f32 %v4429, %v4685
        %v4814 = vadd.f32 %v4430, %v4686
        %v4815 = vadd.f32 %v4431, %v4687
        %v4816 = vadd.f32 %v4432, %v4688
        %v4817 = vadd.f32 %v4433, %v4689
        %v4818 = vadd.f32 %v4434, %v4690
        %v4819 = vadd.f32 %v4435, %v4691
        %v4820 = vadd.f32 %v4436, %v4692
        %v4821 = vadd.f32 %v4437, %v4693
        %v4822 = vadd.f32 %v4438, %v4694
        %v4823 = vadd.f32 %v4439, %v4695
        %v4824 = vadd.f32 %v4440, %v4696
        %v4825 = vadd.f32 %v4441, %v4697
        %v4826 = vadd.f32 %v4442, %v4698
        %v4827 = vadd.f32 %v4443, %v4699
        %v4828 = vadd.f32 %v4444, %v4700
        %v4829 = vadd.f32 %v4445, %v4701
        %v4830 = vadd.f32 %v4446, %v4702
        %v4831 = vadd.f32 %v4447, %v4703
        %v4832 = vadd.f32 %v4448, %v4704
        %v4833 = vadd.f32 %v4449, %v4705
        %v4834 = vadd.f32 %v4450, %v4706
        %v4835 = vadd.f32 %v4451, %v4707
        %v4836 = vadd.f32 %v4452, %v4708
        %v4837 = vadd.f32 %v4453, %v4709
        %v4838 = vadd.f32 %v4454, %v4710
        %v4839 = vadd.f32 %v4455, %v4711
        %v4840 = vadd.f32 %v4456, %v4712
        %v4841 = vadd.f32 %v4457, %v4713
        %v4842 = vadd.f32 %v4458, %v4714
        %v4843 = vadd.f32 %v4459, %v4715
        %v4844 = vadd.f32 %v4460, %v4716
        %v4845 = vadd.f32 %v4461, %v4717
        %v4846 = vadd.f32 %v4462, %v4718
        %v4847 = vadd.f32 %v4463, %v4719
        %v4848 = vadd.f32 %v4464, %v4720
        %v4849 = vadd.f32 %v4465, %v4721
        %v4850 = vadd.f32 %v4466, %v4722
        %v4851 = vadd.f32 %v4467, %v4723
        %v4852 = vadd.f32 %v4468, %v4724
        %v4853 = vadd.f32 %v4469, %v4725
        %v4854 = vadd.f32 %v4470, %v4726
        %v4855 = vadd.f32 %v4471, %v4727
        %v4856 = vadd.f32 %v4472, %v4728
        %v4857 = vadd.f32 %v4473, %v4729
        %v4858 = vadd.f32 %v4474, %v4730
        %v4859 = vtanh.pop %v4731
        %v4860 = vtanh.pop %v4732
        %v4861 = vtanh.pop %v4733
        %v4862 = vtanh.pop %v4734
        %v4863 = vtanh.pop %v4735
        %v4864 = vtanh.pop %v4736
        %v4865 = vtanh.pop %v4737
        %v4866 = vtanh.pop %v4738
        %v4867 = vtanh.pop %v4739
        %v4868 = vtanh.pop %v4740
        %v4869 = vtanh.pop %v4741
        %v4870 = vtanh.pop %v4742
        %v4871 = vtanh.pop %v4743
        %v4872 = vtanh.pop %v4744
        %v4873 = vtanh.pop %v4745
        %v4874 = vtanh.pop %v4746
        %v4875 = vtanh.pop %v4747
        %v4876 = vtanh.pop %v4748
        %v4877 = vtanh.pop %v4749
        %v4878 = vtanh.pop %v4750
        %v4879 = vtanh.pop %v4751
        %v4880 = vtanh.pop %v4752
        %v4881 = vtanh.pop %v4753
        %v4882 = vtanh.pop %v4754
        %v4883 = vtanh.pop %v4755
        %v4884 = vtanh.pop %v4756
        %v4885 = vtanh.pop %v4757
        %v4886 = vtanh.pop %v4758
        %v4887 = vtanh.pop %v4759
        %v4888 = vtanh.pop %v4760
        %v4889 = vtanh.pop %v4761
        %v4890 = vtanh.pop %v4762
        %v4891 = vtanh.pop %v4763
        %v4892 = vtanh.pop %v4764
        %v4893 = vtanh.pop %v4765
        %v4894 = vtanh.pop %v4766
        %v4895 = vtanh.pop %v4767
        %v4896 = vtanh.pop %v4768
        %v4897 = vtanh.pop %v4769
        %v4898 = vtanh.pop %v4770
        %v4899 = vtanh.pop %v4771
        %v4900 = vtanh.pop %v4772
        %v4901 = vtanh.pop %v4773
        %v4902 = vtanh.pop %v4774
        %v4903 = vtanh.pop %v4775
        %v4904 = vtanh.pop %v4776
        %v4905 = vtanh.pop %v4777
        %v4906 = vtanh.pop %v4778
        %v4907 = vtanh.pop %v4779
        %v4908 = vtanh.pop %v4780
        %v4909 = vtanh.pop %v4781
        %v4910 = vtanh.pop %v4782
        %v4911 = vtanh.pop %v4783
        %v4912 = vtanh.pop %v4784
        %v4913 = vtanh.pop %v4785
        %v4914 = vtanh.pop %v4786
        %v4915 = vtanh.pop %v4787
        %v4916 = vtanh.pop %v4788
        %v4917 = vtanh.pop %v4789
        %v4918 = vtanh.pop %v4790
        %v4919 = vtanh.pop %v4791
        %v4920 = vtanh.pop %v4792
        %v4921 = vtanh.pop %v4793
        %v4922 = vtanh.pop %v4794
        %v4923 = vtanh.pop %v4795
        %v4924 = vtanh.pop %v4796
        %v4925 = vtanh.pop %v4797
        %v4926 = vtanh.pop %v4798
        %v4927 = vtanh.pop %v4799
        %v4928 = vtanh.pop %v4800
        %v4929 = vtanh.pop %v4801
        %v4930 = vtanh.pop %v4802
        %v4931 = vtanh.pop %v4803
        %v4932 = vtanh.pop %v4804
        %v4933 = vtanh.pop %v4805
        %v4934 = vtanh.pop %v4806
        %v4935 = vtanh.pop %v4807
        %v4936 = vtanh.pop %v4808
        %v4937 = vtanh.pop %v4809
        %v4938 = vtanh.pop %v4810
        %v4939 = vtanh.pop %v4811
        %v4940 = vtanh.pop %v4812
        %v4941 = vtanh.pop %v4813
        %v4942 = vtanh.pop %v4814
        %v4943 = vtanh.pop %v4815
        %v4944 = vtanh.pop %v4816
        %v4945 = vtanh.pop %v4817
        %v4946 = vtanh.pop %v4818
        %v4947 = vtanh.pop %v4819
        %v4948 = vtanh.pop %v4820
        %v4949 = vtanh.pop %v4821
        %v4950 = vtanh.pop %v4822
        %v4951 = vtanh.pop %v4823
        %v4952 = vtanh.pop %v4824
        %v4953 = vtanh.pop %v4825
        %v4954 = vtanh.pop %v4826
        %v4955 = vtanh.pop %v4827
        %v4956 = vtanh.pop %v4828
        %v4957 = vtanh.pop %v4829
        %v4958 = vtanh.pop %v4830
        %v4959 = vtanh.pop %v4831
        %v4960 = vtanh.pop %v4832
        %v4961 = vtanh.pop %v4833
        %v4962 = vtanh.pop %v4834
        %v4963 = vtanh.pop %v4835
        %v4964 = vtanh.pop %v4836
        %v4965 = vtanh.pop %v4837
        %v4966 = vtanh.pop %v4838
        %v4967 = vtanh.pop %v4839
        %v4968 = vtanh.pop %v4840
        %v4969 = vtanh.pop %v4841
        %v4970 = vtanh.pop %v4842
        %v4971 = vtanh.pop %v4843
        %v4972 = vtanh.pop %v4844
        %v4973 = vtanh.pop %v4845
        %v4974 = vtanh.pop %v4846
        %v4975 = vtanh.pop %v4847
        %v4976 = vtanh.pop %v4848
        %v4977 = vtanh.pop %v4849
        %v4978 = vtanh.pop %v4850
        %v4979 = vtanh.pop %v4851
        %v4980 = vtanh.pop %v4852
        %v4981 = vtanh.pop %v4853
        %v4982 = vtanh.pop %v4854
        %v4983 = vtanh.pop %v4855
        %v4984 = vtanh.pop %v4856
        %v4985 = vtanh.pop %v4857
        %v4986 = vtanh.pop %v4858
        %v4987 = vmul.f32 %v4859, %v4475
        %v4988 = vmul.f32 %v4860, %v4476
        %v4989 = vmul.f32 %v4861, %v4477
        %v4990 = vmul.f32 %v4862, %v4478
        %v4991 = vmul.f32 %v4863, %v4479
        %v4992 = vmul.f32 %v4864, %v4480
        %v4993 = vmul.f32 %v4865, %v4481
        %v4994 = vmul.f32 %v4866, %v4482
        %v4995 = vmul.f32 %v4867, %v4483
        %v4996 = vmul.f32 %v4868, %v4484
        %v4997 = vmul.f32 %v4869, %v4485
        %v4998 = vmul.f32 %v4870, %v4486
        %v4999 = vmul.f32 %v4871, %v4487
        %v5000 = vmul.f32 %v4872, %v4488
        %v5001 = vmul.f32 %v4873, %v4489
        %v5002 = vmul.f32 %v4874, %v4490
        %v5003 = vmul.f32 %v4875, %v4491
        %v5004 = vmul.f32 %v4876, %v4492
        %v5005 = vmul.f32 %v4877, %v4493
        %v5006 = vmul.f32 %v4878, %v4494
        %v5007 = vmul.f32 %v4879, %v4495
        %v5008 = vmul.f32 %v4880, %v4496
        %v5009 = vmul.f32 %v4881, %v4497
        %v5010 = vmul.f32 %v4882, %v4498
        %v5011 = vmul.f32 %v4883, %v4499
        %v5012 = vmul.f32 %v4884, %v4500
        %v5013 = vmul.f32 %v4885, %v4501
        %v5014 = vmul.f32 %v4886, %v4502
        %v5015 = vmul.f32 %v4887, %v4503
        %v5016 = vmul.f32 %v4888, %v4504
        %v5017 = vmul.f32 %v4889, %v4505
        %v5018 = vmul.f32 %v4890, %v4506
        %v5019 = vmul.f32 %v4891, %v4507
        %v5020 = vmul.f32 %v4892, %v4508
        %v5021 = vmul.f32 %v4893, %v4509
        %v5022 = vmul.f32 %v4894, %v4510
        %v5023 = vmul.f32 %v4895, %v4511
        %v5024 = vmul.f32 %v4896, %v4512
        %v5025 = vmul.f32 %v4897, %v4513
        %v5026 = vmul.f32 %v4898, %v4514
        %v5027 = vmul.f32 %v4899, %v4515
        %v5028 = vmul.f32 %v4900, %v4516
        %v5029 = vmul.f32 %v4901, %v4517
        %v5030 = vmul.f32 %v4902, %v4518
        %v5031 = vmul.f32 %v4903, %v4519
        %v5032 = vmul.f32 %v4904, %v4520
        %v5033 = vmul.f32 %v4905, %v4521
        %v5034 = vmul.f32 %v4906, %v4522
        %v5035 = vmul.f32 %v4907, %v4523
        %v5036 = vmul.f32 %v4908, %v4524
        %v5037 = vmul.f32 %v4909, %v4525
        %v5038 = vmul.f32 %v4910, %v4526
        %v5039 = vmul.f32 %v4911, %v4527
        %v5040 = vmul.f32 %v4912, %v4528
        %v5041 = vmul.f32 %v4913, %v4529
        %v5042 = vmul.f32 %v4914, %v4530
        %v5043 = vmul.f32 %v4915, %v4531
        %v5044 = vmul.f32 %v4916, %v4532
        %v5045 = vmul.f32 %v4917, %v4533
        %v5046 = vmul.f32 %v4918, %v4534
        %v5047 = vmul.f32 %v4919, %v4535
        %v5048 = vmul.f32 %v4920, %v4536
        %v5049 = vmul.f32 %v4921, %v4537
        %v5050 = vmul.f32 %v4922, %v4538
        %v5051 = vmul.f32 %v4923, %v4539
        %v5052 = vmul.f32 %v4924, %v4540
        %v5053 = vmul.f32 %v4925, %v4541
        %v5054 = vmul.f32 %v4926, %v4542
        %v5055 = vmul.f32 %v4927, %v4543
        %v5056 = vmul.f32 %v4928, %v4544
        %v5057 = vmul.f32 %v4929, %v4545
        %v5058 = vmul.f32 %v4930, %v4546
        %v5059 = vmul.f32 %v4931, %v4547
        %v5060 = vmul.f32 %v4932, %v4548
        %v5061 = vmul.f32 %v4933, %v4549
        %v5062 = vmul.f32 %v4934, %v4550
        %v5063 = vmul.f32 %v4935, %v4551
        %v5064 = vmul.f32 %v4936, %v4552
        %v5065 = vmul.f32 %v4937, %v4553
        %v5066 = vmul.f32 %v4938, %v4554
        %v5067 = vmul.f32 %v4939, %v4555
        %v5068 = vmul.f32 %v4940, %v4556
        %v5069 = vmul.f32 %v4941, %v4557
        %v5070 = vmul.f32 %v4942, %v4558
        %v5071 = vmul.f32 %v4943, %v4559
        %v5072 = vmul.f32 %v4944, %v4560
        %v5073 = vmul.f32 %v4945, %v4561
        %v5074 = vmul.f32 %v4946, %v4562
        %v5075 = vmul.f32 %v4947, %v4563
        %v5076 = vmul.f32 %v4948, %v4564
        %v5077 = vmul.f32 %v4949, %v4565
        %v5078 = vmul.f32 %v4950, %v4566
        %v5079 = vmul.f32 %v4951, %v4567
        %v5080 = vmul.f32 %v4952, %v4568
        %v5081 = vmul.f32 %v4953, %v4569
        %v5082 = vmul.f32 %v4954, %v4570
        %v5083 = vmul.f32 %v4955, %v4571
        %v5084 = vmul.f32 %v4956, %v4572
        %v5085 = vmul.f32 %v4957, %v4573
        %v5086 = vmul.f32 %v4958, %v4574
        %v5087 = vmul.f32 %v4959, %v4575
        %v5088 = vmul.f32 %v4960, %v4576
        %v5089 = vmul.f32 %v4961, %v4577
        %v5090 = vmul.f32 %v4962, %v4578
        %v5091 = vmul.f32 %v4963, %v4579
        %v5092 = vmul.f32 %v4964, %v4580
        %v5093 = vmul.f32 %v4965, %v4581
        %v5094 = vmul.f32 %v4966, %v4582
        %v5095 = vmul.f32 %v4967, %v4583
        %v5096 = vmul.f32 %v4968, %v4584
        %v5097 = vmul.f32 %v4969, %v4585
        %v5098 = vmul.f32 %v4970, %v4586
        %v5099 = vmul.f32 %v4971, %v4587
        %v5100 = vmul.f32 %v4972, %v4588
        %v5101 = vmul.f32 %v4973, %v4589
        %v5102 = vmul.f32 %v4974, %v4590
        %v5103 = vmul.f32 %v4975, %v4591
        %v5104 = vmul.f32 %v4976, %v4592
        %v5105 = vmul.f32 %v4977, %v4593
        %v5106 = vmul.f32 %v4978, %v4594
        %v5107 = vmul.f32 %v4979, %v4595
        %v5108 = vmul.f32 %v4980, %v4596
        %v5109 = vmul.f32 %v4981, %v4597
        %v5110 = vmul.f32 %v4982, %v4598
        %v5111 = vmul.f32 %v4983, %v4599
        %v5112 = vmul.f32 %v4984, %v4600
        %v5113 = vmul.f32 %v4985, %v4601
        %v5114 = vmul.f32 %v4986, %v4602
        %v5115 = vadd.f32 %v4347, %v4987
        %v5116 = vadd.f32 %v4348, %v4988
        %v5117 = vadd.f32 %v4349, %v4989
        %v5118 = vadd.f32 %v4350, %v4990
        %v5119 = vadd.f32 %v4351, %v4991
        %v5120 = vadd.f32 %v4352, %v4992
        %v5121 = vadd.f32 %v4353, %v4993
        %v5122 = vadd.f32 %v4354, %v4994
        %v5123 = vadd.f32 %v4355, %v4995
        %v5124 = vadd.f32 %v4356, %v4996
        %v5125 = vadd.f32 %v4357, %v4997
        %v5126 = vadd.f32 %v4358, %v4998
        %v5127 = vadd.f32 %v4359, %v4999
        %v5128 = vadd.f32 %v4360, %v5000
        %v5129 = vadd.f32 %v4361, %v5001
        %v5130 = vadd.f32 %v4362, %v5002
        %v5131 = vadd.f32 %v4363, %v5003
        %v5132 = vadd.f32 %v4364, %v5004
        %v5133 = vadd.f32 %v4365, %v5005
        %v5134 = vadd.f32 %v4366, %v5006
        %v5135 = vadd.f32 %v4367, %v5007
        %v5136 = vadd.f32 %v4368, %v5008
        %v5137 = vadd.f32 %v4369, %v5009
        %v5138 = vadd.f32 %v4370, %v5010
        %v5139 = vadd.f32 %v4371, %v5011
        %v5140 = vadd.f32 %v4372, %v5012
        %v5141 = vadd.f32 %v4373, %v5013
        %v5142 = vadd.f32 %v4374, %v5014
        %v5143 = vadd.f32 %v4375, %v5015
        %v5144 = vadd.f32 %v4376, %v5016
        %v5145 = vadd.f32 %v4377, %v5017
        %v5146 = vadd.f32 %v4378, %v5018
        %v5147 = vadd.f32 %v4379, %v5019
        %v5148 = vadd.f32 %v4380, %v5020
        %v5149 = vadd.f32 %v4381, %v5021
        %v5150 = vadd.f32 %v4382, %v5022
        %v5151 = vadd.f32 %v4383, %v5023
        %v5152 = vadd.f32 %v4384, %v5024
        %v5153 = vadd.f32 %v4385, %v5025
        %v5154 = vadd.f32 %v4386, %v5026
        %v5155 = vadd.f32 %v4387, %v5027
        %v5156 = vadd.f32 %v4388, %v5028
        %v5157 = vadd.f32 %v4389, %v5029
        %v5158 = vadd.f32 %v4390, %v5030
        %v5159 = vadd.f32 %v4391, %v5031
        %v5160 = vadd.f32 %v4392, %v5032
        %v5161 = vadd.f32 %v4393, %v5033
        %v5162 = vadd.f32 %v4394, %v5034
        %v5163 = vadd.f32 %v4395, %v5035
        %v5164 = vadd.f32 %v4396, %v5036
        %v5165 = vadd.f32 %v4397, %v5037
        %v5166 = vadd.f32 %v4398, %v5038
        %v5167 = vadd.f32 %v4399, %v5039
        %v5168 = vadd.f32 %v4400, %v5040
        %v5169 = vadd.f32 %v4401, %v5041
        %v5170 = vadd.f32 %v4402, %v5042
        %v5171 = vadd.f32 %v4403, %v5043
        %v5172 = vadd.f32 %v4404, %v5044
        %v5173 = vadd.f32 %v4405, %v5045
        %v5174 = vadd.f32 %v4406, %v5046
        %v5175 = vadd.f32 %v4407, %v5047
        %v5176 = vadd.f32 %v4408, %v5048
        %v5177 = vadd.f32 %v4409, %v5049
        %v5178 = vadd.f32 %v4410, %v5050
        %v5179 = vadd.f32 %v4411, %v5051
        %v5180 = vadd.f32 %v4412, %v5052
        %v5181 = vadd.f32 %v4413, %v5053
        %v5182 = vadd.f32 %v4414, %v5054
        %v5183 = vadd.f32 %v4415, %v5055
        %v5184 = vadd.f32 %v4416, %v5056
        %v5185 = vadd.f32 %v4417, %v5057
        %v5186 = vadd.f32 %v4418, %v5058
        %v5187 = vadd.f32 %v4419, %v5059
        %v5188 = vadd.f32 %v4420, %v5060
        %v5189 = vadd.f32 %v4421, %v5061
        %v5190 = vadd.f32 %v4422, %v5062
        %v5191 = vadd.f32 %v4423, %v5063
        %v5192 = vadd.f32 %v4424, %v5064
        %v5193 = vadd.f32 %v4425, %v5065
        %v5194 = vadd.f32 %v4426, %v5066
        %v5195 = vadd.f32 %v4427, %v5067
        %v5196 = vadd.f32 %v4428, %v5068
        %v5197 = vadd.f32 %v4429, %v5069
        %v5198 = vadd.f32 %v4430, %v5070
        %v5199 = vadd.f32 %v4431, %v5071
        %v5200 = vadd.f32 %v4432, %v5072
        %v5201 = vadd.f32 %v4433, %v5073
        %v5202 = vadd.f32 %v4434, %v5074
        %v5203 = vadd.f32 %v4435, %v5075
        %v5204 = vadd.f32 %v4436, %v5076
        %v5205 = vadd.f32 %v4437, %v5077
        %v5206 = vadd.f32 %v4438, %v5078
        %v5207 = vadd.f32 %v4439, %v5079
        %v5208 = vadd.f32 %v4440, %v5080
        %v5209 = vadd.f32 %v4441, %v5081
        %v5210 = vadd.f32 %v4442, %v5082
        %v5211 = vadd.f32 %v4443, %v5083
        %v5212 = vadd.f32 %v4444, %v5084
        %v5213 = vadd.f32 %v4445, %v5085
        %v5214 = vadd.f32 %v4446, %v5086
        %v5215 = vadd.f32 %v4447, %v5087
        %v5216 = vadd.f32 %v4448, %v5088
        %v5217 = vadd.f32 %v4449, %v5089
        %v5218 = vadd.f32 %v4450, %v5090
        %v5219 = vadd.f32 %v4451, %v5091
        %v5220 = vadd.f32 %v4452, %v5092
        %v5221 = vadd.f32 %v4453, %v5093
        %v5222 = vadd.f32 %v4454, %v5094
        %v5223 = vadd.f32 %v4455, %v5095
        %v5224 = vadd.f32 %v4456, %v5096
        %v5225 = vadd.f32 %v4457, %v5097
        %v5226 = vadd.f32 %v4458, %v5098
        %v5227 = vadd.f32 %v4459, %v5099
        %v5228 = vadd.f32 %v4460, %v5100
        %v5229 = vadd.f32 %v4461, %v5101
        %v5230 = vadd.f32 %v4462, %v5102
        %v5231 = vadd.f32 %v4463, %v5103
        %v5232 = vadd.f32 %v4464, %v5104
        %v5233 = vadd.f32 %v4465, %v5105
        %v5234 = vadd.f32 %v4466, %v5106
        %v5235 = vadd.f32 %v4467, %v5107
        %v5236 = vadd.f32 %v4468, %v5108
        %v5237 = vadd.f32 %v4469, %v5109
        %v5238 = vadd.f32 %v4470, %v5110
        %v5239 = vadd.f32 %v4471, %v5111
        %v5240 = vadd.f32 %v4472, %v5112
        %v5241 = vadd.f32 %v4473, %v5113
        %v5242 = vadd.f32 %v4474, %v5114
        %v5243 = vld [vmem:[%s3] sm:$0xff]
        %v5244 = vld [vmem:[%s3 + $0x8] sm:$0xff]
        %v5245 = vld [vmem:[%s3 + $0x10] sm:$0xff]
        %v5246 = vld [vmem:[%s3 + $0x18] sm:$0xff]
        %v5247 = vld [vmem:[%s4] sm:$0xff]
        %v5248 = vld [vmem:[%s4 + $0x8] sm:$0xff]
        %v5249 = vld [vmem:[%s4 + $0x10] sm:$0xff]
        %v5250 = vld [vmem:[%s4 + $0x18] sm:$0xff]
        %5252 = vset.pattern.permute.xlu0 0
        %5253 = vperm.xlu0 %5252, %v5247
        %v5254 = vpop.permute.xlu0 %5253
        %5257 = vset.pattern.permute.xlu0 0
        %5258 = vperm.xlu0 %5257, %v5248
        %v5259 = vpop.permute.xlu0 %5258
        %5262 = vset.pattern.permute.xlu0 0
        %5263 = vperm.xlu0 %5262, %v5249
        %v5264 = vpop.permute.xlu0 %5263
        %5267 = vset.pattern.permute.xlu0 0
        %5268 = vperm.xlu0 %5267, %v5250
        %v5269 = vpop.permute.xlu0 %5268
        %vm5271 = vcmask 261120
        %v5273 = vsel %vm5271, %v5243, 0
        %v5276 = vsel %vm5271, %v5244, 0
        %v5279 = vsel %vm5271, %v5245, 0
        %v5282 = vsel %vm5271, %v5246, 0
        %5284 = vmatprep.subr.mxu0 %v5116
        %5285 = vmatpush1.msra.mxu0 %v5115
        %5286 = vmatprep.subr.mxu0 %v5148
        %5287 = vmatpush1.msra.mxu0 %v5147
        %5288 = vmatprep.subr.mxu0 %v5180
        %5289 = vmatpush1.msra.mxu0 %v5179
        %5290 = vmatprep.subr.mxu0 %v5212
        %5291 = vmatpush1.msra.mxu0 %v5211
        %5292 = vmatprep.subr.mxu0 0.0
        %5293 = vmatpush1.msra.mxu0 0.0
        %5294 = vmatprep.subr.mxu0 0.0
        %5295 = vmatpush1.msra.mxu0 0.0
        %5296 = vmatprep.subr.mxu0 0.0
        %5297 = vmatpush1.msra.mxu0 0.0
        %5298 = vmatprep.subr.mxu0 0.0
        %5299 = vmatpush1.msra.mxu0 0.0
        %5300 = vmatprep.subr.mxu0 0.0
        %5301 = vmatpush1.msra.mxu0 0.0
        %5302 = vmatprep.subr.mxu0 0.0
        %5303 = vmatpush1.msra.mxu0 0.0
        %5304 = vmatprep.subr.mxu0 0.0
        %5305 = vmatpush1.msra.mxu0 0.0
        %5306 = vmatprep.subr.mxu0 0.0
        %5307 = vmatpush1.msra.mxu0 0.0
        %5308 = vmatprep.subr.mxu0 0.0
        %5309 = vmatpush1.msra.mxu0 0.0
        %5310 = vmatprep.subr.mxu0 0.0
        %5311 = vmatpush1.msra.mxu0 0.0
        %5312 = vmatprep.subr.mxu0 0.0
        %5313 = vmatpush1.msra.mxu0 0.0
        %5314 = vmatprep.subr.mxu0 0.0
        %5315 = vmatpush1.msra.mxu0 0.0
        %5316 = vmatprep.subr.mxu0 0.0
        %5317 = vmatpush1.msra.mxu0 0.0
        %5318 = vmatprep.subr.mxu0 0.0
        %5319 = vmatpush1.msra.mxu0 0.0
        %5320 = vmatprep.subr.mxu0 0.0
        %5321 = vmatpush1.msra.mxu0 0.0
        %5322 = vmatprep.subr.mxu0 0.0
        %5323 = vmatpush1.msra.mxu0 0.0
        %5324 = vmatprep.subr.mxu0 0.0
        %5325 = vmatpush1.msra.mxu0 0.0
        %5326 = vmatprep.subr.mxu0 0.0
        %5327 = vmatpush1.msra.mxu0 0.0
        %5328 = vmatprep.subr.mxu0 0.0
        %5329 = vmatpush1.msra.mxu0 0.0
        %5330 = vmatprep.subr.mxu0 0.0
        %5331 = vmatpush1.msra.mxu0 0.0
        %5332 = vmatprep.subr.mxu0 0.0
        %5333 = vmatpush1.msra.mxu0 0.0
        %5334 = vmatprep.subr.mxu0 0.0
        %5335 = vmatpush1.msra.mxu0 0.0
        %5336 = vmatprep.subr.mxu0 0.0
        %5337 = vmatpush1.msra.mxu0 0.0
        %5338 = vmatprep.subr.mxu0 0.0
        %5339 = vmatpush1.msra.mxu0 0.0
        %5340 = vmatprep.subr.mxu0 0.0
        %5341 = vmatpush1.msra.mxu0 0.0
        %5342 = vmatprep.subr.mxu0 0.0
        %5343 = vmatpush1.msra.mxu0 0.0
        %5344 = vmatprep.subr.mxu0 0.0
        %5345 = vmatpush1.msra.mxu0 0.0
        %5346 = vmatprep.subr.mxu0 0.0
        %5347 = vmatpush1.msra.mxu0 0.0
        %5348 = vmatprep.mubr.f32.mxu0 0.0
        %5349 = vmatmul.mubr.f32.gmra.mrb[0].mxu0 %v5273
        %v5350 = vpop.f32.mrb[0].mxu0
        %v5351 = vadd.f32 %v5254, %v5350
        %v5352 = vpop.f32.mrb[0].mxu0
        %v5353 = vadd.f32 %v5254, %v5352
        %5354 = vmatprep.mubr.f32.mxu0 0.0
        %5355 = vmatmul.mubr.f32.gmra.mrb[0].mxu0 %v5276
        %v5356 = vpop.f32.mrb[0].mxu0
        %v5357 = vadd.f32 %v5259, %v5356
        %v5358 = vpop.f32.mrb[0].mxu0
        %v5359 = vadd.f32 %v5259, %v5358
        %5360 = vmatprep.mubr.f32.mxu0 0.0
        %5361 = vmatmul.mubr.f32.gmra.mrb[0].mxu0 %v5279
        %v5362 = vpop.f32.mrb[0].mxu0
        %v5363 = vadd.f32 %v5264, %v5362
        %v5364 = vpop.f32.mrb[0].mxu0
        %v5365 = vadd.f32 %v5264, %v5364
        %5366 = vmatprep.mubr.f32.mxu0 0.0
        %5367 = vmatmul.mubr.f32.gmra.mrb[0].mxu0 %v5282
        %v5368 = vpop.f32.mrb[0].mxu0
        %v5369 = vadd.f32 %v5269, %v5368
        %v5370 = vpop.f32.mrb[0].mxu0
        %v5371 = vadd.f32 %v5269, %v5370
        %5372 = vdwg.mxu0
        %5373 = vmatprep.subr.mxu0 %v5118
        %5374 = vmatpush1.msra.mxu0 %v5117
        %5375 = vmatprep.subr.mxu0 %v5150
        %5376 = vmatpush1.msra.mxu0 %v5149
        %5377 = vmatprep.subr.mxu0 %v5182
        %5378 = vmatpush1.msra.mxu0 %v5181
        %5379 = vmatprep.subr.mxu0 %v5214
        %5380 = vmatpush1.msra.mxu0 %v5213
        %5381 = vmatprep.subr.mxu0 0.0
        %5382 = vmatpush1.msra.mxu0 0.0
        %5383 = vmatprep.subr.mxu0 0.0
        %5384 = vmatpush1.msra.mxu0 0.0
        %5385 = vmatprep.subr.mxu0 0.0
        %5386 = vmatpush1.msra.mxu0 0.0
        %5387 = vmatprep.subr.mxu0 0.0
        %5388 = vmatpush1.msra.mxu0 0.0
        %5389 = vmatprep.subr.mxu0 0.0
        %5390 = vmatpush1.msra.mxu0 0.0
        %5391 = vmatprep.subr.mxu0 0.0
        %5392 = vmatpush1.msra.mxu0 0.0
        %5393 = vmatprep.subr.mxu0 0.0
        %5394 = vmatpush1.msra.mxu0 0.0
        %5395 = vmatprep.subr.mxu0 0.0
        %5396 = vmatpush1.msra.mxu0 0.0
        %5397 = vmatprep.subr.mxu0 0.0
        %5398 = vmatpush1.msra.mxu0 0.0
        %5399 = vmatprep.subr.mxu0 0.0
        %5400 = vmatpush1.msra.mxu0 0.0
        %5401 = vmatprep.subr.mxu0 0.0
        %5402 = vmatpush1.msra.mxu0 0.0
        %5403 = vmatprep.subr.mxu0 0.0
        %5404 = vmatpush1.msra.mxu0 0.0
        %5405 = vmatprep.subr.mxu0 0.0
        %5406 = vmatpush1.msra.mxu0 0.0
        %5407 = vmatprep.subr.mxu0 0.0
        %5408 = vmatpush1.msra.mxu0 0.0
        %5409 = vmatprep.subr.mxu0 0.0
        %5410 = vmatpush1.msra.mxu0 0.0
        %5411 = vmatprep.subr.mxu0 0.0
        %5412 = vmatpush1.msra.mxu0 0.0
        %5413 = vmatprep.subr.mxu0 0.0
        %5414 = vmatpush1.msra.mxu0 0.0
        %5415 = vmatprep.subr.mxu0 0.0
        %5416 = vmatpush1.msra.mxu0 0.0
        %5417 = vmatprep.subr.mxu0 0.0
        %5418 = vmatpush1.msra.mxu0 0.0
        %5419 = vmatprep.subr.mxu0 0.0
        %5420 = vmatpush1.msra.mxu0 0.0
        %5421 = vmatprep.subr.mxu0 0.0
        %5422 = vmatpush1.msra.mxu0 0.0
        %5423 = vmatprep.subr.mxu0 0.0
        %5424 = vmatpush1.msra.mxu0 0.0
        %5425 = vmatprep.subr.mxu0 0.0
        %5426 = vmatpush1.msra.mxu0 0.0
        %5427 = vmatprep.subr.mxu0 0.0
        %5428 = vmatpush1.msra.mxu0 0.0
        %5429 = vmatprep.subr.mxu0 0.0
        %5430 = vmatpush1.msra.mxu0 0.0
        %5431 = vmatprep.subr.mxu0 0.0
        %5432 = vmatpush1.msra.mxu0 0.0
        %5433 = vmatprep.subr.mxu0 0.0
        %5434 = vmatpush1.msra.mxu0 0.0
        %5435 = vmatprep.subr.mxu0 0.0
        %5436 = vmatpush1.msra.mxu0 0.0
        %5437 = vmatprep.mubr.f32.mxu0 0.0
        %5438 = vmatmul.mubr.f32.gmra.mrb[0].mxu0 %v5273
        %v5439 = vpop.f32.mrb[0].mxu0
        %v5440 = vadd.f32 %v5254, %v5439
        %v5441 = vpop.f32.mrb[0].mxu0
        %v5442 = vadd.f32 %v5254, %v5441
        %5443 = vmatprep.mubr.f32.mxu0 0.0
        %5444 = vmatmul.mubr.f32.gmra.mrb[0].mxu0 %v5276
        %v5445 = vpop.f32.mrb[0].mxu0
        %v5446 = vadd.f32 %v5259, %v5445
        %v5447 = vpop.f32.mrb[0].mxu0
        %v5448 = vadd.f32 %v5259, %v5447
        %5449 = vmatprep.mubr.f32.mxu0 0.0
        %5450 = vmatmul.mubr.f32.gmra.mrb[0].mxu0 %v5279
        %v5451 = vpop.f32.mrb[0].mxu0
        %v5452 = vadd.f32 %v5264, %v5451
        %v5453 = vpop.f32.mrb[0].mxu0
        %v5454 = vadd.f32 %v5264, %v5453
        %5455 = vmatprep.mubr.f32.mxu0 0.0
        %5456 = vmatmul.mubr.f32.gmra.mrb[0].mxu0 %v5282
        %v5457 = vpop.f32.mrb[0].mxu0
        %v5458 = vadd.f32 %v5269, %v5457
        %v5459 = vpop.f32.mrb[0].mxu0
        %v5460 = vadd.f32 %v5269, %v5459
        %5461 = vdwg.mxu0
        %5462 = vmatprep.subr.mxu0 %v5120
        %5463 = vmatpush1.msra.mxu0 %v5119
        %5464 = vmatprep.subr.mxu0 %v5152
        %5465 = vmatpush1.msra.mxu0 %v5151
        %5466 = vmatprep.subr.mxu0 %v5184
        %5467 = vmatpush1.msra.mxu0 %v5183
        %5468 = vmatprep.subr.mxu0 %v5216
        %5469 = vmatpush1.msra.mxu0 %v5215
        %5470 = vmatprep.subr.mxu0 0.0
        %5471 = vmatpush1.msra.mxu0 0.0
        %5472 = vmatprep.subr.mxu0 0.0
        %5473 = vmatpush1.msra.mxu0 0.0
        %5474 = vmatprep.subr.mxu0 0.0
        %5475 = vmatpush1.msra.mxu0 0.0
        %5476 = vmatprep.subr.mxu0 0.0
        %5477 = vmatpush1.msra.mxu0 0.0
        %5478 = vmatprep.subr.mxu0 0.0
        %5479 = vmatpush1.msra.mxu0 0.0
        %5480 = vmatprep.subr.mxu0 0.0
        %5481 = vmatpush1.msra.mxu0 0.0
        %5482 = vmatprep.subr.mxu0 0.0
        %5483 = vmatpush1.msra.mxu0 0.0
        %5484 = vmatprep.subr.mxu0 0.0
        %5485 = vmatpush1.msra.mxu0 0.0
        %5486 = vmatprep.subr.mxu0 0.0
        %5487 = vmatpush1.msra.mxu0 0.0
        %5488 = vmatprep.subr.mxu0 0.0
        %5489 = vmatpush1.msra.mxu0 0.0
        %5490 = vmatprep.subr.mxu0 0.0
        %5491 = vmatpush1.msra.mxu0 0.0
        %5492 = vmatprep.subr.mxu0 0.0
        %5493 = vmatpush1.msra.mxu0 0.0
        %5494 = vmatprep.subr.mxu0 0.0
        %5495 = vmatpush1.msra.mxu0 0.0
        %5496 = vmatprep.subr.mxu0 0.0
        %5497 = vmatpush1.msra.mxu0 0.0
        %5498 = vmatprep.subr.mxu0 0.0
        %5499 = vmatpush1.msra.mxu0 0.0
        %5500 = vmatprep.subr.mxu0 0.0
        %5501 = vmatpush1.msra.mxu0 0.0
        %5502 = vmatprep.subr.mxu0 0.0
        %5503 = vmatpush1.msra.mxu0 0.0
        %5504 = vmatprep.subr.mxu0 0.0
        %5505 = vmatpush1.msra.mxu0 0.0
        %5506 = vmatprep.subr.mxu0 0.0
        %5507 = vmatpush1.msra.mxu0 0.0
        %5508 = vmatprep.subr.mxu0 0.0
        %5509 = vmatpush1.msra.mxu0 0.0
        %5510 = vmatprep.subr.mxu0 0.0
        %5511 = vmatpush1.msra.mxu0 0.0
        %5512 = vmatprep.subr.mxu0 0.0
        %5513 = vmatpush1.msra.mxu0 0.0
        %5514 = vmatprep.subr.mxu0 0.0
        %5515 = vmatpush1.msra.mxu0 0.0
        %5516 = vmatprep.subr.mxu0 0.0
        %5517 = vmatpush1.msra.mxu0 0.0
        %5518 = vmatprep.subr.mxu0 0.0
        %5519 = vmatpush1.msra.mxu0 0.0
        %5520 = vmatprep.subr.mxu0 0.0
        %5521 = vmatpush1.msra.mxu0 0.0
        %5522 = vmatprep.subr.mxu0 0.0
        %5523 = vmatpush1.msra.mxu0 0.0
        %5524 = vmatprep.subr.mxu0 0.0
        %5525 = vmatpush1.msra.mxu0 0.0
        %5526 = vmatprep.mubr.f32.mxu0 0.0
        %5527 = vmatmul.mubr.f32.gmra.mrb[0].mxu0 %v5273
        %v5528 = vpop.f32.mrb[0].mxu0
        %v5529 = vadd.f32 %v5254, %v5528
        %v5530 = vpop.f32.mrb[0].mxu0
        %v5531 = vadd.f32 %v5254, %v5530
        %5532 = vmatprep.mubr.f32.mxu0 0.0
        %5533 = vmatmul.mubr.f32.gmra.mrb[0].mxu0 %v5276
        %v5534 = vpop.f32.mrb[0].mxu0
        %v5535 = vadd.f32 %v5259, %v5534
        %v5536 = vpop.f32.mrb[0].mxu0
        %v5537 = vadd.f32 %v5259, %v5536
        %5538 = vmatprep.mubr.f32.mxu0 0.0
        %5539 = vmatmul.mubr.f32.gmra.mrb[0].mxu0 %v5279
        %v5540 = vpop.f32.mrb[0].mxu0
        %v5541 = vadd.f32 %v5264, %v5540
        %v5542 = vpop.f32.mrb[0].mxu0
        %v5543 = vadd.f32 %v5264, %v5542
        %5544 = vmatprep.mubr.f32.mxu0 0.0
        %5545 = vmatmul.mubr.f32.gmra.mrb[0].mxu0 %v5282
        %v5546 = vpop.f32.mrb[0].mxu0
        %v5547 = vadd.f32 %v5269, %v5546
        %v5548 = vpop.f32.mrb[0].mxu0
        %v5549 = vadd.f32 %v5269, %v5548
        %5550 = vdwg.mxu0
        %5551 = vmatprep.subr.mxu0 %v5122
        %5552 = vmatpush1.msra.mxu0 %v5121
        %5553 = vmatprep.subr.mxu0 %v5154
        %5554 = vmatpush1.msra.mxu0 %v5153
        %5555 = vmatprep.subr.mxu0 %v5186
        %5556 = vmatpush1.msra.mxu0 %v5185
        %5557 = vmatprep.subr.mxu0 %v5218
        %5558 = vmatpush1.msra.mxu0 %v5217
        %5559 = vmatprep.subr.mxu0 0.0
        %5560 = vmatpush1.msra.mxu0 0.0
        %5561 = vmatprep.subr.mxu0 0.0
        %5562 = vmatpush1.msra.mxu0 0.0
        %5563 = vmatprep.subr.mxu0 0.0
        %5564 = vmatpush1.msra.mxu0 0.0
        %5565 = vmatprep.subr.mxu0 0.0
        %5566 = vmatpush1.msra.mxu0 0.0
        %5567 = vmatprep.subr.mxu0 0.0
        %5568 = vmatpush1.msra.mxu0 0.0
        %5569 = vmatprep.subr.mxu0 0.0
        %5570 = vmatpush1.msra.mxu0 0.0
        %5571 = vmatprep.subr.mxu0 0.0
        %5572 = vmatpush1.msra.mxu0 0.0
        %5573 = vmatprep.subr.mxu0 0.0
        %5574 = vmatpush1.msra.mxu0 0.0
        %5575 = vmatprep.subr.mxu0 0.0
        %5576 = vmatpush1.msra.mxu0 0.0
        %5577 = vmatprep.subr.mxu0 0.0
        %5578 = vmatpush1.msra.mxu0 0.0
        %5579 = vmatprep.subr.mxu0 0.0
        %5580 = vmatpush1.msra.mxu0 0.0
        %5581 = vmatprep.subr.mxu0 0.0
        %5582 = vmatpush1.msra.mxu0 0.0
        %5583 = vmatprep.subr.mxu0 0.0
        %5584 = vmatpush1.msra.mxu0 0.0
        %5585 = vmatprep.subr.mxu0 0.0
        %5586 = vmatpush1.msra.mxu0 0.0
        %5587 = vmatprep.subr.mxu0 0.0
        %5588 = vmatpush1.msra.mxu0 0.0
        %5589 = vmatprep.subr.mxu0 0.0
        %5590 = vmatpush1.msra.mxu0 0.0
        %5591 = vmatprep.subr.mxu0 0.0
        %5592 = vmatpush1.msra.mxu0 0.0
        %5593 = vmatprep.subr.mxu0 0.0
        %5594 = vmatpush1.msra.mxu0 0.0
        %5595 = vmatprep.subr.mxu0 0.0
        %5596 = vmatpush1.msra.mxu0 0.0
        %5597 = vmatprep.subr.mxu0 0.0
        %5598 = vmatpush1.msra.mxu0 0.0
        %5599 = vmatprep.subr.mxu0 0.0
        %5600 = vmatpush1.msra.mxu0 0.0
        %5601 = vmatprep.subr.mxu0 0.0
        %5602 = vmatpush1.msra.mxu0 0.0
        %5603 = vmatprep.subr.mxu0 0.0
        %5604 = vmatpush1.msra.mxu0 0.0
        %5605 = vmatprep.subr.mxu0 0.0
        %5606 = vmatpush1.msra.mxu0 0.0
        %5607 = vmatprep.subr.mxu0 0.0
        %5608 = vmatpush1.msra.mxu0 0.0
        %5609 = vmatprep.subr.mxu0 0.0
        %5610 = vmatpush1.msra.mxu0 0.0
        %5611 = vmatprep.subr.mxu0 0.0
        %5612 = vmatpush1.msra.mxu0 0.0
        %5613 = vmatprep.subr.mxu0 0.0
        %5614 = vmatpush1.msra.mxu0 0.0
        %5615 = vmatprep.mubr.f32.mxu0 0.0
        %5616 = vmatmul.mubr.f32.gmra.mrb[0].mxu0 %v5273
        %v5617 = vpop.f32.mrb[0].mxu0
        %v5618 = vadd.f32 %v5254, %v5617
        %v5619 = vpop.f32.mrb[0].mxu0
        %v5620 = vadd.f32 %v5254, %v5619
        %5621 = vmatprep.mubr.f32.mxu0 0.0
        %5622 = vmatmul.mubr.f32.gmra.mrb[0].mxu0 %v5276
        %v5623 = vpop.f32.mrb[0].mxu0
        %v5624 = vadd.f32 %v5259, %v5623
        %v5625 = vpop.f32.mrb[0].mxu0
        %v5626 = vadd.f32 %v5259, %v5625
        %5627 = vmatprep.mubr.f32.mxu0 0.0
        %5628 = vmatmul.mubr.f32.gmra.mrb[0].mxu0 %v5279
        %v5629 = vpop.f32.mrb[0].mxu0
        %v5630 = vadd.f32 %v5264, %v5629
        %v5631 = vpop.f32.mrb[0].mxu0
        %v5632 = vadd.f32 %v5264, %v5631
        %5633 = vmatprep.mubr.f32.mxu0 0.0
        %5634 = vmatmul.mubr.f32.gmra.mrb[0].mxu0 %v5282
        %v5635 = vpop.f32.mrb[0].mxu0
        %v5636 = vadd.f32 %v5269, %v5635
        %v5637 = vpop.f32.mrb[0].mxu0
        %v5638 = vadd.f32 %v5269, %v5637
        %5639 = vdwg.mxu0
        %5640 = vmatprep.subr.mxu0 %v5124
        %5641 = vmatpush1.msra.mxu0 %v5123
        %5642 = vmatprep.subr.mxu0 %v5156
        %5643 = vmatpush1.msra.mxu0 %v5155
        %5644 = vmatprep.subr.mxu0 %v5188
        %5645 = vmatpush1.msra.mxu0 %v5187
        %5646 = vmatprep.subr.mxu0 %v5220
        %5647 = vmatpush1.msra.mxu0 %v5219
        %5648 = vmatprep.subr.mxu0 0.0
        %5649 = vmatpush1.msra.mxu0 0.0
        %5650 = vmatprep.subr.mxu0 0.0
        %5651 = vmatpush1.msra.mxu0 0.0
        %5652 = vmatprep.subr.mxu0 0.0
        %5653 = vmatpush1.msra.mxu0 0.0
        %5654 = vmatprep.subr.mxu0 0.0
        %5655 = vmatpush1.msra.mxu0 0.0
        %5656 = vmatprep.subr.mxu0 0.0
        %5657 = vmatpush1.msra.mxu0 0.0
        %5658 = vmatprep.subr.mxu0 0.0
        %5659 = vmatpush1.msra.mxu0 0.0
        %5660 = vmatprep.subr.mxu0 0.0
        %5661 = vmatpush1.msra.mxu0 0.0
        %5662 = vmatprep.subr.mxu0 0.0
        %5663 = vmatpush1.msra.mxu0 0.0
        %5664 = vmatprep.subr.mxu0 0.0
        %5665 = vmatpush1.msra.mxu0 0.0
        %5666 = vmatprep.subr.mxu0 0.0
        %5667 = vmatpush1.msra.mxu0 0.0
        %5668 = vmatprep.subr.mxu0 0.0
        %5669 = vmatpush1.msra.mxu0 0.0
        %5670 = vmatprep.subr.mxu0 0.0
        %5671 = vmatpush1.msra.mxu0 0.0
        %5672 = vmatprep.subr.mxu0 0.0
        %5673 = vmatpush1.msra.mxu0 0.0
        %5674 = vmatprep.subr.mxu0 0.0
        %5675 = vmatpush1.msra.mxu0 0.0
        %5676 = vmatprep.subr.mxu0 0.0
        %5677 = vmatpush1.msra.mxu0 0.0
        %5678 = vmatprep.subr.mxu0 0.0
        %5679 = vmatpush1.msra.mxu0 0.0
        %5680 = vmatprep.subr.mxu0 0.0
        %5681 = vmatpush1.msra.mxu0 0.0
        %5682 = vmatprep.subr.mxu0 0.0
        %5683 = vmatpush1.msra.mxu0 0.0
        %5684 = vmatprep.subr.mxu0 0.0
        %5685 = vmatpush1.msra.mxu0 0.0
        %5686 = vmatprep.subr.mxu0 0.0
        %5687 = vmatpush1.msra.mxu0 0.0
        %5688 = vmatprep.subr.mxu0 0.0
        %5689 = vmatpush1.msra.mxu0 0.0
        %5690 = vmatprep.subr.mxu0 0.0
        %5691 = vmatpush1.msra.mxu0 0.0
        %5692 = vmatprep.subr.mxu0 0.0
        %5693 = vmatpush1.msra.mxu0 0.0
        %5694 = vmatprep.subr.mxu0 0.0
        %5695 = vmatpush1.msra.mxu0 0.0
        %5696 = vmatprep.subr.mxu0 0.0
        %5697 = vmatpush1.msra.mxu0 0.0
        %5698 = vmatprep.subr.mxu0 0.0
        %5699 = vmatpush1.msra.mxu0 0.0
        %5700 = vmatprep.subr.mxu0 0.0
        %5701 = vmatpush1.msra.mxu0 0.0
        %5702 = vmatprep.subr.mxu0 0.0
        %5703 = vmatpush1.msra.mxu0 0.0
        %5704 = vmatprep.mubr.f32.mxu0 0.0
        %5705 = vmatmul.mubr.f32.gmra.mrb[0].mxu0 %v5273
        %v5706 = vpop.f32.mrb[0].mxu0
        %v5707 = vadd.f32 %v5254, %v5706
        %v5708 = vpop.f32.mrb[0].mxu0
        %v5709 = vadd.f32 %v5254, %v5708
        %5710 = vmatprep.mubr.f32.mxu0 0.0
        %5711 = vmatmul.mubr.f32.gmra.mrb[0].mxu0 %v5276
        %v5712 = vpop.f32.mrb[0].mxu0
        %v5713 = vadd.f32 %v5259, %v5712
        %v5714 = vpop.f32.mrb[0].mxu0
        %v5715 = vadd.f32 %v5259, %v5714
        %5716 = vmatprep.mubr.f32.mxu0 0.0
        %5717 = vmatmul.mubr.f32.gmra.mrb[0].mxu0 %v5279
        %v5718 = vpop.f32.mrb[0].mxu0
        %v5719 = vadd.f32 %v5264, %v5718
        %v5720 = vpop.f32.mrb[0].mxu0
        %v5721 = vadd.f32 %v5264, %v5720
        %5722 = vmatprep.mubr.f32.mxu0 0.0
        %5723 = vmatmul.mubr.f32.gmra.mrb[0].mxu0 %v5282
        %v5724 = vpop.f32.mrb[0].mxu0
        %v5725 = vadd.f32 %v5269, %v5724
        %v5726 = vpop.f32.mrb[0].mxu0
        %v5727 = vadd.f32 %v5269, %v5726
        %5728 = vdwg.mxu0
        %5729 = vmatprep.subr.mxu0 %v5126
        %5730 = vmatpush1.msra.mxu0 %v5125
        %5731 = vmatprep.subr.mxu0 %v5158
        %5732 = vmatpush1.msra.mxu0 %v5157
        %5733 = vmatprep.subr.mxu0 %v5190
        %5734 = vmatpush1.msra.mxu0 %v5189
        %5735 = vmatprep.subr.mxu0 %v5222
        %5736 = vmatpush1.msra.mxu0 %v5221
        %5737 = vmatprep.subr.mxu0 0.0
        %5738 = vmatpush1.msra.mxu0 0.0
        %5739 = vmatprep.subr.mxu0 0.0
        %5740 = vmatpush1.msra.mxu0 0.0
        %5741 = vmatprep.subr.mxu0 0.0
        %5742 = vmatpush1.msra.mxu0 0.0
        %5743 = vmatprep.subr.mxu0 0.0
        %5744 = vmatpush1.msra.mxu0 0.0
        %5745 = vmatprep.subr.mxu0 0.0
        %5746 = vmatpush1.msra.mxu0 0.0
        %5747 = vmatprep.subr.mxu0 0.0
        %5748 = vmatpush1.msra.mxu0 0.0
        %5749 = vmatprep.subr.mxu0 0.0
        %5750 = vmatpush1.msra.mxu0 0.0
        %5751 = vmatprep.subr.mxu0 0.0
        %5752 = vmatpush1.msra.mxu0 0.0
        %5753 = vmatprep.subr.mxu0 0.0
        %5754 = vmatpush1.msra.mxu0 0.0
        %5755 = vmatprep.subr.mxu0 0.0
        %5756 = vmatpush1.msra.mxu0 0.0
        %5757 = vmatprep.subr.mxu0 0.0
        %5758 = vmatpush1.msra.mxu0 0.0
        %5759 = vmatprep.subr.mxu0 0.0
        %5760 = vmatpush1.msra.mxu0 0.0
        %5761 = vmatprep.subr.mxu0 0.0
        %5762 = vmatpush1.msra.mxu0 0.0
        %5763 = vmatprep.subr.mxu0 0.0
        %5764 = vmatpush1.msra.mxu0 0.0
        %5765 = vmatprep.subr.mxu0 0.0
        %5766 = vmatpush1.msra.mxu0 0.0
        %5767 = vmatprep.subr.mxu0 0.0
        %5768 = vmatpush1.msra.mxu0 0.0
        %5769 = vmatprep.subr.mxu0 0.0
        %5770 = vmatpush1.msra.mxu0 0.0
        %5771 = vmatprep.subr.mxu0 0.0
        %5772 = vmatpush1.msra.mxu0 0.0
        %5773 = vmatprep.subr.mxu0 0.0
        %5774 = vmatpush1.msra.mxu0 0.0
        %5775 = vmatprep.subr.mxu0 0.0
        %5776 = vmatpush1.msra.mxu0 0.0
        %5777 = vmatprep.subr.mxu0 0.0
        %5778 = vmatpush1.msra.mxu0 0.0
        %5779 = vmatprep.subr.mxu0 0.0
        %5780 = vmatpush1.msra.mxu0 0.0
        %5781 = vmatprep.subr.mxu0 0.0
        %5782 = vmatpush1.msra.mxu0 0.0
        %5783 = vmatprep.subr.mxu0 0.0
        %5784 = vmatpush1.msra.mxu0 0.0
        %5785 = vmatprep.subr.mxu0 0.0
        %5786 = vmatpush1.msra.mxu0 0.0
        %5787 = vmatprep.subr.mxu0 0.0
        %5788 = vmatpush1.msra.mxu0 0.0
        %5789 = vmatprep.subr.mxu0 0.0
        %5790 = vmatpush1.msra.mxu0 0.0
        %5791 = vmatprep.subr.mxu0 0.0
        %5792 = vmatpush1.msra.mxu0 0.0
        %5793 = vmatprep.mubr.f32.mxu0 0.0
        %5794 = vmatmul.mubr.f32.gmra.mrb[0].mxu0 %v5273
        %v5795 = vpop.f32.mrb[0].mxu0
        %v5796 = vadd.f32 %v5254, %v5795
        %v5797 = vpop.f32.mrb[0].mxu0
        %v5798 = vadd.f32 %v5254, %v5797
        %5799 = vmatprep.mubr.f32.mxu0 0.0
        %5800 = vmatmul.mubr.f32.gmra.mrb[0].mxu0 %v5276
        %v5801 = vpop.f32.mrb[0].mxu0
        %v5802 = vadd.f32 %v5259, %v5801
        %v5803 = vpop.f32.mrb[0].mxu0
        %v5804 = vadd.f32 %v5259, %v5803
        %5805 = vmatprep.mubr.f32.mxu0 0.0
        %5806 = vmatmul.mubr.f32.gmra.mrb[0].mxu0 %v5279
        %v5807 = vpop.f32.mrb[0].mxu0
        %v5808 = vadd.f32 %v5264, %v5807
        %v5809 = vpop.f32.mrb[0].mxu0
        %v5810 = vadd.f32 %v5264, %v5809
        %5811 = vmatprep.mubr.f32.mxu0 0.0
        %5812 = vmatmul.mubr.f32.gmra.mrb[0].mxu0 %v5282
        %v5813 = vpop.f32.mrb[0].mxu0
        %v5814 = vadd.f32 %v5269, %v5813
        %v5815 = vpop.f32.mrb[0].mxu0
        %v5816 = vadd.f32 %v5269, %v5815
        %5817 = vdwg.mxu0
        %5818 = vmatprep.subr.mxu0 %v5128
        %5819 = vmatpush1.msra.mxu0 %v5127
        %5820 = vmatprep.subr.mxu0 %v5160
        %5821 = vmatpush1.msra.mxu0 %v5159
        %5822 = vmatprep.subr.mxu0 %v5192
        %5823 = vmatpush1.msra.mxu0 %v5191
        %5824 = vmatprep.subr.mxu0 %v5224
        %5825 = vmatpush1.msra.mxu0 %v5223
        %5826 = vmatprep.subr.mxu0 0.0
        %5827 = vmatpush1.msra.mxu0 0.0
        %5828 = vmatprep.subr.mxu0 0.0
        %5829 = vmatpush1.msra.mxu0 0.0
        %5830 = vmatprep.subr.mxu0 0.0
        %5831 = vmatpush1.msra.mxu0 0.0
        %5832 = vmatprep.subr.mxu0 0.0
        %5833 = vmatpush1.msra.mxu0 0.0
        %5834 = vmatprep.subr.mxu0 0.0
        %5835 = vmatpush1.msra.mxu0 0.0
        %5836 = vmatprep.subr.mxu0 0.0
        %5837 = vmatpush1.msra.mxu0 0.0
        %5838 = vmatprep.subr.mxu0 0.0
        %5839 = vmatpush1.msra.mxu0 0.0
        %5840 = vmatprep.subr.mxu0 0.0
        %5841 = vmatpush1.msra.mxu0 0.0
        %5842 = vmatprep.subr.mxu0 0.0
        %5843 = vmatpush1.msra.mxu0 0.0
        %5844 = vmatprep.subr.mxu0 0.0
        %5845 = vmatpush1.msra.mxu0 0.0
        %5846 = vmatprep.subr.mxu0 0.0
        %5847 = vmatpush1.msra.mxu0 0.0
        %5848 = vmatprep.subr.mxu0 0.0
        %5849 = vmatpush1.msra.mxu0 0.0
        %5850 = vmatprep.subr.mxu0 0.0
        %5851 = vmatpush1.msra.mxu0 0.0
        %5852 = vmatprep.subr.mxu0 0.0
        %5853 = vmatpush1.msra.mxu0 0.0
        %5854 = vmatprep.subr.mxu0 0.0
        %5855 = vmatpush1.msra.mxu0 0.0
        %5856 = vmatprep.subr.mxu0 0.0
        %5857 = vmatpush1.msra.mxu0 0.0
        %5858 = vmatprep.subr.mxu0 0.0
        %5859 = vmatpush1.msra.mxu0 0.0
        %5860 = vmatprep.subr.mxu0 0.0
        %5861 = vmatpush1.msra.mxu0 0.0
        %5862 = vmatprep.subr.mxu0 0.0
        %5863 = vmatpush1.msra.mxu0 0.0
        %5864 = vmatprep.subr.mxu0 0.0
        %5865 = vmatpush1.msra.mxu0 0.0
        %5866 = vmatprep.subr.mxu0 0.0
        %5867 = vmatpush1.msra.mxu0 0.0
        %5868 = vmatprep.subr.mxu0 0.0
        %5869 = vmatpush1.msra.mxu0 0.0
        %5870 = vmatprep.subr.mxu0 0.0
        %5871 = vmatpush1.msra.mxu0 0.0
        %5872 = vmatprep.subr.mxu0 0.0
        %5873 = vmatpush1.msra.mxu0 0.0
        %5874 = vmatprep.subr.mxu0 0.0
        %5875 = vmatpush1.msra.mxu0 0.0
        %5876 = vmatprep.subr.mxu0 0.0
        %5877 = vmatpush1.msra.mxu0 0.0
        %5878 = vmatprep.subr.mxu0 0.0
        %5879 = vmatpush1.msra.mxu0 0.0
        %5880 = vmatprep.subr.mxu0 0.0
        %5881 = vmatpush1.msra.mxu0 0.0
        %5882 = vmatprep.mubr.f32.mxu0 0.0
        %5883 = vmatmul.mubr.f32.gmra.mrb[0].mxu0 %v5273
        %v5884 = vpop.f32.mrb[0].mxu0
        %v5885 = vadd.f32 %v5254, %v5884
        %v5886 = vpop.f32.mrb[0].mxu0
        %v5887 = vadd.f32 %v5254, %v5886
        %5888 = vmatprep.mubr.f32.mxu0 0.0
        %5889 = vmatmul.mubr.f32.gmra.mrb[0].mxu0 %v5276
        %v5890 = vpop.f32.mrb[0].mxu0
        %v5891 = vadd.f32 %v5259, %v5890
        %v5892 = vpop.f32.mrb[0].mxu0
        %v5893 = vadd.f32 %v5259, %v5892
        %5894 = vmatprep.mubr.f32.mxu0 0.0
        %5895 = vmatmul.mubr.f32.gmra.mrb[0].mxu0 %v5279
        %v5896 = vpop.f32.mrb[0].mxu0
        %v5897 = vadd.f32 %v5264, %v5896
        %v5898 = vpop.f32.mrb[0].mxu0
        %v5899 = vadd.f32 %v5264, %v5898
        %5900 = vmatprep.mubr.f32.mxu0 0.0
        %5901 = vmatmul.mubr.f32.gmra.mrb[0].mxu0 %v5282
        %v5902 = vpop.f32.mrb[0].mxu0
        %v5903 = vadd.f32 %v5269, %v5902
        %v5904 = vpop.f32.mrb[0].mxu0
        %v5905 = vadd.f32 %v5269, %v5904
        %5906 = vdwg.mxu0
        %5907 = vmatprep.subr.mxu0 %v5130
        %5908 = vmatpush1.msra.mxu0 %v5129
        %5909 = vmatprep.subr.mxu0 %v5162
        %5910 = vmatpush1.msra.mxu0 %v5161
        %5911 = vmatprep.subr.mxu0 %v5194
        %5912 = vmatpush1.msra.mxu0 %v5193
        %5913 = vmatprep.subr.mxu0 %v5226
        %5914 = vmatpush1.msra.mxu0 %v5225
        %5915 = vmatprep.subr.mxu0 0.0
        %5916 = vmatpush1.msra.mxu0 0.0
        %5917 = vmatprep.subr.mxu0 0.0
        %5918 = vmatpush1.msra.mxu0 0.0
        %5919 = vmatprep.subr.mxu0 0.0
        %5920 = vmatpush1.msra.mxu0 0.0
        %5921 = vmatprep.subr.mxu0 0.0
        %5922 = vmatpush1.msra.mxu0 0.0
        %5923 = vmatprep.subr.mxu0 0.0
        %5924 = vmatpush1.msra.mxu0 0.0
        %5925 = vmatprep.subr.mxu0 0.0
        %5926 = vmatpush1.msra.mxu0 0.0
        %5927 = vmatprep.subr.mxu0 0.0
        %5928 = vmatpush1.msra.mxu0 0.0
        %5929 = vmatprep.subr.mxu0 0.0
        %5930 = vmatpush1.msra.mxu0 0.0
        %5931 = vmatprep.subr.mxu0 0.0
        %5932 = vmatpush1.msra.mxu0 0.0
        %5933 = vmatprep.subr.mxu0 0.0
        %5934 = vmatpush1.msra.mxu0 0.0
        %5935 = vmatprep.subr.mxu0 0.0
        %5936 = vmatpush1.msra.mxu0 0.0
        %5937 = vmatprep.subr.mxu0 0.0
        %5938 = vmatpush1.msra.mxu0 0.0
        %5939 = vmatprep.subr.mxu0 0.0
        %5940 = vmatpush1.msra.mxu0 0.0
        %5941 = vmatprep.subr.mxu0 0.0
        %5942 = vmatpush1.msra.mxu0 0.0
        %5943 = vmatprep.subr.mxu0 0.0
        %5944 = vmatpush1.msra.mxu0 0.0
        %5945 = vmatprep.subr.mxu0 0.0
        %5946 = vmatpush1.msra.mxu0 0.0
        %5947 = vmatprep.subr.mxu0 0.0
        %5948 = vmatpush1.msra.mxu0 0.0
        %5949 = vmatprep.subr.mxu0 0.0
        %5950 = vmatpush1.msra.mxu0 0.0
        %5951 = vmatprep.subr.mxu0 0.0
        %5952 = vmatpush1.msra.mxu0 0.0
        %5953 = vmatprep.subr.mxu0 0.0
        %5954 = vmatpush1.msra.mxu0 0.0
        %5955 = vmatprep.subr.mxu0 0.0
        %5956 = vmatpush1.msra.mxu0 0.0
        %5957 = vmatprep.subr.mxu0 0.0
        %5958 = vmatpush1.msra.mxu0 0.0
        %5959 = vmatprep.subr.mxu0 0.0
        %5960 = vmatpush1.msra.mxu0 0.0
        %5961 = vmatprep.subr.mxu0 0.0
        %5962 = vmatpush1.msra.mxu0 0.0
        %5963 = vmatprep.subr.mxu0 0.0
        %5964 = vmatpush1.msra.mxu0 0.0
        %5965 = vmatprep.subr.mxu0 0.0
        %5966 = vmatpush1.msra.mxu0 0.0
        %5967 = vmatprep.subr.mxu0 0.0
        %5968 = vmatpush1.msra.mxu0 0.0
        %5969 = vmatprep.subr.mxu0 0.0
        %5970 = vmatpush1.msra.mxu0 0.0
        %5971 = vmatprep.mubr.f32.mxu0 0.0
        %5972 = vmatmul.mubr.f32.gmra.mrb[0].mxu0 %v5273
        %v5973 = vpop.f32.mrb[0].mxu0
        %v5974 = vadd.f32 %v5254, %v5973
        %v5975 = vpop.f32.mrb[0].mxu0
        %v5976 = vadd.f32 %v5254, %v5975
        %5977 = vmatprep.mubr.f32.mxu0 0.0
        %5978 = vmatmul.mubr.f32.gmra.mrb[0].mxu0 %v5276
        %v5979 = vpop.f32.mrb[0].mxu0
        %v5980 = vadd.f32 %v5259, %v5979
        %v5981 = vpop.f32.mrb[0].mxu0
        %v5982 = vadd.f32 %v5259, %v5981
        %5983 = vmatprep.mubr.f32.mxu0 0.0
        %5984 = vmatmul.mubr.f32.gmra.mrb[0].mxu0 %v5279
        %v5985 = vpop.f32.mrb[0].mxu0
        %v5986 = vadd.f32 %v5264, %v5985
        %v5987 = vpop.f32.mrb[0].mxu0
        %v5988 = vadd.f32 %v5264, %v5987
        %5989 = vmatprep.mubr.f32.mxu0 0.0
        %5990 = vmatmul.mubr.f32.gmra.mrb[0].mxu0 %v5282
        %v5991 = vpop.f32.mrb[0].mxu0
        %v5992 = vadd.f32 %v5269, %v5991
        %v5993 = vpop.f32.mrb[0].mxu0
        %v5994 = vadd.f32 %v5269, %v5993
        %5995 = vdwg.mxu0
        %5996 = vmatprep.subr.mxu0 %v5132
        %5997 = vmatpush1.msra.mxu0 %v5131
        %5998 = vmatprep.subr.mxu0 %v5164
        %5999 = vmatpush1.msra.mxu0 %v5163
        %6000 = vmatprep.subr.mxu0 %v5196
        %6001 = vmatpush1.msra.mxu0 %v5195
        %6002 = vmatprep.subr.mxu0 %v5228
        %6003 = vmatpush1.msra.mxu0 %v5227
        %6004 = vmatprep.subr.mxu0 0.0
        %6005 = vmatpush1.msra.mxu0 0.0
        %6006 = vmatprep.subr.mxu0 0.0
        %6007 = vmatpush1.msra.mxu0 0.0
        %6008 = vmatprep.subr.mxu0 0.0
        %6009 = vmatpush1.msra.mxu0 0.0
        %6010 = vmatprep.subr.mxu0 0.0
        %6011 = vmatpush1.msra.mxu0 0.0
        %6012 = vmatprep.subr.mxu0 0.0
        %6013 = vmatpush1.msra.mxu0 0.0
        %6014 = vmatprep.subr.mxu0 0.0
        %6015 = vmatpush1.msra.mxu0 0.0
        %6016 = vmatprep.subr.mxu0 0.0
        %6017 = vmatpush1.msra.mxu0 0.0
        %6018 = vmatprep.subr.mxu0 0.0
        %6019 = vmatpush1.msra.mxu0 0.0
        %6020 = vmatprep.subr.mxu0 0.0
        %6021 = vmatpush1.msra.mxu0 0.0
        %6022 = vmatprep.subr.mxu0 0.0
        %6023 = vmatpush1.msra.mxu0 0.0
        %6024 = vmatprep.subr.mxu0 0.0
        %6025 = vmatpush1.msra.mxu0 0.0
        %6026 = vmatprep.subr.mxu0 0.0
        %6027 = vmatpush1.msra.mxu0 0.0
        %6028 = vmatprep.subr.mxu0 0.0
        %6029 = vmatpush1.msra.mxu0 0.0
        %6030 = vmatprep.subr.mxu0 0.0
        %6031 = vmatpush1.msra.mxu0 0.0
        %6032 = vmatprep.subr.mxu0 0.0
        %6033 = vmatpush1.msra.mxu0 0.0
        %6034 = vmatprep.subr.mxu0 0.0
        %6035 = vmatpush1.msra.mxu0 0.0
        %6036 = vmatprep.subr.mxu0 0.0
        %6037 = vmatpush1.msra.mxu0 0.0
        %6038 = vmatprep.subr.mxu0 0.0
        %6039 = vmatpush1.msra.mxu0 0.0
        %6040 = vmatprep.subr.mxu0 0.0
        %6041 = vmatpush1.msra.mxu0 0.0
        %6042 = vmatprep.subr.mxu0 0.0
        %6043 = vmatpush1.msra.mxu0 0.0
        %6044 = vmatprep.subr.mxu0 0.0
        %6045 = vmatpush1.msra.mxu0 0.0
        %6046 = vmatprep.subr.mxu0 0.0
        %6047 = vmatpush1.msra.mxu0 0.0
        %6048 = vmatprep.subr.mxu0 0.0
        %6049 = vmatpush1.msra.mxu0 0.0
        %6050 = vmatprep.subr.mxu0 0.0
        %6051 = vmatpush1.msra.mxu0 0.0
        %6052 = vmatprep.subr.mxu0 0.0
        %6053 = vmatpush1.msra.mxu0 0.0
        %6054 = vmatprep.subr.mxu0 0.0
        %6055 = vmatpush1.msra.mxu0 0.0
        %6056 = vmatprep.subr.mxu0 0.0
        %6057 = vmatpush1.msra.mxu0 0.0
        %6058 = vmatprep.subr.mxu0 0.0
        %6059 = vmatpush1.msra.mxu0 0.0
        %6060 = vmatprep.mubr.f32.mxu0 0.0
        %6061 = vmatmul.mubr.f32.gmra.mrb[0].mxu0 %v5273
        %v6062 = vpop.f32.mrb[0].mxu0
        %v6063 = vadd.f32 %v5254, %v6062
        %v6064 = vpop.f32.mrb[0].mxu0
        %v6065 = vadd.f32 %v5254, %v6064
        %6066 = vmatprep.mubr.f32.mxu0 0.0
        %6067 = vmatmul.mubr.f32.gmra.mrb[0].mxu0 %v5276
        %v6068 = vpop.f32.mrb[0].mxu0
        %v6069 = vadd.f32 %v5259, %v6068
        %v6070 = vpop.f32.mrb[0].mxu0
        %v6071 = vadd.f32 %v5259, %v6070
        %6072 = vmatprep.mubr.f32.mxu0 0.0
        %6073 = vmatmul.mubr.f32.gmra.mrb[0].mxu0 %v5279
        %v6074 = vpop.f32.mrb[0].mxu0
        %v6075 = vadd.f32 %v5264, %v6074
        %v6076 = vpop.f32.mrb[0].mxu0
        %v6077 = vadd.f32 %v5264, %v6076
        %6078 = vmatprep.mubr.f32.mxu0 0.0
        %6079 = vmatmul.mubr.f32.gmra.mrb[0].mxu0 %v5282
        %v6080 = vpop.f32.mrb[0].mxu0
        %v6081 = vadd.f32 %v5269, %v6080
        %v6082 = vpop.f32.mrb[0].mxu0
        %v6083 = vadd.f32 %v5269, %v6082
        %6084 = vdwg.mxu0
        %6085 = vmatprep.subr.mxu0 %v5134
        %6086 = vmatpush1.msra.mxu0 %v5133
        %6087 = vmatprep.subr.mxu0 %v5166
        %6088 = vmatpush1.msra.mxu0 %v5165
        %6089 = vmatprep.subr.mxu0 %v5198
        %6090 = vmatpush1.msra.mxu0 %v5197
        %6091 = vmatprep.subr.mxu0 %v5230
        %6092 = vmatpush1.msra.mxu0 %v5229
        %6093 = vmatprep.subr.mxu0 0.0
        %6094 = vmatpush1.msra.mxu0 0.0
        %6095 = vmatprep.subr.mxu0 0.0
        %6096 = vmatpush1.msra.mxu0 0.0
        %6097 = vmatprep.subr.mxu0 0.0
        %6098 = vmatpush1.msra.mxu0 0.0
        %6099 = vmatprep.subr.mxu0 0.0
        %6100 = vmatpush1.msra.mxu0 0.0
        %6101 = vmatprep.subr.mxu0 0.0
        %6102 = vmatpush1.msra.mxu0 0.0
        %6103 = vmatprep.subr.mxu0 0.0
        %6104 = vmatpush1.msra.mxu0 0.0
        %6105 = vmatprep.subr.mxu0 0.0
        %6106 = vmatpush1.msra.mxu0 0.0
        %6107 = vmatprep.subr.mxu0 0.0
        %6108 = vmatpush1.msra.mxu0 0.0
        %6109 = vmatprep.subr.mxu0 0.0
        %6110 = vmatpush1.msra.mxu0 0.0
        %6111 = vmatprep.subr.mxu0 0.0
        %6112 = vmatpush1.msra.mxu0 0.0
        %6113 = vmatprep.subr.mxu0 0.0
        %6114 = vmatpush1.msra.mxu0 0.0
        %6115 = vmatprep.subr.mxu0 0.0
        %6116 = vmatpush1.msra.mxu0 0.0
        %6117 = vmatprep.subr.mxu0 0.0
        %6118 = vmatpush1.msra.mxu0 0.0
        %6119 = vmatprep.subr.mxu0 0.0
        %6120 = vmatpush1.msra.mxu0 0.0
        %6121 = vmatprep.subr.mxu0 0.0
        %6122 = vmatpush1.msra.mxu0 0.0
        %6123 = vmatprep.subr.mxu0 0.0
        %6124 = vmatpush1.msra.mxu0 0.0
        %6125 = vmatprep.subr.mxu0 0.0
        %6126 = vmatpush1.msra.mxu0 0.0
        %6127 = vmatprep.subr.mxu0 0.0
        %6128 = vmatpush1.msra.mxu0 0.0
        %6129 = vmatprep.subr.mxu0 0.0
        %6130 = vmatpush1.msra.mxu0 0.0
        %6131 = vmatprep.subr.mxu0 0.0
        %6132 = vmatpush1.msra.mxu0 0.0
        %6133 = vmatprep.subr.mxu0 0.0
        %6134 = vmatpush1.msra.mxu0 0.0
        %6135 = vmatprep.subr.mxu0 0.0
        %6136 = vmatpush1.msra.mxu0 0.0
        %6137 = vmatprep.subr.mxu0 0.0
        %6138 = vmatpush1.msra.mxu0 0.0
        %6139 = vmatprep.subr.mxu0 0.0
        %6140 = vmatpush1.msra.mxu0 0.0
        %6141 = vmatprep.subr.mxu0 0.0
        %6142 = vmatpush1.msra.mxu0 0.0
        %6143 = vmatprep.subr.mxu0 0.0
        %6144 = vmatpush1.msra.mxu0 0.0
        %6145 = vmatprep.subr.mxu0 0.0
        %6146 = vmatpush1.msra.mxu0 0.0
        %6147 = vmatprep.subr.mxu0 0.0
        %6148 = vmatpush1.msra.mxu0 0.0
        %6149 = vmatprep.mubr.f32.mxu0 0.0
        %6150 = vmatmul.mubr.f32.gmra.mrb[0].mxu0 %v5273
        %v6151 = vpop.f32.mrb[0].mxu0
        %v6152 = vadd.f32 %v5254, %v6151
        %v6153 = vpop.f32.mrb[0].mxu0
        %v6154 = vadd.f32 %v5254, %v6153
        %6155 = vmatprep.mubr.f32.mxu0 0.0
        %6156 = vmatmul.mubr.f32.gmra.mrb[0].mxu0 %v5276
        %v6157 = vpop.f32.mrb[0].mxu0
        %v6158 = vadd.f32 %v5259, %v6157
        %v6159 = vpop.f32.mrb[0].mxu0
        %v6160 = vadd.f32 %v5259, %v6159
        %6161 = vmatprep.mubr.f32.mxu0 0.0
        %6162 = vmatmul.mubr.f32.gmra.mrb[0].mxu0 %v5279
        %v6163 = vpop.f32.mrb[0].mxu0
        %v6164 = vadd.f32 %v5264, %v6163
        %v6165 = vpop.f32.mrb[0].mxu0
        %v6166 = vadd.f32 %v5264, %v6165
        %6167 = vmatprep.mubr.f32.mxu0 0.0
        %6168 = vmatmul.mubr.f32.gmra.mrb[0].mxu0 %v5282
        %v6169 = vpop.f32.mrb[0].mxu0
        %v6170 = vadd.f32 %v5269, %v6169
        %v6171 = vpop.f32.mrb[0].mxu0
        %v6172 = vadd.f32 %v5269, %v6171
        %6173 = vdwg.mxu0
        %6174 = vmatprep.subr.mxu0 %v5136
        %6175 = vmatpush1.msra.mxu0 %v5135
        %6176 = vmatprep.subr.mxu0 %v5168
        %6177 = vmatpush1.msra.mxu0 %v5167
        %6178 = vmatprep.subr.mxu0 %v5200
        %6179 = vmatpush1.msra.mxu0 %v5199
        %6180 = vmatprep.subr.mxu0 %v5232
        %6181 = vmatpush1.msra.mxu0 %v5231
        %6182 = vmatprep.subr.mxu0 0.0
        %6183 = vmatpush1.msra.mxu0 0.0
        %6184 = vmatprep.subr.mxu0 0.0
        %6185 = vmatpush1.msra.mxu0 0.0
        %6186 = vmatprep.subr.mxu0 0.0
        %6187 = vmatpush1.msra.mxu0 0.0
        %6188 = vmatprep.subr.mxu0 0.0
        %6189 = vmatpush1.msra.mxu0 0.0
        %6190 = vmatprep.subr.mxu0 0.0
        %6191 = vmatpush1.msra.mxu0 0.0
        %6192 = vmatprep.subr.mxu0 0.0
        %6193 = vmatpush1.msra.mxu0 0.0
        %6194 = vmatprep.subr.mxu0 0.0
        %6195 = vmatpush1.msra.mxu0 0.0
        %6196 = vmatprep.subr.mxu0 0.0
        %6197 = vmatpush1.msra.mxu0 0.0
        %6198 = vmatprep.subr.mxu0 0.0
        %6199 = vmatpush1.msra.mxu0 0.0
        %6200 = vmatprep.subr.mxu0 0.0
        %6201 = vmatpush1.msra.mxu0 0.0
        %6202 = vmatprep.subr.mxu0 0.0
        %6203 = vmatpush1.msra.mxu0 0.0
        %6204 = vmatprep.subr.mxu0 0.0
        %6205 = vmatpush1.msra.mxu0 0.0
        %6206 = vmatprep.subr.mxu0 0.0
        %6207 = vmatpush1.msra.mxu0 0.0
        %6208 = vmatprep.subr.mxu0 0.0
        %6209 = vmatpush1.msra.mxu0 0.0
        %6210 = vmatprep.subr.mxu0 0.0
        %6211 = vmatpush1.msra.mxu0 0.0
        %6212 = vmatprep.subr.mxu0 0.0
        %6213 = vmatpush1.msra.mxu0 0.0
        %6214 = vmatprep.subr.mxu0 0.0
        %6215 = vmatpush1.msra.mxu0 0.0
        %6216 = vmatprep.subr.mxu0 0.0
        %6217 = vmatpush1.msra.mxu0 0.0
        %6218 = vmatprep.subr.mxu0 0.0
        %6219 = vmatpush1.msra.mxu0 0.0
        %6220 = vmatprep.subr.mxu0 0.0
        %6221 = vmatpush1.msra.mxu0 0.0
        %6222 = vmatprep.subr.mxu0 0.0
        %6223 = vmatpush1.msra.mxu0 0.0
        %6224 = vmatprep.subr.mxu0 0.0
        %6225 = vmatpush1.msra.mxu0 0.0
        %6226 = vmatprep.subr.mxu0 0.0
        %6227 = vmatpush1.msra.mxu0 0.0
        %6228 = vmatprep.subr.mxu0 0.0
        %6229 = vmatpush1.msra.mxu0 0.0
        %6230 = vmatprep.subr.mxu0 0.0
        %6231 = vmatpush1.msra.mxu0 0.0
        %6232 = vmatprep.subr.mxu0 0.0
        %6233 = vmatpush1.msra.mxu0 0.0
        %6234 = vmatprep.subr.mxu0 0.0
        %6235 = vmatpush1.msra.mxu0 0.0
        %6236 = vmatprep.subr.mxu0 0.0
        %6237 = vmatpush1.msra.mxu0 0.0
        %6238 = vmatprep.mubr.f32.mxu0 0.0
        %6239 = vmatmul.mubr.f32.gmra.mrb[0].mxu0 %v5273
        %v6240 = vpop.f32.mrb[0].mxu0
        %v6241 = vadd.f32 %v5254, %v6240
        %v6242 = vpop.f32.mrb[0].mxu0
        %v6243 = vadd.f32 %v5254, %v6242
        %6244 = vmatprep.mubr.f32.mxu0 0.0
        %6245 = vmatmul.mubr.f32.gmra.mrb[0].mxu0 %v5276
        %v6246 = vpop.f32.mrb[0].mxu0
        %v6247 = vadd.f32 %v5259, %v6246
        %v6248 = vpop.f32.mrb[0].mxu0
        %v6249 = vadd.f32 %v5259, %v6248
        %6250 = vmatprep.mubr.f32.mxu0 0.0
        %6251 = vmatmul.mubr.f32.gmra.mrb[0].mxu0 %v5279
        %v6252 = vpop.f32.mrb[0].mxu0
        %v6253 = vadd.f32 %v5264, %v6252
        %v6254 = vpop.f32.mrb[0].mxu0
        %v6255 = vadd.f32 %v5264, %v6254
        %6256 = vmatprep.mubr.f32.mxu0 0.0
        %6257 = vmatmul.mubr.f32.gmra.mrb[0].mxu0 %v5282
        %v6258 = vpop.f32.mrb[0].mxu0
        %v6259 = vadd.f32 %v5269, %v6258
        %v6260 = vpop.f32.mrb[0].mxu0
        %v6261 = vadd.f32 %v5269, %v6260
        %6262 = vdwg.mxu0
        %6263 = vmatprep.subr.mxu0 %v5138
        %6264 = vmatpush1.msra.mxu0 %v5137
        %6265 = vmatprep.subr.mxu0 %v5170
        %6266 = vmatpush1.msra.mxu0 %v5169
        %6267 = vmatprep.subr.mxu0 %v5202
        %6268 = vmatpush1.msra.mxu0 %v5201
        %6269 = vmatprep.subr.mxu0 %v5234
        %6270 = vmatpush1.msra.mxu0 %v5233
        %6271 = vmatprep.subr.mxu0 0.0
        %6272 = vmatpush1.msra.mxu0 0.0
        %6273 = vmatprep.subr.mxu0 0.0
        %6274 = vmatpush1.msra.mxu0 0.0
        %6275 = vmatprep.subr.mxu0 0.0
        %6276 = vmatpush1.msra.mxu0 0.0
        %6277 = vmatprep.subr.mxu0 0.0
        %6278 = vmatpush1.msra.mxu0 0.0
        %6279 = vmatprep.subr.mxu0 0.0
        %6280 = vmatpush1.msra.mxu0 0.0
        %6281 = vmatprep.subr.mxu0 0.0
        %6282 = vmatpush1.msra.mxu0 0.0
        %6283 = vmatprep.subr.mxu0 0.0
        %6284 = vmatpush1.msra.mxu0 0.0
        %6285 = vmatprep.subr.mxu0 0.0
        %6286 = vmatpush1.msra.mxu0 0.0
        %6287 = vmatprep.subr.mxu0 0.0
        %6288 = vmatpush1.msra.mxu0 0.0
        %6289 = vmatprep.subr.mxu0 0.0
        %6290 = vmatpush1.msra.mxu0 0.0
        %6291 = vmatprep.subr.mxu0 0.0
        %6292 = vmatpush1.msra.mxu0 0.0
        %6293 = vmatprep.subr.mxu0 0.0
        %6294 = vmatpush1.msra.mxu0 0.0
        %6295 = vmatprep.subr.mxu0 0.0
        %6296 = vmatpush1.msra.mxu0 0.0
        %6297 = vmatprep.subr.mxu0 0.0
        %6298 = vmatpush1.msra.mxu0 0.0
        %6299 = vmatprep.subr.mxu0 0.0
        %6300 = vmatpush1.msra.mxu0 0.0
        %6301 = vmatprep.subr.mxu0 0.0
        %6302 = vmatpush1.msra.mxu0 0.0
        %6303 = vmatprep.subr.mxu0 0.0
        %6304 = vmatpush1.msra.mxu0 0.0
        %6305 = vmatprep.subr.mxu0 0.0
        %6306 = vmatpush1.msra.mxu0 0.0
        %6307 = vmatprep.subr.mxu0 0.0
        %6308 = vmatpush1.msra.mxu0 0.0
        %6309 = vmatprep.subr.mxu0 0.0
        %6310 = vmatpush1.msra.mxu0 0.0
        %6311 = vmatprep.subr.mxu0 0.0
        %6312 = vmatpush1.msra.mxu0 0.0
        %6313 = vmatprep.subr.mxu0 0.0
        %6314 = vmatpush1.msra.mxu0 0.0
        %6315 = vmatprep.subr.mxu0 0.0
        %6316 = vmatpush1.msra.mxu0 0.0
        %6317 = vmatprep.subr.mxu0 0.0
        %6318 = vmatpush1.msra.mxu0 0.0
        %6319 = vmatprep.subr.mxu0 0.0
        %6320 = vmatpush1.msra.mxu0 0.0
        %6321 = vmatprep.subr.mxu0 0.0
        %6322 = vmatpush1.msra.mxu0 0.0
        %6323 = vmatprep.subr.mxu0 0.0
        %6324 = vmatpush1.msra.mxu0 0.0
        %6325 = vmatprep.subr.mxu0 0.0
        %6326 = vmatpush1.msra.mxu0 0.0
        %6327 = vmatprep.mubr.f32.mxu0 0.0
        %6328 = vmatmul.mubr.f32.gmra.mrb[0].mxu0 %v5273
        %v6329 = vpop.f32.mrb[0].mxu0
        %v6330 = vadd.f32 %v5254, %v6329
        %v6331 = vpop.f32.mrb[0].mxu0
        %v6332 = vadd.f32 %v5254, %v6331
        %6333 = vmatprep.mubr.f32.mxu0 0.0
        %6334 = vmatmul.mubr.f32.gmra.mrb[0].mxu0 %v5276
        %v6335 = vpop.f32.mrb[0].mxu0
        %v6336 = vadd.f32 %v5259, %v6335
        %v6337 = vpop.f32.mrb[0].mxu0
        %v6338 = vadd.f32 %v5259, %v6337
        %6339 = vmatprep.mubr.f32.mxu0 0.0
        %6340 = vmatmul.mubr.f32.gmra.mrb[0].mxu0 %v5279
        %v6341 = vpop.f32.mrb[0].mxu0
        %v6342 = vadd.f32 %v5264, %v6341
        %v6343 = vpop.f32.mrb[0].mxu0
        %v6344 = vadd.f32 %v5264, %v6343
        %6345 = vmatprep.mubr.f32.mxu0 0.0
        %6346 = vmatmul.mubr.f32.gmra.mrb[0].mxu0 %v5282
        %v6347 = vpop.f32.mrb[0].mxu0
        %v6348 = vadd.f32 %v5269, %v6347
        %v6349 = vpop.f32.mrb[0].mxu0
        %v6350 = vadd.f32 %v5269, %v6349
        %6351 = vdwg.mxu0
        %6352 = vmatprep.subr.mxu0 %v5140
        %6353 = vmatpush1.msra.mxu0 %v5139
        %6354 = vmatprep.subr.mxu0 %v5172
        %6355 = vmatpush1.msra.mxu0 %v5171
        %6356 = vmatprep.subr.mxu0 %v5204
        %6357 = vmatpush1.msra.mxu0 %v5203
        %6358 = vmatprep.subr.mxu0 %v5236
        %6359 = vmatpush1.msra.mxu0 %v5235
        %6360 = vmatprep.subr.mxu0 0.0
        %6361 = vmatpush1.msra.mxu0 0.0
        %6362 = vmatprep.subr.mxu0 0.0
        %6363 = vmatpush1.msra.mxu0 0.0
        %6364 = vmatprep.subr.mxu0 0.0
        %6365 = vmatpush1.msra.mxu0 0.0
        %6366 = vmatprep.subr.mxu0 0.0
        %6367 = vmatpush1.msra.mxu0 0.0
        %6368 = vmatprep.subr.mxu0 0.0
        %6369 = vmatpush1.msra.mxu0 0.0
        %6370 = vmatprep.subr.mxu0 0.0
        %6371 = vmatpush1.msra.mxu0 0.0
        %6372 = vmatprep.subr.mxu0 0.0
        %6373 = vmatpush1.msra.mxu0 0.0
        %6374 = vmatprep.subr.mxu0 0.0
        %6375 = vmatpush1.msra.mxu0 0.0
        %6376 = vmatprep.subr.mxu0 0.0
        %6377 = vmatpush1.msra.mxu0 0.0
        %6378 = vmatprep.subr.mxu0 0.0
        %6379 = vmatpush1.msra.mxu0 0.0
        %6380 = vmatprep.subr.mxu0 0.0
        %6381 = vmatpush1.msra.mxu0 0.0
        %6382 = vmatprep.subr.mxu0 0.0
        %6383 = vmatpush1.msra.mxu0 0.0
        %6384 = vmatprep.subr.mxu0 0.0
        %6385 = vmatpush1.msra.mxu0 0.0
        %6386 = vmatprep.subr.mxu0 0.0
        %6387 = vmatpush1.msra.mxu0 0.0
        %6388 = vmatprep.subr.mxu0 0.0
        %6389 = vmatpush1.msra.mxu0 0.0
        %6390 = vmatprep.subr.mxu0 0.0
        %6391 = vmatpush1.msra.mxu0 0.0
        %6392 = vmatprep.subr.mxu0 0.0
        %6393 = vmatpush1.msra.mxu0 0.0
        %6394 = vmatprep.subr.mxu0 0.0
        %6395 = vmatpush1.msra.mxu0 0.0
        %6396 = vmatprep.subr.mxu0 0.0
        %6397 = vmatpush1.msra.mxu0 0.0
        %6398 = vmatprep.subr.mxu0 0.0
        %6399 = vmatpush1.msra.mxu0 0.0
        %6400 = vmatprep.subr.mxu0 0.0
        %6401 = vmatpush1.msra.mxu0 0.0
        %6402 = vmatprep.subr.mxu0 0.0
        %6403 = vmatpush1.msra.mxu0 0.0
        %6404 = vmatprep.subr.mxu0 0.0
        %6405 = vmatpush1.msra.mxu0 0.0
        %6406 = vmatprep.subr.mxu0 0.0
        %6407 = vmatpush1.msra.mxu0 0.0
        %6408 = vmatprep.subr.mxu0 0.0
        %6409 = vmatpush1.msra.mxu0 0.0
        %6410 = vmatprep.subr.mxu0 0.0
        %6411 = vmatpush1.msra.mxu0 0.0
        %6412 = vmatprep.subr.mxu0 0.0
        %6413 = vmatpush1.msra.mxu0 0.0
        %6414 = vmatprep.subr.mxu0 0.0
        %6415 = vmatpush1.msra.mxu0 0.0
        %6416 = vmatprep.mubr.f32.mxu0 0.0
        %6417 = vmatmul.mubr.f32.gmra.mrb[0].mxu0 %v5273
        %v6418 = vpop.f32.mrb[0].mxu0
        %v6419 = vadd.f32 %v5254, %v6418
        %v6420 = vpop.f32.mrb[0].mxu0
        %v6421 = vadd.f32 %v5254, %v6420
        %6422 = vmatprep.mubr.f32.mxu0 0.0
        %6423 = vmatmul.mubr.f32.gmra.mrb[0].mxu0 %v5276
        %v6424 = vpop.f32.mrb[0].mxu0
        %v6425 = vadd.f32 %v5259, %v6424
        %v6426 = vpop.f32.mrb[0].mxu0
        %v6427 = vadd.f32 %v5259, %v6426
        %6428 = vmatprep.mubr.f32.mxu0 0.0
        %6429 = vmatmul.mubr.f32.gmra.mrb[0].mxu0 %v5279
        %v6430 = vpop.f32.mrb[0].mxu0
        %v6431 = vadd.f32 %v5264, %v6430
        %v6432 = vpop.f32.mrb[0].mxu0
        %v6433 = vadd.f32 %v5264, %v6432
        %6434 = vmatprep.mubr.f32.mxu0 0.0
        %6435 = vmatmul.mubr.f32.gmra.mrb[0].mxu0 %v5282
        %v6436 = vpop.f32.mrb[0].mxu0
        %v6437 = vadd.f32 %v5269, %v6436
        %v6438 = vpop.f32.mrb[0].mxu0
        %v6439 = vadd.f32 %v5269, %v6438
        %6440 = vdwg.mxu0
        %6441 = vmatprep.subr.mxu0 %v5142
        %6442 = vmatpush1.msra.mxu0 %v5141
        %6443 = vmatprep.subr.mxu0 %v5174
        %6444 = vmatpush1.msra.mxu0 %v5173
        %6445 = vmatprep.subr.mxu0 %v5206
        %6446 = vmatpush1.msra.mxu0 %v5205
        %6447 = vmatprep.subr.mxu0 %v5238
        %6448 = vmatpush1.msra.mxu0 %v5237
        %6449 = vmatprep.subr.mxu0 0.0
        %6450 = vmatpush1.msra.mxu0 0.0
        %6451 = vmatprep.subr.mxu0 0.0
        %6452 = vmatpush1.msra.mxu0 0.0
        %6453 = vmatprep.subr.mxu0 0.0
        %6454 = vmatpush1.msra.mxu0 0.0
        %6455 = vmatprep.subr.mxu0 0.0
        %6456 = vmatpush1.msra.mxu0 0.0
        %6457 = vmatprep.subr.mxu0 0.0
        %6458 = vmatpush1.msra.mxu0 0.0
        %6459 = vmatprep.subr.mxu0 0.0
        %6460 = vmatpush1.msra.mxu0 0.0
        %6461 = vmatprep.subr.mxu0 0.0
        %6462 = vmatpush1.msra.mxu0 0.0
        %6463 = vmatprep.subr.mxu0 0.0
        %6464 = vmatpush1.msra.mxu0 0.0
        %6465 = vmatprep.subr.mxu0 0.0
        %6466 = vmatpush1.msra.mxu0 0.0
        %6467 = vmatprep.subr.mxu0 0.0
        %6468 = vmatpush1.msra.mxu0 0.0
        %6469 = vmatprep.subr.mxu0 0.0
        %6470 = vmatpush1.msra.mxu0 0.0
        %6471 = vmatprep.subr.mxu0 0.0
        %6472 = vmatpush1.msra.mxu0 0.0
        %6473 = vmatprep.subr.mxu0 0.0
        %6474 = vmatpush1.msra.mxu0 0.0
        %6475 = vmatprep.subr.mxu0 0.0
        %6476 = vmatpush1.msra.mxu0 0.0
        %6477 = vmatprep.subr.mxu0 0.0
        %6478 = vmatpush1.msra.mxu0 0.0
        %6479 = vmatprep.subr.mxu0 0.0
        %6480 = vmatpush1.msra.mxu0 0.0
        %6481 = vmatprep.subr.mxu0 0.0
        %6482 = vmatpush1.msra.mxu0 0.0
        %6483 = vmatprep.subr.mxu0 0.0
        %6484 = vmatpush1.msra.mxu0 0.0
        %6485 = vmatprep.subr.mxu0 0.0
        %6486 = vmatpush1.msra.mxu0 0.0
        %6487 = vmatprep.subr.mxu0 0.0
        %6488 = vmatpush1.msra.mxu0 0.0
        %6489 = vmatprep.subr.mxu0 0.0
        %6490 = vmatpush1.msra.mxu0 0.0
        %6491 = vmatprep.subr.mxu0 0.0
        %6492 = vmatpush1.msra.mxu0 0.0
        %6493 = vmatprep.subr.mxu0 0.0
        %6494 = vmatpush1.msra.mxu0 0.0
        %6495 = vmatprep.subr.mxu0 0.0
        %6496 = vmatpush1.msra.mxu0 0.0
        %6497 = vmatprep.subr.mxu0 0.0
        %6498 = vmatpush1.msra.mxu0 0.0
        %6499 = vmatprep.subr.mxu0 0.0
        %6500 = vmatpush1.msra.mxu0 0.0
        %6501 = vmatprep.subr.mxu0 0.0
        %6502 = vmatpush1.msra.mxu0 0.0
        %6503 = vmatprep.subr.mxu0 0.0
        %6504 = vmatpush1.msra.mxu0 0.0
        %6505 = vmatprep.mubr.f32.mxu0 0.0
        %6506 = vmatmul.mubr.f32.gmra.mrb[0].mxu0 %v5273
        %v6507 = vpop.f32.mrb[0].mxu0
        %v6508 = vadd.f32 %v5254, %v6507
        %v6509 = vpop.f32.mrb[0].mxu0
        %v6510 = vadd.f32 %v5254, %v6509
        %6511 = vmatprep.mubr.f32.mxu0 0.0
        %6512 = vmatmul.mubr.f32.gmra.mrb[0].mxu0 %v5276
        %v6513 = vpop.f32.mrb[0].mxu0
        %v6514 = vadd.f32 %v5259, %v6513
        %v6515 = vpop.f32.mrb[0].mxu0
        %v6516 = vadd.f32 %v5259, %v6515
        %6517 = vmatprep.mubr.f32.mxu0 0.0
        %6518 = vmatmul.mubr.f32.gmra.mrb[0].mxu0 %v5279
        %v6519 = vpop.f32.mrb[0].mxu0
        %v6520 = vadd.f32 %v5264, %v6519
        %v6521 = vpop.f32.mrb[0].mxu0
        %v6522 = vadd.f32 %v5264, %v6521
        %6523 = vmatprep.mubr.f32.mxu0 0.0
        %6524 = vmatmul.mubr.f32.gmra.mrb[0].mxu0 %v5282
        %v6525 = vpop.f32.mrb[0].mxu0
        %v6526 = vadd.f32 %v5269, %v6525
        %v6527 = vpop.f32.mrb[0].mxu0
        %v6528 = vadd.f32 %v5269, %v6527
        %6529 = vdwg.mxu0
        %6530 = vmatprep.subr.mxu0 %v5144
        %6531 = vmatpush1.msra.mxu0 %v5143
        %6532 = vmatprep.subr.mxu0 %v5176
        %6533 = vmatpush1.msra.mxu0 %v5175
        %6534 = vmatprep.subr.mxu0 %v5208
        %6535 = vmatpush1.msra.mxu0 %v5207
        %6536 = vmatprep.subr.mxu0 %v5240
        %6537 = vmatpush1.msra.mxu0 %v5239
        %6538 = vmatprep.subr.mxu0 0.0
        %6539 = vmatpush1.msra.mxu0 0.0
        %6540 = vmatprep.subr.mxu0 0.0
        %6541 = vmatpush1.msra.mxu0 0.0
        %6542 = vmatprep.subr.mxu0 0.0
        %6543 = vmatpush1.msra.mxu0 0.0
        %6544 = vmatprep.subr.mxu0 0.0
        %6545 = vmatpush1.msra.mxu0 0.0
        %6546 = vmatprep.subr.mxu0 0.0
        %6547 = vmatpush1.msra.mxu0 0.0
        %6548 = vmatprep.subr.mxu0 0.0
        %6549 = vmatpush1.msra.mxu0 0.0
        %6550 = vmatprep.subr.mxu0 0.0
        %6551 = vmatpush1.msra.mxu0 0.0
        %6552 = vmatprep.subr.mxu0 0.0
        %6553 = vmatpush1.msra.mxu0 0.0
        %6554 = vmatprep.subr.mxu0 0.0
        %6555 = vmatpush1.msra.mxu0 0.0
        %6556 = vmatprep.subr.mxu0 0.0
        %6557 = vmatpush1.msra.mxu0 0.0
        %6558 = vmatprep.subr.mxu0 0.0
        %6559 = vmatpush1.msra.mxu0 0.0
        %6560 = vmatprep.subr.mxu0 0.0
        %6561 = vmatpush1.msra.mxu0 0.0
        %6562 = vmatprep.subr.mxu0 0.0
        %6563 = vmatpush1.msra.mxu0 0.0
        %6564 = vmatprep.subr.mxu0 0.0
        %6565 = vmatpush1.msra.mxu0 0.0
        %6566 = vmatprep.subr.mxu0 0.0
        %6567 = vmatpush1.msra.mxu0 0.0
        %6568 = vmatprep.subr.mxu0 0.0
        %6569 = vmatpush1.msra.mxu0 0.0
        %6570 = vmatprep.subr.mxu0 0.0
        %6571 = vmatpush1.msra.mxu0 0.0
        %6572 = vmatprep.subr.mxu0 0.0
        %6573 = vmatpush1.msra.mxu0 0.0
        %6574 = vmatprep.subr.mxu0 0.0
        %6575 = vmatpush1.msra.mxu0 0.0
        %6576 = vmatprep.subr.mxu0 0.0
        %6577 = vmatpush1.msra.mxu0 0.0
        %6578 = vmatprep.subr.mxu0 0.0
        %6579 = vmatpush1.msra.mxu0 0.0
        %6580 = vmatprep.subr.mxu0 0.0
        %6581 = vmatpush1.msra.mxu0 0.0
        %6582 = vmatprep.subr.mxu0 0.0
        %6583 = vmatpush1.msra.mxu0 0.0
        %6584 = vmatprep.subr.mxu0 0.0
        %6585 = vmatpush1.msra.mxu0 0.0
        %6586 = vmatprep.subr.mxu0 0.0
        %6587 = vmatpush1.msra.mxu0 0.0
        %6588 = vmatprep.subr.mxu0 0.0
        %6589 = vmatpush1.msra.mxu0 0.0
        %6590 = vmatprep.subr.mxu0 0.0
        %6591 = vmatpush1.msra.mxu0 0.0
        %6592 = vmatprep.subr.mxu0 0.0
        %6593 = vmatpush1.msra.mxu0 0.0
        %6594 = vmatprep.mubr.f32.mxu0 0.0
        %6595 = vmatmul.mubr.f32.gmra.mrb[0].mxu0 %v5273
        %v6596 = vpop.f32.mrb[0].mxu0
        %v6597 = vadd.f32 %v5254, %v6596
        %v6598 = vpop.f32.mrb[0].mxu0
        %v6599 = vadd.f32 %v5254, %v6598
        %6600 = vmatprep.mubr.f32.mxu0 0.0
        %6601 = vmatmul.mubr.f32.gmra.mrb[0].mxu0 %v5276
        %v6602 = vpop.f32.mrb[0].mxu0
        %v6603 = vadd.f32 %v5259, %v6602
        %v6604 = vpop.f32.mrb[0].mxu0
        %v6605 = vadd.f32 %v5259, %v6604
        %6606 = vmatprep.mubr.f32.mxu0 0.0
        %6607 = vmatmul.mubr.f32.gmra.mrb[0].mxu0 %v5279
        %v6608 = vpop.f32.mrb[0].mxu0
        %v6609 = vadd.f32 %v5264, %v6608
        %v6610 = vpop.f32.mrb[0].mxu0
        %v6611 = vadd.f32 %v5264, %v6610
        %6612 = vmatprep.mubr.f32.mxu0 0.0
        %6613 = vmatmul.mubr.f32.gmra.mrb[0].mxu0 %v5282
        %v6614 = vpop.f32.mrb[0].mxu0
        %v6615 = vadd.f32 %v5269, %v6614
        %v6616 = vpop.f32.mrb[0].mxu0
        %v6617 = vadd.f32 %v5269, %v6616
        %6618 = vdwg.mxu0
        %6619 = vmatprep.subr.mxu0 %v5146
        %6620 = vmatpush1.msra.mxu0 %v5145
        %6621 = vmatprep.subr.mxu0 %v5178
        %6622 = vmatpush1.msra.mxu0 %v5177
        %6623 = vmatprep.subr.mxu0 %v5210
        %6624 = vmatpush1.msra.mxu0 %v5209
        %6625 = vmatprep.subr.mxu0 %v5242
        %6626 = vmatpush1.msra.mxu0 %v5241
        %6627 = vmatprep.subr.mxu0 0.0
        %6628 = vmatpush1.msra.mxu0 0.0
        %6629 = vmatprep.subr.mxu0 0.0
        %6630 = vmatpush1.msra.mxu0 0.0
        %6631 = vmatprep.subr.mxu0 0.0
        %6632 = vmatpush1.msra.mxu0 0.0
        %6633 = vmatprep.subr.mxu0 0.0
        %6634 = vmatpush1.msra.mxu0 0.0
        %6635 = vmatprep.subr.mxu0 0.0
        %6636 = vmatpush1.msra.mxu0 0.0
        %6637 = vmatprep.subr.mxu0 0.0
        %6638 = vmatpush1.msra.mxu0 0.0
        %6639 = vmatprep.subr.mxu0 0.0
        %6640 = vmatpush1.msra.mxu0 0.0
        %6641 = vmatprep.subr.mxu0 0.0
        %6642 = vmatpush1.msra.mxu0 0.0
        %6643 = vmatprep.subr.mxu0 0.0
        %6644 = vmatpush1.msra.mxu0 0.0
        %6645 = vmatprep.subr.mxu0 0.0
        %6646 = vmatpush1.msra.mxu0 0.0
        %6647 = vmatprep.subr.mxu0 0.0
        %6648 = vmatpush1.msra.mxu0 0.0
        %6649 = vmatprep.subr.mxu0 0.0
        %6650 = vmatpush1.msra.mxu0 0.0
        %6651 = vmatprep.subr.mxu0 0.0
        %6652 = vmatpush1.msra.mxu0 0.0
        %6653 = vmatprep.subr.mxu0 0.0
        %6654 = vmatpush1.msra.mxu0 0.0
        %6655 = vmatprep.subr.mxu0 0.0
        %6656 = vmatpush1.msra.mxu0 0.0
        %6657 = vmatprep.subr.mxu0 0.0
        %6658 = vmatpush1.msra.mxu0 0.0
        %6659 = vmatprep.subr.mxu0 0.0
        %6660 = vmatpush1.msra.mxu0 0.0
        %6661 = vmatprep.subr.mxu0 0.0
        %6662 = vmatpush1.msra.mxu0 0.0
        %6663 = vmatprep.subr.mxu0 0.0
        %6664 = vmatpush1.msra.mxu0 0.0
        %6665 = vmatprep.subr.mxu0 0.0
        %6666 = vmatpush1.msra.mxu0 0.0
        %6667 = vmatprep.subr.mxu0 0.0
        %6668 = vmatpush1.msra.mxu0 0.0
        %6669 = vmatprep.subr.mxu0 0.0
        %6670 = vmatpush1.msra.mxu0 0.0
        %6671 = vmatprep.subr.mxu0 0.0
        %6672 = vmatpush1.msra.mxu0 0.0
        %6673 = vmatprep.subr.mxu0 0.0
        %6674 = vmatpush1.msra.mxu0 0.0
        %6675 = vmatprep.subr.mxu0 0.0
        %6676 = vmatpush1.msra.mxu0 0.0
        %6677 = vmatprep.subr.mxu0 0.0
        %6678 = vmatpush1.msra.mxu0 0.0
        %6679 = vmatprep.subr.mxu0 0.0
        %6680 = vmatpush1.msra.mxu0 0.0
        %6681 = vmatprep.subr.mxu0 0.0
        %6682 = vmatpush1.msra.mxu0 0.0
        %6683 = vmatprep.mubr.f32.mxu0 0.0
        %6684 = vmatmul.mubr.f32.gmra.mrb[0].mxu0 %v5273
        %v6685 = vpop.f32.mrb[0].mxu0
        %v6686 = vadd.f32 %v5254, %v6685
        %v6687 = vpop.f32.mrb[0].mxu0
        %v6688 = vadd.f32 %v5254, %v6687
        %6689 = vmatprep.mubr.f32.mxu0 0.0
        %6690 = vmatmul.mubr.f32.gmra.mrb[0].mxu0 %v5276
        %v6691 = vpop.f32.mrb[0].mxu0
        %v6692 = vadd.f32 %v5259, %v6691
        %v6693 = vpop.f32.mrb[0].mxu0
        %v6694 = vadd.f32 %v5259, %v6693
        %6695 = vmatprep.mubr.f32.mxu0 0.0
        %6696 = vmatmul.mubr.f32.gmra.mrb[0].mxu0 %v5279
        %v6697 = vpop.f32.mrb[0].mxu0
        %v6698 = vadd.f32 %v5264, %v6697
        %v6699 = vpop.f32.mrb[0].mxu0
        %v6700 = vadd.f32 %v5264, %v6699
        %6701 = vmatprep.mubr.f32.mxu0 0.0
        %6702 = vmatmul.mubr.f32.gmra.mrb[0].mxu0 %v5282
        %v6703 = vpop.f32.mrb[0].mxu0
        %v6704 = vadd.f32 %v5269, %v6703
        %v6705 = vpop.f32.mrb[0].mxu0
        %v6706 = vadd.f32 %v5269, %v6705
        %6707 = vdwg.mxu0
        %v6708 = vmul.f32 %v5351, %v4475
        %v6709 = vmul.f32 %v5353, %v4476
        %v6710 = vmul.f32 %v5440, %v4477
        %v6711 = vmul.f32 %v5442, %v4478
        %v6712 = vmul.f32 %v5529, %v4479
        %v6713 = vmul.f32 %v5531, %v4480
        %v6714 = vmul.f32 %v5618, %v4481
        %v6715 = vmul.f32 %v5620, %v4482
        %v6716 = vmul.f32 %v5707, %v4483
        %v6717 = vmul.f32 %v5709, %v4484
        %v6718 = vmul.f32 %v5796, %v4485
        %v6719 = vmul.f32 %v5798, %v4486
        %v6720 = vmul.f32 %v5885, %v4487
        %v6721 = vmul.f32 %v5887, %v4488
        %v6722 = vmul.f32 %v5974, %v4489
        %v6723 = vmul.f32 %v5976, %v4490
        %v6724 = vmul.f32 %v6063, %v4491
        %v6725 = vmul.f32 %v6065, %v4492
        %v6726 = vmul.f32 %v6152, %v4493
        %v6727 = vmul.f32 %v6154, %v4494
        %v6728 = vmul.f32 %v6241, %v4495
        %v6729 = vmul.f32 %v6243, %v4496
        %v6730 = vmul.f32 %v6330, %v4497
        %v6731 = vmul.f32 %v6332, %v4498
        %v6732 = vmul.f32 %v6419, %v4499
        %v6733 = vmul.f32 %v6421, %v4500
        %v6734 = vmul.f32 %v6508, %v4501
        %v6735 = vmul.f32 %v6510, %v4502
        %v6736 = vmul.f32 %v6597, %v4503
        %v6737 = vmul.f32 %v6599, %v4504
        %v6738 = vmul.f32 %v6686, %v4505
        %v6739 = vmul.f32 %v6688, %v4506
        %v6740 = vmul.f32 %v5357, %v4507
        %v6741 = vmul.f32 %v5359, %v4508
        %v6742 = vmul.f32 %v5446, %v4509
        %v6743 = vmul.f32 %v5448, %v4510
        %v6744 = vmul.f32 %v5535, %v4511
        %v6745 = vmul.f32 %v5537, %v4512
        %v6746 = vmul.f32 %v5624, %v4513
        %v6747 = vmul.f32 %v5626, %v4514
        %v6748 = vmul.f32 %v5713, %v4515
        %v6749 = vmul.f32 %v5715, %v4516
        %v6750 = vmul.f32 %v5802, %v4517
        %v6751 = vmul.f32 %v5804, %v4518
        %v6752 = vmul.f32 %v5891, %v4519
        %v6753 = vmul.f32 %v5893, %v4520
        %v6754 = vmul.f32 %v5980, %v4521
        %v6755 = vmul.f32 %v5982, %v4522
        %v6756 = vmul.f32 %v6069, %v4523
        %v6757 = vmul.f32 %v6071, %v4524
        %v6758 = vmul.f32 %v6158, %v4525
        %v6759 = vmul.f32 %v6160, %v4526
        %v6760 = vmul.f32 %v6247, %v4527
        %v6761 = vmul.f32 %v6249, %v4528
        %v6762 = vmul.f32 %v6336, %v4529
        %v6763 = vmul.f32 %v6338, %v4530
        %v6764 = vmul.f32 %v6425, %v4531
        %v6765 = vmul.f32 %v6427, %v4532
        %v6766 = vmul.f32 %v6514, %v4533
        %v6767 = vmul.f32 %v6516, %v4534
        %v6768 = vmul.f32 %v6603, %v4535
        %v6769 = vmul.f32 %v6605, %v4536
        %v6770 = vmul.f32 %v6692, %v4537
        %v6771 = vmul.f32 %v6694, %v4538
        %v6772 = vmul.f32 %v5363, %v4539
        %v6773 = vmul.f32 %v5365, %v4540
        %v6774 = vmul.f32 %v5452, %v4541
        %v6775 = vmul.f32 %v5454, %v4542
        %v6776 = vmul.f32 %v5541, %v4543
        %v6777 = vmul.f32 %v5543, %v4544
        %v6778 = vmul.f32 %v5630, %v4545
        %v6779 = vmul.f32 %v5632, %v4546
        %v6780 = vmul.f32 %v5719, %v4547
        %v6781 = vmul.f32 %v5721, %v4548
        %v6782 = vmul.f32 %v5808, %v4549
        %v6783 = vmul.f32 %v5810, %v4550
        %v6784 = vmul.f32 %v5897, %v4551
        %v6785 = vmul.f32 %v5899, %v4552
        %v6786 = vmul.f32 %v5986, %v4553
        %v6787 = vmul.f32 %v5988, %v4554
        %v6788 = vmul.f32 %v6075, %v4555
        %v6789 = vmul.f32 %v6077, %v4556
        %v6790 = vmul.f32 %v6164, %v4557
        %v6791 = vmul.f32 %v6166, %v4558
        %v6792 = vmul.f32 %v6253, %v4559
        %v6793 = vmul.f32 %v6255, %v4560
        %v6794 = vmul.f32 %v6342, %v4561
        %v6795 = vmul.f32 %v6344, %v4562
        %v6796 = vmul.f32 %v6431, %v4563
        %v6797 = vmul.f32 %v6433, %v4564
        %v6798 = vmul.f32 %v6520, %v4565
        %v6799 = vmul.f32 %v6522, %v4566
        %v6800 = vmul.f32 %v6609, %v4567
        %v6801 = vmul.f32 %v6611, %v4568
        %v6802 = vmul.f32 %v6698, %v4569
        %v6803 = vmul.f32 %v6700, %v4570
        %v6804 = vmul.f32 %v5369, %v4571
        %v6805 = vmul.f32 %v5371, %v4572
        %v6806 = vmul.f32 %v5458, %v4573
        %v6807 = vmul.f32 %v5460, %v4574
        %v6808 = vmul.f32 %v5547, %v4575
        %v6809 = vmul.f32 %v5549, %v4576
        %v6810 = vmul.f32 %v5636, %v4577
        %v6811 = vmul.f32 %v5638, %v4578
        %v6812 = vmul.f32 %v5725, %v4579
        %v6813 = vmul.f32 %v5727, %v4580
        %v6814 = vmul.f32 %v5814, %v4581
        %v6815 = vmul.f32 %v5816, %v4582
        %v6816 = vmul.f32 %v5903, %v4583
        %v6817 = vmul.f32 %v5905, %v4584
        %v6818 = vmul.f32 %v5992, %v4585
        %v6819 = vmul.f32 %v5994, %v4586
        %v6820 = vmul.f32 %v6081, %v4587
        %v6821 = vmul.f32 %v6083, %v4588
        %v6822 = vmul.f32 %v6170, %v4589
        %v6823 = vmul.f32 %v6172, %v4590
        %v6824 = vmul.f32 %v6259, %v4591
        %v6825 = vmul.f32 %v6261, %v4592
        %v6826 = vmul.f32 %v6348, %v4593
        %v6827 = vmul.f32 %v6350, %v4594
        %v6828 = vmul.f32 %v6437, %v4595
        %v6829 = vmul.f32 %v6439, %v4596
        %v6830 = vmul.f32 %v6526, %v4597
        %v6831 = vmul.f32 %v6528, %v4598
        %v6832 = vmul.f32 %v6615, %v4599
        %v6833 = vmul.f32 %v6617, %v4600
        %v6834 = vmul.f32 %v6704, %v4601
        %v6835 = vmul.f32 %v6706, %v4602
        %v6836 = vadd.f32 %v4347, %v6708
        %v6837 = vadd.f32 %v4348, %v6709
        %v6838 = vadd.f32 %v4349, %v6710
        %v6839 = vadd.f32 %v4350, %v6711
        %v6840 = vadd.f32 %v4351, %v6712
        %v6841 = vadd.f32 %v4352, %v6713
        %v6842 = vadd.f32 %v4353, %v6714
        %v6843 = vadd.f32 %v4354, %v6715
        %v6844 = vadd.f32 %v4355, %v6716
        %v6845 = vadd.f32 %v4356, %v6717
        %v6846 = vadd.f32 %v4357, %v6718
        %v6847 = vadd.f32 %v4358, %v6719
        %v6848 = vadd.f32 %v4359, %v6720
        %v6849 = vadd.f32 %v4360, %v6721
        %v6850 = vadd.f32 %v4361, %v6722
        %v6851 = vadd.f32 %v4362, %v6723
        %v6852 = vadd.f32 %v4363, %v6724
        %v6853 = vadd.f32 %v4364, %v6725
        %v6854 = vadd.f32 %v4365, %v6726
        %v6855 = vadd.f32 %v4366, %v6727
        %v6856 = vadd.f32 %v4367, %v6728
        %v6857 = vadd.f32 %v4368, %v6729
        %v6858 = vadd.f32 %v4369, %v6730
        %v6859 = vadd.f32 %v4370, %v6731
        %v6860 = vadd.f32 %v4371, %v6732
        %v6861 = vadd.f32 %v4372, %v6733
        %v6862 = vadd.f32 %v4373, %v6734
        %v6863 = vadd.f32 %v4374, %v6735
        %v6864 = vadd.f32 %v4375, %v6736
        %v6865 = vadd.f32 %v4376, %v6737
        %v6866 = vadd.f32 %v4377, %v6738
        %v6867 = vadd.f32 %v4378, %v6739
        %v6868 = vadd.f32 %v4379, %v6740
        %v6869 = vadd.f32 %v4380, %v6741
        %v6870 = vadd.f32 %v4381, %v6742
        %v6871 = vadd.f32 %v4382, %v6743
        %v6872 = vadd.f32 %v4383, %v6744
        %v6873 = vadd.f32 %v4384, %v6745
        %v6874 = vadd.f32 %v4385, %v6746
        %v6875 = vadd.f32 %v4386, %v6747
        %v6876 = vadd.f32 %v4387, %v6748
        %v6877 = vadd.f32 %v4388, %v6749
        %v6878 = vadd.f32 %v4389, %v6750
        %v6879 = vadd.f32 %v4390, %v6751
        %v6880 = vadd.f32 %v4391, %v6752
        %v6881 = vadd.f32 %v4392, %v6753
        %v6882 = vadd.f32 %v4393, %v6754
        %v6883 = vadd.f32 %v4394, %v6755
        %v6884 = vadd.f32 %v4395, %v6756
        %v6885 = vadd.f32 %v4396, %v6757
        %v6886 = vadd.f32 %v4397, %v6758
        %v6887 = vadd.f32 %v4398, %v6759
        %v6888 = vadd.f32 %v4399, %v6760
        %v6889 = vadd.f32 %v4400, %v6761
        %v6890 = vadd.f32 %v4401, %v6762
        %v6891 = vadd.f32 %v4402, %v6763
        %v6892 = vadd.f32 %v4403, %v6764
        %v6893 = vadd.f32 %v4404, %v6765
        %v6894 = vadd.f32 %v4405, %v6766
        %v6895 = vadd.f32 %v4406, %v6767
        %v6896 = vadd.f32 %v4407, %v6768
        %v6897 = vadd.f32 %v4408, %v6769
        %v6898 = vadd.f32 %v4409, %v6770
        %v6899 = vadd.f32 %v4410, %v6771
        %v6900 = vadd.f32 %v4411, %v6772
        %v6901 = vadd.f32 %v4412, %v6773
        %v6902 = vadd.f32 %v4413, %v6774
        %v6903 = vadd.f32 %v4414, %v6775
        %v6904 = vadd.f32 %v4415, %v6776
        %v6905 = vadd.f32 %v4416, %v6777
        %v6906 = vadd.f32 %v4417, %v6778
        %v6907 = vadd.f32 %v4418, %v6779
        %v6908 = vadd.f32 %v4419, %v6780
        %v6909 = vadd.f32 %v4420, %v6781
        %v6910 = vadd.f32 %v4421, %v6782
        %v6911 = vadd.f32 %v4422, %v6783
        %v6912 = vadd.f32 %v4423, %v6784
        %v6913 = vadd.f32 %v4424, %v6785
        %v6914 = vadd.f32 %v4425, %v6786
        %v6915 = vadd.f32 %v4426, %v6787
        %v6916 = vadd.f32 %v4427, %v6788
        %v6917 = vadd.f32 %v4428, %v6789
        %v6918 = vadd.f32 %v4429, %v6790
        %v6919 = vadd.f32 %v4430, %v6791
        %v6920 = vadd.f32 %v4431, %v6792
        %v6921 = vadd.f32 %v4432, %v6793
        %v6922 = vadd.f32 %v4433, %v6794
        %v6923 = vadd.f32 %v4434, %v6795
        %v6924 = vadd.f32 %v4435, %v6796
        %v6925 = vadd.f32 %v4436, %v6797
        %v6926 = vadd.f32 %v4437, %v6798
        %v6927 = vadd.f32 %v4438, %v6799
        %v6928 = vadd.f32 %v4439, %v6800
        %v6929 = vadd.f32 %v4440, %v6801
        %v6930 = vadd.f32 %v4441, %v6802
        %v6931 = vadd.f32 %v4442, %v6803
        %v6932 = vadd.f32 %v4443, %v6804
        %v6933 = vadd.f32 %v4444, %v6805
        %v6934 = vadd.f32 %v4445, %v6806
        %v6935 = vadd.f32 %v4446, %v6807
        %v6936 = vadd.f32 %v4447, %v6808
        %v6937 = vadd.f32 %v4448, %v6809
        %v6938 = vadd.f32 %v4449, %v6810
        %v6939 = vadd.f32 %v4450, %v6811
        %v6940 = vadd.f32 %v4451, %v6812
        %v6941 = vadd.f32 %v4452, %v6813
        %v6942 = vadd.f32 %v4453, %v6814
        %v6943 = vadd.f32 %v4454, %v6815
        %v6944 = vadd.f32 %v4455, %v6816
        %v6945 = vadd.f32 %v4456, %v6817
        %v6946 = vadd.f32 %v4457, %v6818
        %v6947 = vadd.f32 %v4458, %v6819
        %v6948 = vadd.f32 %v4459, %v6820
        %v6949 = vadd.f32 %v4460, %v6821
        %v6950 = vadd.f32 %v4461, %v6822
        %v6951 = vadd.f32 %v4462, %v6823
        %v6952 = vadd.f32 %v4463, %v6824
        %v6953 = vadd.f32 %v4464, %v6825
        %v6954 = vadd.f32 %v4465, %v6826
        %v6955 = vadd.f32 %v4466, %v6827
        %v6956 = vadd.f32 %v4467, %v6828
        %v6957 = vadd.f32 %v4468, %v6829
        %v6958 = vadd.f32 %v4469, %v6830
        %v6959 = vadd.f32 %v4470, %v6831
        %v6960 = vadd.f32 %v4471, %v6832
        %v6961 = vadd.f32 %v4472, %v6833
        %v6962 = vadd.f32 %v4473, %v6834
        %v6963 = vadd.f32 %v4474, %v6835
        %v6964 = vtanh.pop %v6836
        %v6965 = vtanh.pop %v6837
        %v6966 = vtanh.pop %v6838
        %v6967 = vtanh.pop %v6839
        %v6968 = vtanh.pop %v6840
        %v6969 = vtanh.pop %v6841
        %v6970 = vtanh.pop %v6842
        %v6971 = vtanh.pop %v6843
        %v6972 = vtanh.pop %v6844
        %v6973 = vtanh.pop %v6845
        %v6974 = vtanh.pop %v6846
        %v6975 = vtanh.pop %v6847
        %v6976 = vtanh.pop %v6848
        %v6977 = vtanh.pop %v6849
        %v6978 = vtanh.pop %v6850
        %v6979 = vtanh.pop %v6851
        %v6980 = vtanh.pop %v6852
        %v6981 = vtanh.pop %v6853
        %v6982 = vtanh.pop %v6854
        %v6983 = vtanh.pop %v6855
        %v6984 = vtanh.pop %v6856
        %v6985 = vtanh.pop %v6857
        %v6986 = vtanh.pop %v6858
        %v6987 = vtanh.pop %v6859
        %v6988 = vtanh.pop %v6860
        %v6989 = vtanh.pop %v6861
        %v6990 = vtanh.pop %v6862
        %v6991 = vtanh.pop %v6863
        %v6992 = vtanh.pop %v6864
        %v6993 = vtanh.pop %v6865
        %v6994 = vtanh.pop %v6866
        %v6995 = vtanh.pop %v6867
        %v6996 = vtanh.pop %v6868
        %v6997 = vtanh.pop %v6869
        %v6998 = vtanh.pop %v6870
        %v6999 = vtanh.pop %v6871
        %v7000 = vtanh.pop %v6872
        %v7001 = vtanh.pop %v6873
        %v7002 = vtanh.pop %v6874
        %v7003 = vtanh.pop %v6875
        %v7004 = vtanh.pop %v6876
        %v7005 = vtanh.pop %v6877
        %v7006 = vtanh.pop %v6878
        %v7007 = vtanh.pop %v6879
        %v7008 = vtanh.pop %v6880
        %v7009 = vtanh.pop %v6881
        %v7010 = vtanh.pop %v6882
        %v7011 = vtanh.pop %v6883
        %v7012 = vtanh.pop %v6884
        %v7013 = vtanh.pop %v6885
        %v7014 = vtanh.pop %v6886
        %v7015 = vtanh.pop %v6887
        %v7016 = vtanh.pop %v6888
        %v7017 = vtanh.pop %v6889
        %v7018 = vtanh.pop %v6890
        %v7019 = vtanh.pop %v6891
        %v7020 = vtanh.pop %v6892
        %v7021 = vtanh.pop %v6893
        %v7022 = vtanh.pop %v6894
        %v7023 = vtanh.pop %v6895
        %v7024 = vtanh.pop %v6896
        %v7025 = vtanh.pop %v6897
        %v7026 = vtanh.pop %v6898
        %v7027 = vtanh.pop %v6899
        %v7028 = vtanh.pop %v6900
        %v7029 = vtanh.pop %v6901
        %v7030 = vtanh.pop %v6902
        %v7031 = vtanh.pop %v6903
        %v7032 = vtanh.pop %v6904
        %v7033 = vtanh.pop %v6905
        %v7034 = vtanh.pop %v6906
        %v7035 = vtanh.pop %v6907
        %v7036 = vtanh.pop %v6908
        %v7037 = vtanh.pop %v6909
        %v7038 = vtanh.pop %v6910
        %v7039 = vtanh.pop %v6911
        %v7040 = vtanh.pop %v6912
        %v7041 = vtanh.pop %v6913
        %v7042 = vtanh.pop %v6914
        %v7043 = vtanh.pop %v6915
        %v7044 = vtanh.pop %v6916
        %v7045 = vtanh.pop %v6917
        %v7046 = vtanh.pop %v6918
        %v7047 = vtanh.pop %v6919
        %v7048 = vtanh.pop %v6920
        %v7049 = vtanh.pop %v6921
        %v7050 = vtanh.pop %v6922
        %v7051 = vtanh.pop %v6923
        %v7052 = vtanh.pop %v6924
        %v7053 = vtanh.pop %v6925
        %v7054 = vtanh.pop %v6926
        %v7055 = vtanh.pop %v6927
        %v7056 = vtanh.pop %v6928
        %v7057 = vtanh.pop %v6929
        %v7058 = vtanh.pop %v6930
        %v7059 = vtanh.pop %v6931
        %v7060 = vtanh.pop %v6932
        %v7061 = vtanh.pop %v6933
        %v7062 = vtanh.pop %v6934
        %v7063 = vtanh.pop %v6935
        %v7064 = vtanh.pop %v6936
        %v7065 = vtanh.pop %v6937
        %v7066 = vtanh.pop %v6938
        %v7067 = vtanh.pop %v6939
        %v7068 = vtanh.pop %v6940
        %v7069 = vtanh.pop %v6941
        %v7070 = vtanh.pop %v6942
        %v7071 = vtanh.pop %v6943
        %v7072 = vtanh.pop %v6944
        %v7073 = vtanh.pop %v6945
        %v7074 = vtanh.pop %v6946
        %v7075 = vtanh.pop %v6947
        %v7076 = vtanh.pop %v6948
        %v7077 = vtanh.pop %v6949
        %v7078 = vtanh.pop %v6950
        %v7079 = vtanh.pop %v6951
        %v7080 = vtanh.pop %v6952
        %v7081 = vtanh.pop %v6953
        %v7082 = vtanh.pop %v6954
        %v7083 = vtanh.pop %v6955
        %v7084 = vtanh.pop %v6956
        %v7085 = vtanh.pop %v6957
        %v7086 = vtanh.pop %v6958
        %v7087 = vtanh.pop %v6959
        %v7088 = vtanh.pop %v6960
        %v7089 = vtanh.pop %v6961
        %v7090 = vtanh.pop %v6962
        %v7091 = vtanh.pop %v6963
        %v7092 = vmul.f32 %v6964, %v4475
        %v7093 = vmul.f32 %v6965, %v4476
        %v7094 = vmul.f32 %v6966, %v4477
        %v7095 = vmul.f32 %v6967, %v4478
        %v7096 = vmul.f32 %v6968, %v4479
        %v7097 = vmul.f32 %v6969, %v4480
        %v7098 = vmul.f32 %v6970, %v4481
        %v7099 = vmul.f32 %v6971, %v4482
        %v7100 = vmul.f32 %v6972, %v4483
        %v7101 = vmul.f32 %v6973, %v4484
        %v7102 = vmul.f32 %v6974, %v4485
        %v7103 = vmul.f32 %v6975, %v4486
        %v7104 = vmul.f32 %v6976, %v4487
        %v7105 = vmul.f32 %v6977, %v4488
        %v7106 = vmul.f32 %v6978, %v4489
        %v7107 = vmul.f32 %v6979, %v4490
        %v7108 = vmul.f32 %v6980, %v4491
        %v7109 = vmul.f32 %v6981, %v4492
        %v7110 = vmul.f32 %v6982, %v4493
        %v7111 = vmul.f32 %v6983, %v4494
        %v7112 = vmul.f32 %v6984, %v4495
        %v7113 = vmul.f32 %v6985, %v4496
        %v7114 = vmul.f32 %v6986, %v4497
        %v7115 = vmul.f32 %v6987, %v4498
        %v7116 = vmul.f32 %v6988, %v4499
        %v7117 = vmul.f32 %v6989, %v4500
        %v7118 = vmul.f32 %v6990, %v4501
        %v7119 = vmul.f32 %v6991, %v4502
        %v7120 = vmul.f32 %v6992, %v4503
        %v7121 = vmul.f32 %v6993, %v4504
        %v7122 = vmul.f32 %v6994, %v4505
        %v7123 = vmul.f32 %v6995, %v4506
        %v7124 = vmul.f32 %v6996, %v4507
        %v7125 = vmul.f32 %v6997, %v4508
        %v7126 = vmul.f32 %v6998, %v4509
        %v7127 = vmul.f32 %v6999, %v4510
        %v7128 = vmul.f32 %v7000, %v4511
        %v7129 = vmul.f32 %v7001, %v4512
        %v7130 = vmul.f32 %v7002, %v4513
        %v7131 = vmul.f32 %v7003, %v4514
        %v7132 = vmul.f32 %v7004, %v4515
        %v7133 = vmul.f32 %v7005, %v4516
        %v7134 = vmul.f32 %v7006, %v4517
        %v7135 = vmul.f32 %v7007, %v4518
        %v7136 = vmul.f32 %v7008, %v4519
        %v7137 = vmul.f32 %v7009, %v4520
        %v7138 = vmul.f32 %v7010, %v4521
        %v7139 = vmul.f32 %v7011, %v4522
        %v7140 = vmul.f32 %v7012, %v4523
        %v7141 = vmul.f32 %v7013, %v4524
        %v7142 = vmul.f32 %v7014, %v4525
        %v7143 = vmul.f32 %v7015, %v4526
        %v7144 = vmul.f32 %v7016, %v4527
        %v7145 = vmul.f32 %v7017, %v4528
        %v7146 = vmul.f32 %v7018, %v4529
        %v7147 = vmul.f32 %v7019, %v4530
        %v7148 = vmul.f32 %v7020, %v4531
        %v7149 = vmul.f32 %v7021, %v4532
        %v7150 = vmul.f32 %v7022, %v4533
        %v7151 = vmul.f32 %v7023, %v4534
        %v7152 = vmul.f32 %v7024, %v4535
        %v7153 = vmul.f32 %v7025, %v4536
        %v7154 = vmul.f32 %v7026, %v4537
        %v7155 = vmul.f32 %v7027, %v4538
        %v7156 = vmul.f32 %v7028, %v4539
        %v7157 = vmul.f32 %v7029, %v4540
        %v7158 = vmul.f32 %v7030, %v4541
        %v7159 = vmul.f32 %v7031, %v4542
        %v7160 = vmul.f32 %v7032, %v4543
        %v7161 = vmul.f32 %v7033, %v4544
        %v7162 = vmul.f32 %v7034, %v4545
        %v7163 = vmul.f32 %v7035, %v4546
        %v7164 = vmul.f32 %v7036, %v4547
        %v7165 = vmul.f32 %v7037, %v4548
        %v7166 = vmul.f32 %v7038, %v4549
        %v7167 = vmul.f32 %v7039, %v4550
        %v7168 = vmul.f32 %v7040, %v4551
        %v7169 = vmul.f32 %v7041, %v4552
        %v7170 = vmul.f32 %v7042, %v4553
        %v7171 = vmul.f32 %v7043, %v4554
        %v7172 = vmul.f32 %v7044, %v4555
        %v7173 = vmul.f32 %v7045, %v4556
        %v7174 = vmul.f32 %v7046, %v4557
        %v7175 = vmul.f32 %v7047, %v4558
        %v7176 = vmul.f32 %v7048, %v4559
        %v7177 = vmul.f32 %v7049, %v4560
        %v7178 = vmul.f32 %v7050, %v4561
        %v7179 = vmul.f32 %v7051, %v4562
        %v7180 = vmul.f32 %v7052, %v4563
        %v7181 = vmul.f32 %v7053, %v4564
        %v7182 = vmul.f32 %v7054, %v4565
        %v7183 = vmul.f32 %v7055, %v4566
        %v7184 = vmul.f32 %v7056, %v4567
        %v7185 = vmul.f32 %v7057, %v4568
        %v7186 = vmul.f32 %v7058, %v4569
        %v7187 = vmul.f32 %v7059, %v4570
        %v7188 = vmul.f32 %v7060, %v4571
        %v7189 = vmul.f32 %v7061, %v4572
        %v7190 = vmul.f32 %v7062, %v4573
        %v7191 = vmul.f32 %v7063, %v4574
        %v7192 = vmul.f32 %v7064, %v4575
        %v7193 = vmul.f32 %v7065, %v4576
        %v7194 = vmul.f32 %v7066, %v4577
        %v7195 = vmul.f32 %v7067, %v4578
        %v7196 = vmul.f32 %v7068, %v4579
        %v7197 = vmul.f32 %v7069, %v4580
        %v7198 = vmul.f32 %v7070, %v4581
        %v7199 = vmul.f32 %v7071, %v4582
        %v7200 = vmul.f32 %v7072, %v4583
        %v7201 = vmul.f32 %v7073, %v4584
        %v7202 = vmul.f32 %v7074, %v4585
        %v7203 = vmul.f32 %v7075, %v4586
        %v7204 = vmul.f32 %v7076, %v4587
        %v7205 = vmul.f32 %v7077, %v4588
        %v7206 = vmul.f32 %v7078, %v4589
        %v7207 = vmul.f32 %v7079, %v4590
        %v7208 = vmul.f32 %v7080, %v4591
        %v7209 = vmul.f32 %v7081, %v4592
        %v7210 = vmul.f32 %v7082, %v4593
        %v7211 = vmul.f32 %v7083, %v4594
        %v7212 = vmul.f32 %v7084, %v4595
        %v7213 = vmul.f32 %v7085, %v4596
        %v7214 = vmul.f32 %v7086, %v4597
        %v7215 = vmul.f32 %v7087, %v4598
        %v7216 = vmul.f32 %v7088, %v4599
        %v7217 = vmul.f32 %v7089, %v4600
        %v7218 = vmul.f32 %v7090, %v4601
        %v7219 = vmul.f32 %v7091, %v4602
        %v7220 = vadd.f32 %v4347, %v7092
        %v7221 = vadd.f32 %v4348, %v7093
        %v7222 = vadd.f32 %v4349, %v7094
        %v7223 = vadd.f32 %v4350, %v7095
        %v7224 = vadd.f32 %v4351, %v7096
        %v7225 = vadd.f32 %v4352, %v7097
        %v7226 = vadd.f32 %v4353, %v7098
        %v7227 = vadd.f32 %v4354, %v7099
        %v7228 = vadd.f32 %v4355, %v7100
        %v7229 = vadd.f32 %v4356, %v7101
        %v7230 = vadd.f32 %v4357, %v7102
        %v7231 = vadd.f32 %v4358, %v7103
        %v7232 = vadd.f32 %v4359, %v7104
        %v7233 = vadd.f32 %v4360, %v7105
        %v7234 = vadd.f32 %v4361, %v7106
        %v7235 = vadd.f32 %v4362, %v7107
        %v7236 = vadd.f32 %v4363, %v7108
        %v7237 = vadd.f32 %v4364, %v7109
        %v7238 = vadd.f32 %v4365, %v7110
        %v7239 = vadd.f32 %v4366, %v7111
        %v7240 = vadd.f32 %v4367, %v7112
        %v7241 = vadd.f32 %v4368, %v7113
        %v7242 = vadd.f32 %v4369, %v7114
        %v7243 = vadd.f32 %v4370, %v7115
        %v7244 = vadd.f32 %v4371, %v7116
        %v7245 = vadd.f32 %v4372, %v7117
        %v7246 = vadd.f32 %v4373, %v7118
        %v7247 = vadd.f32 %v4374, %v7119
        %v7248 = vadd.f32 %v4375, %v7120
        %v7249 = vadd.f32 %v4376, %v7121
        %v7250 = vadd.f32 %v4377, %v7122
        %v7251 = vadd.f32 %v4378, %v7123
        %v7252 = vadd.f32 %v4379, %v7124
        %v7253 = vadd.f32 %v4380, %v7125
        %v7254 = vadd.f32 %v4381, %v7126
        %v7255 = vadd.f32 %v4382, %v7127
        %v7256 = vadd.f32 %v4383, %v7128
        %v7257 = vadd.f32 %v4384, %v7129
        %v7258 = vadd.f32 %v4385, %v7130
        %v7259 = vadd.f32 %v4386, %v7131
        %v7260 = vadd.f32 %v4387, %v7132
        %v7261 = vadd.f32 %v4388, %v7133
        %v7262 = vadd.f32 %v4389, %v7134
        %v7263 = vadd.f32 %v4390, %v7135
        %v7264 = vadd.f32 %v4391, %v7136
        %v7265 = vadd.f32 %v4392, %v7137
        %v7266 = vadd.f32 %v4393, %v7138
        %v7267 = vadd.f32 %v4394, %v7139
        %v7268 = vadd.f32 %v4395, %v7140
        %v7269 = vadd.f32 %v4396, %v7141
        %v7270 = vadd.f32 %v4397, %v7142
        %v7271 = vadd.f32 %v4398, %v7143
        %v7272 = vadd.f32 %v4399, %v7144
        %v7273 = vadd.f32 %v4400, %v7145
        %v7274 = vadd.f32 %v4401, %v7146
        %v7275 = vadd.f32 %v4402, %v7147
        %v7276 = vadd.f32 %v4403, %v7148
        %v7277 = vadd.f32 %v4404, %v7149
        %v7278 = vadd.f32 %v4405, %v7150
        %v7279 = vadd.f32 %v4406, %v7151
        %v7280 = vadd.f32 %v4407, %v7152
        %v7281 = vadd.f32 %v4408, %v7153
        %v7282 = vadd.f32 %v4409, %v7154
        %v7283 = vadd.f32 %v4410, %v7155
        %v7284 = vadd.f32 %v4411, %v7156
        %v7285 = vadd.f32 %v4412, %v7157
        %v7286 = vadd.f32 %v4413, %v7158
        %v7287 = vadd.f32 %v4414, %v7159
        %v7288 = vadd.f32 %v4415, %v7160
        %v7289 = vadd.f32 %v4416, %v7161
        %v7290 = vadd.f32 %v4417, %v7162
        %v7291 = vadd.f32 %v4418, %v7163
        %v7292 = vadd.f32 %v4419, %v7164
        %v7293 = vadd.f32 %v4420, %v7165
        %v7294 = vadd.f32 %v4421, %v7166
        %v7295 = vadd.f32 %v4422, %v7167
        %v7296 = vadd.f32 %v4423, %v7168
        %v7297 = vadd.f32 %v4424, %v7169
        %v7298 = vadd.f32 %v4425, %v7170
        %v7299 = vadd.f32 %v4426, %v7171
        %v7300 = vadd.f32 %v4427, %v7172
        %v7301 = vadd.f32 %v4428, %v7173
        %v7302 = vadd.f32 %v4429, %v7174
        %v7303 = vadd.f32 %v4430, %v7175
        %v7304 = vadd.f32 %v4431, %v7176
        %v7305 = vadd.f32 %v4432, %v7177
        %v7306 = vadd.f32 %v4433, %v7178
        %v7307 = vadd.f32 %v4434, %v7179
        %v7308 = vadd.f32 %v4435, %v7180
        %v7309 = vadd.f32 %v4436, %v7181
        %v7310 = vadd.f32 %v4437, %v7182
        %v7311 = vadd.f32 %v4438, %v7183
        %v7312 = vadd.f32 %v4439, %v7184
        %v7313 = vadd.f32 %v4440, %v7185
        %v7314 = vadd.f32 %v4441, %v7186
        %v7315 = vadd.f32 %v4442, %v7187
        %v7316 = vadd.f32 %v4443, %v7188
        %v7317 = vadd.f32 %v4444, %v7189
        %v7318 = vadd.f32 %v4445, %v7190
        %v7319 = vadd.f32 %v4446, %v7191
        %v7320 = vadd.f32 %v4447, %v7192
        %v7321 = vadd.f32 %v4448, %v7193
        %v7322 = vadd.f32 %v4449, %v7194
        %v7323 = vadd.f32 %v4450, %v7195
        %v7324 = vadd.f32 %v4451, %v7196
        %v7325 = vadd.f32 %v4452, %v7197
        %v7326 = vadd.f32 %v4453, %v7198
        %v7327 = vadd.f32 %v4454, %v7199
        %v7328 = vadd.f32 %v4455, %v7200
        %v7329 = vadd.f32 %v4456, %v7201
        %v7330 = vadd.f32 %v4457, %v7202
        %v7331 = vadd.f32 %v4458, %v7203
        %v7332 = vadd.f32 %v4459, %v7204
        %v7333 = vadd.f32 %v4460, %v7205
        %v7334 = vadd.f32 %v4461, %v7206
        %v7335 = vadd.f32 %v4462, %v7207
        %v7336 = vadd.f32 %v4463, %v7208
        %v7337 = vadd.f32 %v4464, %v7209
        %v7338 = vadd.f32 %v4465, %v7210
        %v7339 = vadd.f32 %v4466, %v7211
        %v7340 = vadd.f32 %v4467, %v7212
        %v7341 = vadd.f32 %v4468, %v7213
        %v7342 = vadd.f32 %v4469, %v7214
        %v7343 = vadd.f32 %v4470, %v7215
        %v7344 = vadd.f32 %v4471, %v7216
        %v7345 = vadd.f32 %v4472, %v7217
        %v7346 = vadd.f32 %v4473, %v7218
        %v7347 = vadd.f32 %v4474, %v7219
        %v7348 = vld [vmem:[%s5] sm:$0xff]
        %v7349 = vld [vmem:[%s5 + $0x8] sm:$0xff]
        %v7350 = vld [vmem:[%s5 + $0x10] sm:$0xff]
        %v7351 = vld [vmem:[%s5 + $0x18] sm:$0xff]
        %v7352 = vld [vmem:[%s6] sm:$0xff]
        %v7353 = vld [vmem:[%s6 + $0x8] sm:$0xff]
        %v7354 = vld [vmem:[%s6 + $0x10] sm:$0xff]
        %v7355 = vld [vmem:[%s6 + $0x18] sm:$0xff]
        %7357 = vset.pattern.permute.xlu0 0
        %7358 = vperm.xlu0 %7357, %v7352
        %v7359 = vpop.permute.xlu0 %7358
        %7362 = vset.pattern.permute.xlu0 0
        %7363 = vperm.xlu0 %7362, %v7353
        %v7364 = vpop.permute.xlu0 %7363
        %7367 = vset.pattern.permute.xlu0 0
        %7368 = vperm.xlu0 %7367, %v7354
        %v7369 = vpop.permute.xlu0 %7368
        %7372 = vset.pattern.permute.xlu0 0
        %7373 = vperm.xlu0 %7372, %v7355
        %v7374 = vpop.permute.xlu0 %7373
        %v7377 = vsel %vm5271, %v7348, 0
        %v7380 = vsel %vm5271, %v7349, 0
        %v7383 = vsel %vm5271, %v7350, 0
        %v7386 = vsel %vm5271, %v7351, 0
        %7388 = vmatprep.subr.mxu0 %v7221
        %7389 = vmatpush1.msra.mxu0 %v7220
        %7390 = vmatprep.subr.mxu0 %v7253
        %7391 = vmatpush1.msra.mxu0 %v7252
        %7392 = vmatprep.subr.mxu0 %v7285
        %7393 = vmatpush1.msra.mxu0 %v7284
        %7394 = vmatprep.subr.mxu0 %v7317
        %7395 = vmatpush1.msra.mxu0 %v7316
        %7396 = vmatprep.subr.mxu0 0.0
        %7397 = vmatpush1.msra.mxu0 0.0
        %7398 = vmatprep.subr.mxu0 0.0
        %7399 = vmatpush1.msra.mxu0 0.0
        %7400 = vmatprep.subr.mxu0 0.0
        %7401 = vmatpush1.msra.mxu0 0.0
        %7402 = vmatprep.subr.mxu0 0.0
        %7403 = vmatpush1.msra.mxu0 0.0
        %7404 = vmatprep.subr.mxu0 0.0
        %7405 = vmatpush1.msra.mxu0 0.0
        %7406 = vmatprep.subr.mxu0 0.0
        %7407 = vmatpush1.msra.mxu0 0.0
        %7408 = vmatprep.subr.mxu0 0.0
        %7409 = vmatpush1.msra.mxu0 0.0
        %7410 = vmatprep.subr.mxu0 0.0
        %7411 = vmatpush1.msra.mxu0 0.0
        %7412 = vmatprep.subr.mxu0 0.0
        %7413 = vmatpush1.msra.mxu0 0.0
        %7414 = vmatprep.subr.mxu0 0.0
        %7415 = vmatpush1.msra.mxu0 0.0
        %7416 = vmatprep.subr.mxu0 0.0
        %7417 = vmatpush1.msra.mxu0 0.0
        %7418 = vmatprep.subr.mxu0 0.0
        %7419 = vmatpush1.msra.mxu0 0.0
        %7420 = vmatprep.subr.mxu0 0.0
        %7421 = vmatpush1.msra.mxu0 0.0
        %7422 = vmatprep.subr.mxu0 0.0
        %7423 = vmatpush1.msra.mxu0 0.0
        %7424 = vmatprep.subr.mxu0 0.0
        %7425 = vmatpush1.msra.mxu0 0.0
        %7426 = vmatprep.subr.mxu0 0.0
        %7427 = vmatpush1.msra.mxu0 0.0
        %7428 = vmatprep.subr.mxu0 0.0
        %7429 = vmatpush1.msra.mxu0 0.0
        %7430 = vmatprep.subr.mxu0 0.0
        %7431 = vmatpush1.msra.mxu0 0.0
        %7432 = vmatprep.subr.mxu0 0.0
        %7433 = vmatpush1.msra.mxu0 0.0
        %7434 = vmatprep.subr.mxu0 0.0
        %7435 = vmatpush1.msra.mxu0 0.0
        %7436 = vmatprep.subr.mxu0 0.0
        %7437 = vmatpush1.msra.mxu0 0.0
        %7438 = vmatprep.subr.mxu0 0.0
        %7439 = vmatpush1.msra.mxu0 0.0
        %7440 = vmatprep.subr.mxu0 0.0
        %7441 = vmatpush1.msra.mxu0 0.0
        %7442 = vmatprep.subr.mxu0 0.0
        %7443 = vmatpush1.msra.mxu0 0.0
        %7444 = vmatprep.subr.mxu0 0.0
        %7445 = vmatpush1.msra.mxu0 0.0
        %7446 = vmatprep.subr.mxu0 0.0
        %7447 = vmatpush1.msra.mxu0 0.0
        %7448 = vmatprep.subr.mxu0 0.0
        %7449 = vmatpush1.msra.mxu0 0.0
        %7450 = vmatprep.subr.mxu0 0.0
        %7451 = vmatpush1.msra.mxu0 0.0
        %7452 = vmatprep.mubr.f32.mxu0 0.0
        %7453 = vmatmul.mubr.f32.gmra.mrb[0].mxu0 %v7377
        %v7454 = vpop.f32.mrb[0].mxu0
        %v7455 = vadd.f32 %v7359, %v7454
        %v7456 = vpop.f32.mrb[0].mxu0
        %v7457 = vadd.f32 %v7359, %v7456
        %7458 = vmatprep.mubr.f32.mxu0 0.0
        %7459 = vmatmul.mubr.f32.gmra.mrb[0].mxu0 %v7380
        %v7460 = vpop.f32.mrb[0].mxu0
        %v7461 = vadd.f32 %v7364, %v7460
        %v7462 = vpop.f32.mrb[0].mxu0
        %v7463 = vadd.f32 %v7364, %v7462
        %7464 = vmatprep.mubr.f32.mxu0 0.0
        %7465 = vmatmul.mubr.f32.gmra.mrb[0].mxu0 %v7383
        %v7466 = vpop.f32.mrb[0].mxu0
        %v7467 = vadd.f32 %v7369, %v7466
        %v7468 = vpop.f32.mrb[0].mxu0
        %v7469 = vadd.f32 %v7369, %v7468
        %7470 = vmatprep.mubr.f32.mxu0 0.0
        %7471 = vmatmul.mubr.f32.gmra.mrb[0].mxu0 %v7386
        %v7472 = vpop.f32.mrb[0].mxu0
        %v7473 = vadd.f32 %v7374, %v7472
        %v7474 = vpop.f32.mrb[0].mxu0
        %v7475 = vadd.f32 %v7374, %v7474
        %7476 = vdwg.mxu0
        %7477 = vmatprep.subr.mxu0 %v7223
        %7478 = vmatpush1.msra.mxu0 %v7222
        %7479 = vmatprep.subr.mxu0 %v7255
        %7480 = vmatpush1.msra.mxu0 %v7254
        %7481 = vmatprep.subr.mxu0 %v7287
        %7482 = vmatpush1.msra.mxu0 %v7286
        %7483 = vmatprep.subr.mxu0 %v7319
        %7484 = vmatpush1.msra.mxu0 %v7318
        %7485 = vmatprep.subr.mxu0 0.0
        %7486 = vmatpush1.msra.mxu0 0.0
        %7487 = vmatprep.subr.mxu0 0.0
        %7488 = vmatpush1.msra.mxu0 0.0
        %7489 = vmatprep.subr.mxu0 0.0
        %7490 = vmatpush1.msra.mxu0 0.0
        %7491 = vmatprep.subr.mxu0 0.0
        %7492 = vmatpush1.msra.mxu0 0.0
        %7493 = vmatprep.subr.mxu0 0.0
        %7494 = vmatpush1.msra.mxu0 0.0
        %7495 = vmatprep.subr.mxu0 0.0
        %7496 = vmatpush1.msra.mxu0 0.0
        %7497 = vmatprep.subr.mxu0 0.0
        %7498 = vmatpush1.msra.mxu0 0.0
        %7499 = vmatprep.subr.mxu0 0.0
        %7500 = vmatpush1.msra.mxu0 0.0
        %7501 = vmatprep.subr.mxu0 0.0
        %7502 = vmatpush1.msra.mxu0 0.0
        %7503 = vmatprep.subr.mxu0 0.0
        %7504 = vmatpush1.msra.mxu0 0.0
        %7505 = vmatprep.subr.mxu0 0.0
        %7506 = vmatpush1.msra.mxu0 0.0
        %7507 = vmatprep.subr.mxu0 0.0
        %7508 = vmatpush1.msra.mxu0 0.0
        %7509 = vmatprep.subr.mxu0 0.0
        %7510 = vmatpush1.msra.mxu0 0.0
        %7511 = vmatprep.subr.mxu0 0.0
        %7512 = vmatpush1.msra.mxu0 0.0
        %7513 = vmatprep.subr.mxu0 0.0
        %7514 = vmatpush1.msra.mxu0 0.0
        %7515 = vmatprep.subr.mxu0 0.0
        %7516 = vmatpush1.msra.mxu0 0.0
        %7517 = vmatprep.subr.mxu0 0.0
        %7518 = vmatpush1.msra.mxu0 0.0
        %7519 = vmatprep.subr.mxu0 0.0
        %7520 = vmatpush1.msra.mxu0 0.0
        %7521 = vmatprep.subr.mxu0 0.0
        %7522 = vmatpush1.msra.mxu0 0.0
        %7523 = vmatprep.subr.mxu0 0.0
        %7524 = vmatpush1.msra.mxu0 0.0
        %7525 = vmatprep.subr.mxu0 0.0
        %7526 = vmatpush1.msra.mxu0 0.0
        %7527 = vmatprep.subr.mxu0 0.0
        %7528 = vmatpush1.msra.mxu0 0.0
        %7529 = vmatprep.subr.mxu0 0.0
        %7530 = vmatpush1.msra.mxu0 0.0
        %7531 = vmatprep.subr.mxu0 0.0
        %7532 = vmatpush1.msra.mxu0 0.0
        %7533 = vmatprep.subr.mxu0 0.0
        %7534 = vmatpush1.msra.mxu0 0.0
        %7535 = vmatprep.subr.mxu0 0.0
        %7536 = vmatpush1.msra.mxu0 0.0
        %7537 = vmatprep.subr.mxu0 0.0
        %7538 = vmatpush1.msra.mxu0 0.0
        %7539 = vmatprep.subr.mxu0 0.0
        %7540 = vmatpush1.msra.mxu0 0.0
        %7541 = vmatprep.mubr.f32.mxu0 0.0
        %7542 = vmatmul.mubr.f32.gmra.mrb[0].mxu0 %v7377
        %v7543 = vpop.f32.mrb[0].mxu0
        %v7544 = vadd.f32 %v7359, %v7543
        %v7545 = vpop.f32.mrb[0].mxu0
        %v7546 = vadd.f32 %v7359, %v7545
        %7547 = vmatprep.mubr.f32.mxu0 0.0
        %7548 = vmatmul.mubr.f32.gmra.mrb[0].mxu0 %v7380
        %v7549 = vpop.f32.mrb[0].mxu0
        %v7550 = vadd.f32 %v7364, %v7549
        %v7551 = vpop.f32.mrb[0].mxu0
        %v7552 = vadd.f32 %v7364, %v7551
        %7553 = vmatprep.mubr.f32.mxu0 0.0
        %7554 = vmatmul.mubr.f32.gmra.mrb[0].mxu0 %v7383
        %v7555 = vpop.f32.mrb[0].mxu0
        %v7556 = vadd.f32 %v7369, %v7555
        %v7557 = vpop.f32.mrb[0].mxu0
        %v7558 = vadd.f32 %v7369, %v7557
        %7559 = vmatprep.mubr.f32.mxu0 0.0
        %7560 = vmatmul.mubr.f32.gmra.mrb[0].mxu0 %v7386
        %v7561 = vpop.f32.mrb[0].mxu0
        %v7562 = vadd.f32 %v7374, %v7561
        %v7563 = vpop.f32.mrb[0].mxu0
        %v7564 = vadd.f32 %v7374, %v7563
        %7565 = vdwg.mxu0
        %7566 = vmatprep.subr.mxu0 %v7225
        %7567 = vmatpush1.msra.mxu0 %v7224
        %7568 = vmatprep.subr.mxu0 %v7257
        %7569 = vmatpush1.msra.mxu0 %v7256
        %7570 = vmatprep.subr.mxu0 %v7289
        %7571 = vmatpush1.msra.mxu0 %v7288
        %7572 = vmatprep.subr.mxu0 %v7321
        %7573 = vmatpush1.msra.mxu0 %v7320
        %7574 = vmatprep.subr.mxu0 0.0
        %7575 = vmatpush1.msra.mxu0 0.0
        %7576 = vmatprep.subr.mxu0 0.0
        %7577 = vmatpush1.msra.mxu0 0.0
        %7578 = vmatprep.subr.mxu0 0.0
        %7579 = vmatpush1.msra.mxu0 0.0
        %7580 = vmatprep.subr.mxu0 0.0
        %7581 = vmatpush1.msra.mxu0 0.0
        %7582 = vmatprep.subr.mxu0 0.0
        %7583 = vmatpush1.msra.mxu0 0.0
        %7584 = vmatprep.subr.mxu0 0.0
        %7585 = vmatpush1.msra.mxu0 0.0
        %7586 = vmatprep.subr.mxu0 0.0
        %7587 = vmatpush1.msra.mxu0 0.0
        %7588 = vmatprep.subr.mxu0 0.0
        %7589 = vmatpush1.msra.mxu0 0.0
        %7590 = vmatprep.subr.mxu0 0.0
        %7591 = vmatpush1.msra.mxu0 0.0
        %7592 = vmatprep.subr.mxu0 0.0
        %7593 = vmatpush1.msra.mxu0 0.0
        %7594 = vmatprep.subr.mxu0 0.0
        %7595 = vmatpush1.msra.mxu0 0.0
        %7596 = vmatprep.subr.mxu0 0.0
        %7597 = vmatpush1.msra.mxu0 0.0
        %7598 = vmatprep.subr.mxu0 0.0
        %7599 = vmatpush1.msra.mxu0 0.0
        %7600 = vmatprep.subr.mxu0 0.0
        %7601 = vmatpush1.msra.mxu0 0.0
        %7602 = vmatprep.subr.mxu0 0.0
        %7603 = vmatpush1.msra.mxu0 0.0
        %7604 = vmatprep.subr.mxu0 0.0
        %7605 = vmatpush1.msra.mxu0 0.0
        %7606 = vmatprep.subr.mxu0 0.0
        %7607 = vmatpush1.msra.mxu0 0.0
        %7608 = vmatprep.subr.mxu0 0.0
        %7609 = vmatpush1.msra.mxu0 0.0
        %7610 = vmatprep.subr.mxu0 0.0
        %7611 = vmatpush1.msra.mxu0 0.0
        %7612 = vmatprep.subr.mxu0 0.0
        %7613 = vmatpush1.msra.mxu0 0.0
        %7614 = vmatprep.subr.mxu0 0.0
        %7615 = vmatpush1.msra.mxu0 0.0
        %7616 = vmatprep.subr.mxu0 0.0
        %7617 = vmatpush1.msra.mxu0 0.0
        %7618 = vmatprep.subr.mxu0 0.0
        %7619 = vmatpush1.msra.mxu0 0.0
        %7620 = vmatprep.subr.mxu0 0.0
        %7621 = vmatpush1.msra.mxu0 0.0
        %7622 = vmatprep.subr.mxu0 0.0
        %7623 = vmatpush1.msra.mxu0 0.0
        %7624 = vmatprep.subr.mxu0 0.0
        %7625 = vmatpush1.msra.mxu0 0.0
        %7626 = vmatprep.subr.mxu0 0.0
        %7627 = vmatpush1.msra.mxu0 0.0
        %7628 = vmatprep.subr.mxu0 0.0
        %7629 = vmatpush1.msra.mxu0 0.0
        %7630 = vmatprep.mubr.f32.mxu0 0.0
        %7631 = vmatmul.mubr.f32.gmra.mrb[0].mxu0 %v7377
        %v7632 = vpop.f32.mrb[0].mxu0
        %v7633 = vadd.f32 %v7359, %v7632
        %v7634 = vpop.f32.mrb[0].mxu0
        %v7635 = vadd.f32 %v7359, %v7634
        %7636 = vmatprep.mubr.f32.mxu0 0.0
        %7637 = vmatmul.mubr.f32.gmra.mrb[0].mxu0 %v7380
        %v7638 = vpop.f32.mrb[0].mxu0
        %v7639 = vadd.f32 %v7364, %v7638
        %v7640 = vpop.f32.mrb[0].mxu0
        %v7641 = vadd.f32 %v7364, %v7640
        %7642 = vmatprep.mubr.f32.mxu0 0.0
        %7643 = vmatmul.mubr.f32.gmra.mrb[0].mxu0 %v7383
        %v7644 = vpop.f32.mrb[0].mxu0
        %v7645 = vadd.f32 %v7369, %v7644
        %v7646 = vpop.f32.mrb[0].mxu0
        %v7647 = vadd.f32 %v7369, %v7646
        %7648 = vmatprep.mubr.f32.mxu0 0.0
        %7649 = vmatmul.mubr.f32.gmra.mrb[0].mxu0 %v7386
        %v7650 = vpop.f32.mrb[0].mxu0
        %v7651 = vadd.f32 %v7374, %v7650
        %v7652 = vpop.f32.mrb[0].mxu0
        %v7653 = vadd.f32 %v7374, %v7652
        %7654 = vdwg.mxu0
        %7655 = vmatprep.subr.mxu0 %v7227
        %7656 = vmatpush1.msra.mxu0 %v7226
        %7657 = vmatprep.subr.mxu0 %v7259
        %7658 = vmatpush1.msra.mxu0 %v7258
        %7659 = vmatprep.subr.mxu0 %v7291
        %7660 = vmatpush1.msra.mxu0 %v7290
        %7661 = vmatprep.subr.mxu0 %v7323
        %7662 = vmatpush1.msra.mxu0 %v7322
        %7663 = vmatprep.subr.mxu0 0.0
        %7664 = vmatpush1.msra.mxu0 0.0
        %7665 = vmatprep.subr.mxu0 0.0
        %7666 = vmatpush1.msra.mxu0 0.0
        %7667 = vmatprep.subr.mxu0 0.0
        %7668 = vmatpush1.msra.mxu0 0.0
        %7669 = vmatprep.subr.mxu0 0.0
        %7670 = vmatpush1.msra.mxu0 0.0
        %7671 = vmatprep.subr.mxu0 0.0
        %7672 = vmatpush1.msra.mxu0 0.0
        %7673 = vmatprep.subr.mxu0 0.0
        %7674 = vmatpush1.msra.mxu0 0.0
        %7675 = vmatprep.subr.mxu0 0.0
        %7676 = vmatpush1.msra.mxu0 0.0
        %7677 = vmatprep.subr.mxu0 0.0
        %7678 = vmatpush1.msra.mxu0 0.0
        %7679 = vmatprep.subr.mxu0 0.0
        %7680 = vmatpush1.msra.mxu0 0.0
        %7681 = vmatprep.subr.mxu0 0.0
        %7682 = vmatpush1.msra.mxu0 0.0
        %7683 = vmatprep.subr.mxu0 0.0
        %7684 = vmatpush1.msra.mxu0 0.0
        %7685 = vmatprep.subr.mxu0 0.0
        %7686 = vmatpush1.msra.mxu0 0.0
        %7687 = vmatprep.subr.mxu0 0.0
        %7688 = vmatpush1.msra.mxu0 0.0
        %7689 = vmatprep.subr.mxu0 0.0
        %7690 = vmatpush1.msra.mxu0 0.0
        %7691 = vmatprep.subr.mxu0 0.0
        %7692 = vmatpush1.msra.mxu0 0.0
        %7693 = vmatprep.subr.mxu0 0.0
        %7694 = vmatpush1.msra.mxu0 0.0
        %7695 = vmatprep.subr.mxu0 0.0
        %7696 = vmatpush1.msra.mxu0 0.0
        %7697 = vmatprep.subr.mxu0 0.0
        %7698 = vmatpush1.msra.mxu0 0.0
        %7699 = vmatprep.subr.mxu0 0.0
        %7700 = vmatpush1.msra.mxu0 0.0
        %7701 = vmatprep.subr.mxu0 0.0
        %7702 = vmatpush1.msra.mxu0 0.0
        %7703 = vmatprep.subr.mxu0 0.0
        %7704 = vmatpush1.msra.mxu0 0.0
        %7705 = vmatprep.subr.mxu0 0.0
        %7706 = vmatpush1.msra.mxu0 0.0
        %7707 = vmatprep.subr.mxu0 0.0
        %7708 = vmatpush1.msra.mxu0 0.0
        %7709 = vmatprep.subr.mxu0 0.0
        %7710 = vmatpush1.msra.mxu0 0.0
        %7711 = vmatprep.subr.mxu0 0.0
        %7712 = vmatpush1.msra.mxu0 0.0
        %7713 = vmatprep.subr.mxu0 0.0
        %7714 = vmatpush1.msra.mxu0 0.0
        %7715 = vmatprep.subr.mxu0 0.0
        %7716 = vmatpush1.msra.mxu0 0.0
        %7717 = vmatprep.subr.mxu0 0.0
        %7718 = vmatpush1.msra.mxu0 0.0
        %7719 = vmatprep.mubr.f32.mxu0 0.0
        %7720 = vmatmul.mubr.f32.gmra.mrb[0].mxu0 %v7377
        %v7721 = vpop.f32.mrb[0].mxu0
        %v7722 = vadd.f32 %v7359, %v7721
        %v7723 = vpop.f32.mrb[0].mxu0
        %v7724 = vadd.f32 %v7359, %v7723
        %7725 = vmatprep.mubr.f32.mxu0 0.0
        %7726 = vmatmul.mubr.f32.gmra.mrb[0].mxu0 %v7380
        %v7727 = vpop.f32.mrb[0].mxu0
        %v7728 = vadd.f32 %v7364, %v7727
        %v7729 = vpop.f32.mrb[0].mxu0
        %v7730 = vadd.f32 %v7364, %v7729
        %7731 = vmatprep.mubr.f32.mxu0 0.0
        %7732 = vmatmul.mubr.f32.gmra.mrb[0].mxu0 %v7383
        %v7733 = vpop.f32.mrb[0].mxu0
        %v7734 = vadd.f32 %v7369, %v7733
        %v7735 = vpop.f32.mrb[0].mxu0
        %v7736 = vadd.f32 %v7369, %v7735
        %7737 = vmatprep.mubr.f32.mxu0 0.0
        %7738 = vmatmul.mubr.f32.gmra.mrb[0].mxu0 %v7386
        %v7739 = vpop.f32.mrb[0].mxu0
        %v7740 = vadd.f32 %v7374, %v7739
        %v7741 = vpop.f32.mrb[0].mxu0
        %v7742 = vadd.f32 %v7374, %v7741
        %7743 = vdwg.mxu0
        %7744 = vmatprep.subr.mxu0 %v7229
        %7745 = vmatpush1.msra.mxu0 %v7228
        %7746 = vmatprep.subr.mxu0 %v7261
        %7747 = vmatpush1.msra.mxu0 %v7260
        %7748 = vmatprep.subr.mxu0 %v7293
        %7749 = vmatpush1.msra.mxu0 %v7292
        %7750 = vmatprep.subr.mxu0 %v7325
        %7751 = vmatpush1.msra.mxu0 %v7324
        %7752 = vmatprep.subr.mxu0 0.0
        %7753 = vmatpush1.msra.mxu0 0.0
        %7754 = vmatprep.subr.mxu0 0.0
        %7755 = vmatpush1.msra.mxu0 0.0
        %7756 = vmatprep.subr.mxu0 0.0
        %7757 = vmatpush1.msra.mxu0 0.0
        %7758 = vmatprep.subr.mxu0 0.0
        %7759 = vmatpush1.msra.mxu0 0.0
        %7760 = vmatprep.subr.mxu0 0.0
        %7761 = vmatpush1.msra.mxu0 0.0
        %7762 = vmatprep.subr.mxu0 0.0
        %7763 = vmatpush1.msra.mxu0 0.0
        %7764 = vmatprep.subr.mxu0 0.0
        %7765 = vmatpush1.msra.mxu0 0.0
        %7766 = vmatprep.subr.mxu0 0.0
        %7767 = vmatpush1.msra.mxu0 0.0
        %7768 = vmatprep.subr.mxu0 0.0
        %7769 = vmatpush1.msra.mxu0 0.0
        %7770 = vmatprep.subr.mxu0 0.0
        %7771 = vmatpush1.msra.mxu0 0.0
        %7772 = vmatprep.subr.mxu0 0.0
        %7773 = vmatpush1.msra.mxu0 0.0
        %7774 = vmatprep.subr.mxu0 0.0
        %7775 = vmatpush1.msra.mxu0 0.0
        %7776 = vmatprep.subr.mxu0 0.0
        %7777 = vmatpush1.msra.mxu0 0.0
        %7778 = vmatprep.subr.mxu0 0.0
        %7779 = vmatpush1.msra.mxu0 0.0
        %7780 = vmatprep.subr.mxu0 0.0
        %7781 = vmatpush1.msra.mxu0 0.0
        %7782 = vmatprep.subr.mxu0 0.0
        %7783 = vmatpush1.msra.mxu0 0.0
        %7784 = vmatprep.subr.mxu0 0.0
        %7785 = vmatpush1.msra.mxu0 0.0
        %7786 = vmatprep.subr.mxu0 0.0
        %7787 = vmatpush1.msra.mxu0 0.0
        %7788 = vmatprep.subr.mxu0 0.0
        %7789 = vmatpush1.msra.mxu0 0.0
        %7790 = vmatprep.subr.mxu0 0.0
        %7791 = vmatpush1.msra.mxu0 0.0
        %7792 = vmatprep.subr.mxu0 0.0
        %7793 = vmatpush1.msra.mxu0 0.0
        %7794 = vmatprep.subr.mxu0 0.0
        %7795 = vmatpush1.msra.mxu0 0.0
        %7796 = vmatprep.subr.mxu0 0.0
        %7797 = vmatpush1.msra.mxu0 0.0
        %7798 = vmatprep.subr.mxu0 0.0
        %7799 = vmatpush1.msra.mxu0 0.0
        %7800 = vmatprep.subr.mxu0 0.0
        %7801 = vmatpush1.msra.mxu0 0.0
        %7802 = vmatprep.subr.mxu0 0.0
        %7803 = vmatpush1.msra.mxu0 0.0
        %7804 = vmatprep.subr.mxu0 0.0
        %7805 = vmatpush1.msra.mxu0 0.0
        %7806 = vmatprep.subr.mxu0 0.0
        %7807 = vmatpush1.msra.mxu0 0.0
        %7808 = vmatprep.mubr.f32.mxu0 0.0
        %7809 = vmatmul.mubr.f32.gmra.mrb[0].mxu0 %v7377
        %v7810 = vpop.f32.mrb[0].mxu0
        %v7811 = vadd.f32 %v7359, %v7810
        %v7812 = vpop.f32.mrb[0].mxu0
        %v7813 = vadd.f32 %v7359, %v7812
        %7814 = vmatprep.mubr.f32.mxu0 0.0
        %7815 = vmatmul.mubr.f32.gmra.mrb[0].mxu0 %v7380
        %v7816 = vpop.f32.mrb[0].mxu0
        %v7817 = vadd.f32 %v7364, %v7816
        %v7818 = vpop.f32.mrb[0].mxu0
        %v7819 = vadd.f32 %v7364, %v7818
        %7820 = vmatprep.mubr.f32.mxu0 0.0
        %7821 = vmatmul.mubr.f32.gmra.mrb[0].mxu0 %v7383
        %v7822 = vpop.f32.mrb[0].mxu0
        %v7823 = vadd.f32 %v7369, %v7822
        %v7824 = vpop.f32.mrb[0].mxu0
        %v7825 = vadd.f32 %v7369, %v7824
        %7826 = vmatprep.mubr.f32.mxu0 0.0
        %7827 = vmatmul.mubr.f32.gmra.mrb[0].mxu0 %v7386
        %v7828 = vpop.f32.mrb[0].mxu0
        %v7829 = vadd.f32 %v7374, %v7828
        %v7830 = vpop.f32.mrb[0].mxu0
        %v7831 = vadd.f32 %v7374, %v7830
        %7832 = vdwg.mxu0
        %7833 = vmatprep.subr.mxu0 %v7231
        %7834 = vmatpush1.msra.mxu0 %v7230
        %7835 = vmatprep.subr.mxu0 %v7263
        %7836 = vmatpush1.msra.mxu0 %v7262
        %7837 = vmatprep.subr.mxu0 %v7295
        %7838 = vmatpush1.msra.mxu0 %v7294
        %7839 = vmatprep.subr.mxu0 %v7327
        %7840 = vmatpush1.msra.mxu0 %v7326
        %7841 = vmatprep.subr.mxu0 0.0
        %7842 = vmatpush1.msra.mxu0 0.0
        %7843 = vmatprep.subr.mxu0 0.0
        %7844 = vmatpush1.msra.mxu0 0.0
        %7845 = vmatprep.subr.mxu0 0.0
        %7846 = vmatpush1.msra.mxu0 0.0
        %7847 = vmatprep.subr.mxu0 0.0
        %7848 = vmatpush1.msra.mxu0 0.0
        %7849 = vmatprep.subr.mxu0 0.0
        %7850 = vmatpush1.msra.mxu0 0.0
        %7851 = vmatprep.subr.mxu0 0.0
        %7852 = vmatpush1.msra.mxu0 0.0
        %7853 = vmatprep.subr.mxu0 0.0
        %7854 = vmatpush1.msra.mxu0 0.0
        %7855 = vmatprep.subr.mxu0 0.0
        %7856 = vmatpush1.msra.mxu0 0.0
        %7857 = vmatprep.subr.mxu0 0.0
        %7858 = vmatpush1.msra.mxu0 0.0
        %7859 = vmatprep.subr.mxu0 0.0
        %7860 = vmatpush1.msra.mxu0 0.0
        %7861 = vmatprep.subr.mxu0 0.0
        %7862 = vmatpush1.msra.mxu0 0.0
        %7863 = vmatprep.subr.mxu0 0.0
        %7864 = vmatpush1.msra.mxu0 0.0
        %7865 = vmatprep.subr.mxu0 0.0
        %7866 = vmatpush1.msra.mxu0 0.0
        %7867 = vmatprep.subr.mxu0 0.0
        %7868 = vmatpush1.msra.mxu0 0.0
        %7869 = vmatprep.subr.mxu0 0.0
        %7870 = vmatpush1.msra.mxu0 0.0
        %7871 = vmatprep.subr.mxu0 0.0
        %7872 = vmatpush1.msra.mxu0 0.0
        %7873 = vmatprep.subr.mxu0 0.0
        %7874 = vmatpush1.msra.mxu0 0.0
        %7875 = vmatprep.subr.mxu0 0.0
        %7876 = vmatpush1.msra.mxu0 0.0
        %7877 = vmatprep.subr.mxu0 0.0
        %7878 = vmatpush1.msra.mxu0 0.0
        %7879 = vmatprep.subr.mxu0 0.0
        %7880 = vmatpush1.msra.mxu0 0.0
        %7881 = vmatprep.subr.mxu0 0.0
        %7882 = vmatpush1.msra.mxu0 0.0
        %7883 = vmatprep.subr.mxu0 0.0
        %7884 = vmatpush1.msra.mxu0 0.0
        %7885 = vmatprep.subr.mxu0 0.0
        %7886 = vmatpush1.msra.mxu0 0.0
        %7887 = vmatprep.subr.mxu0 0.0
        %7888 = vmatpush1.msra.mxu0 0.0
        %7889 = vmatprep.subr.mxu0 0.0
        %7890 = vmatpush1.msra.mxu0 0.0
        %7891 = vmatprep.subr.mxu0 0.0
        %7892 = vmatpush1.msra.mxu0 0.0
        %7893 = vmatprep.subr.mxu0 0.0
        %7894 = vmatpush1.msra.mxu0 0.0
        %7895 = vmatprep.subr.mxu0 0.0
        %7896 = vmatpush1.msra.mxu0 0.0
        %7897 = vmatprep.mubr.f32.mxu0 0.0
        %7898 = vmatmul.mubr.f32.gmra.mrb[0].mxu0 %v7377
        %v7899 = vpop.f32.mrb[0].mxu0
        %v7900 = vadd.f32 %v7359, %v7899
        %v7901 = vpop.f32.mrb[0].mxu0
        %v7902 = vadd.f32 %v7359, %v7901
        %7903 = vmatprep.mubr.f32.mxu0 0.0
        %7904 = vmatmul.mubr.f32.gmra.mrb[0].mxu0 %v7380
        %v7905 = vpop.f32.mrb[0].mxu0
        %v7906 = vadd.f32 %v7364, %v7905
        %v7907 = vpop.f32.mrb[0].mxu0
        %v7908 = vadd.f32 %v7364, %v7907
        %7909 = vmatprep.mubr.f32.mxu0 0.0
        %7910 = vmatmul.mubr.f32.gmra.mrb[0].mxu0 %v7383
        %v7911 = vpop.f32.mrb[0].mxu0
        %v7912 = vadd.f32 %v7369, %v7911
        %v7913 = vpop.f32.mrb[0].mxu0
        %v7914 = vadd.f32 %v7369, %v7913
        %7915 = vmatprep.mubr.f32.mxu0 0.0
        %7916 = vmatmul.mubr.f32.gmra.mrb[0].mxu0 %v7386
        %v7917 = vpop.f32.mrb[0].mxu0
        %v7918 = vadd.f32 %v7374, %v7917
        %v7919 = vpop.f32.mrb[0].mxu0
        %v7920 = vadd.f32 %v7374, %v7919
        %7921 = vdwg.mxu0
        %7922 = vmatprep.subr.mxu0 %v7233
        %7923 = vmatpush1.msra.mxu0 %v7232
        %7924 = vmatprep.subr.mxu0 %v7265
        %7925 = vmatpush1.msra.mxu0 %v7264
        %7926 = vmatprep.subr.mxu0 %v7297
        %7927 = vmatpush1.msra.mxu0 %v7296
        %7928 = vmatprep.subr.mxu0 %v7329
        %7929 = vmatpush1.msra.mxu0 %v7328
        %7930 = vmatprep.subr.mxu0 0.0
        %7931 = vmatpush1.msra.mxu0 0.0
        %7932 = vmatprep.subr.mxu0 0.0
        %7933 = vmatpush1.msra.mxu0 0.0
        %7934 = vmatprep.subr.mxu0 0.0
        %7935 = vmatpush1.msra.mxu0 0.0
        %7936 = vmatprep.subr.mxu0 0.0
        %7937 = vmatpush1.msra.mxu0 0.0
        %7938 = vmatprep.subr.mxu0 0.0
        %7939 = vmatpush1.msra.mxu0 0.0
        %7940 = vmatprep.subr.mxu0 0.0
        %7941 = vmatpush1.msra.mxu0 0.0
        %7942 = vmatprep.subr.mxu0 0.0
        %7943 = vmatpush1.msra.mxu0 0.0
        %7944 = vmatprep.subr.mxu0 0.0
        %7945 = vmatpush1.msra.mxu0 0.0
        %7946 = vmatprep.subr.mxu0 0.0
        %7947 = vmatpush1.msra.mxu0 0.0
        %7948 = vmatprep.subr.mxu0 0.0
        %7949 = vmatpush1.msra.mxu0 0.0
        %7950 = vmatprep.subr.mxu0 0.0
        %7951 = vmatpush1.msra.mxu0 0.0
        %7952 = vmatprep.subr.mxu0 0.0
        %7953 = vmatpush1.msra.mxu0 0.0
        %7954 = vmatprep.subr.mxu0 0.0
        %7955 = vmatpush1.msra.mxu0 0.0
        %7956 = vmatprep.subr.mxu0 0.0
        %7957 = vmatpush1.msra.mxu0 0.0
        %7958 = vmatprep.subr.mxu0 0.0
        %7959 = vmatpush1.msra.mxu0 0.0
        %7960 = vmatprep.subr.mxu0 0.0
        %7961 = vmatpush1.msra.mxu0 0.0
        %7962 = vmatprep.subr.mxu0 0.0
        %7963 = vmatpush1.msra.mxu0 0.0
        %7964 = vmatprep.subr.mxu0 0.0
        %7965 = vmatpush1.msra.mxu0 0.0
        %7966 = vmatprep.subr.mxu0 0.0
        %7967 = vmatpush1.msra.mxu0 0.0
        %7968 = vmatprep.subr.mxu0 0.0
        %7969 = vmatpush1.msra.mxu0 0.0
        %7970 = vmatprep.subr.mxu0 0.0
        %7971 = vmatpush1.msra.mxu0 0.0
        %7972 = vmatprep.subr.mxu0 0.0
        %7973 = vmatpush1.msra.mxu0 0.0
        %7974 = vmatprep.subr.mxu0 0.0
        %7975 = vmatpush1.msra.mxu0 0.0
        %7976 = vmatprep.subr.mxu0 0.0
        %7977 = vmatpush1.msra.mxu0 0.0
        %7978 = vmatprep.subr.mxu0 0.0
        %7979 = vmatpush1.msra.mxu0 0.0
        %7980 = vmatprep.subr.mxu0 0.0
        %7981 = vmatpush1.msra.mxu0 0.0
        %7982 = vmatprep.subr.mxu0 0.0
        %7983 = vmatpush1.msra.mxu0 0.0
        %7984 = vmatprep.subr.mxu0 0.0
        %7985 = vmatpush1.msra.mxu0 0.0
        %7986 = vmatprep.mubr.f32.mxu0 0.0
        %7987 = vmatmul.mubr.f32.gmra.mrb[0].mxu0 %v7377
        %v7988 = vpop.f32.mrb[0].mxu0
        %v7989 = vadd.f32 %v7359, %v7988
        %v7990 = vpop.f32.mrb[0].mxu0
        %v7991 = vadd.f32 %v7359, %v7990
        %7992 = vmatprep.mubr.f32.mxu0 0.0
        %7993 = vmatmul.mubr.f32.gmra.mrb[0].mxu0 %v7380
        %v7994 = vpop.f32.mrb[0].mxu0
        %v7995 = vadd.f32 %v7364, %v7994
        %v7996 = vpop.f32.mrb[0].mxu0
        %v7997 = vadd.f32 %v7364, %v7996
        %7998 = vmatprep.mubr.f32.mxu0 0.0
        %7999 = vmatmul.mubr.f32.gmra.mrb[0].mxu0 %v7383
        %v8000 = vpop.f32.mrb[0].mxu0
        %v8001 = vadd.f32 %v7369, %v8000
        %v8002 = vpop.f32.mrb[0].mxu0
        %v8003 = vadd.f32 %v7369, %v8002
        %8004 = vmatprep.mubr.f32.mxu0 0.0
        %8005 = vmatmul.mubr.f32.gmra.mrb[0].mxu0 %v7386
        %v8006 = vpop.f32.mrb[0].mxu0
        %v8007 = vadd.f32 %v7374, %v8006
        %v8008 = vpop.f32.mrb[0].mxu0
        %v8009 = vadd.f32 %v7374, %v8008
        %8010 = vdwg.mxu0
        %8011 = vmatprep.subr.mxu0 %v7235
        %8012 = vmatpush1.msra.mxu0 %v7234
        %8013 = vmatprep.subr.mxu0 %v7267
        %8014 = vmatpush1.msra.mxu0 %v7266
        %8015 = vmatprep.subr.mxu0 %v7299
        %8016 = vmatpush1.msra.mxu0 %v7298
        %8017 = vmatprep.subr.mxu0 %v7331
        %8018 = vmatpush1.msra.mxu0 %v7330
        %8019 = vmatprep.subr.mxu0 0.0
        %8020 = vmatpush1.msra.mxu0 0.0
        %8021 = vmatprep.subr.mxu0 0.0
        %8022 = vmatpush1.msra.mxu0 0.0
        %8023 = vmatprep.subr.mxu0 0.0
        %8024 = vmatpush1.msra.mxu0 0.0
        %8025 = vmatprep.subr.mxu0 0.0
        %8026 = vmatpush1.msra.mxu0 0.0
        %8027 = vmatprep.subr.mxu0 0.0
        %8028 = vmatpush1.msra.mxu0 0.0
        %8029 = vmatprep.subr.mxu0 0.0
        %8030 = vmatpush1.msra.mxu0 0.0
        %8031 = vmatprep.subr.mxu0 0.0
        %8032 = vmatpush1.msra.mxu0 0.0
        %8033 = vmatprep.subr.mxu0 0.0
        %8034 = vmatpush1.msra.mxu0 0.0
        %8035 = vmatprep.subr.mxu0 0.0
        %8036 = vmatpush1.msra.mxu0 0.0
        %8037 = vmatprep.subr.mxu0 0.0
        %8038 = vmatpush1.msra.mxu0 0.0
        %8039 = vmatprep.subr.mxu0 0.0
        %8040 = vmatpush1.msra.mxu0 0.0
        %8041 = vmatprep.subr.mxu0 0.0
        %8042 = vmatpush1.msra.mxu0 0.0
        %8043 = vmatprep.subr.mxu0 0.0
        %8044 = vmatpush1.msra.mxu0 0.0
        %8045 = vmatprep.subr.mxu0 0.0
        %8046 = vmatpush1.msra.mxu0 0.0
        %8047 = vmatprep.subr.mxu0 0.0
        %8048 = vmatpush1.msra.mxu0 0.0
        %8049 = vmatprep.subr.mxu0 0.0
        %8050 = vmatpush1.msra.mxu0 0.0
        %8051 = vmatprep.subr.mxu0 0.0
        %8052 = vmatpush1.msra.mxu0 0.0
        %8053 = vmatprep.subr.mxu0 0.0
        %8054 = vmatpush1.msra.mxu0 0.0
        %8055 = vmatprep.subr.mxu0 0.0
        %8056 = vmatpush1.msra.mxu0 0.0
        %8057 = vmatprep.subr.mxu0 0.0
        %8058 = vmatpush1.msra.mxu0 0.0
        %8059 = vmatprep.subr.mxu0 0.0
        %8060 = vmatpush1.msra.mxu0 0.0
        %8061 = vmatprep.subr.mxu0 0.0
        %8062 = vmatpush1.msra.mxu0 0.0
        %8063 = vmatprep.subr.mxu0 0.0
        %8064 = vmatpush1.msra.mxu0 0.0
        %8065 = vmatprep.subr.mxu0 0.0
        %8066 = vmatpush1.msra.mxu0 0.0
        %8067 = vmatprep.subr.mxu0 0.0
        %8068 = vmatpush1.msra.mxu0 0.0
        %8069 = vmatprep.subr.mxu0 0.0
        %8070 = vmatpush1.msra.mxu0 0.0
        %8071 = vmatprep.subr.mxu0 0.0
        %8072 = vmatpush1.msra.mxu0 0.0
        %8073 = vmatprep.subr.mxu0 0.0
        %8074 = vmatpush1.msra.mxu0 0.0
        %8075 = vmatprep.mubr.f32.mxu0 0.0
        %8076 = vmatmul.mubr.f32.gmra.mrb[0].mxu0 %v7377
        %v8077 = vpop.f32.mrb[0].mxu0
        %v8078 = vadd.f32 %v7359, %v8077
        %v8079 = vpop.f32.mrb[0].mxu0
        %v8080 = vadd.f32 %v7359, %v8079
        %8081 = vmatprep.mubr.f32.mxu0 0.0
        %8082 = vmatmul.mubr.f32.gmra.mrb[0].mxu0 %v7380
        %v8083 = vpop.f32.mrb[0].mxu0
        %v8084 = vadd.f32 %v7364, %v8083
        %v8085 = vpop.f32.mrb[0].mxu0
        %v8086 = vadd.f32 %v7364, %v8085
        %8087 = vmatprep.mubr.f32.mxu0 0.0
        %8088 = vmatmul.mubr.f32.gmra.mrb[0].mxu0 %v7383
        %v8089 = vpop.f32.mrb[0].mxu0
        %v8090 = vadd.f32 %v7369, %v8089
        %v8091 = vpop.f32.mrb[0].mxu0
        %v8092 = vadd.f32 %v7369, %v8091
        %8093 = vmatprep.mubr.f32.mxu0 0.0
        %8094 = vmatmul.mubr.f32.gmra.mrb[0].mxu0 %v7386
        %v8095 = vpop.f32.mrb[0].mxu0
        %v8096 = vadd.f32 %v7374, %v8095
        %v8097 = vpop.f32.mrb[0].mxu0
        %v8098 = vadd.f32 %v7374, %v8097
        %8099 = vdwg.mxu0
        %8100 = vmatprep.subr.mxu0 %v7237
        %8101 = vmatpush1.msra.mxu0 %v7236
        %8102 = vmatprep.subr.mxu0 %v7269
        %8103 = vmatpush1.msra.mxu0 %v7268
        %8104 = vmatprep.subr.mxu0 %v7301
        %8105 = vmatpush1.msra.mxu0 %v7300
        %8106 = vmatprep.subr.mxu0 %v7333
        %8107 = vmatpush1.msra.mxu0 %v7332
        %8108 = vmatprep.subr.mxu0 0.0
        %8109 = vmatpush1.msra.mxu0 0.0
        %8110 = vmatprep.subr.mxu0 0.0
        %8111 = vmatpush1.msra.mxu0 0.0
        %8112 = vmatprep.subr.mxu0 0.0
        %8113 = vmatpush1.msra.mxu0 0.0
        %8114 = vmatprep.subr.mxu0 0.0
        %8115 = vmatpush1.msra.mxu0 0.0
        %8116 = vmatprep.subr.mxu0 0.0
        %8117 = vmatpush1.msra.mxu0 0.0
        %8118 = vmatprep.subr.mxu0 0.0
        %8119 = vmatpush1.msra.mxu0 0.0
        %8120 = vmatprep.subr.mxu0 0.0
        %8121 = vmatpush1.msra.mxu0 0.0
        %8122 = vmatprep.subr.mxu0 0.0
        %8123 = vmatpush1.msra.mxu0 0.0
        %8124 = vmatprep.subr.mxu0 0.0
        %8125 = vmatpush1.msra.mxu0 0.0
        %8126 = vmatprep.subr.mxu0 0.0
        %8127 = vmatpush1.msra.mxu0 0.0
        %8128 = vmatprep.subr.mxu0 0.0
        %8129 = vmatpush1.msra.mxu0 0.0
        %8130 = vmatprep.subr.mxu0 0.0
        %8131 = vmatpush1.msra.mxu0 0.0
        %8132 = vmatprep.subr.mxu0 0.0
        %8133 = vmatpush1.msra.mxu0 0.0
        %8134 = vmatprep.subr.mxu0 0.0
        %8135 = vmatpush1.msra.mxu0 0.0
        %8136 = vmatprep.subr.mxu0 0.0
        %8137 = vmatpush1.msra.mxu0 0.0
        %8138 = vmatprep.subr.mxu0 0.0
        %8139 = vmatpush1.msra.mxu0 0.0
        %8140 = vmatprep.subr.mxu0 0.0
        %8141 = vmatpush1.msra.mxu0 0.0
        %8142 = vmatprep.subr.mxu0 0.0
        %8143 = vmatpush1.msra.mxu0 0.0
        %8144 = vmatprep.subr.mxu0 0.0
        %8145 = vmatpush1.msra.mxu0 0.0
        %8146 = vmatprep.subr.mxu0 0.0
        %8147 = vmatpush1.msra.mxu0 0.0
        %8148 = vmatprep.subr.mxu0 0.0
        %8149 = vmatpush1.msra.mxu0 0.0
        %8150 = vmatprep.subr.mxu0 0.0
        %8151 = vmatpush1.msra.mxu0 0.0
        %8152 = vmatprep.subr.mxu0 0.0
        %8153 = vmatpush1.msra.mxu0 0.0
        %8154 = vmatprep.subr.mxu0 0.0
        %8155 = vmatpush1.msra.mxu0 0.0
        %8156 = vmatprep.subr.mxu0 0.0
        %8157 = vmatpush1.msra.mxu0 0.0
        %8158 = vmatprep.subr.mxu0 0.0
        %8159 = vmatpush1.msra.mxu0 0.0
        %8160 = vmatprep.subr.mxu0 0.0
        %8161 = vmatpush1.msra.mxu0 0.0
        %8162 = vmatprep.subr.mxu0 0.0
        %8163 = vmatpush1.msra.mxu0 0.0
        %8164 = vmatprep.mubr.f32.mxu0 0.0
        %8165 = vmatmul.mubr.f32.gmra.mrb[0].mxu0 %v7377
        %v8166 = vpop.f32.mrb[0].mxu0
        %v8167 = vadd.f32 %v7359, %v8166
        %v8168 = vpop.f32.mrb[0].mxu0
        %v8169 = vadd.f32 %v7359, %v8168
        %8170 = vmatprep.mubr.f32.mxu0 0.0
        %8171 = vmatmul.mubr.f32.gmra.mrb[0].mxu0 %v7380
        %v8172 = vpop.f32.mrb[0].mxu0
        %v8173 = vadd.f32 %v7364, %v8172
        %v8174 = vpop.f32.mrb[0].mxu0
        %v8175 = vadd.f32 %v7364, %v8174
        %8176 = vmatprep.mubr.f32.mxu0 0.0
        %8177 = vmatmul.mubr.f32.gmra.mrb[0].mxu0 %v7383
        %v8178 = vpop.f32.mrb[0].mxu0
        %v8179 = vadd.f32 %v7369, %v8178
        %v8180 = vpop.f32.mrb[0].mxu0
        %v8181 = vadd.f32 %v7369, %v8180
        %8182 = vmatprep.mubr.f32.mxu0 0.0
        %8183 = vmatmul.mubr.f32.gmra.mrb[0].mxu0 %v7386
        %v8184 = vpop.f32.mrb[0].mxu0
        %v8185 = vadd.f32 %v7374, %v8184
        %v8186 = vpop.f32.mrb[0].mxu0
        %v8187 = vadd.f32 %v7374, %v8186
        %8188 = vdwg.mxu0
        %8189 = vmatprep.subr.mxu0 %v7239
        %8190 = vmatpush1.msra.mxu0 %v7238
        %8191 = vmatprep.subr.mxu0 %v7271
        %8192 = vmatpush1.msra.mxu0 %v7270
        %8193 = vmatprep.subr.mxu0 %v7303
        %8194 = vmatpush1.msra.mxu0 %v7302
        %8195 = vmatprep.subr.mxu0 %v7335
        %8196 = vmatpush1.msra.mxu0 %v7334
        %8197 = vmatprep.subr.mxu0 0.0
        %8198 = vmatpush1.msra.mxu0 0.0
        %8199 = vmatprep.subr.mxu0 0.0
        %8200 = vmatpush1.msra.mxu0 0.0
        %8201 = vmatprep.subr.mxu0 0.0
        %8202 = vmatpush1.msra.mxu0 0.0
        %8203 = vmatprep.subr.mxu0 0.0
        %8204 = vmatpush1.msra.mxu0 0.0
        %8205 = vmatprep.subr.mxu0 0.0
        %8206 = vmatpush1.msra.mxu0 0.0
        %8207 = vmatprep.subr.mxu0 0.0
        %8208 = vmatpush1.msra.mxu0 0.0
        %8209 = vmatprep.subr.mxu0 0.0
        %8210 = vmatpush1.msra.mxu0 0.0
        %8211 = vmatprep.subr.mxu0 0.0
        %8212 = vmatpush1.msra.mxu0 0.0
        %8213 = vmatprep.subr.mxu0 0.0
        %8214 = vmatpush1.msra.mxu0 0.0
        %8215 = vmatprep.subr.mxu0 0.0
        %8216 = vmatpush1.msra.mxu0 0.0
        %8217 = vmatprep.subr.mxu0 0.0
        %8218 = vmatpush1.msra.mxu0 0.0
        %8219 = vmatprep.subr.mxu0 0.0
        %8220 = vmatpush1.msra.mxu0 0.0
        %8221 = vmatprep.subr.mxu0 0.0
        %8222 = vmatpush1.msra.mxu0 0.0
        %8223 = vmatprep.subr.mxu0 0.0
        %8224 = vmatpush1.msra.mxu0 0.0
        %8225 = vmatprep.subr.mxu0 0.0
        %8226 = vmatpush1.msra.mxu0 0.0
        %8227 = vmatprep.subr.mxu0 0.0
        %8228 = vmatpush1.msra.mxu0 0.0
        %8229 = vmatprep.subr.mxu0 0.0
        %8230 = vmatpush1.msra.mxu0 0.0
        %8231 = vmatprep.subr.mxu0 0.0
        %8232 = vmatpush1.msra.mxu0 0.0
        %8233 = vmatprep.subr.mxu0 0.0
        %8234 = vmatpush1.msra.mxu0 0.0
        %8235 = vmatprep.subr.mxu0 0.0
        %8236 = vmatpush1.msra.mxu0 0.0
        %8237 = vmatprep.subr.mxu0 0.0
        %8238 = vmatpush1.msra.mxu0 0.0
        %8239 = vmatprep.subr.mxu0 0.0
        %8240 = vmatpush1.msra.mxu0 0.0
        %8241 = vmatprep.subr.mxu0 0.0
        %8242 = vmatpush1.msra.mxu0 0.0
        %8243 = vmatprep.subr.mxu0 0.0
        %8244 = vmatpush1.msra.mxu0 0.0
        %8245 = vmatprep.subr.mxu0 0.0
        %8246 = vmatpush1.msra.mxu0 0.0
        %8247 = vmatprep.subr.mxu0 0.0
        %8248 = vmatpush1.msra.mxu0 0.0
        %8249 = vmatprep.subr.mxu0 0.0
        %8250 = vmatpush1.msra.mxu0 0.0
        %8251 = vmatprep.subr.mxu0 0.0
        %8252 = vmatpush1.msra.mxu0 0.0
        %8253 = vmatprep.mubr.f32.mxu0 0.0
        %8254 = vmatmul.mubr.f32.gmra.mrb[0].mxu0 %v7377
        %v8255 = vpop.f32.mrb[0].mxu0
        %v8256 = vadd.f32 %v7359, %v8255
        %v8257 = vpop.f32.mrb[0].mxu0
        %v8258 = vadd.f32 %v7359, %v8257
        %8259 = vmatprep.mubr.f32.mxu0 0.0
        %8260 = vmatmul.mubr.f32.gmra.mrb[0].mxu0 %v7380
        %v8261 = vpop.f32.mrb[0].mxu0
        %v8262 = vadd.f32 %v7364, %v8261
        %v8263 = vpop.f32.mrb[0].mxu0
        %v8264 = vadd.f32 %v7364, %v8263
        %8265 = vmatprep.mubr.f32.mxu0 0.0
        %8266 = vmatmul.mubr.f32.gmra.mrb[0].mxu0 %v7383
        %v8267 = vpop.f32.mrb[0].mxu0
        %v8268 = vadd.f32 %v7369, %v8267
        %v8269 = vpop.f32.mrb[0].mxu0
        %v8270 = vadd.f32 %v7369, %v8269
        %8271 = vmatprep.mubr.f32.mxu0 0.0
        %8272 = vmatmul.mubr.f32.gmra.mrb[0].mxu0 %v7386
        %v8273 = vpop.f32.mrb[0].mxu0
        %v8274 = vadd.f32 %v7374, %v8273
        %v8275 = vpop.f32.mrb[0].mxu0
        %v8276 = vadd.f32 %v7374, %v8275
        %8277 = vdwg.mxu0
        %8278 = vmatprep.subr.mxu0 %v7241
        %8279 = vmatpush1.msra.mxu0 %v7240
        %8280 = vmatprep.subr.mxu0 %v7273
        %8281 = vmatpush1.msra.mxu0 %v7272
        %8282 = vmatprep.subr.mxu0 %v7305
        %8283 = vmatpush1.msra.mxu0 %v7304
        %8284 = vmatprep.subr.mxu0 %v7337
        %8285 = vmatpush1.msra.mxu0 %v7336
        %8286 = vmatprep.subr.mxu0 0.0
        %8287 = vmatpush1.msra.mxu0 0.0
        %8288 = vmatprep.subr.mxu0 0.0
        %8289 = vmatpush1.msra.mxu0 0.0
        %8290 = vmatprep.subr.mxu0 0.0
        %8291 = vmatpush1.msra.mxu0 0.0
        %8292 = vmatprep.subr.mxu0 0.0
        %8293 = vmatpush1.msra.mxu0 0.0
        %8294 = vmatprep.subr.mxu0 0.0
        %8295 = vmatpush1.msra.mxu0 0.0
        %8296 = vmatprep.subr.mxu0 0.0
        %8297 = vmatpush1.msra.mxu0 0.0
        %8298 = vmatprep.subr.mxu0 0.0
        %8299 = vmatpush1.msra.mxu0 0.0
        %8300 = vmatprep.subr.mxu0 0.0
        %8301 = vmatpush1.msra.mxu0 0.0
        %8302 = vmatprep.subr.mxu0 0.0
        %8303 = vmatpush1.msra.mxu0 0.0
        %8304 = vmatprep.subr.mxu0 0.0
        %8305 = vmatpush1.msra.mxu0 0.0
        %8306 = vmatprep.subr.mxu0 0.0
        %8307 = vmatpush1.msra.mxu0 0.0
        %8308 = vmatprep.subr.mxu0 0.0
        %8309 = vmatpush1.msra.mxu0 0.0
        %8310 = vmatprep.subr.mxu0 0.0
        %8311 = vmatpush1.msra.mxu0 0.0
        %8312 = vmatprep.subr.mxu0 0.0
        %8313 = vmatpush1.msra.mxu0 0.0
        %8314 = vmatprep.subr.mxu0 0.0
        %8315 = vmatpush1.msra.mxu0 0.0
        %8316 = vmatprep.subr.mxu0 0.0
        %8317 = vmatpush1.msra.mxu0 0.0
        %8318 = vmatprep.subr.mxu0 0.0
        %8319 = vmatpush1.msra.mxu0 0.0
        %8320 = vmatprep.subr.mxu0 0.0
        %8321 = vmatpush1.msra.mxu0 0.0
        %8322 = vmatprep.subr.mxu0 0.0
        %8323 = vmatpush1.msra.mxu0 0.0
        %8324 = vmatprep.subr.mxu0 0.0
        %8325 = vmatpush1.msra.mxu0 0.0
        %8326 = vmatprep.subr.mxu0 0.0
        %8327 = vmatpush1.msra.mxu0 0.0
        %8328 = vmatprep.subr.mxu0 0.0
        %8329 = vmatpush1.msra.mxu0 0.0
        %8330 = vmatprep.subr.mxu0 0.0
        %8331 = vmatpush1.msra.mxu0 0.0
        %8332 = vmatprep.subr.mxu0 0.0
        %8333 = vmatpush1.msra.mxu0 0.0
        %8334 = vmatprep.subr.mxu0 0.0
        %8335 = vmatpush1.msra.mxu0 0.0
        %8336 = vmatprep.subr.mxu0 0.0
        %8337 = vmatpush1.msra.mxu0 0.0
        %8338 = vmatprep.subr.mxu0 0.0
        %8339 = vmatpush1.msra.mxu0 0.0
        %8340 = vmatprep.subr.mxu0 0.0
        %8341 = vmatpush1.msra.mxu0 0.0
        %8342 = vmatprep.mubr.f32.mxu0 0.0
        %8343 = vmatmul.mubr.f32.gmra.mrb[0].mxu0 %v7377
        %v8344 = vpop.f32.mrb[0].mxu0
        %v8345 = vadd.f32 %v7359, %v8344
        %v8346 = vpop.f32.mrb[0].mxu0
        %v8347 = vadd.f32 %v7359, %v8346
        %8348 = vmatprep.mubr.f32.mxu0 0.0
        %8349 = vmatmul.mubr.f32.gmra.mrb[0].mxu0 %v7380
        %v8350 = vpop.f32.mrb[0].mxu0
        %v8351 = vadd.f32 %v7364, %v8350
        %v8352 = vpop.f32.mrb[0].mxu0
        %v8353 = vadd.f32 %v7364, %v8352
        %8354 = vmatprep.mubr.f32.mxu0 0.0
        %8355 = vmatmul.mubr.f32.gmra.mrb[0].mxu0 %v7383
        %v8356 = vpop.f32.mrb[0].mxu0
        %v8357 = vadd.f32 %v7369, %v8356
        %v8358 = vpop.f32.mrb[0].mxu0
        %v8359 = vadd.f32 %v7369, %v8358
        %8360 = vmatprep.mubr.f32.mxu0 0.0
        %8361 = vmatmul.mubr.f32.gmra.mrb[0].mxu0 %v7386
        %v8362 = vpop.f32.mrb[0].mxu0
        %v8363 = vadd.f32 %v7374, %v8362
        %v8364 = vpop.f32.mrb[0].mxu0
        %v8365 = vadd.f32 %v7374, %v8364
        %8366 = vdwg.mxu0
        %8367 = vmatprep.subr.mxu0 %v7243
        %8368 = vmatpush1.msra.mxu0 %v7242
        %8369 = vmatprep.subr.mxu0 %v7275
        %8370 = vmatpush1.msra.mxu0 %v7274
        %8371 = vmatprep.subr.mxu0 %v7307
        %8372 = vmatpush1.msra.mxu0 %v7306
        %8373 = vmatprep.subr.mxu0 %v7339
        %8374 = vmatpush1.msra.mxu0 %v7338
        %8375 = vmatprep.subr.mxu0 0.0
        %8376 = vmatpush1.msra.mxu0 0.0
        %8377 = vmatprep.subr.mxu0 0.0
        %8378 = vmatpush1.msra.mxu0 0.0
        %8379 = vmatprep.subr.mxu0 0.0
        %8380 = vmatpush1.msra.mxu0 0.0
        %8381 = vmatprep.subr.mxu0 0.0
        %8382 = vmatpush1.msra.mxu0 0.0
        %8383 = vmatprep.subr.mxu0 0.0
        %8384 = vmatpush1.msra.mxu0 0.0
        %8385 = vmatprep.subr.mxu0 0.0
        %8386 = vmatpush1.msra.mxu0 0.0
        %8387 = vmatprep.subr.mxu0 0.0
        %8388 = vmatpush1.msra.mxu0 0.0
        %8389 = vmatprep.subr.mxu0 0.0
        %8390 = vmatpush1.msra.mxu0 0.0
        %8391 = vmatprep.subr.mxu0 0.0
        %8392 = vmatpush1.msra.mxu0 0.0
        %8393 = vmatprep.subr.mxu0 0.0
        %8394 = vmatpush1.msra.mxu0 0.0
        %8395 = vmatprep.subr.mxu0 0.0
        %8396 = vmatpush1.msra.mxu0 0.0
        %8397 = vmatprep.subr.mxu0 0.0
        %8398 = vmatpush1.msra.mxu0 0.0
        %8399 = vmatprep.subr.mxu0 0.0
        %8400 = vmatpush1.msra.mxu0 0.0
        %8401 = vmatprep.subr.mxu0 0.0
        %8402 = vmatpush1.msra.mxu0 0.0
        %8403 = vmatprep.subr.mxu0 0.0
        %8404 = vmatpush1.msra.mxu0 0.0
        %8405 = vmatprep.subr.mxu0 0.0
        %8406 = vmatpush1.msra.mxu0 0.0
        %8407 = vmatprep.subr.mxu0 0.0
        %8408 = vmatpush1.msra.mxu0 0.0
        %8409 = vmatprep.subr.mxu0 0.0
        %8410 = vmatpush1.msra.mxu0 0.0
        %8411 = vmatprep.subr.mxu0 0.0
        %8412 = vmatpush1.msra.mxu0 0.0
        %8413 = vmatprep.subr.mxu0 0.0
        %8414 = vmatpush1.msra.mxu0 0.0
        %8415 = vmatprep.subr.mxu0 0.0
        %8416 = vmatpush1.msra.mxu0 0.0
        %8417 = vmatprep.subr.mxu0 0.0
        %8418 = vmatpush1.msra.mxu0 0.0
        %8419 = vmatprep.subr.mxu0 0.0
        %8420 = vmatpush1.msra.mxu0 0.0
        %8421 = vmatprep.subr.mxu0 0.0
        %8422 = vmatpush1.msra.mxu0 0.0
        %8423 = vmatprep.subr.mxu0 0.0
        %8424 = vmatpush1.msra.mxu0 0.0
        %8425 = vmatprep.subr.mxu0 0.0
        %8426 = vmatpush1.msra.mxu0 0.0
        %8427 = vmatprep.subr.mxu0 0.0
        %8428 = vmatpush1.msra.mxu0 0.0
        %8429 = vmatprep.subr.mxu0 0.0
        %8430 = vmatpush1.msra.mxu0 0.0
        %8431 = vmatprep.mubr.f32.mxu0 0.0
        %8432 = vmatmul.mubr.f32.gmra.mrb[0].mxu0 %v7377
        %v8433 = vpop.f32.mrb[0].mxu0
        %v8434 = vadd.f32 %v7359, %v8433
        %v8435 = vpop.f32.mrb[0].mxu0
        %v8436 = vadd.f32 %v7359, %v8435
        %8437 = vmatprep.mubr.f32.mxu0 0.0
        %8438 = vmatmul.mubr.f32.gmra.mrb[0].mxu0 %v7380
        %v8439 = vpop.f32.mrb[0].mxu0
        %v8440 = vadd.f32 %v7364, %v8439
        %v8441 = vpop.f32.mrb[0].mxu0
        %v8442 = vadd.f32 %v7364, %v8441
        %8443 = vmatprep.mubr.f32.mxu0 0.0
        %8444 = vmatmul.mubr.f32.gmra.mrb[0].mxu0 %v7383
        %v8445 = vpop.f32.mrb[0].mxu0
        %v8446 = vadd.f32 %v7369, %v8445
        %v8447 = vpop.f32.mrb[0].mxu0
        %v8448 = vadd.f32 %v7369, %v8447
        %8449 = vmatprep.mubr.f32.mxu0 0.0
        %8450 = vmatmul.mubr.f32.gmra.mrb[0].mxu0 %v7386
        %v8451 = vpop.f32.mrb[0].mxu0
        %v8452 = vadd.f32 %v7374, %v8451
        %v8453 = vpop.f32.mrb[0].mxu0
        %v8454 = vadd.f32 %v7374, %v8453
        %8455 = vdwg.mxu0
        %8456 = vmatprep.subr.mxu0 %v7245
        %8457 = vmatpush1.msra.mxu0 %v7244
        %8458 = vmatprep.subr.mxu0 %v7277
        %8459 = vmatpush1.msra.mxu0 %v7276
        %8460 = vmatprep.subr.mxu0 %v7309
        %8461 = vmatpush1.msra.mxu0 %v7308
        %8462 = vmatprep.subr.mxu0 %v7341
        %8463 = vmatpush1.msra.mxu0 %v7340
        %8464 = vmatprep.subr.mxu0 0.0
        %8465 = vmatpush1.msra.mxu0 0.0
        %8466 = vmatprep.subr.mxu0 0.0
        %8467 = vmatpush1.msra.mxu0 0.0
        %8468 = vmatprep.subr.mxu0 0.0
        %8469 = vmatpush1.msra.mxu0 0.0
        %8470 = vmatprep.subr.mxu0 0.0
        %8471 = vmatpush1.msra.mxu0 0.0
        %8472 = vmatprep.subr.mxu0 0.0
        %8473 = vmatpush1.msra.mxu0 0.0
        %8474 = vmatprep.subr.mxu0 0.0
        %8475 = vmatpush1.msra.mxu0 0.0
        %8476 = vmatprep.subr.mxu0 0.0
        %8477 = vmatpush1.msra.mxu0 0.0
        %8478 = vmatprep.subr.mxu0 0.0
        %8479 = vmatpush1.msra.mxu0 0.0
        %8480 = vmatprep.subr.mxu0 0.0
        %8481 = vmatpush1.msra.mxu0 0.0
        %8482 = vmatprep.subr.mxu0 0.0
        %8483 = vmatpush1.msra.mxu0 0.0
        %8484 = vmatprep.subr.mxu0 0.0
        %8485 = vmatpush1.msra.mxu0 0.0
        %8486 = vmatprep.subr.mxu0 0.0
        %8487 = vmatpush1.msra.mxu0 0.0
        %8488 = vmatprep.subr.mxu0 0.0
        %8489 = vmatpush1.msra.mxu0 0.0
        %8490 = vmatprep.subr.mxu0 0.0
        %8491 = vmatpush1.msra.mxu0 0.0
        %8492 = vmatprep.subr.mxu0 0.0
        %8493 = vmatpush1.msra.mxu0 0.0
        %8494 = vmatprep.subr.mxu0 0.0
        %8495 = vmatpush1.msra.mxu0 0.0
        %8496 = vmatprep.subr.mxu0 0.0
        %8497 = vmatpush1.msra.mxu0 0.0
        %8498 = vmatprep.subr.mxu0 0.0
        %8499 = vmatpush1.msra.mxu0 0.0
        %8500 = vmatprep.subr.mxu0 0.0
        %8501 = vmatpush1.msra.mxu0 0.0
        %8502 = vmatprep.subr.mxu0 0.0
        %8503 = vmatpush1.msra.mxu0 0.0
        %8504 = vmatprep.subr.mxu0 0.0
        %8505 = vmatpush1.msra.mxu0 0.0
        %8506 = vmatprep.subr.mxu0 0.0
        %8507 = vmatpush1.msra.mxu0 0.0
        %8508 = vmatprep.subr.mxu0 0.0
        %8509 = vmatpush1.msra.mxu0 0.0
        %8510 = vmatprep.subr.mxu0 0.0
        %8511 = vmatpush1.msra.mxu0 0.0
        %8512 = vmatprep.subr.mxu0 0.0
        %8513 = vmatpush1.msra.mxu0 0.0
        %8514 = vmatprep.subr.mxu0 0.0
        %8515 = vmatpush1.msra.mxu0 0.0
        %8516 = vmatprep.subr.mxu0 0.0
        %8517 = vmatpush1.msra.mxu0 0.0
        %8518 = vmatprep.subr.mxu0 0.0
        %8519 = vmatpush1.msra.mxu0 0.0
        %8520 = vmatprep.mubr.f32.mxu0 0.0
        %8521 = vmatmul.mubr.f32.gmra.mrb[0].mxu0 %v7377
        %v8522 = vpop.f32.mrb[0].mxu0
        %v8523 = vadd.f32 %v7359, %v8522
        %v8524 = vpop.f32.mrb[0].mxu0
        %v8525 = vadd.f32 %v7359, %v8524
        %8526 = vmatprep.mubr.f32.mxu0 0.0
        %8527 = vmatmul.mubr.f32.gmra.mrb[0].mxu0 %v7380
        %v8528 = vpop.f32.mrb[0].mxu0
        %v8529 = vadd.f32 %v7364, %v8528
        %v8530 = vpop.f32.mrb[0].mxu0
        %v8531 = vadd.f32 %v7364, %v8530
        %8532 = vmatprep.mubr.f32.mxu0 0.0
        %8533 = vmatmul.mubr.f32.gmra.mrb[0].mxu0 %v7383
        %v8534 = vpop.f32.mrb[0].mxu0
        %v8535 = vadd.f32 %v7369, %v8534
        %v8536 = vpop.f32.mrb[0].mxu0
        %v8537 = vadd.f32 %v7369, %v8536
        %8538 = vmatprep.mubr.f32.mxu0 0.0
        %8539 = vmatmul.mubr.f32.gmra.mrb[0].mxu0 %v7386
        %v8540 = vpop.f32.mrb[0].mxu0
        %v8541 = vadd.f32 %v7374, %v8540
        %v8542 = vpop.f32.mrb[0].mxu0
        %v8543 = vadd.f32 %v7374, %v8542
        %8544 = vdwg.mxu0
        %8545 = vmatprep.subr.mxu0 %v7247
        %8546 = vmatpush1.msra.mxu0 %v7246
        %8547 = vmatprep.subr.mxu0 %v7279
        %8548 = vmatpush1.msra.mxu0 %v7278
        %8549 = vmatprep.subr.mxu0 %v7311
        %8550 = vmatpush1.msra.mxu0 %v7310
        %8551 = vmatprep.subr.mxu0 %v7343
        %8552 = vmatpush1.msra.mxu0 %v7342
        %8553 = vmatprep.subr.mxu0 0.0
        %8554 = vmatpush1.msra.mxu0 0.0
        %8555 = vmatprep.subr.mxu0 0.0
        %8556 = vmatpush1.msra.mxu0 0.0
        %8557 = vmatprep.subr.mxu0 0.0
        %8558 = vmatpush1.msra.mxu0 0.0
        %8559 = vmatprep.subr.mxu0 0.0
        %8560 = vmatpush1.msra.mxu0 0.0
        %8561 = vmatprep.subr.mxu0 0.0
        %8562 = vmatpush1.msra.mxu0 0.0
        %8563 = vmatprep.subr.mxu0 0.0
        %8564 = vmatpush1.msra.mxu0 0.0
        %8565 = vmatprep.subr.mxu0 0.0
        %8566 = vmatpush1.msra.mxu0 0.0
        %8567 = vmatprep.subr.mxu0 0.0
        %8568 = vmatpush1.msra.mxu0 0.0
        %8569 = vmatprep.subr.mxu0 0.0
        %8570 = vmatpush1.msra.mxu0 0.0
        %8571 = vmatprep.subr.mxu0 0.0
        %8572 = vmatpush1.msra.mxu0 0.0
        %8573 = vmatprep.subr.mxu0 0.0
        %8574 = vmatpush1.msra.mxu0 0.0
        %8575 = vmatprep.subr.mxu0 0.0
        %8576 = vmatpush1.msra.mxu0 0.0
        %8577 = vmatprep.subr.mxu0 0.0
        %8578 = vmatpush1.msra.mxu0 0.0
        %8579 = vmatprep.subr.mxu0 0.0
        %8580 = vmatpush1.msra.mxu0 0.0
        %8581 = vmatprep.subr.mxu0 0.0
        %8582 = vmatpush1.msra.mxu0 0.0
        %8583 = vmatprep.subr.mxu0 0.0
        %8584 = vmatpush1.msra.mxu0 0.0
        %8585 = vmatprep.subr.mxu0 0.0
        %8586 = vmatpush1.msra.mxu0 0.0
        %8587 = vmatprep.subr.mxu0 0.0
        %8588 = vmatpush1.msra.mxu0 0.0
        %8589 = vmatprep.subr.mxu0 0.0
        %8590 = vmatpush1.msra.mxu0 0.0
        %8591 = vmatprep.subr.mxu0 0.0
        %8592 = vmatpush1.msra.mxu0 0.0
        %8593 = vmatprep.subr.mxu0 0.0
        %8594 = vmatpush1.msra.mxu0 0.0
        %8595 = vmatprep.subr.mxu0 0.0
        %8596 = vmatpush1.msra.mxu0 0.0
        %8597 = vmatprep.subr.mxu0 0.0
        %8598 = vmatpush1.msra.mxu0 0.0
        %8599 = vmatprep.subr.mxu0 0.0
        %8600 = vmatpush1.msra.mxu0 0.0
        %8601 = vmatprep.subr.mxu0 0.0
        %8602 = vmatpush1.msra.mxu0 0.0
        %8603 = vmatprep.subr.mxu0 0.0
        %8604 = vmatpush1.msra.mxu0 0.0
        %8605 = vmatprep.subr.mxu0 0.0
        %8606 = vmatpush1.msra.mxu0 0.0
        %8607 = vmatprep.subr.mxu0 0.0
        %8608 = vmatpush1.msra.mxu0 0.0
        %8609 = vmatprep.mubr.f32.mxu0 0.0
        %8610 = vmatmul.mubr.f32.gmra.mrb[0].mxu0 %v7377
        %v8611 = vpop.f32.mrb[0].mxu0
        %v8612 = vadd.f32 %v7359, %v8611
        %v8613 = vpop.f32.mrb[0].mxu0
        %v8614 = vadd.f32 %v7359, %v8613
        %8615 = vmatprep.mubr.f32.mxu0 0.0
        %8616 = vmatmul.mubr.f32.gmra.mrb[0].mxu0 %v7380
        %v8617 = vpop.f32.mrb[0].mxu0
        %v8618 = vadd.f32 %v7364, %v8617
        %v8619 = vpop.f32.mrb[0].mxu0
        %v8620 = vadd.f32 %v7364, %v8619
        %8621 = vmatprep.mubr.f32.mxu0 0.0
        %8622 = vmatmul.mubr.f32.gmra.mrb[0].mxu0 %v7383
        %v8623 = vpop.f32.mrb[0].mxu0
        %v8624 = vadd.f32 %v7369, %v8623
        %v8625 = vpop.f32.mrb[0].mxu0
        %v8626 = vadd.f32 %v7369, %v8625
        %8627 = vmatprep.mubr.f32.mxu0 0.0
        %8628 = vmatmul.mubr.f32.gmra.mrb[0].mxu0 %v7386
        %v8629 = vpop.f32.mrb[0].mxu0
        %v8630 = vadd.f32 %v7374, %v8629
        %v8631 = vpop.f32.mrb[0].mxu0
        %v8632 = vadd.f32 %v7374, %v8631
        %8633 = vdwg.mxu0
        %8634 = vmatprep.subr.mxu0 %v7249
        %8635 = vmatpush1.msra.mxu0 %v7248
        %8636 = vmatprep.subr.mxu0 %v7281
        %8637 = vmatpush1.msra.mxu0 %v7280
        %8638 = vmatprep.subr.mxu0 %v7313
        %8639 = vmatpush1.msra.mxu0 %v7312
        %8640 = vmatprep.subr.mxu0 %v7345
        %8641 = vmatpush1.msra.mxu0 %v7344
        %8642 = vmatprep.subr.mxu0 0.0
        %8643 = vmatpush1.msra.mxu0 0.0
        %8644 = vmatprep.subr.mxu0 0.0
        %8645 = vmatpush1.msra.mxu0 0.0
        %8646 = vmatprep.subr.mxu0 0.0
        %8647 = vmatpush1.msra.mxu0 0.0
        %8648 = vmatprep.subr.mxu0 0.0
        %8649 = vmatpush1.msra.mxu0 0.0
        %8650 = vmatprep.subr.mxu0 0.0
        %8651 = vmatpush1.msra.mxu0 0.0
        %8652 = vmatprep.subr.mxu0 0.0
        %8653 = vmatpush1.msra.mxu0 0.0
        %8654 = vmatprep.subr.mxu0 0.0
        %8655 = vmatpush1.msra.mxu0 0.0
        %8656 = vmatprep.subr.mxu0 0.0
        %8657 = vmatpush1.msra.mxu0 0.0
        %8658 = vmatprep.subr.mxu0 0.0
        %8659 = vmatpush1.msra.mxu0 0.0
        %8660 = vmatprep.subr.mxu0 0.0
        %8661 = vmatpush1.msra.mxu0 0.0
        %8662 = vmatprep.subr.mxu0 0.0
        %8663 = vmatpush1.msra.mxu0 0.0
        %8664 = vmatprep.subr.mxu0 0.0
        %8665 = vmatpush1.msra.mxu0 0.0
        %8666 = vmatprep.subr.mxu0 0.0
        %8667 = vmatpush1.msra.mxu0 0.0
        %8668 = vmatprep.subr.mxu0 0.0
        %8669 = vmatpush1.msra.mxu0 0.0
        %8670 = vmatprep.subr.mxu0 0.0
        %8671 = vmatpush1.msra.mxu0 0.0
        %8672 = vmatprep.subr.mxu0 0.0
        %8673 = vmatpush1.msra.mxu0 0.0
        %8674 = vmatprep.subr.mxu0 0.0
        %8675 = vmatpush1.msra.mxu0 0.0
        %8676 = vmatprep.subr.mxu0 0.0
        %8677 = vmatpush1.msra.mxu0 0.0
        %8678 = vmatprep.subr.mxu0 0.0
        %8679 = vmatpush1.msra.mxu0 0.0
        %8680 = vmatprep.subr.mxu0 0.0
        %8681 = vmatpush1.msra.mxu0 0.0
        %8682 = vmatprep.subr.mxu0 0.0
        %8683 = vmatpush1.msra.mxu0 0.0
        %8684 = vmatprep.subr.mxu0 0.0
        %8685 = vmatpush1.msra.mxu0 0.0
        %8686 = vmatprep.subr.mxu0 0.0
        %8687 = vmatpush1.msra.mxu0 0.0
        %8688 = vmatprep.subr.mxu0 0.0
        %8689 = vmatpush1.msra.mxu0 0.0
        %8690 = vmatprep.subr.mxu0 0.0
        %8691 = vmatpush1.msra.mxu0 0.0
        %8692 = vmatprep.subr.mxu0 0.0
        %8693 = vmatpush1.msra.mxu0 0.0
        %8694 = vmatprep.subr.mxu0 0.0
        %8695 = vmatpush1.msra.mxu0 0.0
        %8696 = vmatprep.subr.mxu0 0.0
        %8697 = vmatpush1.msra.mxu0 0.0
        %8698 = vmatprep.mubr.f32.mxu0 0.0
        %8699 = vmatmul.mubr.f32.gmra.mrb[0].mxu0 %v7377
        %v8700 = vpop.f32.mrb[0].mxu0
        %v8701 = vadd.f32 %v7359, %v8700
        %v8702 = vpop.f32.mrb[0].mxu0
        %v8703 = vadd.f32 %v7359, %v8702
        %8704 = vmatprep.mubr.f32.mxu0 0.0
        %8705 = vmatmul.mubr.f32.gmra.mrb[0].mxu0 %v7380
        %v8706 = vpop.f32.mrb[0].mxu0
        %v8707 = vadd.f32 %v7364, %v8706
        %v8708 = vpop.f32.mrb[0].mxu0
        %v8709 = vadd.f32 %v7364, %v8708
        %8710 = vmatprep.mubr.f32.mxu0 0.0
        %8711 = vmatmul.mubr.f32.gmra.mrb[0].mxu0 %v7383
        %v8712 = vpop.f32.mrb[0].mxu0
        %v8713 = vadd.f32 %v7369, %v8712
        %v8714 = vpop.f32.mrb[0].mxu0
        %v8715 = vadd.f32 %v7369, %v8714
        %8716 = vmatprep.mubr.f32.mxu0 0.0
        %8717 = vmatmul.mubr.f32.gmra.mrb[0].mxu0 %v7386
        %v8718 = vpop.f32.mrb[0].mxu0
        %v8719 = vadd.f32 %v7374, %v8718
        %v8720 = vpop.f32.mrb[0].mxu0
        %v8721 = vadd.f32 %v7374, %v8720
        %8722 = vdwg.mxu0
        %8723 = vmatprep.subr.mxu0 %v7251
        %8724 = vmatpush1.msra.mxu0 %v7250
        %8725 = vmatprep.subr.mxu0 %v7283
        %8726 = vmatpush1.msra.mxu0 %v7282
        %8727 = vmatprep.subr.mxu0 %v7315
        %8728 = vmatpush1.msra.mxu0 %v7314
        %8729 = vmatprep.subr.mxu0 %v7347
        %8730 = vmatpush1.msra.mxu0 %v7346
        %8731 = vmatprep.subr.mxu0 0.0
        %8732 = vmatpush1.msra.mxu0 0.0
        %8733 = vmatprep.subr.mxu0 0.0
        %8734 = vmatpush1.msra.mxu0 0.0
        %8735 = vmatprep.subr.mxu0 0.0
        %8736 = vmatpush1.msra.mxu0 0.0
        %8737 = vmatprep.subr.mxu0 0.0
        %8738 = vmatpush1.msra.mxu0 0.0
        %8739 = vmatprep.subr.mxu0 0.0
        %8740 = vmatpush1.msra.mxu0 0.0
        %8741 = vmatprep.subr.mxu0 0.0
        %8742 = vmatpush1.msra.mxu0 0.0
        %8743 = vmatprep.subr.mxu0 0.0
        %8744 = vmatpush1.msra.mxu0 0.0
        %8745 = vmatprep.subr.mxu0 0.0
        %8746 = vmatpush1.msra.mxu0 0.0
        %8747 = vmatprep.subr.mxu0 0.0
        %8748 = vmatpush1.msra.mxu0 0.0
        %8749 = vmatprep.subr.mxu0 0.0
        %8750 = vmatpush1.msra.mxu0 0.0
        %8751 = vmatprep.subr.mxu0 0.0
        %8752 = vmatpush1.msra.mxu0 0.0
        %8753 = vmatprep.subr.mxu0 0.0
        %8754 = vmatpush1.msra.mxu0 0.0
        %8755 = vmatprep.subr.mxu0 0.0
        %8756 = vmatpush1.msra.mxu0 0.0
        %8757 = vmatprep.subr.mxu0 0.0
        %8758 = vmatpush1.msra.mxu0 0.0
        %8759 = vmatprep.subr.mxu0 0.0
        %8760 = vmatpush1.msra.mxu0 0.0
        %8761 = vmatprep.subr.mxu0 0.0
        %8762 = vmatpush1.msra.mxu0 0.0
        %8763 = vmatprep.subr.mxu0 0.0
        %8764 = vmatpush1.msra.mxu0 0.0
        %8765 = vmatprep.subr.mxu0 0.0
        %8766 = vmatpush1.msra.mxu0 0.0
        %8767 = vmatprep.subr.mxu0 0.0
        %8768 = vmatpush1.msra.mxu0 0.0
        %8769 = vmatprep.subr.mxu0 0.0
        %8770 = vmatpush1.msra.mxu0 0.0
        %8771 = vmatprep.subr.mxu0 0.0
        %8772 = vmatpush1.msra.mxu0 0.0
        %8773 = vmatprep.subr.mxu0 0.0
        %8774 = vmatpush1.msra.mxu0 0.0
        %8775 = vmatprep.subr.mxu0 0.0
        %8776 = vmatpush1.msra.mxu0 0.0
        %8777 = vmatprep.subr.mxu0 0.0
        %8778 = vmatpush1.msra.mxu0 0.0
        %8779 = vmatprep.subr.mxu0 0.0
        %8780 = vmatpush1.msra.mxu0 0.0
        %8781 = vmatprep.subr.mxu0 0.0
        %8782 = vmatpush1.msra.mxu0 0.0
        %8783 = vmatprep.subr.mxu0 0.0
        %8784 = vmatpush1.msra.mxu0 0.0
        %8785 = vmatprep.subr.mxu0 0.0
        %8786 = vmatpush1.msra.mxu0 0.0
        %8787 = vmatprep.mubr.f32.mxu0 0.0
        %8788 = vmatmul.mubr.f32.gmra.mrb[0].mxu0 %v7377
        %v8789 = vpop.f32.mrb[0].mxu0
        %v8790 = vadd.f32 %v7359, %v8789
        %v8791 = vpop.f32.mrb[0].mxu0
        %v8792 = vadd.f32 %v7359, %v8791
        %8793 = vmatprep.mubr.f32.mxu0 0.0
        %8794 = vmatmul.mubr.f32.gmra.mrb[0].mxu0 %v7380
        %v8795 = vpop.f32.mrb[0].mxu0
        %v8796 = vadd.f32 %v7364, %v8795
        %v8797 = vpop.f32.mrb[0].mxu0
        %v8798 = vadd.f32 %v7364, %v8797
        %8799 = vmatprep.mubr.f32.mxu0 0.0
        %8800 = vmatmul.mubr.f32.gmra.mrb[0].mxu0 %v7383
        %v8801 = vpop.f32.mrb[0].mxu0
        %v8802 = vadd.f32 %v7369, %v8801
        %v8803 = vpop.f32.mrb[0].mxu0
        %v8804 = vadd.f32 %v7369, %v8803
        %8805 = vmatprep.mubr.f32.mxu0 0.0
        %8806 = vmatmul.mubr.f32.gmra.mrb[0].mxu0 %v7386
        %v8807 = vpop.f32.mrb[0].mxu0
        %v8808 = vadd.f32 %v7374, %v8807
        %v8809 = vpop.f32.mrb[0].mxu0
        %v8810 = vadd.f32 %v7374, %v8809
        %8811 = vdwg.mxu0
        %v8812 = vmul.f32 %v7455, %v4475
        %v8813 = vmul.f32 %v7457, %v4476
        %v8814 = vmul.f32 %v7544, %v4477
        %v8815 = vmul.f32 %v7546, %v4478
        %v8816 = vmul.f32 %v7633, %v4479
        %v8817 = vmul.f32 %v7635, %v4480
        %v8818 = vmul.f32 %v7722, %v4481
        %v8819 = vmul.f32 %v7724, %v4482
        %v8820 = vmul.f32 %v7811, %v4483
        %v8821 = vmul.f32 %v7813, %v4484
        %v8822 = vmul.f32 %v7900, %v4485
        %v8823 = vmul.f32 %v7902, %v4486
        %v8824 = vmul.f32 %v7989, %v4487
        %v8825 = vmul.f32 %v7991, %v4488
        %v8826 = vmul.f32 %v8078, %v4489
        %v8827 = vmul.f32 %v8080, %v4490
        %v8828 = vmul.f32 %v8167, %v4491
        %v8829 = vmul.f32 %v8169, %v4492
        %v8830 = vmul.f32 %v8256, %v4493
        %v8831 = vmul.f32 %v8258, %v4494
        %v8832 = vmul.f32 %v8345, %v4495
        %v8833 = vmul.f32 %v8347, %v4496
        %v8834 = vmul.f32 %v8434, %v4497
        %v8835 = vmul.f32 %v8436, %v4498
        %v8836 = vmul.f32 %v8523, %v4499
        %v8837 = vmul.f32 %v8525, %v4500
        %v8838 = vmul.f32 %v8612, %v4501
        %v8839 = vmul.f32 %v8614, %v4502
        %v8840 = vmul.f32 %v8701, %v4503
        %v8841 = vmul.f32 %v8703, %v4504
        %v8842 = vmul.f32 %v8790, %v4505
        %v8843 = vmul.f32 %v8792, %v4506
        %v8844 = vmul.f32 %v7461, %v4507
        %v8845 = vmul.f32 %v7463, %v4508
        %v8846 = vmul.f32 %v7550, %v4509
        %v8847 = vmul.f32 %v7552, %v4510
        %v8848 = vmul.f32 %v7639, %v4511
        %v8849 = vmul.f32 %v7641, %v4512
        %v8850 = vmul.f32 %v7728, %v4513
        %v8851 = vmul.f32 %v7730, %v4514
        %v8852 = vmul.f32 %v7817, %v4515
        %v8853 = vmul.f32 %v7819, %v4516
        %v8854 = vmul.f32 %v7906, %v4517
        %v8855 = vmul.f32 %v7908, %v4518
        %v8856 = vmul.f32 %v7995, %v4519
        %v8857 = vmul.f32 %v7997, %v4520
        %v8858 = vmul.f32 %v8084, %v4521
        %v8859 = vmul.f32 %v8086, %v4522
        %v8860 = vmul.f32 %v8173, %v4523
        %v8861 = vmul.f32 %v8175, %v4524
        %v8862 = vmul.f32 %v8262, %v4525
        %v8863 = vmul.f32 %v8264, %v4526
        %v8864 = vmul.f32 %v8351, %v4527
        %v8865 = vmul.f32 %v8353, %v4528
        %v8866 = vmul.f32 %v8440, %v4529
        %v8867 = vmul.f32 %v8442, %v4530
        %v8868 = vmul.f32 %v8529, %v4531
        %v8869 = vmul.f32 %v8531, %v4532
        %v8870 = vmul.f32 %v8618, %v4533
        %v8871 = vmul.f32 %v8620, %v4534
        %v8872 = vmul.f32 %v8707, %v4535
        %v8873 = vmul.f32 %v8709, %v4536
        %v8874 = vmul.f32 %v8796, %v4537
        %v8875 = vmul.f32 %v8798, %v4538
        %v8876 = vmul.f32 %v7467, %v4539
        %v8877 = vmul.f32 %v7469, %v4540
        %v8878 = vmul.f32 %v7556, %v4541
        %v8879 = vmul.f32 %v7558, %v4542
        %v8880 = vmul.f32 %v7645, %v4543
        %v8881 = vmul.f32 %v7647, %v4544
        %v8882 = vmul.f32 %v7734, %v4545
        %v8883 = vmul.f32 %v7736, %v4546
        %v8884 = vmul.f32 %v7823, %v4547
        %v8885 = vmul.f32 %v7825, %v4548
        %v8886 = vmul.f32 %v7912, %v4549
        %v8887 = vmul.f32 %v7914, %v4550
        %v8888 = vmul.f32 %v8001, %v4551
        %v8889 = vmul.f32 %v8003, %v4552
        %v8890 = vmul.f32 %v8090, %v4553
        %v8891 = vmul.f32 %v8092, %v4554
        %v8892 = vmul.f32 %v8179, %v4555
        %v8893 = vmul.f32 %v8181, %v4556
        %v8894 = vmul.f32 %v8268, %v4557
        %v8895 = vmul.f32 %v8270, %v4558
        %v8896 = vmul.f32 %v8357, %v4559
        %v8897 = vmul.f32 %v8359, %v4560
        %v8898 = vmul.f32 %v8446, %v4561
        %v8899 = vmul.f32 %v8448, %v4562
        %v8900 = vmul.f32 %v8535, %v4563
        %v8901 = vmul.f32 %v8537, %v4564
        %v8902 = vmul.f32 %v8624, %v4565
        %v8903 = vmul.f32 %v8626, %v4566
        %v8904 = vmul.f32 %v8713, %v4567
        %v8905 = vmul.f32 %v8715, %v4568
        %v8906 = vmul.f32 %v8802, %v4569
        %v8907 = vmul.f32 %v8804, %v4570
        %v8908 = vmul.f32 %v7473, %v4571
        %v8909 = vmul.f32 %v7475, %v4572
        %v8910 = vmul.f32 %v7562, %v4573
        %v8911 = vmul.f32 %v7564, %v4574
        %v8912 = vmul.f32 %v7651, %v4575
        %v8913 = vmul.f32 %v7653, %v4576
        %v8914 = vmul.f32 %v7740, %v4577
        %v8915 = vmul.f32 %v7742, %v4578
        %v8916 = vmul.f32 %v7829, %v4579
        %v8917 = vmul.f32 %v7831, %v4580
        %v8918 = vmul.f32 %v7918, %v4581
        %v8919 = vmul.f32 %v7920, %v4582
        %v8920 = vmul.f32 %v8007, %v4583
        %v8921 = vmul.f32 %v8009, %v4584
        %v8922 = vmul.f32 %v8096, %v4585
        %v8923 = vmul.f32 %v8098, %v4586
        %v8924 = vmul.f32 %v8185, %v4587
        %v8925 = vmul.f32 %v8187, %v4588
        %v8926 = vmul.f32 %v8274, %v4589
        %v8927 = vmul.f32 %v8276, %v4590
        %v8928 = vmul.f32 %v8363, %v4591
        %v8929 = vmul.f32 %v8365, %v4592
        %v8930 = vmul.f32 %v8452, %v4593
        %v8931 = vmul.f32 %v8454, %v4594
        %v8932 = vmul.f32 %v8541, %v4595
        %v8933 = vmul.f32 %v8543, %v4596
        %v8934 = vmul.f32 %v8630, %v4597
        %v8935 = vmul.f32 %v8632, %v4598
        %v8936 = vmul.f32 %v8719, %v4599
        %v8937 = vmul.f32 %v8721, %v4600
        %v8938 = vmul.f32 %v8808, %v4601
        %v8939 = vmul.f32 %v8810, %v4602
        %v8940 = vadd.f32 %v4347, %v8812
        %v8941 = vadd.f32 %v4348, %v8813
        %v8942 = vadd.f32 %v4349, %v8814
        %v8943 = vadd.f32 %v4350, %v8815
        %v8944 = vadd.f32 %v4351, %v8816
        %v8945 = vadd.f32 %v4352, %v8817
        %v8946 = vadd.f32 %v4353, %v8818
        %v8947 = vadd.f32 %v4354, %v8819
        %v8948 = vadd.f32 %v4355, %v8820
        %v8949 = vadd.f32 %v4356, %v8821
        %v8950 = vadd.f32 %v4357, %v8822
        %v8951 = vadd.f32 %v4358, %v8823
        %v8952 = vadd.f32 %v4359, %v8824
        %v8953 = vadd.f32 %v4360, %v8825
        %v8954 = vadd.f32 %v4361, %v8826
        %v8955 = vadd.f32 %v4362, %v8827
        %v8956 = vadd.f32 %v4363, %v8828
        %v8957 = vadd.f32 %v4364, %v8829
        %v8958 = vadd.f32 %v4365, %v8830
        %v8959 = vadd.f32 %v4366, %v8831
        %v8960 = vadd.f32 %v4367, %v8832
        %v8961 = vadd.f32 %v4368, %v8833
        %v8962 = vadd.f32 %v4369, %v8834
        %v8963 = vadd.f32 %v4370, %v8835
        %v8964 = vadd.f32 %v4371, %v8836
        %v8965 = vadd.f32 %v4372, %v8837
        %v8966 = vadd.f32 %v4373, %v8838
        %v8967 = vadd.f32 %v4374, %v8839
        %v8968 = vadd.f32 %v4375, %v8840
        %v8969 = vadd.f32 %v4376, %v8841
        %v8970 = vadd.f32 %v4377, %v8842
        %v8971 = vadd.f32 %v4378, %v8843
        %v8972 = vadd.f32 %v4379, %v8844
        %v8973 = vadd.f32 %v4380, %v8845
        %v8974 = vadd.f32 %v4381, %v8846
        %v8975 = vadd.f32 %v4382, %v8847
        %v8976 = vadd.f32 %v4383, %v8848
        %v8977 = vadd.f32 %v4384, %v8849
        %v8978 = vadd.f32 %v4385, %v8850
        %v8979 = vadd.f32 %v4386, %v8851
        %v8980 = vadd.f32 %v4387, %v8852
        %v8981 = vadd.f32 %v4388, %v8853
        %v8982 = vadd.f32 %v4389, %v8854
        %v8983 = vadd.f32 %v4390, %v8855
        %v8984 = vadd.f32 %v4391, %v8856
        %v8985 = vadd.f32 %v4392, %v8857
        %v8986 = vadd.f32 %v4393, %v8858
        %v8987 = vadd.f32 %v4394, %v8859
        %v8988 = vadd.f32 %v4395, %v8860
        %v8989 = vadd.f32 %v4396, %v8861
        %v8990 = vadd.f32 %v4397, %v8862
        %v8991 = vadd.f32 %v4398, %v8863
        %v8992 = vadd.f32 %v4399, %v8864
        %v8993 = vadd.f32 %v4400, %v8865
        %v8994 = vadd.f32 %v4401, %v8866
        %v8995 = vadd.f32 %v4402, %v8867
        %v8996 = vadd.f32 %v4403, %v8868
        %v8997 = vadd.f32 %v4404, %v8869
        %v8998 = vadd.f32 %v4405, %v8870
        %v8999 = vadd.f32 %v4406, %v8871
        %v9000 = vadd.f32 %v4407, %v8872
        %v9001 = vadd.f32 %v4408, %v8873
        %v9002 = vadd.f32 %v4409, %v8874
        %v9003 = vadd.f32 %v4410, %v8875
        %v9004 = vadd.f32 %v4411, %v8876
        %v9005 = vadd.f32 %v4412, %v8877
        %v9006 = vadd.f32 %v4413, %v8878
        %v9007 = vadd.f32 %v4414, %v8879
        %v9008 = vadd.f32 %v4415, %v8880
        %v9009 = vadd.f32 %v4416, %v8881
        %v9010 = vadd.f32 %v4417, %v8882
        %v9011 = vadd.f32 %v4418, %v8883
        %v9012 = vadd.f32 %v4419, %v8884
        %v9013 = vadd.f32 %v4420, %v8885
        %v9014 = vadd.f32 %v4421, %v8886
        %v9015 = vadd.f32 %v4422, %v8887
        %v9016 = vadd.f32 %v4423, %v8888
        %v9017 = vadd.f32 %v4424, %v8889
        %v9018 = vadd.f32 %v4425, %v8890
        %v9019 = vadd.f32 %v4426, %v8891
        %v9020 = vadd.f32 %v4427, %v8892
        %v9021 = vadd.f32 %v4428, %v8893
        %v9022 = vadd.f32 %v4429, %v8894
        %v9023 = vadd.f32 %v4430, %v8895
        %v9024 = vadd.f32 %v4431, %v8896
        %v9025 = vadd.f32 %v4432, %v8897
        %v9026 = vadd.f32 %v4433, %v8898
        %v9027 = vadd.f32 %v4434, %v8899
        %v9028 = vadd.f32 %v4435, %v8900
        %v9029 = vadd.f32 %v4436, %v8901
        %v9030 = vadd.f32 %v4437, %v8902
        %v9031 = vadd.f32 %v4438, %v8903
        %v9032 = vadd.f32 %v4439, %v8904
        %v9033 = vadd.f32 %v4440, %v8905
        %v9034 = vadd.f32 %v4441, %v8906
        %v9035 = vadd.f32 %v4442, %v8907
        %v9036 = vadd.f32 %v4443, %v8908
        %v9037 = vadd.f32 %v4444, %v8909
        %v9038 = vadd.f32 %v4445, %v8910
        %v9039 = vadd.f32 %v4446, %v8911
        %v9040 = vadd.f32 %v4447, %v8912
        %v9041 = vadd.f32 %v4448, %v8913
        %v9042 = vadd.f32 %v4449, %v8914
        %v9043 = vadd.f32 %v4450, %v8915
        %v9044 = vadd.f32 %v4451, %v8916
        %v9045 = vadd.f32 %v4452, %v8917
        %v9046 = vadd.f32 %v4453, %v8918
        %v9047 = vadd.f32 %v4454, %v8919
        %v9048 = vadd.f32 %v4455, %v8920
        %v9049 = vadd.f32 %v4456, %v8921
        %v9050 = vadd.f32 %v4457, %v8922
        %v9051 = vadd.f32 %v4458, %v8923
        %v9052 = vadd.f32 %v4459, %v8924
        %v9053 = vadd.f32 %v4460, %v8925
        %v9054 = vadd.f32 %v4461, %v8926
        %v9055 = vadd.f32 %v4462, %v8927
        %v9056 = vadd.f32 %v4463, %v8928
        %v9057 = vadd.f32 %v4464, %v8929
        %v9058 = vadd.f32 %v4465, %v8930
        %v9059 = vadd.f32 %v4466, %v8931
        %v9060 = vadd.f32 %v4467, %v8932
        %v9061 = vadd.f32 %v4468, %v8933
        %v9062 = vadd.f32 %v4469, %v8934
        %v9063 = vadd.f32 %v4470, %v8935
        %v9064 = vadd.f32 %v4471, %v8936
        %v9065 = vadd.f32 %v4472, %v8937
        %v9066 = vadd.f32 %v4473, %v8938
        %v9067 = vadd.f32 %v4474, %v8939
        %v9068 = vtanh.pop %v8940
        %v9069 = vtanh.pop %v8941
        %v9070 = vtanh.pop %v8942
        %v9071 = vtanh.pop %v8943
        %v9072 = vtanh.pop %v8944
        %v9073 = vtanh.pop %v8945
        %v9074 = vtanh.pop %v8946
        %v9075 = vtanh.pop %v8947
        %v9076 = vtanh.pop %v8948
        %v9077 = vtanh.pop %v8949
        %v9078 = vtanh.pop %v8950
        %v9079 = vtanh.pop %v8951
        %v9080 = vtanh.pop %v8952
        %v9081 = vtanh.pop %v8953
        %v9082 = vtanh.pop %v8954
        %v9083 = vtanh.pop %v8955
        %v9084 = vtanh.pop %v8956
        %v9085 = vtanh.pop %v8957
        %v9086 = vtanh.pop %v8958
        %v9087 = vtanh.pop %v8959
        %v9088 = vtanh.pop %v8960
        %v9089 = vtanh.pop %v8961
        %v9090 = vtanh.pop %v8962
        %v9091 = vtanh.pop %v8963
        %v9092 = vtanh.pop %v8964
        %v9093 = vtanh.pop %v8965
        %v9094 = vtanh.pop %v8966
        %v9095 = vtanh.pop %v8967
        %v9096 = vtanh.pop %v8968
        %v9097 = vtanh.pop %v8969
        %v9098 = vtanh.pop %v8970
        %v9099 = vtanh.pop %v8971
        %v9100 = vtanh.pop %v8972
        %v9101 = vtanh.pop %v8973
        %v9102 = vtanh.pop %v8974
        %v9103 = vtanh.pop %v8975
        %v9104 = vtanh.pop %v8976
        %v9105 = vtanh.pop %v8977
        %v9106 = vtanh.pop %v8978
        %v9107 = vtanh.pop %v8979
        %v9108 = vtanh.pop %v8980
        %v9109 = vtanh.pop %v8981
        %v9110 = vtanh.pop %v8982
        %v9111 = vtanh.pop %v8983
        %v9112 = vtanh.pop %v8984
        %v9113 = vtanh.pop %v8985
        %v9114 = vtanh.pop %v8986
        %v9115 = vtanh.pop %v8987
        %v9116 = vtanh.pop %v8988
        %v9117 = vtanh.pop %v8989
        %v9118 = vtanh.pop %v8990
        %v9119 = vtanh.pop %v8991
        %v9120 = vtanh.pop %v8992
        %v9121 = vtanh.pop %v8993
        %v9122 = vtanh.pop %v8994
        %v9123 = vtanh.pop %v8995
        %v9124 = vtanh.pop %v8996
        %v9125 = vtanh.pop %v8997
        %v9126 = vtanh.pop %v8998
        %v9127 = vtanh.pop %v8999
        %v9128 = vtanh.pop %v9000
        %v9129 = vtanh.pop %v9001
        %v9130 = vtanh.pop %v9002
        %v9131 = vtanh.pop %v9003
        %v9132 = vtanh.pop %v9004
        %v9133 = vtanh.pop %v9005
        %v9134 = vtanh.pop %v9006
        %v9135 = vtanh.pop %v9007
        %v9136 = vtanh.pop %v9008
        %v9137 = vtanh.pop %v9009
        %v9138 = vtanh.pop %v9010
        %v9139 = vtanh.pop %v9011
        %v9140 = vtanh.pop %v9012
        %v9141 = vtanh.pop %v9013
        %v9142 = vtanh.pop %v9014
        %v9143 = vtanh.pop %v9015
        %v9144 = vtanh.pop %v9016
        %v9145 = vtanh.pop %v9017
        %v9146 = vtanh.pop %v9018
        %v9147 = vtanh.pop %v9019
        %v9148 = vtanh.pop %v9020
        %v9149 = vtanh.pop %v9021
        %v9150 = vtanh.pop %v9022
        %v9151 = vtanh.pop %v9023
        %v9152 = vtanh.pop %v9024
        %v9153 = vtanh.pop %v9025
        %v9154 = vtanh.pop %v9026
        %v9155 = vtanh.pop %v9027
        %v9156 = vtanh.pop %v9028
        %v9157 = vtanh.pop %v9029
        %v9158 = vtanh.pop %v9030
        %v9159 = vtanh.pop %v9031
        %v9160 = vtanh.pop %v9032
        %v9161 = vtanh.pop %v9033
        %v9162 = vtanh.pop %v9034
        %v9163 = vtanh.pop %v9035
        %v9164 = vtanh.pop %v9036
        %v9165 = vtanh.pop %v9037
        %v9166 = vtanh.pop %v9038
        %v9167 = vtanh.pop %v9039
        %v9168 = vtanh.pop %v9040
        %v9169 = vtanh.pop %v9041
        %v9170 = vtanh.pop %v9042
        %v9171 = vtanh.pop %v9043
        %v9172 = vtanh.pop %v9044
        %v9173 = vtanh.pop %v9045
        %v9174 = vtanh.pop %v9046
        %v9175 = vtanh.pop %v9047
        %v9176 = vtanh.pop %v9048
        %v9177 = vtanh.pop %v9049
        %v9178 = vtanh.pop %v9050
        %v9179 = vtanh.pop %v9051
        %v9180 = vtanh.pop %v9052
        %v9181 = vtanh.pop %v9053
        %v9182 = vtanh.pop %v9054
        %v9183 = vtanh.pop %v9055
        %v9184 = vtanh.pop %v9056
        %v9185 = vtanh.pop %v9057
        %v9186 = vtanh.pop %v9058
        %v9187 = vtanh.pop %v9059
        %v9188 = vtanh.pop %v9060
        %v9189 = vtanh.pop %v9061
        %v9190 = vtanh.pop %v9062
        %v9191 = vtanh.pop %v9063
        %v9192 = vtanh.pop %v9064
        %v9193 = vtanh.pop %v9065
        %v9194 = vtanh.pop %v9066
        %v9195 = vtanh.pop %v9067
        %v9196 = vmul.f32 %v9068, %v4475
        %v9197 = vmul.f32 %v9069, %v4476
        %v9198 = vmul.f32 %v9070, %v4477
        %v9199 = vmul.f32 %v9071, %v4478
        %v9200 = vmul.f32 %v9072, %v4479
        %v9201 = vmul.f32 %v9073, %v4480
        %v9202 = vmul.f32 %v9074, %v4481
        %v9203 = vmul.f32 %v9075, %v4482
        %v9204 = vmul.f32 %v9076, %v4483
        %v9205 = vmul.f32 %v9077, %v4484
        %v9206 = vmul.f32 %v9078, %v4485
        %v9207 = vmul.f32 %v9079, %v4486
        %v9208 = vmul.f32 %v9080, %v4487
        %v9209 = vmul.f32 %v9081, %v4488
        %v9210 = vmul.f32 %v9082, %v4489
        %v9211 = vmul.f32 %v9083, %v4490
        %v9212 = vmul.f32 %v9084, %v4491
        %v9213 = vmul.f32 %v9085, %v4492
        %v9214 = vmul.f32 %v9086, %v4493
        %v9215 = vmul.f32 %v9087, %v4494
        %v9216 = vmul.f32 %v9088, %v4495
        %v9217 = vmul.f32 %v9089, %v4496
        %v9218 = vmul.f32 %v9090, %v4497
        %v9219 = vmul.f32 %v9091, %v4498
        %v9220 = vmul.f32 %v9092, %v4499
        %v9221 = vmul.f32 %v9093, %v4500
        %v9222 = vmul.f32 %v9094, %v4501
        %v9223 = vmul.f32 %v9095, %v4502
        %v9224 = vmul.f32 %v9096, %v4503
        %v9225 = vmul.f32 %v9097, %v4504
        %v9226 = vmul.f32 %v9098, %v4505
        %v9227 = vmul.f32 %v9099, %v4506
        %v9228 = vmul.f32 %v9100, %v4507
        %v9229 = vmul.f32 %v9101, %v4508
        %v9230 = vmul.f32 %v9102, %v4509
        %v9231 = vmul.f32 %v9103, %v4510
        %v9232 = vmul.f32 %v9104, %v4511
        %v9233 = vmul.f32 %v9105, %v4512
        %v9234 = vmul.f32 %v9106, %v4513
        %v9235 = vmul.f32 %v9107, %v4514
        %v9236 = vmul.f32 %v9108, %v4515
        %v9237 = vmul.f32 %v9109, %v4516
        %v9238 = vmul.f32 %v9110, %v4517
        %v9239 = vmul.f32 %v9111, %v4518
        %v9240 = vmul.f32 %v9112, %v4519
        %v9241 = vmul.f32 %v9113, %v4520
        %v9242 = vmul.f32 %v9114, %v4521
        %v9243 = vmul.f32 %v9115, %v4522
        %v9244 = vmul.f32 %v9116, %v4523
        %v9245 = vmul.f32 %v9117, %v4524
        %v9246 = vmul.f32 %v9118, %v4525
        %v9247 = vmul.f32 %v9119, %v4526
        %v9248 = vmul.f32 %v9120, %v4527
        %v9249 = vmul.f32 %v9121, %v4528
        %v9250 = vmul.f32 %v9122, %v4529
        %v9251 = vmul.f32 %v9123, %v4530
        %v9252 = vmul.f32 %v9124, %v4531
        %v9253 = vmul.f32 %v9125, %v4532
        %v9254 = vmul.f32 %v9126, %v4533
        %v9255 = vmul.f32 %v9127, %v4534
        %v9256 = vmul.f32 %v9128, %v4535
        %v9257 = vmul.f32 %v9129, %v4536
        %v9258 = vmul.f32 %v9130, %v4537
        %v9259 = vmul.f32 %v9131, %v4538
        %v9260 = vmul.f32 %v9132, %v4539
        %v9261 = vmul.f32 %v9133, %v4540
        %v9262 = vmul.f32 %v9134, %v4541
        %v9263 = vmul.f32 %v9135, %v4542
        %v9264 = vmul.f32 %v9136, %v4543
        %v9265 = vmul.f32 %v9137, %v4544
        %v9266 = vmul.f32 %v9138, %v4545
        %v9267 = vmul.f32 %v9139, %v4546
        %v9268 = vmul.f32 %v9140, %v4547
        %v9269 = vmul.f32 %v9141, %v4548
        %v9270 = vmul.f32 %v9142, %v4549
        %v9271 = vmul.f32 %v9143, %v4550
        %v9272 = vmul.f32 %v9144, %v4551
        %v9273 = vmul.f32 %v9145, %v4552
        %v9274 = vmul.f32 %v9146, %v4553
        %v9275 = vmul.f32 %v9147, %v4554
        %v9276 = vmul.f32 %v9148, %v4555
        %v9277 = vmul.f32 %v9149, %v4556
        %v9278 = vmul.f32 %v9150, %v4557
        %v9279 = vmul.f32 %v9151, %v4558
        %v9280 = vmul.f32 %v9152, %v4559
        %v9281 = vmul.f32 %v9153, %v4560
        %v9282 = vmul.f32 %v9154, %v4561
        %v9283 = vmul.f32 %v9155, %v4562
        %v9284 = vmul.f32 %v9156, %v4563
        %v9285 = vmul.f32 %v9157, %v4564
        %v9286 = vmul.f32 %v9158, %v4565
        %v9287 = vmul.f32 %v9159, %v4566
        %v9288 = vmul.f32 %v9160, %v4567
        %v9289 = vmul.f32 %v9161, %v4568
        %v9290 = vmul.f32 %v9162, %v4569
        %v9291 = vmul.f32 %v9163, %v4570
        %v9292 = vmul.f32 %v9164, %v4571
        %v9293 = vmul.f32 %v9165, %v4572
        %v9294 = vmul.f32 %v9166, %v4573
        %v9295 = vmul.f32 %v9167, %v4574
        %v9296 = vmul.f32 %v9168, %v4575
        %v9297 = vmul.f32 %v9169, %v4576
        %v9298 = vmul.f32 %v9170, %v4577
        %v9299 = vmul.f32 %v9171, %v4578
        %v9300 = vmul.f32 %v9172, %v4579
        %v9301 = vmul.f32 %v9173, %v4580
        %v9302 = vmul.f32 %v9174, %v4581
        %v9303 = vmul.f32 %v9175, %v4582
        %v9304 = vmul.f32 %v9176, %v4583
        %v9305 = vmul.f32 %v9177, %v4584
        %v9306 = vmul.f32 %v9178, %v4585
        %v9307 = vmul.f32 %v9179, %v4586
        %v9308 = vmul.f32 %v9180, %v4587
        %v9309 = vmul.f32 %v9181, %v4588
        %v9310 = vmul.f32 %v9182, %v4589
        %v9311 = vmul.f32 %v9183, %v4590
        %v9312 = vmul.f32 %v9184, %v4591
        %v9313 = vmul.f32 %v9185, %v4592
        %v9314 = vmul.f32 %v9186, %v4593
        %v9315 = vmul.f32 %v9187, %v4594
        %v9316 = vmul.f32 %v9188, %v4595
        %v9317 = vmul.f32 %v9189, %v4596
        %v9318 = vmul.f32 %v9190, %v4597
        %v9319 = vmul.f32 %v9191, %v4598
        %v9320 = vmul.f32 %v9192, %v4599
        %v9321 = vmul.f32 %v9193, %v4600
        %v9322 = vmul.f32 %v9194, %v4601
        %v9323 = vmul.f32 %v9195, %v4602
        %v9324 = vadd.f32 %v4347, %v9196
        %v9325 = vadd.f32 %v4348, %v9197
        %v9326 = vadd.f32 %v4349, %v9198
        %v9327 = vadd.f32 %v4350, %v9199
        %v9328 = vadd.f32 %v4351, %v9200
        %v9329 = vadd.f32 %v4352, %v9201
        %v9330 = vadd.f32 %v4353, %v9202
        %v9331 = vadd.f32 %v4354, %v9203
        %v9332 = vadd.f32 %v4355, %v9204
        %v9333 = vadd.f32 %v4356, %v9205
        %v9334 = vadd.f32 %v4357, %v9206
        %v9335 = vadd.f32 %v4358, %v9207
        %v9336 = vadd.f32 %v4359, %v9208
        %v9337 = vadd.f32 %v4360, %v9209
        %v9338 = vadd.f32 %v4361, %v9210
        %v9339 = vadd.f32 %v4362, %v9211
        %v9340 = vadd.f32 %v4363, %v9212
        %v9341 = vadd.f32 %v4364, %v9213
        %v9342 = vadd.f32 %v4365, %v9214
        %v9343 = vadd.f32 %v4366, %v9215
        %v9344 = vadd.f32 %v4367, %v9216
        %v9345 = vadd.f32 %v4368, %v9217
        %v9346 = vadd.f32 %v4369, %v9218
        %v9347 = vadd.f32 %v4370, %v9219
        %v9348 = vadd.f32 %v4371, %v9220
        %v9349 = vadd.f32 %v4372, %v9221
        %v9350 = vadd.f32 %v4373, %v9222
        %v9351 = vadd.f32 %v4374, %v9223
        %v9352 = vadd.f32 %v4375, %v9224
        %v9353 = vadd.f32 %v4376, %v9225
        %v9354 = vadd.f32 %v4377, %v9226
        %v9355 = vadd.f32 %v4378, %v9227
        %v9356 = vadd.f32 %v4379, %v9228
        %v9357 = vadd.f32 %v4380, %v9229
        %v9358 = vadd.f32 %v4381, %v9230
        %v9359 = vadd.f32 %v4382, %v9231
        %v9360 = vadd.f32 %v4383, %v9232
        %v9361 = vadd.f32 %v4384, %v9233
        %v9362 = vadd.f32 %v4385, %v9234
        %v9363 = vadd.f32 %v4386, %v9235
        %v9364 = vadd.f32 %v4387, %v9236
        %v9365 = vadd.f32 %v4388, %v9237
        %v9366 = vadd.f32 %v4389, %v9238
        %v9367 = vadd.f32 %v4390, %v9239
        %v9368 = vadd.f32 %v4391, %v9240
        %v9369 = vadd.f32 %v4392, %v9241
        %v9370 = vadd.f32 %v4393, %v9242
        %v9371 = vadd.f32 %v4394, %v9243
        %v9372 = vadd.f32 %v4395, %v9244
        %v9373 = vadd.f32 %v4396, %v9245
        %v9374 = vadd.f32 %v4397, %v9246
        %v9375 = vadd.f32 %v4398, %v9247
        %v9376 = vadd.f32 %v4399, %v9248
        %v9377 = vadd.f32 %v4400, %v9249
        %v9378 = vadd.f32 %v4401, %v9250
        %v9379 = vadd.f32 %v4402, %v9251
        %v9380 = vadd.f32 %v4403, %v9252
        %v9381 = vadd.f32 %v4404, %v9253
        %v9382 = vadd.f32 %v4405, %v9254
        %v9383 = vadd.f32 %v4406, %v9255
        %v9384 = vadd.f32 %v4407, %v9256
        %v9385 = vadd.f32 %v4408, %v9257
        %v9386 = vadd.f32 %v4409, %v9258
        %v9387 = vadd.f32 %v4410, %v9259
        %v9388 = vadd.f32 %v4411, %v9260
        %v9389 = vadd.f32 %v4412, %v9261
        %v9390 = vadd.f32 %v4413, %v9262
        %v9391 = vadd.f32 %v4414, %v9263
        %v9392 = vadd.f32 %v4415, %v9264
        %v9393 = vadd.f32 %v4416, %v9265
        %v9394 = vadd.f32 %v4417, %v9266
        %v9395 = vadd.f32 %v4418, %v9267
        %v9396 = vadd.f32 %v4419, %v9268
        %v9397 = vadd.f32 %v4420, %v9269
        %v9398 = vadd.f32 %v4421, %v9270
        %v9399 = vadd.f32 %v4422, %v9271
        %v9400 = vadd.f32 %v4423, %v9272
        %v9401 = vadd.f32 %v4424, %v9273
        %v9402 = vadd.f32 %v4425, %v9274
        %v9403 = vadd.f32 %v4426, %v9275
        %v9404 = vadd.f32 %v4427, %v9276
        %v9405 = vadd.f32 %v4428, %v9277
        %v9406 = vadd.f32 %v4429, %v9278
        %v9407 = vadd.f32 %v4430, %v9279
        %v9408 = vadd.f32 %v4431, %v9280
        %v9409 = vadd.f32 %v4432, %v9281
        %v9410 = vadd.f32 %v4433, %v9282
        %v9411 = vadd.f32 %v4434, %v9283
        %v9412 = vadd.f32 %v4435, %v9284
        %v9413 = vadd.f32 %v4436, %v9285
        %v9414 = vadd.f32 %v4437, %v9286
        %v9415 = vadd.f32 %v4438, %v9287
        %v9416 = vadd.f32 %v4439, %v9288
        %v9417 = vadd.f32 %v4440, %v9289
        %v9418 = vadd.f32 %v4441, %v9290
        %v9419 = vadd.f32 %v4442, %v9291
        %v9420 = vadd.f32 %v4443, %v9292
        %v9421 = vadd.f32 %v4444, %v9293
        %v9422 = vadd.f32 %v4445, %v9294
        %v9423 = vadd.f32 %v4446, %v9295
        %v9424 = vadd.f32 %v4447, %v9296
        %v9425 = vadd.f32 %v4448, %v9297
        %v9426 = vadd.f32 %v4449, %v9298
        %v9427 = vadd.f32 %v4450, %v9299
        %v9428 = vadd.f32 %v4451, %v9300
        %v9429 = vadd.f32 %v4452, %v9301
        %v9430 = vadd.f32 %v4453, %v9302
        %v9431 = vadd.f32 %v4454, %v9303
        %v9432 = vadd.f32 %v4455, %v9304
        %v9433 = vadd.f32 %v4456, %v9305
        %v9434 = vadd.f32 %v4457, %v9306
        %v9435 = vadd.f32 %v4458, %v9307
        %v9436 = vadd.f32 %v4459, %v9308
        %v9437 = vadd.f32 %v4460, %v9309
        %v9438 = vadd.f32 %v4461, %v9310
        %v9439 = vadd.f32 %v4462, %v9311
        %v9440 = vadd.f32 %v4463, %v9312
        %v9441 = vadd.f32 %v4464, %v9313
        %v9442 = vadd.f32 %v4465, %v9314
        %v9443 = vadd.f32 %v4466, %v9315
        %v9444 = vadd.f32 %v4467, %v9316
        %v9445 = vadd.f32 %v4468, %v9317
        %v9446 = vadd.f32 %v4469, %v9318
        %v9447 = vadd.f32 %v4470, %v9319
        %v9448 = vadd.f32 %v4471, %v9320
        %v9449 = vadd.f32 %v4472, %v9321
        %v9450 = vadd.f32 %v4473, %v9322
        %v9451 = vadd.f32 %v4474, %v9323
        %v9452 = vld [vmem:[%s7] sm:$0x1]
        %v9453 = vld [vmem:[#allocation2] sm:$0x1]
        %9455 = vset.pattern.permute.xlu0 0
        %9456 = vperm.xlu0 %9455, %v9453
        %v9457 = vpop.permute.xlu0 %9456
        %v9459 = vlaneseq
        %v9460 = vshrl.u32 %v9459, 7
        %v9461 = vsub.s32 0, %v9460
        %v9462 = vrot.slane %v9457, %v9461
        %v9464 = vsel %vm5271, %v9452, 0
        %9466 = vmatprep.subr.mxu0 %v9325
        %9467 = vmatpush1.msra.mxu0 %v9324
        %9468 = vmatprep.subr.mxu0 %v9357
        %9469 = vmatpush1.msra.mxu0 %v9356
        %9470 = vmatprep.subr.mxu0 %v9389
        %9471 = vmatpush1.msra.mxu0 %v9388
        %9472 = vmatprep.subr.mxu0 %v9421
        %9473 = vmatpush1.msra.mxu0 %v9420
        %9474 = vmatprep.subr.mxu0 0.0
        %9475 = vmatpush1.msra.mxu0 0.0
        %9476 = vmatprep.subr.mxu0 0.0
        %9477 = vmatpush1.msra.mxu0 0.0
        %9478 = vmatprep.subr.mxu0 0.0
        %9479 = vmatpush1.msra.mxu0 0.0
        %9480 = vmatprep.subr.mxu0 0.0
        %9481 = vmatpush1.msra.mxu0 0.0
        %9482 = vmatprep.subr.mxu0 0.0
        %9483 = vmatpush1.msra.mxu0 0.0
        %9484 = vmatprep.subr.mxu0 0.0
        %9485 = vmatpush1.msra.mxu0 0.0
        %9486 = vmatprep.subr.mxu0 0.0
        %9487 = vmatpush1.msra.mxu0 0.0
        %9488 = vmatprep.subr.mxu0 0.0
        %9489 = vmatpush1.msra.mxu0 0.0
        %9490 = vmatprep.subr.mxu0 0.0
        %9491 = vmatpush1.msra.mxu0 0.0
        %9492 = vmatprep.subr.mxu0 0.0
        %9493 = vmatpush1.msra.mxu0 0.0
        %9494 = vmatprep.subr.mxu0 0.0
        %9495 = vmatpush1.msra.mxu0 0.0
        %9496 = vmatprep.subr.mxu0 0.0
        %9497 = vmatpush1.msra.mxu0 0.0
        %9498 = vmatprep.subr.mxu0 0.0
        %9499 = vmatpush1.msra.mxu0 0.0
        %9500 = vmatprep.subr.mxu0 0.0
        %9501 = vmatpush1.msra.mxu0 0.0
        %9502 = vmatprep.subr.mxu0 0.0
        %9503 = vmatpush1.msra.mxu0 0.0
        %9504 = vmatprep.subr.mxu0 0.0
        %9505 = vmatpush1.msra.mxu0 0.0
        %9506 = vmatprep.subr.mxu0 0.0
        %9507 = vmatpush1.msra.mxu0 0.0
        %9508 = vmatprep.subr.mxu0 0.0
        %9509 = vmatpush1.msra.mxu0 0.0
        %9510 = vmatprep.subr.mxu0 0.0
        %9511 = vmatpush1.msra.mxu0 0.0
        %9512 = vmatprep.subr.mxu0 0.0
        %9513 = vmatpush1.msra.mxu0 0.0
        %9514 = vmatprep.subr.mxu0 0.0
        %9515 = vmatpush1.msra.mxu0 0.0
        %9516 = vmatprep.subr.mxu0 0.0
        %9517 = vmatpush1.msra.mxu0 0.0
        %9518 = vmatprep.subr.mxu0 0.0
        %9519 = vmatpush1.msra.mxu0 0.0
        %9520 = vmatprep.subr.mxu0 0.0
        %9521 = vmatpush1.msra.mxu0 0.0
        %9522 = vmatprep.subr.mxu0 0.0
        %9523 = vmatpush1.msra.mxu0 0.0
        %9524 = vmatprep.subr.mxu0 0.0
        %9525 = vmatpush1.msra.mxu0 0.0
        %9526 = vmatprep.subr.mxu0 0.0
        %9527 = vmatpush1.msra.mxu0 0.0
        %9528 = vmatprep.subr.mxu0 0.0
        %9529 = vmatpush1.msra.mxu0 0.0
        %9530 = vmatprep.mubr.f32.mxu0 0.0
        %9531 = vmatmul.mubr.f32.gmra.mrb[0].mxu0 %v9464
        %v9532 = vpop.f32.mrb[0].mxu0
        %v9533 = vadd.f32 %v9462, %v9532
        %v9534 = vpop.f32.mrb[0].mxu0
        %v9535 = vadd.f32 %v9462, %v9534
        %9536 = vdwg.mxu0
        %9537 = vmatprep.subr.mxu0 %v9327
        %9538 = vmatpush1.msra.mxu0 %v9326
        %9539 = vmatprep.subr.mxu0 %v9359
        %9540 = vmatpush1.msra.mxu0 %v9358
        %9541 = vmatprep.subr.mxu0 %v9391
        %9542 = vmatpush1.msra.mxu0 %v9390
        %9543 = vmatprep.subr.mxu0 %v9423
        %9544 = vmatpush1.msra.mxu0 %v9422
        %9545 = vmatprep.subr.mxu0 0.0
        %9546 = vmatpush1.msra.mxu0 0.0
        %9547 = vmatprep.subr.mxu0 0.0
        %9548 = vmatpush1.msra.mxu0 0.0
        %9549 = vmatprep.subr.mxu0 0.0
        %9550 = vmatpush1.msra.mxu0 0.0
        %9551 = vmatprep.subr.mxu0 0.0
        %9552 = vmatpush1.msra.mxu0 0.0
        %9553 = vmatprep.subr.mxu0 0.0
        %9554 = vmatpush1.msra.mxu0 0.0
        %9555 = vmatprep.subr.mxu0 0.0
        %9556 = vmatpush1.msra.mxu0 0.0
        %9557 = vmatprep.subr.mxu0 0.0
        %9558 = vmatpush1.msra.mxu0 0.0
        %9559 = vmatprep.subr.mxu0 0.0
        %9560 = vmatpush1.msra.mxu0 0.0
        %9561 = vmatprep.subr.mxu0 0.0
        %9562 = vmatpush1.msra.mxu0 0.0
        %9563 = vmatprep.subr.mxu0 0.0
        %9564 = vmatpush1.msra.mxu0 0.0
        %9565 = vmatprep.subr.mxu0 0.0
        %9566 = vmatpush1.msra.mxu0 0.0
        %9567 = vmatprep.subr.mxu0 0.0
        %9568 = vmatpush1.msra.mxu0 0.0
        %9569 = vmatprep.subr.mxu0 0.0
        %9570 = vmatpush1.msra.mxu0 0.0
        %9571 = vmatprep.subr.mxu0 0.0
        %9572 = vmatpush1.msra.mxu0 0.0
        %9573 = vmatprep.subr.mxu0 0.0
        %9574 = vmatpush1.msra.mxu0 0.0
        %9575 = vmatprep.subr.mxu0 0.0
        %9576 = vmatpush1.msra.mxu0 0.0
        %9577 = vmatprep.subr.mxu0 0.0
        %9578 = vmatpush1.msra.mxu0 0.0
        %9579 = vmatprep.subr.mxu0 0.0
        %9580 = vmatpush1.msra.mxu0 0.0
        %9581 = vmatprep.subr.mxu0 0.0
        %9582 = vmatpush1.msra.mxu0 0.0
        %9583 = vmatprep.subr.mxu0 0.0
        %9584 = vmatpush1.msra.mxu0 0.0
        %9585 = vmatprep.subr.mxu0 0.0
        %9586 = vmatpush1.msra.mxu0 0.0
        %9587 = vmatprep.subr.mxu0 0.0
        %9588 = vmatpush1.msra.mxu0 0.0
        %9589 = vmatprep.subr.mxu0 0.0
        %9590 = vmatpush1.msra.mxu0 0.0
        %9591 = vmatprep.subr.mxu0 0.0
        %9592 = vmatpush1.msra.mxu0 0.0
        %9593 = vmatprep.subr.mxu0 0.0
        %9594 = vmatpush1.msra.mxu0 0.0
        %9595 = vmatprep.subr.mxu0 0.0
        %9596 = vmatpush1.msra.mxu0 0.0
        %9597 = vmatprep.subr.mxu0 0.0
        %9598 = vmatpush1.msra.mxu0 0.0
        %9599 = vmatprep.subr.mxu0 0.0
        %9600 = vmatpush1.msra.mxu0 0.0
        %9601 = vmatprep.mubr.f32.mxu0 0.0
        %9602 = vmatmul.mubr.f32.gmra.mrb[0].mxu0 %v9464
        %v9603 = vpop.f32.mrb[0].mxu0
        %v9604 = vadd.f32 %v9462, %v9603
        %v9605 = vpop.f32.mrb[0].mxu0
        %v9606 = vadd.f32 %v9462, %v9605
        %9607 = vdwg.mxu0
        %9608 = vmatprep.subr.mxu0 %v9329
        %9609 = vmatpush1.msra.mxu0 %v9328
        %9610 = vmatprep.subr.mxu0 %v9361
        %9611 = vmatpush1.msra.mxu0 %v9360
        %9612 = vmatprep.subr.mxu0 %v9393
        %9613 = vmatpush1.msra.mxu0 %v9392
        %9614 = vmatprep.subr.mxu0 %v9425
        %9615 = vmatpush1.msra.mxu0 %v9424
        %9616 = vmatprep.subr.mxu0 0.0
        %9617 = vmatpush1.msra.mxu0 0.0
        %9618 = vmatprep.subr.mxu0 0.0
        %9619 = vmatpush1.msra.mxu0 0.0
        %9620 = vmatprep.subr.mxu0 0.0
        %9621 = vmatpush1.msra.mxu0 0.0
        %9622 = vmatprep.subr.mxu0 0.0
        %9623 = vmatpush1.msra.mxu0 0.0
        %9624 = vmatprep.subr.mxu0 0.0
        %9625 = vmatpush1.msra.mxu0 0.0
        %9626 = vmatprep.subr.mxu0 0.0
        %9627 = vmatpush1.msra.mxu0 0.0
        %9628 = vmatprep.subr.mxu0 0.0
        %9629 = vmatpush1.msra.mxu0 0.0
        %9630 = vmatprep.subr.mxu0 0.0
        %9631 = vmatpush1.msra.mxu0 0.0
        %9632 = vmatprep.subr.mxu0 0.0
        %9633 = vmatpush1.msra.mxu0 0.0
        %9634 = vmatprep.subr.mxu0 0.0
        %9635 = vmatpush1.msra.mxu0 0.0
        %9636 = vmatprep.subr.mxu0 0.0
        %9637 = vmatpush1.msra.mxu0 0.0
        %9638 = vmatprep.subr.mxu0 0.0
        %9639 = vmatpush1.msra.mxu0 0.0
        %9640 = vmatprep.subr.mxu0 0.0
        %9641 = vmatpush1.msra.mxu0 0.0
        %9642 = vmatprep.subr.mxu0 0.0
        %9643 = vmatpush1.msra.mxu0 0.0
        %9644 = vmatprep.subr.mxu0 0.0
        %9645 = vmatpush1.msra.mxu0 0.0
        %9646 = vmatprep.subr.mxu0 0.0
        %9647 = vmatpush1.msra.mxu0 0.0
        %9648 = vmatprep.subr.mxu0 0.0
        %9649 = vmatpush1.msra.mxu0 0.0
        %9650 = vmatprep.subr.mxu0 0.0
        %9651 = vmatpush1.msra.mxu0 0.0
        %9652 = vmatprep.subr.mxu0 0.0
        %9653 = vmatpush1.msra.mxu0 0.0
        %9654 = vmatprep.subr.mxu0 0.0
        %9655 = vmatpush1.msra.mxu0 0.0
        %9656 = vmatprep.subr.mxu0 0.0
        %9657 = vmatpush1.msra.mxu0 0.0
        %9658 = vmatprep.subr.mxu0 0.0
        %9659 = vmatpush1.msra.mxu0 0.0
        %9660 = vmatprep.subr.mxu0 0.0
        %9661 = vmatpush1.msra.mxu0 0.0
        %9662 = vmatprep.subr.mxu0 0.0
        %9663 = vmatpush1.msra.mxu0 0.0
        %9664 = vmatprep.subr.mxu0 0.0
        %9665 = vmatpush1.msra.mxu0 0.0
        %9666 = vmatprep.subr.mxu0 0.0
        %9667 = vmatpush1.msra.mxu0 0.0
        %9668 = vmatprep.subr.mxu0 0.0
        %9669 = vmatpush1.msra.mxu0 0.0
        %9670 = vmatprep.subr.mxu0 0.0
        %9671 = vmatpush1.msra.mxu0 0.0
        %9672 = vmatprep.mubr.f32.mxu0 0.0
        %9673 = vmatmul.mubr.f32.gmra.mrb[0].mxu0 %v9464
        %v9674 = vpop.f32.mrb[0].mxu0
        %v9675 = vadd.f32 %v9462, %v9674
        %v9676 = vpop.f32.mrb[0].mxu0
        %v9677 = vadd.f32 %v9462, %v9676
        %9678 = vdwg.mxu0
        %9679 = vmatprep.subr.mxu0 %v9331
        %9680 = vmatpush1.msra.mxu0 %v9330
        %9681 = vmatprep.subr.mxu0 %v9363
        %9682 = vmatpush1.msra.mxu0 %v9362
        %9683 = vmatprep.subr.mxu0 %v9395
        %9684 = vmatpush1.msra.mxu0 %v9394
        %9685 = vmatprep.subr.mxu0 %v9427
        %9686 = vmatpush1.msra.mxu0 %v9426
        %9687 = vmatprep.subr.mxu0 0.0
        %9688 = vmatpush1.msra.mxu0 0.0
        %9689 = vmatprep.subr.mxu0 0.0
        %9690 = vmatpush1.msra.mxu0 0.0
        %9691 = vmatprep.subr.mxu0 0.0
        %9692 = vmatpush1.msra.mxu0 0.0
        %9693 = vmatprep.subr.mxu0 0.0
        %9694 = vmatpush1.msra.mxu0 0.0
        %9695 = vmatprep.subr.mxu0 0.0
        %9696 = vmatpush1.msra.mxu0 0.0
        %9697 = vmatprep.subr.mxu0 0.0
        %9698 = vmatpush1.msra.mxu0 0.0
        %9699 = vmatprep.subr.mxu0 0.0
        %9700 = vmatpush1.msra.mxu0 0.0
        %9701 = vmatprep.subr.mxu0 0.0
        %9702 = vmatpush1.msra.mxu0 0.0
        %9703 = vmatprep.subr.mxu0 0.0
        %9704 = vmatpush1.msra.mxu0 0.0
        %9705 = vmatprep.subr.mxu0 0.0
        %9706 = vmatpush1.msra.mxu0 0.0
        %9707 = vmatprep.subr.mxu0 0.0
        %9708 = vmatpush1.msra.mxu0 0.0
        %9709 = vmatprep.subr.mxu0 0.0
        %9710 = vmatpush1.msra.mxu0 0.0
        %9711 = vmatprep.subr.mxu0 0.0
        %9712 = vmatpush1.msra.mxu0 0.0
        %9713 = vmatprep.subr.mxu0 0.0
        %9714 = vmatpush1.msra.mxu0 0.0
        %9715 = vmatprep.subr.mxu0 0.0
        %9716 = vmatpush1.msra.mxu0 0.0
        %9717 = vmatprep.subr.mxu0 0.0
        %9718 = vmatpush1.msra.mxu0 0.0
        %9719 = vmatprep.subr.mxu0 0.0
        %9720 = vmatpush1.msra.mxu0 0.0
        %9721 = vmatprep.subr.mxu0 0.0
        %9722 = vmatpush1.msra.mxu0 0.0
        %9723 = vmatprep.subr.mxu0 0.0
        %9724 = vmatpush1.msra.mxu0 0.0
        %9725 = vmatprep.subr.mxu0 0.0
        %9726 = vmatpush1.msra.mxu0 0.0
        %9727 = vmatprep.subr.mxu0 0.0
        %9728 = vmatpush1.msra.mxu0 0.0
        %9729 = vmatprep.subr.mxu0 0.0
        %9730 = vmatpush1.msra.mxu0 0.0
        %9731 = vmatprep.subr.mxu0 0.0
        %9732 = vmatpush1.msra.mxu0 0.0
        %9733 = vmatprep.subr.mxu0 0.0
        %9734 = vmatpush1.msra.mxu0 0.0
        %9735 = vmatprep.subr.mxu0 0.0
        %9736 = vmatpush1.msra.mxu0 0.0
        %9737 = vmatprep.subr.mxu0 0.0
        %9738 = vmatpush1.msra.mxu0 0.0
        %9739 = vmatprep.subr.mxu0 0.0
        %9740 = vmatpush1.msra.mxu0 0.0
        %9741 = vmatprep.subr.mxu0 0.0
        %9742 = vmatpush1.msra.mxu0 0.0
        %9743 = vmatprep.mubr.f32.mxu0 0.0
        %9744 = vmatmul.mubr.f32.gmra.mrb[0].mxu0 %v9464
        %v9745 = vpop.f32.mrb[0].mxu0
        %v9746 = vadd.f32 %v9462, %v9745
        %v9747 = vpop.f32.mrb[0].mxu0
        %v9748 = vadd.f32 %v9462, %v9747
        %9749 = vdwg.mxu0
        %9750 = vmatprep.subr.mxu0 %v9333
        %9751 = vmatpush1.msra.mxu0 %v9332
        %9752 = vmatprep.subr.mxu0 %v9365
        %9753 = vmatpush1.msra.mxu0 %v9364
        %9754 = vmatprep.subr.mxu0 %v9397
        %9755 = vmatpush1.msra.mxu0 %v9396
        %9756 = vmatprep.subr.mxu0 %v9429
        %9757 = vmatpush1.msra.mxu0 %v9428
        %9758 = vmatprep.subr.mxu0 0.0
        %9759 = vmatpush1.msra.mxu0 0.0
        %9760 = vmatprep.subr.mxu0 0.0
        %9761 = vmatpush1.msra.mxu0 0.0
        %9762 = vmatprep.subr.mxu0 0.0
        %9763 = vmatpush1.msra.mxu0 0.0
        %9764 = vmatprep.subr.mxu0 0.0
        %9765 = vmatpush1.msra.mxu0 0.0
        %9766 = vmatprep.subr.mxu0 0.0
        %9767 = vmatpush1.msra.mxu0 0.0
        %9768 = vmatprep.subr.mxu0 0.0
        %9769 = vmatpush1.msra.mxu0 0.0
        %9770 = vmatprep.subr.mxu0 0.0
        %9771 = vmatpush1.msra.mxu0 0.0
        %9772 = vmatprep.subr.mxu0 0.0
        %9773 = vmatpush1.msra.mxu0 0.0
        %9774 = vmatprep.subr.mxu0 0.0
        %9775 = vmatpush1.msra.mxu0 0.0
        %9776 = vmatprep.subr.mxu0 0.0
        %9777 = vmatpush1.msra.mxu0 0.0
        %9778 = vmatprep.subr.mxu0 0.0
        %9779 = vmatpush1.msra.mxu0 0.0
        %9780 = vmatprep.subr.mxu0 0.0
        %9781 = vmatpush1.msra.mxu0 0.0
        %9782 = vmatprep.subr.mxu0 0.0
        %9783 = vmatpush1.msra.mxu0 0.0
        %9784 = vmatprep.subr.mxu0 0.0
        %9785 = vmatpush1.msra.mxu0 0.0
        %9786 = vmatprep.subr.mxu0 0.0
        %9787 = vmatpush1.msra.mxu0 0.0
        %9788 = vmatprep.subr.mxu0 0.0
        %9789 = vmatpush1.msra.mxu0 0.0
        %9790 = vmatprep.subr.mxu0 0.0
        %9791 = vmatpush1.msra.mxu0 0.0
        %9792 = vmatprep.subr.mxu0 0.0
        %9793 = vmatpush1.msra.mxu0 0.0
        %9794 = vmatprep.subr.mxu0 0.0
        %9795 = vmatpush1.msra.mxu0 0.0
        %9796 = vmatprep.subr.mxu0 0.0
        %9797 = vmatpush1.msra.mxu0 0.0
        %9798 = vmatprep.subr.mxu0 0.0
        %9799 = vmatpush1.msra.mxu0 0.0
        %9800 = vmatprep.subr.mxu0 0.0
        %9801 = vmatpush1.msra.mxu0 0.0
        %9802 = vmatprep.subr.mxu0 0.0
        %9803 = vmatpush1.msra.mxu0 0.0
        %9804 = vmatprep.subr.mxu0 0.0
        %9805 = vmatpush1.msra.mxu0 0.0
        %9806 = vmatprep.subr.mxu0 0.0
        %9807 = vmatpush1.msra.mxu0 0.0
        %9808 = vmatprep.subr.mxu0 0.0
        %9809 = vmatpush1.msra.mxu0 0.0
        %9810 = vmatprep.subr.mxu0 0.0
        %9811 = vmatpush1.msra.mxu0 0.0
        %9812 = vmatprep.subr.mxu0 0.0
        %9813 = vmatpush1.msra.mxu0 0.0
        %9814 = vmatprep.mubr.f32.mxu0 0.0
        %9815 = vmatmul.mubr.f32.gmra.mrb[0].mxu0 %v9464
        %v9816 = vpop.f32.mrb[0].mxu0
        %v9817 = vadd.f32 %v9462, %v9816
        %v9818 = vpop.f32.mrb[0].mxu0
        %v9819 = vadd.f32 %v9462, %v9818
        %9820 = vdwg.mxu0
        %9821 = vmatprep.subr.mxu0 %v9335
        %9822 = vmatpush1.msra.mxu0 %v9334
        %9823 = vmatprep.subr.mxu0 %v9367
        %9824 = vmatpush1.msra.mxu0 %v9366
        %9825 = vmatprep.subr.mxu0 %v9399
        %9826 = vmatpush1.msra.mxu0 %v9398
        %9827 = vmatprep.subr.mxu0 %v9431
        %9828 = vmatpush1.msra.mxu0 %v9430
        %9829 = vmatprep.subr.mxu0 0.0
        %9830 = vmatpush1.msra.mxu0 0.0
        %9831 = vmatprep.subr.mxu0 0.0
        %9832 = vmatpush1.msra.mxu0 0.0
        %9833 = vmatprep.subr.mxu0 0.0
        %9834 = vmatpush1.msra.mxu0 0.0
        %9835 = vmatprep.subr.mxu0 0.0
        %9836 = vmatpush1.msra.mxu0 0.0
        %9837 = vmatprep.subr.mxu0 0.0
        %9838 = vmatpush1.msra.mxu0 0.0
        %9839 = vmatprep.subr.mxu0 0.0
        %9840 = vmatpush1.msra.mxu0 0.0
        %9841 = vmatprep.subr.mxu0 0.0
        %9842 = vmatpush1.msra.mxu0 0.0
        %9843 = vmatprep.subr.mxu0 0.0
        %9844 = vmatpush1.msra.mxu0 0.0
        %9845 = vmatprep.subr.mxu0 0.0
        %9846 = vmatpush1.msra.mxu0 0.0
        %9847 = vmatprep.subr.mxu0 0.0
        %9848 = vmatpush1.msra.mxu0 0.0
        %9849 = vmatprep.subr.mxu0 0.0
        %9850 = vmatpush1.msra.mxu0 0.0
        %9851 = vmatprep.subr.mxu0 0.0
        %9852 = vmatpush1.msra.mxu0 0.0
        %9853 = vmatprep.subr.mxu0 0.0
        %9854 = vmatpush1.msra.mxu0 0.0
        %9855 = vmatprep.subr.mxu0 0.0
        %9856 = vmatpush1.msra.mxu0 0.0
        %9857 = vmatprep.subr.mxu0 0.0
        %9858 = vmatpush1.msra.mxu0 0.0
        %9859 = vmatprep.subr.mxu0 0.0
        %9860 = vmatpush1.msra.mxu0 0.0
        %9861 = vmatprep.subr.mxu0 0.0
        %9862 = vmatpush1.msra.mxu0 0.0
        %9863 = vmatprep.subr.mxu0 0.0
        %9864 = vmatpush1.msra.mxu0 0.0
        %9865 = vmatprep.subr.mxu0 0.0
        %9866 = vmatpush1.msra.mxu0 0.0
        %9867 = vmatprep.subr.mxu0 0.0
        %9868 = vmatpush1.msra.mxu0 0.0
        %9869 = vmatprep.subr.mxu0 0.0
        %9870 = vmatpush1.msra.mxu0 0.0
        %9871 = vmatprep.subr.mxu0 0.0
        %9872 = vmatpush1.msra.mxu0 0.0
        %9873 = vmatprep.subr.mxu0 0.0
        %9874 = vmatpush1.msra.mxu0 0.0
        %9875 = vmatprep.subr.mxu0 0.0
        %9876 = vmatpush1.msra.mxu0 0.0
        %9877 = vmatprep.subr.mxu0 0.0
        %9878 = vmatpush1.msra.mxu0 0.0
        %9879 = vmatprep.subr.mxu0 0.0
        %9880 = vmatpush1.msra.mxu0 0.0
        %9881 = vmatprep.subr.mxu0 0.0
        %9882 = vmatpush1.msra.mxu0 0.0
        %9883 = vmatprep.subr.mxu0 0.0
        %9884 = vmatpush1.msra.mxu0 0.0
        %9885 = vmatprep.mubr.f32.mxu0 0.0
        %9886 = vmatmul.mubr.f32.gmra.mrb[0].mxu0 %v9464
        %v9887 = vpop.f32.mrb[0].mxu0
        %v9888 = vadd.f32 %v9462, %v9887
        %v9889 = vpop.f32.mrb[0].mxu0
        %v9890 = vadd.f32 %v9462, %v9889
        %9891 = vdwg.mxu0
        %9892 = vmatprep.subr.mxu0 %v9337
        %9893 = vmatpush1.msra.mxu0 %v9336
        %9894 = vmatprep.subr.mxu0 %v9369
        %9895 = vmatpush1.msra.mxu0 %v9368
        %9896 = vmatprep.subr.mxu0 %v9401
        %9897 = vmatpush1.msra.mxu0 %v9400
        %9898 = vmatprep.subr.mxu0 %v9433
        %9899 = vmatpush1.msra.mxu0 %v9432
        %9900 = vmatprep.subr.mxu0 0.0
        %9901 = vmatpush1.msra.mxu0 0.0
        %9902 = vmatprep.subr.mxu0 0.0
        %9903 = vmatpush1.msra.mxu0 0.0
        %9904 = vmatprep.subr.mxu0 0.0
        %9905 = vmatpush1.msra.mxu0 0.0
        %9906 = vmatprep.subr.mxu0 0.0
        %9907 = vmatpush1.msra.mxu0 0.0
        %9908 = vmatprep.subr.mxu0 0.0
        %9909 = vmatpush1.msra.mxu0 0.0
        %9910 = vmatprep.subr.mxu0 0.0
        %9911 = vmatpush1.msra.mxu0 0.0
        %9912 = vmatprep.subr.mxu0 0.0
        %9913 = vmatpush1.msra.mxu0 0.0
        %9914 = vmatprep.subr.mxu0 0.0
        %9915 = vmatpush1.msra.mxu0 0.0
        %9916 = vmatprep.subr.mxu0 0.0
        %9917 = vmatpush1.msra.mxu0 0.0
        %9918 = vmatprep.subr.mxu0 0.0
        %9919 = vmatpush1.msra.mxu0 0.0
        %9920 = vmatprep.subr.mxu0 0.0
        %9921 = vmatpush1.msra.mxu0 0.0
        %9922 = vmatprep.subr.mxu0 0.0
        %9923 = vmatpush1.msra.mxu0 0.0
        %9924 = vmatprep.subr.mxu0 0.0
        %9925 = vmatpush1.msra.mxu0 0.0
        %9926 = vmatprep.subr.mxu0 0.0
        %9927 = vmatpush1.msra.mxu0 0.0
        %9928 = vmatprep.subr.mxu0 0.0
        %9929 = vmatpush1.msra.mxu0 0.0
        %9930 = vmatprep.subr.mxu0 0.0
        %9931 = vmatpush1.msra.mxu0 0.0
        %9932 = vmatprep.subr.mxu0 0.0
        %9933 = vmatpush1.msra.mxu0 0.0
        %9934 = vmatprep.subr.mxu0 0.0
        %9935 = vmatpush1.msra.mxu0 0.0
        %9936 = vmatprep.subr.mxu0 0.0
        %9937 = vmatpush1.msra.mxu0 0.0
        %9938 = vmatprep.subr.mxu0 0.0
        %9939 = vmatpush1.msra.mxu0 0.0
        %9940 = vmatprep.subr.mxu0 0.0
        %9941 = vmatpush1.msra.mxu0 0.0
        %9942 = vmatprep.subr.mxu0 0.0
        %9943 = vmatpush1.msra.mxu0 0.0
        %9944 = vmatprep.subr.mxu0 0.0
        %9945 = vmatpush1.msra.mxu0 0.0
        %9946 = vmatprep.subr.mxu0 0.0
        %9947 = vmatpush1.msra.mxu0 0.0
        %9948 = vmatprep.subr.mxu0 0.0
        %9949 = vmatpush1.msra.mxu0 0.0
        %9950 = vmatprep.subr.mxu0 0.0
        %9951 = vmatpush1.msra.mxu0 0.0
        %9952 = vmatprep.subr.mxu0 0.0
        %9953 = vmatpush1.msra.mxu0 0.0
        %9954 = vmatprep.subr.mxu0 0.0
        %9955 = vmatpush1.msra.mxu0 0.0
        %9956 = vmatprep.mubr.f32.mxu0 0.0
        %9957 = vmatmul.mubr.f32.gmra.mrb[0].mxu0 %v9464
        %v9958 = vpop.f32.mrb[0].mxu0
        %v9959 = vadd.f32 %v9462, %v9958
        %v9960 = vpop.f32.mrb[0].mxu0
        %v9961 = vadd.f32 %v9462, %v9960
        %9962 = vdwg.mxu0
        %9963 = vmatprep.subr.mxu0 %v9339
        %9964 = vmatpush1.msra.mxu0 %v9338
        %9965 = vmatprep.subr.mxu0 %v9371
        %9966 = vmatpush1.msra.mxu0 %v9370
        %9967 = vmatprep.subr.mxu0 %v9403
        %9968 = vmatpush1.msra.mxu0 %v9402
        %9969 = vmatprep.subr.mxu0 %v9435
        %9970 = vmatpush1.msra.mxu0 %v9434
        %9971 = vmatprep.subr.mxu0 0.0
        %9972 = vmatpush1.msra.mxu0 0.0
        %9973 = vmatprep.subr.mxu0 0.0
        %9974 = vmatpush1.msra.mxu0 0.0
        %9975 = vmatprep.subr.mxu0 0.0
        %9976 = vmatpush1.msra.mxu0 0.0
        %9977 = vmatprep.subr.mxu0 0.0
        %9978 = vmatpush1.msra.mxu0 0.0
        %9979 = vmatprep.subr.mxu0 0.0
        %9980 = vmatpush1.msra.mxu0 0.0
        %9981 = vmatprep.subr.mxu0 0.0
        %9982 = vmatpush1.msra.mxu0 0.0
        %9983 = vmatprep.subr.mxu0 0.0
        %9984 = vmatpush1.msra.mxu0 0.0
        %9985 = vmatprep.subr.mxu0 0.0
        %9986 = vmatpush1.msra.mxu0 0.0
        %9987 = vmatprep.subr.mxu0 0.0
        %9988 = vmatpush1.msra.mxu0 0.0
        %9989 = vmatprep.subr.mxu0 0.0
        %9990 = vmatpush1.msra.mxu0 0.0
        %9991 = vmatprep.subr.mxu0 0.0
        %9992 = vmatpush1.msra.mxu0 0.0
        %9993 = vmatprep.subr.mxu0 0.0
        %9994 = vmatpush1.msra.mxu0 0.0
        %9995 = vmatprep.subr.mxu0 0.0
        %9996 = vmatpush1.msra.mxu0 0.0
        %9997 = vmatprep.subr.mxu0 0.0
        %9998 = vmatpush1.msra.mxu0 0.0
        %9999 = vmatprep.subr.mxu0 0.0
        %10000 = vmatpush1.msra.mxu0 0.0
        %10001 = vmatprep.subr.mxu0 0.0
        %10002 = vmatpush1.msra.mxu0 0.0
        %10003 = vmatprep.subr.mxu0 0.0
        %10004 = vmatpush1.msra.mxu0 0.0
        %10005 = vmatprep.subr.mxu0 0.0
        %10006 = vmatpush1.msra.mxu0 0.0
        %10007 = vmatprep.subr.mxu0 0.0
        %10008 = vmatpush1.msra.mxu0 0.0
        %10009 = vmatprep.subr.mxu0 0.0
        %10010 = vmatpush1.msra.mxu0 0.0
        %10011 = vmatprep.subr.mxu0 0.0
        %10012 = vmatpush1.msra.mxu0 0.0
        %10013 = vmatprep.subr.mxu0 0.0
        %10014 = vmatpush1.msra.mxu0 0.0
        %10015 = vmatprep.subr.mxu0 0.0
        %10016 = vmatpush1.msra.mxu0 0.0
        %10017 = vmatprep.subr.mxu0 0.0
        %10018 = vmatpush1.msra.mxu0 0.0
        %10019 = vmatprep.subr.mxu0 0.0
        %10020 = vmatpush1.msra.mxu0 0.0
        %10021 = vmatprep.subr.mxu0 0.0
        %10022 = vmatpush1.msra.mxu0 0.0
        %10023 = vmatprep.subr.mxu0 0.0
        %10024 = vmatpush1.msra.mxu0 0.0
        %10025 = vmatprep.subr.mxu0 0.0
        %10026 = vmatpush1.msra.mxu0 0.0
        %10027 = vmatprep.mubr.f32.mxu0 0.0
        %10028 = vmatmul.mubr.f32.gmra.mrb[0].mxu0 %v9464
        %v10029 = vpop.f32.mrb[0].mxu0
        %v10030 = vadd.f32 %v9462, %v10029
        %v10031 = vpop.f32.mrb[0].mxu0
        %v10032 = vadd.f32 %v9462, %v10031
        %10033 = vdwg.mxu0
        %10034 = vmatprep.subr.mxu0 %v9341
        %10035 = vmatpush1.msra.mxu0 %v9340
        %10036 = vmatprep.subr.mxu0 %v9373
        %10037 = vmatpush1.msra.mxu0 %v9372
        %10038 = vmatprep.subr.mxu0 %v9405
        %10039 = vmatpush1.msra.mxu0 %v9404
        %10040 = vmatprep.subr.mxu0 %v9437
        %10041 = vmatpush1.msra.mxu0 %v9436
        %10042 = vmatprep.subr.mxu0 0.0
        %10043 = vmatpush1.msra.mxu0 0.0
        %10044 = vmatprep.subr.mxu0 0.0
        %10045 = vmatpush1.msra.mxu0 0.0
        %10046 = vmatprep.subr.mxu0 0.0
        %10047 = vmatpush1.msra.mxu0 0.0
        %10048 = vmatprep.subr.mxu0 0.0
        %10049 = vmatpush1.msra.mxu0 0.0
        %10050 = vmatprep.subr.mxu0 0.0
        %10051 = vmatpush1.msra.mxu0 0.0
        %10052 = vmatprep.subr.mxu0 0.0
        %10053 = vmatpush1.msra.mxu0 0.0
        %10054 = vmatprep.subr.mxu0 0.0
        %10055 = vmatpush1.msra.mxu0 0.0
        %10056 = vmatprep.subr.mxu0 0.0
        %10057 = vmatpush1.msra.mxu0 0.0
        %10058 = vmatprep.subr.mxu0 0.0
        %10059 = vmatpush1.msra.mxu0 0.0
        %10060 = vmatprep.subr.mxu0 0.0
        %10061 = vmatpush1.msra.mxu0 0.0
        %10062 = vmatprep.subr.mxu0 0.0
        %10063 = vmatpush1.msra.mxu0 0.0
        %10064 = vmatprep.subr.mxu0 0.0
        %10065 = vmatpush1.msra.mxu0 0.0
        %10066 = vmatprep.subr.mxu0 0.0
        %10067 = vmatpush1.msra.mxu0 0.0
        %10068 = vmatprep.subr.mxu0 0.0
        %10069 = vmatpush1.msra.mxu0 0.0
        %10070 = vmatprep.subr.mxu0 0.0
        %10071 = vmatpush1.msra.mxu0 0.0
        %10072 = vmatprep.subr.mxu0 0.0
        %10073 = vmatpush1.msra.mxu0 0.0
        %10074 = vmatprep.subr.mxu0 0.0
        %10075 = vmatpush1.msra.mxu0 0.0
        %10076 = vmatprep.subr.mxu0 0.0
        %10077 = vmatpush1.msra.mxu0 0.0
        %10078 = vmatprep.subr.mxu0 0.0
        %10079 = vmatpush1.msra.mxu0 0.0
        %10080 = vmatprep.subr.mxu0 0.0
        %10081 = vmatpush1.msra.mxu0 0.0
        %10082 = vmatprep.subr.mxu0 0.0
        %10083 = vmatpush1.msra.mxu0 0.0
        %10084 = vmatprep.subr.mxu0 0.0
        %10085 = vmatpush1.msra.mxu0 0.0
        %10086 = vmatprep.subr.mxu0 0.0
        %10087 = vmatpush1.msra.mxu0 0.0
        %10088 = vmatprep.subr.mxu0 0.0
        %10089 = vmatpush1.msra.mxu0 0.0
        %10090 = vmatprep.subr.mxu0 0.0
        %10091 = vmatpush1.msra.mxu0 0.0
        %10092 = vmatprep.subr.mxu0 0.0
        %10093 = vmatpush1.msra.mxu0 0.0
        %10094 = vmatprep.subr.mxu0 0.0
        %10095 = vmatpush1.msra.mxu0 0.0
        %10096 = vmatprep.subr.mxu0 0.0
        %10097 = vmatpush1.msra.mxu0 0.0
        %10098 = vmatprep.mubr.f32.mxu0 0.0
        %10099 = vmatmul.mubr.f32.gmra.mrb[0].mxu0 %v9464
        %v10100 = vpop.f32.mrb[0].mxu0
        %v10101 = vadd.f32 %v9462, %v10100
        %v10102 = vpop.f32.mrb[0].mxu0
        %v10103 = vadd.f32 %v9462, %v10102
        %10104 = vdwg.mxu0
        %10105 = vmatprep.subr.mxu0 %v9343
        %10106 = vmatpush1.msra.mxu0 %v9342
        %10107 = vmatprep.subr.mxu0 %v9375
        %10108 = vmatpush1.msra.mxu0 %v9374
        %10109 = vmatprep.subr.mxu0 %v9407
        %10110 = vmatpush1.msra.mxu0 %v9406
        %10111 = vmatprep.subr.mxu0 %v9439
        %10112 = vmatpush1.msra.mxu0 %v9438
        %10113 = vmatprep.subr.mxu0 0.0
        %10114 = vmatpush1.msra.mxu0 0.0
        %10115 = vmatprep.subr.mxu0 0.0
        %10116 = vmatpush1.msra.mxu0 0.0
        %10117 = vmatprep.subr.mxu0 0.0
        %10118 = vmatpush1.msra.mxu0 0.0
        %10119 = vmatprep.subr.mxu0 0.0
        %10120 = vmatpush1.msra.mxu0 0.0
        %10121 = vmatprep.subr.mxu0 0.0
        %10122 = vmatpush1.msra.mxu0 0.0
        %10123 = vmatprep.subr.mxu0 0.0
        %10124 = vmatpush1.msra.mxu0 0.0
        %10125 = vmatprep.subr.mxu0 0.0
        %10126 = vmatpush1.msra.mxu0 0.0
        %10127 = vmatprep.subr.mxu0 0.0
        %10128 = vmatpush1.msra.mxu0 0.0
        %10129 = vmatprep.subr.mxu0 0.0
        %10130 = vmatpush1.msra.mxu0 0.0
        %10131 = vmatprep.subr.mxu0 0.0
        %10132 = vmatpush1.msra.mxu0 0.0
        %10133 = vmatprep.subr.mxu0 0.0
        %10134 = vmatpush1.msra.mxu0 0.0
        %10135 = vmatprep.subr.mxu0 0.0
        %10136 = vmatpush1.msra.mxu0 0.0
        %10137 = vmatprep.subr.mxu0 0.0
        %10138 = vmatpush1.msra.mxu0 0.0
        %10139 = vmatprep.subr.mxu0 0.0
        %10140 = vmatpush1.msra.mxu0 0.0
        %10141 = vmatprep.subr.mxu0 0.0
        %10142 = vmatpush1.msra.mxu0 0.0
        %10143 = vmatprep.subr.mxu0 0.0
        %10144 = vmatpush1.msra.mxu0 0.0
        %10145 = vmatprep.subr.mxu0 0.0
        %10146 = vmatpush1.msra.mxu0 0.0
        %10147 = vmatprep.subr.mxu0 0.0
        %10148 = vmatpush1.msra.mxu0 0.0
        %10149 = vmatprep.subr.mxu0 0.0
        %10150 = vmatpush1.msra.mxu0 0.0
        %10151 = vmatprep.subr.mxu0 0.0
        %10152 = vmatpush1.msra.mxu0 0.0
        %10153 = vmatprep.subr.mxu0 0.0
        %10154 = vmatpush1.msra.mxu0 0.0
        %10155 = vmatprep.subr.mxu0 0.0
        %10156 = vmatpush1.msra.mxu0 0.0
        %10157 = vmatprep.subr.mxu0 0.0
        %10158 = vmatpush1.msra.mxu0 0.0
        %10159 = vmatprep.subr.mxu0 0.0
        %10160 = vmatpush1.msra.mxu0 0.0
        %10161 = vmatprep.subr.mxu0 0.0
        %10162 = vmatpush1.msra.mxu0 0.0
        %10163 = vmatprep.subr.mxu0 0.0
        %10164 = vmatpush1.msra.mxu0 0.0
        %10165 = vmatprep.subr.mxu0 0.0
        %10166 = vmatpush1.msra.mxu0 0.0
        %10167 = vmatprep.subr.mxu0 0.0
        %10168 = vmatpush1.msra.mxu0 0.0
        %10169 = vmatprep.mubr.f32.mxu0 0.0
        %10170 = vmatmul.mubr.f32.gmra.mrb[0].mxu0 %v9464
        %v10171 = vpop.f32.mrb[0].mxu0
        %v10172 = vadd.f32 %v9462, %v10171
        %v10173 = vpop.f32.mrb[0].mxu0
        %v10174 = vadd.f32 %v9462, %v10173
        %10175 = vdwg.mxu0
        %10176 = vmatprep.subr.mxu0 %v9345
        %10177 = vmatpush1.msra.mxu0 %v9344
        %10178 = vmatprep.subr.mxu0 %v9377
        %10179 = vmatpush1.msra.mxu0 %v9376
        %10180 = vmatprep.subr.mxu0 %v9409
        %10181 = vmatpush1.msra.mxu0 %v9408
        %10182 = vmatprep.subr.mxu0 %v9441
        %10183 = vmatpush1.msra.mxu0 %v9440
        %10184 = vmatprep.subr.mxu0 0.0
        %10185 = vmatpush1.msra.mxu0 0.0
        %10186 = vmatprep.subr.mxu0 0.0
        %10187 = vmatpush1.msra.mxu0 0.0
        %10188 = vmatprep.subr.mxu0 0.0
        %10189 = vmatpush1.msra.mxu0 0.0
        %10190 = vmatprep.subr.mxu0 0.0
        %10191 = vmatpush1.msra.mxu0 0.0
        %10192 = vmatprep.subr.mxu0 0.0
        %10193 = vmatpush1.msra.mxu0 0.0
        %10194 = vmatprep.subr.mxu0 0.0
        %10195 = vmatpush1.msra.mxu0 0.0
        %10196 = vmatprep.subr.mxu0 0.0
        %10197 = vmatpush1.msra.mxu0 0.0
        %10198 = vmatprep.subr.mxu0 0.0
        %10199 = vmatpush1.msra.mxu0 0.0
        %10200 = vmatprep.subr.mxu0 0.0
        %10201 = vmatpush1.msra.mxu0 0.0
        %10202 = vmatprep.subr.mxu0 0.0
        %10203 = vmatpush1.msra.mxu0 0.0
        %10204 = vmatprep.subr.mxu0 0.0
        %10205 = vmatpush1.msra.mxu0 0.0
        %10206 = vmatprep.subr.mxu0 0.0
        %10207 = vmatpush1.msra.mxu0 0.0
        %10208 = vmatprep.subr.mxu0 0.0
        %10209 = vmatpush1.msra.mxu0 0.0
        %10210 = vmatprep.subr.mxu0 0.0
        %10211 = vmatpush1.msra.mxu0 0.0
        %10212 = vmatprep.subr.mxu0 0.0
        %10213 = vmatpush1.msra.mxu0 0.0
        %10214 = vmatprep.subr.mxu0 0.0
        %10215 = vmatpush1.msra.mxu0 0.0
        %10216 = vmatprep.subr.mxu0 0.0
        %10217 = vmatpush1.msra.mxu0 0.0
        %10218 = vmatprep.subr.mxu0 0.0
        %10219 = vmatpush1.msra.mxu0 0.0
        %10220 = vmatprep.subr.mxu0 0.0
        %10221 = vmatpush1.msra.mxu0 0.0
        %10222 = vmatprep.subr.mxu0 0.0
        %10223 = vmatpush1.msra.mxu0 0.0
        %10224 = vmatprep.subr.mxu0 0.0
        %10225 = vmatpush1.msra.mxu0 0.0
        %10226 = vmatprep.subr.mxu0 0.0
        %10227 = vmatpush1.msra.mxu0 0.0
        %10228 = vmatprep.subr.mxu0 0.0
        %10229 = vmatpush1.msra.mxu0 0.0
        %10230 = vmatprep.subr.mxu0 0.0
        %10231 = vmatpush1.msra.mxu0 0.0
        %10232 = vmatprep.subr.mxu0 0.0
        %10233 = vmatpush1.msra.mxu0 0.0
        %10234 = vmatprep.subr.mxu0 0.0
        %10235 = vmatpush1.msra.mxu0 0.0
        %10236 = vmatprep.subr.mxu0 0.0
        %10237 = vmatpush1.msra.mxu0 0.0
        %10238 = vmatprep.subr.mxu0 0.0
        %10239 = vmatpush1.msra.mxu0 0.0
        %10240 = vmatprep.mubr.f32.mxu0 0.0
        %10241 = vmatmul.mubr.f32.gmra.mrb[0].mxu0 %v9464
        %v10242 = vpop.f32.mrb[0].mxu0
        %v10243 = vadd.f32 %v9462, %v10242
        %v10244 = vpop.f32.mrb[0].mxu0
        %v10245 = vadd.f32 %v9462, %v10244
        %10246 = vdwg.mxu0
        %10247 = vmatprep.subr.mxu0 %v9347
        %10248 = vmatpush1.msra.mxu0 %v9346
        %10249 = vmatprep.subr.mxu0 %v9379
        %10250 = vmatpush1.msra.mxu0 %v9378
        %10251 = vmatprep.subr.mxu0 %v9411
        %10252 = vmatpush1.msra.mxu0 %v9410
        %10253 = vmatprep.subr.mxu0 %v9443
        %10254 = vmatpush1.msra.mxu0 %v9442
        %10255 = vmatprep.subr.mxu0 0.0
        %10256 = vmatpush1.msra.mxu0 0.0
        %10257 = vmatprep.subr.mxu0 0.0
        %10258 = vmatpush1.msra.mxu0 0.0
        %10259 = vmatprep.subr.mxu0 0.0
        %10260 = vmatpush1.msra.mxu0 0.0
        %10261 = vmatprep.subr.mxu0 0.0
        %10262 = vmatpush1.msra.mxu0 0.0
        %10263 = vmatprep.subr.mxu0 0.0
        %10264 = vmatpush1.msra.mxu0 0.0
        %10265 = vmatprep.subr.mxu0 0.0
        %10266 = vmatpush1.msra.mxu0 0.0
        %10267 = vmatprep.subr.mxu0 0.0
        %10268 = vmatpush1.msra.mxu0 0.0
        %10269 = vmatprep.subr.mxu0 0.0
        %10270 = vmatpush1.msra.mxu0 0.0
        %10271 = vmatprep.subr.mxu0 0.0
        %10272 = vmatpush1.msra.mxu0 0.0
        %10273 = vmatprep.subr.mxu0 0.0
        %10274 = vmatpush1.msra.mxu0 0.0
        %10275 = vmatprep.subr.mxu0 0.0
        %10276 = vmatpush1.msra.mxu0 0.0
        %10277 = vmatprep.subr.mxu0 0.0
        %10278 = vmatpush1.msra.mxu0 0.0
        %10279 = vmatprep.subr.mxu0 0.0
        %10280 = vmatpush1.msra.mxu0 0.0
        %10281 = vmatprep.subr.mxu0 0.0
        %10282 = vmatpush1.msra.mxu0 0.0
        %10283 = vmatprep.subr.mxu0 0.0
        %10284 = vmatpush1.msra.mxu0 0.0
        %10285 = vmatprep.subr.mxu0 0.0
        %10286 = vmatpush1.msra.mxu0 0.0
        %10287 = vmatprep.subr.mxu0 0.0
        %10288 = vmatpush1.msra.mxu0 0.0
        %10289 = vmatprep.subr.mxu0 0.0
        %10290 = vmatpush1.msra.mxu0 0.0
        %10291 = vmatprep.subr.mxu0 0.0
        %10292 = vmatpush1.msra.mxu0 0.0
        %10293 = vmatprep.subr.mxu0 0.0
        %10294 = vmatpush1.msra.mxu0 0.0
        %10295 = vmatprep.subr.mxu0 0.0
        %10296 = vmatpush1.msra.mxu0 0.0
        %10297 = vmatprep.subr.mxu0 0.0
        %10298 = vmatpush1.msra.mxu0 0.0
        %10299 = vmatprep.subr.mxu0 0.0
        %10300 = vmatpush1.msra.mxu0 0.0
        %10301 = vmatprep.subr.mxu0 0.0
        %10302 = vmatpush1.msra.mxu0 0.0
        %10303 = vmatprep.subr.mxu0 0.0
        %10304 = vmatpush1.msra.mxu0 0.0
        %10305 = vmatprep.subr.mxu0 0.0
        %10306 = vmatpush1.msra.mxu0 0.0
        %10307 = vmatprep.subr.mxu0 0.0
        %10308 = vmatpush1.msra.mxu0 0.0
        %10309 = vmatprep.subr.mxu0 0.0
        %10310 = vmatpush1.msra.mxu0 0.0
        %10311 = vmatprep.mubr.f32.mxu0 0.0
        %10312 = vmatmul.mubr.f32.gmra.mrb[0].mxu0 %v9464
        %v10313 = vpop.f32.mrb[0].mxu0
        %v10314 = vadd.f32 %v9462, %v10313
        %v10315 = vpop.f32.mrb[0].mxu0
        %v10316 = vadd.f32 %v9462, %v10315
        %10317 = vdwg.mxu0
        %10318 = vmatprep.subr.mxu0 %v9349
        %10319 = vmatpush1.msra.mxu0 %v9348
        %10320 = vmatprep.subr.mxu0 %v9381
        %10321 = vmatpush1.msra.mxu0 %v9380
        %10322 = vmatprep.subr.mxu0 %v9413
        %10323 = vmatpush1.msra.mxu0 %v9412
        %10324 = vmatprep.subr.mxu0 %v9445
        %10325 = vmatpush1.msra.mxu0 %v9444
        %10326 = vmatprep.subr.mxu0 0.0
        %10327 = vmatpush1.msra.mxu0 0.0
        %10328 = vmatprep.subr.mxu0 0.0
        %10329 = vmatpush1.msra.mxu0 0.0
        %10330 = vmatprep.subr.mxu0 0.0
        %10331 = vmatpush1.msra.mxu0 0.0
        %10332 = vmatprep.subr.mxu0 0.0
        %10333 = vmatpush1.msra.mxu0 0.0
        %10334 = vmatprep.subr.mxu0 0.0
        %10335 = vmatpush1.msra.mxu0 0.0
        %10336 = vmatprep.subr.mxu0 0.0
        %10337 = vmatpush1.msra.mxu0 0.0
        %10338 = vmatprep.subr.mxu0 0.0
        %10339 = vmatpush1.msra.mxu0 0.0
        %10340 = vmatprep.subr.mxu0 0.0
        %10341 = vmatpush1.msra.mxu0 0.0
        %10342 = vmatprep.subr.mxu0 0.0
        %10343 = vmatpush1.msra.mxu0 0.0
        %10344 = vmatprep.subr.mxu0 0.0
        %10345 = vmatpush1.msra.mxu0 0.0
        %10346 = vmatprep.subr.mxu0 0.0
        %10347 = vmatpush1.msra.mxu0 0.0
        %10348 = vmatprep.subr.mxu0 0.0
        %10349 = vmatpush1.msra.mxu0 0.0
        %10350 = vmatprep.subr.mxu0 0.0
        %10351 = vmatpush1.msra.mxu0 0.0
        %10352 = vmatprep.subr.mxu0 0.0
        %10353 = vmatpush1.msra.mxu0 0.0
        %10354 = vmatprep.subr.mxu0 0.0
        %10355 = vmatpush1.msra.mxu0 0.0
        %10356 = vmatprep.subr.mxu0 0.0
        %10357 = vmatpush1.msra.mxu0 0.0
        %10358 = vmatprep.subr.mxu0 0.0
        %10359 = vmatpush1.msra.mxu0 0.0
        %10360 = vmatprep.subr.mxu0 0.0
        %10361 = vmatpush1.msra.mxu0 0.0
        %10362 = vmatprep.subr.mxu0 0.0
        %10363 = vmatpush1.msra.mxu0 0.0
        %10364 = vmatprep.subr.mxu0 0.0
        %10365 = vmatpush1.msra.mxu0 0.0
        %10366 = vmatprep.subr.mxu0 0.0
        %10367 = vmatpush1.msra.mxu0 0.0
        %10368 = vmatprep.subr.mxu0 0.0
        %10369 = vmatpush1.msra.mxu0 0.0
        %10370 = vmatprep.subr.mxu0 0.0
        %10371 = vmatpush1.msra.mxu0 0.0
        %10372 = vmatprep.subr.mxu0 0.0
        %10373 = vmatpush1.msra.mxu0 0.0
        %10374 = vmatprep.subr.mxu0 0.0
        %10375 = vmatpush1.msra.mxu0 0.0
        %10376 = vmatprep.subr.mxu0 0.0
        %10377 = vmatpush1.msra.mxu0 0.0
        %10378 = vmatprep.subr.mxu0 0.0
        %10379 = vmatpush1.msra.mxu0 0.0
        %10380 = vmatprep.subr.mxu0 0.0
        %10381 = vmatpush1.msra.mxu0 0.0
        %10382 = vmatprep.mubr.f32.mxu0 0.0
        %10383 = vmatmul.mubr.f32.gmra.mrb[0].mxu0 %v9464
        %v10384 = vpop.f32.mrb[0].mxu0
        %v10385 = vadd.f32 %v9462, %v10384
        %v10386 = vpop.f32.mrb[0].mxu0
        %v10387 = vadd.f32 %v9462, %v10386
        %10388 = vdwg.mxu0
        %10389 = vmatprep.subr.mxu0 %v9351
        %10390 = vmatpush1.msra.mxu0 %v9350
        %10391 = vmatprep.subr.mxu0 %v9383
        %10392 = vmatpush1.msra.mxu0 %v9382
        %10393 = vmatprep.subr.mxu0 %v9415
        %10394 = vmatpush1.msra.mxu0 %v9414
        %10395 = vmatprep.subr.mxu0 %v9447
        %10396 = vmatpush1.msra.mxu0 %v9446
        %10397 = vmatprep.subr.mxu0 0.0
        %10398 = vmatpush1.msra.mxu0 0.0
        %10399 = vmatprep.subr.mxu0 0.0
        %10400 = vmatpush1.msra.mxu0 0.0
        %10401 = vmatprep.subr.mxu0 0.0
        %10402 = vmatpush1.msra.mxu0 0.0
        %10403 = vmatprep.subr.mxu0 0.0
        %10404 = vmatpush1.msra.mxu0 0.0
        %10405 = vmatprep.subr.mxu0 0.0
        %10406 = vmatpush1.msra.mxu0 0.0
        %10407 = vmatprep.subr.mxu0 0.0
        %10408 = vmatpush1.msra.mxu0 0.0
        %10409 = vmatprep.subr.mxu0 0.0
        %10410 = vmatpush1.msra.mxu0 0.0
        %10411 = vmatprep.subr.mxu0 0.0
        %10412 = vmatpush1.msra.mxu0 0.0
        %10413 = vmatprep.subr.mxu0 0.0
        %10414 = vmatpush1.msra.mxu0 0.0
        %10415 = vmatprep.subr.mxu0 0.0
        %10416 = vmatpush1.msra.mxu0 0.0
        %10417 = vmatprep.subr.mxu0 0.0
        %10418 = vmatpush1.msra.mxu0 0.0
        %10419 = vmatprep.subr.mxu0 0.0
        %10420 = vmatpush1.msra.mxu0 0.0
        %10421 = vmatprep.subr.mxu0 0.0
        %10422 = vmatpush1.msra.mxu0 0.0
        %10423 = vmatprep.subr.mxu0 0.0
        %10424 = vmatpush1.msra.mxu0 0.0
        %10425 = vmatprep.subr.mxu0 0.0
        %10426 = vmatpush1.msra.mxu0 0.0
        %10427 = vmatprep.subr.mxu0 0.0
        %10428 = vmatpush1.msra.mxu0 0.0
        %10429 = vmatprep.subr.mxu0 0.0
        %10430 = vmatpush1.msra.mxu0 0.0
        %10431 = vmatprep.subr.mxu0 0.0
        %10432 = vmatpush1.msra.mxu0 0.0
        %10433 = vmatprep.subr.mxu0 0.0
        %10434 = vmatpush1.msra.mxu0 0.0
        %10435 = vmatprep.subr.mxu0 0.0
        %10436 = vmatpush1.msra.mxu0 0.0
        %10437 = vmatprep.subr.mxu0 0.0
        %10438 = vmatpush1.msra.mxu0 0.0
        %10439 = vmatprep.subr.mxu0 0.0
        %10440 = vmatpush1.msra.mxu0 0.0
        %10441 = vmatprep.subr.mxu0 0.0
        %10442 = vmatpush1.msra.mxu0 0.0
        %10443 = vmatprep.subr.mxu0 0.0
        %10444 = vmatpush1.msra.mxu0 0.0
        %10445 = vmatprep.subr.mxu0 0.0
        %10446 = vmatpush1.msra.mxu0 0.0
        %10447 = vmatprep.subr.mxu0 0.0
        %10448 = vmatpush1.msra.mxu0 0.0
        %10449 = vmatprep.subr.mxu0 0.0
        %10450 = vmatpush1.msra.mxu0 0.0
        %10451 = vmatprep.subr.mxu0 0.0
        %10452 = vmatpush1.msra.mxu0 0.0
        %10453 = vmatprep.mubr.f32.mxu0 0.0
        %10454 = vmatmul.mubr.f32.gmra.mrb[0].mxu0 %v9464
        %v10455 = vpop.f32.mrb[0].mxu0
        %v10456 = vadd.f32 %v9462, %v10455
        %v10457 = vpop.f32.mrb[0].mxu0
        %v10458 = vadd.f32 %v9462, %v10457
        %10459 = vdwg.mxu0
        %10460 = vmatprep.subr.mxu0 %v9353
        %10461 = vmatpush1.msra.mxu0 %v9352
        %10462 = vmatprep.subr.mxu0 %v9385
        %10463 = vmatpush1.msra.mxu0 %v9384
        %10464 = vmatprep.subr.mxu0 %v9417
        %10465 = vmatpush1.msra.mxu0 %v9416
        %10466 = vmatprep.subr.mxu0 %v9449
        %10467 = vmatpush1.msra.mxu0 %v9448
        %10468 = vmatprep.subr.mxu0 0.0
        %10469 = vmatpush1.msra.mxu0 0.0
        %10470 = vmatprep.subr.mxu0 0.0
        %10471 = vmatpush1.msra.mxu0 0.0
        %10472 = vmatprep.subr.mxu0 0.0
        %10473 = vmatpush1.msra.mxu0 0.0
        %10474 = vmatprep.subr.mxu0 0.0
        %10475 = vmatpush1.msra.mxu0 0.0
        %10476 = vmatprep.subr.mxu0 0.0
        %10477 = vmatpush1.msra.mxu0 0.0
        %10478 = vmatprep.subr.mxu0 0.0
        %10479 = vmatpush1.msra.mxu0 0.0
        %10480 = vmatprep.subr.mxu0 0.0
        %10481 = vmatpush1.msra.mxu0 0.0
        %10482 = vmatprep.subr.mxu0 0.0
        %10483 = vmatpush1.msra.mxu0 0.0
        %10484 = vmatprep.subr.mxu0 0.0
        %10485 = vmatpush1.msra.mxu0 0.0
        %10486 = vmatprep.subr.mxu0 0.0
        %10487 = vmatpush1.msra.mxu0 0.0
        %10488 = vmatprep.subr.mxu0 0.0
        %10489 = vmatpush1.msra.mxu0 0.0
        %10490 = vmatprep.subr.mxu0 0.0
        %10491 = vmatpush1.msra.mxu0 0.0
        %10492 = vmatprep.subr.mxu0 0.0
        %10493 = vmatpush1.msra.mxu0 0.0
        %10494 = vmatprep.subr.mxu0 0.0
        %10495 = vmatpush1.msra.mxu0 0.0
        %10496 = vmatprep.subr.mxu0 0.0
        %10497 = vmatpush1.msra.mxu0 0.0
        %10498 = vmatprep.subr.mxu0 0.0
        %10499 = vmatpush1.msra.mxu0 0.0
        %10500 = vmatprep.subr.mxu0 0.0
        %10501 = vmatpush1.msra.mxu0 0.0
        %10502 = vmatprep.subr.mxu0 0.0
        %10503 = vmatpush1.msra.mxu0 0.0
        %10504 = vmatprep.subr.mxu0 0.0
        %10505 = vmatpush1.msra.mxu0 0.0
        %10506 = vmatprep.subr.mxu0 0.0
        %10507 = vmatpush1.msra.mxu0 0.0
        %10508 = vmatprep.subr.mxu0 0.0
        %10509 = vmatpush1.msra.mxu0 0.0
        %10510 = vmatprep.subr.mxu0 0.0
        %10511 = vmatpush1.msra.mxu0 0.0
        %10512 = vmatprep.subr.mxu0 0.0
        %10513 = vmatpush1.msra.mxu0 0.0
        %10514 = vmatprep.subr.mxu0 0.0
        %10515 = vmatpush1.msra.mxu0 0.0
        %10516 = vmatprep.subr.mxu0 0.0
        %10517 = vmatpush1.msra.mxu0 0.0
        %10518 = vmatprep.subr.mxu0 0.0
        %10519 = vmatpush1.msra.mxu0 0.0
        %10520 = vmatprep.subr.mxu0 0.0
        %10521 = vmatpush1.msra.mxu0 0.0
        %10522 = vmatprep.subr.mxu0 0.0
        %10523 = vmatpush1.msra.mxu0 0.0
        %10524 = vmatprep.mubr.f32.mxu0 0.0
        %10525 = vmatmul.mubr.f32.gmra.mrb[0].mxu0 %v9464
        %v10526 = vpop.f32.mrb[0].mxu0
        %v10527 = vadd.f32 %v9462, %v10526
        %v10528 = vpop.f32.mrb[0].mxu0
        %v10529 = vadd.f32 %v9462, %v10528
        %10530 = vdwg.mxu0
        %10531 = vmatprep.subr.mxu0 %v9355
        %10532 = vmatpush1.msra.mxu0 %v9354
        %10533 = vmatprep.subr.mxu0 %v9387
        %10534 = vmatpush1.msra.mxu0 %v9386
        %10535 = vmatprep.subr.mxu0 %v9419
        %10536 = vmatpush1.msra.mxu0 %v9418
        %10537 = vmatprep.subr.mxu0 %v9451
        %10538 = vmatpush1.msra.mxu0 %v9450
        %10539 = vmatprep.subr.mxu0 0.0
        %10540 = vmatpush1.msra.mxu0 0.0
        %10541 = vmatprep.subr.mxu0 0.0
        %10542 = vmatpush1.msra.mxu0 0.0
        %10543 = vmatprep.subr.mxu0 0.0
        %10544 = vmatpush1.msra.mxu0 0.0
        %10545 = vmatprep.subr.mxu0 0.0
        %10546 = vmatpush1.msra.mxu0 0.0
        %10547 = vmatprep.subr.mxu0 0.0
        %10548 = vmatpush1.msra.mxu0 0.0
        %10549 = vmatprep.subr.mxu0 0.0
        %10550 = vmatpush1.msra.mxu0 0.0
        %10551 = vmatprep.subr.mxu0 0.0
        %10552 = vmatpush1.msra.mxu0 0.0
        %10553 = vmatprep.subr.mxu0 0.0
        %10554 = vmatpush1.msra.mxu0 0.0
        %10555 = vmatprep.subr.mxu0 0.0
        %10556 = vmatpush1.msra.mxu0 0.0
        %10557 = vmatprep.subr.mxu0 0.0
        %10558 = vmatpush1.msra.mxu0 0.0
        %10559 = vmatprep.subr.mxu0 0.0
        %10560 = vmatpush1.msra.mxu0 0.0
        %10561 = vmatprep.subr.mxu0 0.0
        %10562 = vmatpush1.msra.mxu0 0.0
        %10563 = vmatprep.subr.mxu0 0.0
        %10564 = vmatpush1.msra.mxu0 0.0
        %10565 = vmatprep.subr.mxu0 0.0
        %10566 = vmatpush1.msra.mxu0 0.0
        %10567 = vmatprep.subr.mxu0 0.0
        %10568 = vmatpush1.msra.mxu0 0.0
        %10569 = vmatprep.subr.mxu0 0.0
        %10570 = vmatpush1.msra.mxu0 0.0
        %10571 = vmatprep.subr.mxu0 0.0
        %10572 = vmatpush1.msra.mxu0 0.0
        %10573 = vmatprep.subr.mxu0 0.0
        %10574 = vmatpush1.msra.mxu0 0.0
        %10575 = vmatprep.subr.mxu0 0.0
        %10576 = vmatpush1.msra.mxu0 0.0
        %10577 = vmatprep.subr.mxu0 0.0
        %10578 = vmatpush1.msra.mxu0 0.0
        %10579 = vmatprep.subr.mxu0 0.0
        %10580 = vmatpush1.msra.mxu0 0.0
        %10581 = vmatprep.subr.mxu0 0.0
        %10582 = vmatpush1.msra.mxu0 0.0
        %10583 = vmatprep.subr.mxu0 0.0
        %10584 = vmatpush1.msra.mxu0 0.0
        %10585 = vmatprep.subr.mxu0 0.0
        %10586 = vmatpush1.msra.mxu0 0.0
        %10587 = vmatprep.subr.mxu0 0.0
        %10588 = vmatpush1.msra.mxu0 0.0
        %10589 = vmatprep.subr.mxu0 0.0
        %10590 = vmatpush1.msra.mxu0 0.0
        %10591 = vmatprep.subr.mxu0 0.0
        %10592 = vmatpush1.msra.mxu0 0.0
        %10593 = vmatprep.subr.mxu0 0.0
        %10594 = vmatpush1.msra.mxu0 0.0
        %10595 = vmatprep.mubr.f32.mxu0 0.0
        %10596 = vmatmul.mubr.f32.gmra.mrb[0].mxu0 %v9464
        %v10597 = vpop.f32.mrb[0].mxu0
        %v10598 = vadd.f32 %v9462, %v10597
        %v10599 = vpop.f32.mrb[0].mxu0
        %v10600 = vadd.f32 %v9462, %v10599
        %10601 = vdwg.mxu0
        %v10634 = vcombine.low %v9533, %v9535
        %v10635 = vcombine.low %v9604, %v9606
        %v10636 = vcombine.low %v9675, %v9677
        %v10637 = vcombine.low %v9746, %v9748
        %v10639 = vunpack.c.l.s4 1966171168
        %v10640 = vunpack.c.0.s8 %v10639
        %v10641 = vlaneseq
        %v10642 = vshrl.u32 %v10641, 7
        %v10643 = vsub.s32 %v10640, %v10642
        %v10644 = vrot.slane %v10634, %v10643
        %v10646 = vunpack.c.l.s4 1966171168
        %v10647 = vunpack.c.0.s8 %v10646
        %v10648 = vlaneseq
        %v10649 = vshrl.u32 %v10648, 7
        %v10650 = vsub.s32 %v10647, %v10649
        %v10651 = vrot.slane %v10635, %v10650
        %v10653 = vunpack.c.l.s4 1966171168
        %v10654 = vunpack.c.0.s8 %v10653
        %v10655 = vlaneseq
        %v10656 = vshrl.u32 %v10655, 7
        %v10657 = vsub.s32 %v10654, %v10656
        %v10658 = vrot.slane %v10636, %v10657
        %v10660 = vunpack.c.l.s4 1966171168
        %v10661 = vunpack.c.0.s8 %v10660
        %v10662 = vlaneseq
        %v10663 = vshrl.u32 %v10662, 7
        %v10664 = vsub.s32 %v10661, %v10663
        %v10665 = vrot.slane %v10637, %v10664
        %v10666 = vcombine.low %v10644, %v10651
        %v10667 = vcombine.low %v10658, %v10665
        %v10669 = vunpack.c.l.s4 1966171168
        %v10670 = vunpack.c.0.s8 %v10669
        %v10671 = vlaneseq
        %v10672 = vshrl.u32 %v10671, 7
        %v10673 = vsub.s32 %v10670, %v10672
        %v10674 = vrot.slane %v10666, %v10673
        %v10676 = vunpack.c.l.s4 1966171168
        %v10677 = vunpack.c.0.s8 %v10676
        %v10678 = vlaneseq
        %v10679 = vshrl.u32 %v10678, 7
        %v10680 = vsub.s32 %v10677, %v10679
        %v10681 = vrot.slane %v10667, %v10680
        %v10682 = vcombine.low %v10674, %v10681
        %v10683 = vcombine.low %v9817, %v9819
        %v10684 = vcombine.low %v9888, %v9890
        %v10685 = vcombine.low %v9959, %v9961
        %v10686 = vcombine.low %v10030, %v10032
        %v10688 = vunpack.c.l.s4 1966171168
        %v10689 = vunpack.c.0.s8 %v10688
        %v10690 = vlaneseq
        %v10691 = vshrl.u32 %v10690, 7
        %v10692 = vsub.s32 %v10689, %v10691
        %v10693 = vrot.slane %v10683, %v10692
        %v10695 = vunpack.c.l.s4 1966171168
        %v10696 = vunpack.c.0.s8 %v10695
        %v10697 = vlaneseq
        %v10698 = vshrl.u32 %v10697, 7
        %v10699 = vsub.s32 %v10696, %v10698
        %v10700 = vrot.slane %v10684, %v10699
        %v10702 = vunpack.c.l.s4 1966171168
        %v10703 = vunpack.c.0.s8 %v10702
        %v10704 = vlaneseq
        %v10705 = vshrl.u32 %v10704, 7
        %v10706 = vsub.s32 %v10703, %v10705
        %v10707 = vrot.slane %v10685, %v10706
        %v10709 = vunpack.c.l.s4 1966171168
        %v10710 = vunpack.c.0.s8 %v10709
        %v10711 = vlaneseq
        %v10712 = vshrl.u32 %v10711, 7
        %v10713 = vsub.s32 %v10710, %v10712
        %v10714 = vrot.slane %v10686, %v10713
        %v10715 = vcombine.low %v10693, %v10700
        %v10716 = vcombine.low %v10707, %v10714
        %v10718 = vunpack.c.l.s4 1966171168
        %v10719 = vunpack.c.0.s8 %v10718
        %v10720 = vlaneseq
        %v10721 = vshrl.u32 %v10720, 7
        %v10722 = vsub.s32 %v10719, %v10721
        %v10723 = vrot.slane %v10715, %v10722
        %v10725 = vunpack.c.l.s4 1966171168
        %v10726 = vunpack.c.0.s8 %v10725
        %v10727 = vlaneseq
        %v10728 = vshrl.u32 %v10727, 7
        %v10729 = vsub.s32 %v10726, %v10728
        %v10730 = vrot.slane %v10716, %v10729
        %v10731 = vcombine.low %v10723, %v10730
        %v10732 = vcombine.low %v10101, %v10103
        %v10733 = vcombine.low %v10172, %v10174
        %v10734 = vcombine.low %v10243, %v10245
        %v10735 = vcombine.low %v10314, %v10316
        %v10737 = vunpack.c.l.s4 1966171168
        %v10738 = vunpack.c.0.s8 %v10737
        %v10739 = vlaneseq
        %v10740 = vshrl.u32 %v10739, 7
        %v10741 = vsub.s32 %v10738, %v10740
        %v10742 = vrot.slane %v10732, %v10741
        %v10744 = vunpack.c.l.s4 1966171168
        %v10745 = vunpack.c.0.s8 %v10744
        %v10746 = vlaneseq
        %v10747 = vshrl.u32 %v10746, 7
        %v10748 = vsub.s32 %v10745, %v10747
        %v10749 = vrot.slane %v10733, %v10748
        %v10751 = vunpack.c.l.s4 1966171168
        %v10752 = vunpack.c.0.s8 %v10751
        %v10753 = vlaneseq
        %v10754 = vshrl.u32 %v10753, 7
        %v10755 = vsub.s32 %v10752, %v10754
        %v10756 = vrot.slane %v10734, %v10755
        %v10758 = vunpack.c.l.s4 1966171168
        %v10759 = vunpack.c.0.s8 %v10758
        %v10760 = vlaneseq
        %v10761 = vshrl.u32 %v10760, 7
        %v10762 = vsub.s32 %v10759, %v10761
        %v10763 = vrot.slane %v10735, %v10762
        %v10764 = vcombine.low %v10742, %v10749
        %v10765 = vcombine.low %v10756, %v10763
        %v10767 = vunpack.c.l.s4 1966171168
        %v10768 = vunpack.c.0.s8 %v10767
        %v10769 = vlaneseq
        %v10770 = vshrl.u32 %v10769, 7
        %v10771 = vsub.s32 %v10768, %v10770
        %v10772 = vrot.slane %v10764, %v10771
        %v10774 = vunpack.c.l.s4 1966171168
        %v10775 = vunpack.c.0.s8 %v10774
        %v10776 = vlaneseq
        %v10777 = vshrl.u32 %v10776, 7
        %v10778 = vsub.s32 %v10775, %v10777
        %v10779 = vrot.slane %v10765, %v10778
        %v10780 = vcombine.low %v10772, %v10779
        %v10781 = vcombine.low %v10385, %v10387
        %v10782 = vcombine.low %v10456, %v10458
        %v10783 = vcombine.low %v10527, %v10529
        %v10784 = vcombine.low %v10598, %v10600
        %v10786 = vunpack.c.l.s4 1966171168
        %v10787 = vunpack.c.0.s8 %v10786
        %v10788 = vlaneseq
        %v10789 = vshrl.u32 %v10788, 7
        %v10790 = vsub.s32 %v10787, %v10789
        %v10791 = vrot.slane %v10781, %v10790
        %v10793 = vunpack.c.l.s4 1966171168
        %v10794 = vunpack.c.0.s8 %v10793
        %v10795 = vlaneseq
        %v10796 = vshrl.u32 %v10795, 7
        %v10797 = vsub.s32 %v10794, %v10796
        %v10798 = vrot.slane %v10782, %v10797
        %v10800 = vunpack.c.l.s4 1966171168
        %v10801 = vunpack.c.0.s8 %v10800
        %v10802 = vlaneseq
        %v10803 = vshrl.u32 %v10802, 7
        %v10804 = vsub.s32 %v10801, %v10803
        %v10805 = vrot.slane %v10783, %v10804
        %v10807 = vunpack.c.l.s4 1966171168
        %v10808 = vunpack.c.0.s8 %v10807
        %v10809 = vlaneseq
        %v10810 = vshrl.u32 %v10809, 7
        %v10811 = vsub.s32 %v10808, %v10810
        %v10812 = vrot.slane %v10784, %v10811
        %v10813 = vcombine.low %v10791, %v10798
        %v10814 = vcombine.low %v10805, %v10812
        %v10816 = vunpack.c.l.s4 1966171168
        %v10817 = vunpack.c.0.s8 %v10816
        %v10818 = vlaneseq
        %v10819 = vshrl.u32 %v10818, 7
        %v10820 = vsub.s32 %v10817, %v10819
        %v10821 = vrot.slane %v10813, %v10820
        %v10823 = vunpack.c.l.s4 1966171168
        %v10824 = vunpack.c.0.s8 %v10823
        %v10825 = vlaneseq
        %v10826 = vshrl.u32 %v10825, 7
        %v10827 = vsub.s32 %v10824, %v10826
        %v10828 = vrot.slane %v10814, %v10827
        %v10829 = vcombine.low %v10821, %v10828
        %10834 = vst [vmem:[%s328] sm:$0xff] %v10682
        %10835 = vst [vmem:[%s328 + $0x8] sm:$0xff] %v10731
        %10836 = vst [vmem:[%s328 + $0x10] sm:$0xff] %v10780
        %10837 = vst [vmem:[%s328 + $0x18] sm:$0xff] %v10829
        %s10838 = sand.u32 %s227, 1
        %s10839 = scalar_lea.sflag [#allocation4], %s10838
        %s10840 = sand.u32 %s227, 1
        %s10841 = smul.addr %s10840, 32
        %s10842 = scalar_lea.vmem [#allocation3], %s10841
        // Predicated region
        $region57: #{tpu_custom_call.1} parent=55 // pred_check
          %p10843 = pneg %p237
        $region58: #{tpu_custom_call.1} parent=55 // pred_check_branch
          %10845 = sbr.rel (%p10843) target = $region60
        $region59: #{tpu_custom_call.1} parent=55 // pred_region
          %s10846 = smul.u32 32, %s25
          %s10848 = ssub.s32 512, 512
          %10849 = vsyncadd %s10839, %s10848
          %s10850 = smul.addr %s10846, 16
          %s10851 = scalar_lea.hbm %s9, %s10850
          %s10853 = sshll.u32 %s10842, 4
          %s10854 = int_to_ptr.vmem [resolvable:$true] %s10853
          %10856 = dma.vmem_to_hbm [thread:$0]  %s10854, 512, %s10851, %s10839
        $region60: #{tpu_custom_call.1} parent=55 // pred_fallthru
          _
      $region56: #{tpu_custom_call.1} parent=5 // pred_fallthru
        _
      %p10857 = scmp.le.s32.totalorder 2, %s20
      // Predicated region
      $region61: #{tpu_custom_call.1} parent=5 // pred_check
        %p10858 = pneg %p10857
      $region62: #{tpu_custom_call.1} parent=5 // pred_check_branch
        %10860 = sbr.rel (%p10858) target = $region64
      $region63: #{tpu_custom_call.1} parent=5 // pred_region
        %s10861 = ssub.s32 %s20, 2
        // Predicated region
        $region65: #{tpu_custom_call.1} parent=63 // pred_check
          %p10862 = pneg %p243
        $region66: #{tpu_custom_call.1} parent=63 // pred_check_branch
          %10864 = sbr.rel (%p10862) target = $region68
        $region67: #{tpu_custom_call.1} parent=63 // pred_region
          %s10865 = sand.u32 %s228, 1
          %s10866 = scalar_lea.sflag [#allocation4], %s10865
          %s10867 = sand.u32 %s228, 1
          %s10868 = smul.addr %s10867, 32
          %s10869 = scalar_lea.vmem [#allocation3], %s10868
          %10870 = dma.done %s10866, 512
        $region68: #{tpu_custom_call.1} parent=63 // pred_fallthru
          _
      $region64: #{tpu_custom_call.1} parent=5 // pred_fallthru
        _
    $region6: #{tpu_custom_call.1} parent=1 // loop_footer
      %s24 = sadd.s32 1, %s20
    $region7: #{tpu_custom_call.1} parent=1 // loop_footer_branch
      %19 = sbr.rel target = $region3
    $region8: #{tpu_custom_call.1} parent=1 // loop_exit
      _
    %10871 = vsyncpa [#allocation4], 1
    %s10872 = scalar_lea.sflag [#allocation4], 1
    %10873 = vsyncpa %s10872, 1

</llo_original>
